<compile_context>
chip_gen: v5e
topology: v5e:2x2
jax: 0.10.0
libtpu: 0.0.40
codegen_flags: <defaults>
</compile_context>

<pallas_src>
import functools

import jax
import jax.numpy as jnp
from jax import lax
from jax.experimental import pallas as pl
from jax.experimental.pallas import tpu as pltpu

jax.config.update("jax_default_matmul_precision", "highest")

WINDOW = 8
N_TOK = WINDOW * WINDOW          # 64 tokens per 8x8 window
EPS = 1e-12                      # F.normalize epsilon
HIGHEST = lax.Precision.HIGHEST


def _round_up(v, m):
    return (v + m - 1) // m * m


# ------------------------------ Pallas kernel ------------------------------
def _make_window_attn_kernel(Cp, TB):
    """Kernel over one (Cp, TB*64) slab = TB windows, channel-major."""
    TBL = TB * N_TOK
    taps = [(dy, dx) for dy in (-1, 0, 1) for dx in (-1, 0, 1)]

    def kernel(x_ref, wqkv_ref, bqkv_ref, wdw_ref, bdw_ref, dwm_ref,
               temp_ref, keep_ref, wproj_ref, bproj_ref, o_ref):
        x = x_ref[...]                                               # (Cp, TBL)

        # ---- 1x1 qkv conv: one lane-dense MXU matmul for all TB windows ----
        qkv = jnp.dot(wqkv_ref[...], x, precision=HIGHEST,
                      preferred_element_type=jnp.float32) + bqkv_ref[...]

        # ---- 3x3 depthwise conv within each 8x8 window --------------------
        # out[c, s] = b[c] + sum_taps w[c, tap] * in[c, s + 8*dy + dx],
        # realised as a static cyclic lane shift (two lane slices concatenated)
        # * static per-lane window-border mask * per-channel tap weight.
        wdw = wdw_ref[...]                                           # (3Cp, 9)
        dwm = dwm_ref[...]                                           # (9, TBL)
        acc = None
        for t, (dy, dx) in enumerate(taps):
            d = WINDOW * dy + dx
            if d == 0:
                term = qkv * wdw[:, t:t + 1]
            else:
                dd = d % TBL
                shifted = jnp.concatenate([qkv[:, dd:], qkv[:, :dd]], axis=1)
                term = (shifted * dwm[t:t + 1, :]) * wdw[:, t:t + 1]
            acc = term if acc is None else acc + term
        conv = acc + bdw_ref[...]                                    # (3Cp, TBL)

        q_all = conv[0:Cp, :]
        k_all = conv[Cp:2 * Cp, :]
        v_all = conv[2 * Cp:3 * Cp, :]

        temp = temp_ref[...]                                         # (Cp, 1)
        keep = keep_ref[...]                                         # (Cp, Cp)

        # ---- per-window transposed (channel) attention ---------------------
        outs = []
        for w in range(TB):
            lo = w * N_TOK
            qw = q_all[:, lo:lo + N_TOK]                             # (Cp, 64)
            kw = k_all[:, lo:lo + N_TOK]
            vw = v_all[:, lo:lo + N_TOK]

            # L2-normalize each channel over its 64 spatial positions (EUP rsqrt)
            qn = qw * lax.rsqrt(jnp.sum(qw * qw, axis=-1, keepdims=True) + EPS)
            kn = kw * lax.rsqrt(jnp.sum(kw * kw, axis=-1, keepdims=True) + EPS)

            # all heads at once: logits for every channel pair, then zero out
            # cross-head / padded-channel probabilities with the keep-mask.
            logits = lax.dot_general(qn, kn, (((1,), (1,)), ((), ())),
                                     precision=HIGHEST,
                                     preferred_element_type=jnp.float32)
            logits = logits * temp                                   # (Cp, Cp)

            m = jnp.max(logits, axis=-1, keepdims=True)
            e = jnp.exp(logits - m) * keep
            s = jnp.sum(e, axis=-1, keepdims=True)
            p = e / s                                                # head-local softmax

            outs.append(jnp.dot(p, vw, precision=HIGHEST,
                                preferred_element_type=jnp.float32))
        attn_out = jnp.concatenate(outs, axis=1)                     # (Cp, TBL)

        # ---- 1x1 output projection, lane-dense store ------------------------
        o_ref[...] = jnp.dot(wproj_ref[...], attn_out, precision=HIGHEST,
                             preferred_element_type=jnp.float32) + bproj_ref[...]

    return kernel


def _window_attention_pallas(X, wqkv_p, bqkv_p, wdw_p, bdw_p, dwmask,
                             temp_rows, keep, wproj_p, bproj_p, Cp, TB):
    TBL = TB * N_TOK
    C3 = 3 * Cp
    total = X.shape[1]
    n_blocks = total // TBL
    const = lambda i: (0, 0)
    return pl.pallas_call(
        _make_window_attn_kernel(Cp, TB),
        out_shape=jax.ShapeDtypeStruct((Cp, total), jnp.float32),
        grid=(n_blocks,),
        in_specs=[
            pl.BlockSpec((Cp, TBL), lambda i: (0, i)),   # x slab (TB windows)
            pl.BlockSpec((C3, Cp), const),               # Wqkv (resident)
            pl.BlockSpec((C3, 1), const),                # bqkv
            pl.BlockSpec((C3, 9), const),                # depthwise weights
            pl.BlockSpec((C3, 1), const),                # depthwise bias
            pl.BlockSpec((9, TBL), const),               # dw edge masks
            pl.BlockSpec((Cp, 1), const),                # per-row temperature
            pl.BlockSpec((Cp, Cp), const),               # block-diag keep mask
            pl.BlockSpec((Cp, Cp), const),               # Wproj
            pl.BlockSpec((Cp, 1), const),                # bproj
        ],
        out_specs=pl.BlockSpec((Cp, TBL), lambda i: (0, i)),
        compiler_params=pltpu.CompilerParams(
            dimension_semantics=("parallel",)),
    )(X, wqkv_p, bqkv_p, wdw_p, bdw_p, dwmask, temp_rows, keep,
      wproj_p, bproj_p)


# ---------------------- Pallas path: layout + padding -----------------------
def _attention_windows_pallas(xw, params, C, num_heads, tb):
    """xw: (B_, C, 64) -> (B_, C, 64) via the Pallas kernel."""
    B_ = xw.shape[0]
    dh = C // num_heads
    dhp = _round_up(dh, 8)
    Cp = num_heads * dhp
    TB = max(2, tb)
    if TB % 2:
        TB += 1                                    # keep lane block % 128 == 0
    f32 = jnp.float32

    # channel embedding C -> Cp (8-aligned head slices); identity when dh%8==0
    c_idx = jnp.arange(C)
    cols = (c_idx // dh) * dhp + (c_idx % dh)
    E = jnp.zeros((C, Cp), f32).at[c_idx, cols].set(1.0)
    E3 = jnp.kron(jnp.eye(3, dtype=f32), E)                    # (3C, 3Cp)

    wqkv_p = E3.T @ params["wqkv"] @ E                         # (3Cp, Cp)
    bqkv_p = (E3.T @ params["bqkv"])[:, None]
    wdw_p = E3.T @ params["wdw"].reshape(3 * C, 9)             # (3Cp, 9)
    bdw_p = (E3.T @ params["bdw"])[:, None]
    wproj_p = E.T @ params["wproj"] @ E                        # (Cp, Cp)
    bproj_p = (E.T @ params["bproj"])[:, None]
    temp_rows = jnp.repeat(params["temperature"].astype(f32), dhp)[:, None]

    # multiplicative keep-mask: keep same-head, valid key-channel entries only
    rows = jnp.arange(Cp)
    same_head = (rows[:, None] // dhp) == (rows[None, :] // dhp)
    valid_key = (rows[None, :] % dhp) < dh
    keep = (same_head & valid_key).astype(f32)                 # (Cp, Cp)

    # per-tap lane validity (zero padding at 8x8 window borders)
    s = jnp.arange(N_TOK)
    yy, xx = s // WINDOW, s % WINDOW
    masks = []
    for dy in (-1, 0, 1):
        for dx in (-1, 0, 1):
            ok = ((yy + dy >= 0) & (yy + dy < WINDOW) &
                  (xx + dx >= 0) & (xx + dx < WINDOW))
            masks.append(ok.astype(f32))
    dwmask = jnp.tile(jnp.stack(masks), (1, TB))               # (9, TB*64)

    # embed channels, pad window count to a multiple of TB, go lane-major
    xw_p = jnp.einsum("cp,bcs->bps", E, xw, precision=HIGHEST)  # (B_, Cp, 64)
    Bp = _round_up(B_, TB)
    if Bp != B_:
        xw_p = jnp.pad(xw_p, ((0, Bp - B_), (0, 0), (0, 0)))
    X = xw_p.transpose(1, 0, 2).reshape(Cp, Bp * N_TOK)        # (Cp, Bp*64)

    Y = _window_attention_pallas(X, wqkv_p, bqkv_p, wdw_p, bdw_p, dwmask,
                                 temp_rows, keep, wproj_p, bproj_p, Cp, TB)

    out = Y.reshape(Cp, Bp, N_TOK).transpose(1, 0, 2)[:B_]     # (B_, Cp, 64)
    return jnp.einsum("cp,bps->bcs", E, out, precision=HIGHEST)  # (B_, C, 64)


# --------------------------- pure-JAX reference -----------------------------
def _attention_windows_ref(xw, params, C, num_heads):
    """Independent XLA implementation of the per-window math (for checking)."""
    B_ = xw.shape[0]
    x4 = xw.reshape(B_, C, WINDOW, WINDOW)
    qkv = jnp.einsum("oc,bchw->bohw", params["wqkv"], x4, precision=HIGHEST) \
        + params["bqkv"][None, :, None, None]
    dn = lax.conv_dimension_numbers(qkv.shape, params["wdw"].shape,
                                    ("NCHW", "OIHW", "NCHW"))
    qkv = lax.conv_general_dilated(qkv, params["wdw"], (1, 1),
                                   ((1, 1), (1, 1)), dimension_numbers=dn,
                                   feature_group_count=3 * C,
                                   precision=HIGHEST) \
        + params["bdw"][None, :, None, None]
    q, k, v = jnp.split(qkv.reshape(B_, 3 * C, N_TOK), 3, axis=1)
    dh = C // num_heads
    q = q.reshape(B_, num_heads, dh, N_TOK)
    k = k.reshape(B_, num_heads, dh, N_TOK)
    v = v.reshape(B_, num_heads, dh, N_TOK)
    q = q * lax.rsqrt(jnp.sum(q * q, -1, keepdims=True) + EPS)
    k = k * lax.rsqrt(jnp.sum(k * k, -1, keepdims=True) + EPS)
    attn = jnp.einsum("bhcs,bhds->bhcd", q, k, precision=HIGHEST)
    attn = attn * params["temperature"][None, :, None, None]
    attn = jax.nn.softmax(attn, axis=-1)
    out = jnp.einsum("bhcd,bhds->bhcs", attn, v,
                     precision=HIGHEST).reshape(B_, C, N_TOK)
    out = jnp.einsum("oc,bcs->bos", params["wproj"], out, precision=HIGHEST) \
        + params["bproj"][None, :, None]
    return out


# ------------------------------ full forward --------------------------------
def attention_forward(x, params, *, num_heads, depth, use_pallas=True, tb=4):
    """x: (B, C, H, W) float32 -> (B, C, H, W).  Mirrors the PyTorch module."""
    B, C, H, W = x.shape
    G = WINDOW
    assert H % G == 0 and W % G == 0, "H, W must be multiples of window_size"
    assert C % num_heads == 0
    shift = G // 2

    if depth % 2:
        x = jnp.roll(x, shift=(-shift, -shift), axis=(2, 3))

    nH, nW = H // G, W // G
    B_ = B * nH * nW

    # window partition: 'b c (h b0) (w b1) -> (b h w) c (b0 b1)'
    xw = x.reshape(B, C, nH, G, nW, G).transpose(0, 2, 4, 1, 3, 5)
    xw = xw.reshape(B_, C, N_TOK)

    if use_pallas:
        out_w = _attention_windows_pallas(xw, params, C, num_heads, tb)
    else:
        out_w = _attention_windows_ref(xw, params, C, num_heads)

    # un-partition windows (project_out is 1x1 / pointwise, so applying it on
    # windows inside the kernel is identical to applying it after un-windowing)
    y = out_w.reshape(B, nH, nW, C, G, G).transpose(0, 3, 1, 4, 2, 5)
    y = y.reshape(B, C, H, W)
    if depth % 2:
        y = jnp.roll(y, shift=(shift, shift), axis=(2, 3))
    return y


# ------------------------------- parameters ---------------------------------
def init_params(key, dim, num_heads):
    ks = jax.random.split(key, 6)
    n = lambda k, s, sc: (sc * jax.random.normal(k, s)).astype(jnp.float32)
    return {
        "wqkv": n(ks[0], (3 * dim, dim), 0.3),          # qkv 1x1 conv
        "bqkv": n(ks[1], (3 * dim,), 0.1),
        "wdw": n(ks[2], (3 * dim, 1, 3, 3), 0.3),       # depthwise 3x3 conv
        "bdw": n(ks[3], (3 * dim,), 0.1),
        "wproj": n(ks[4], (dim, dim), 0.3),             # project_out 1x1 conv
        "bproj": n(ks[5], (dim,), 0.1),
        "temperature": jnp.ones((num_heads,), jnp.float32),
    }


if __name__ == "__main__":
    DIM, HEADS, DEPTH = 32, 4, 1                 # depth=1 exercises the roll path
    B, H, W = 2, 16, 16                          # 8 windows -> grid of 2 (TB=4)

    key = jax.random.PRNGKey(0)
    kx, kp = jax.random.split(key)
    x = jax.random.normal(kx, (B, DIM, H, W), dtype=jnp.float32)
    params = init_params(kp, DIM, HEADS)

    fwd = jax.jit(functools.partial(attention_forward, num_heads=HEADS,
                                    depth=DEPTH, use_pallas=True, tb=4))
    out = jax.block_until_ready(fwd(x, params))

    ref = jax.block_until_ready(
        attention_forward(x, params, num_heads=HEADS, depth=DEPTH,
                          use_pallas=False))

    assert out.shape == (B, DIM, H, W)
    assert bool(jnp.allclose(out, ref, rtol=2e-2, atol=2e-2)), \
        "mismatch vs JAX reference"
    print("KERNEL_OK")
</pallas_src>

<mosaic_0001>
module attributes {stable_mosaic.version = 11 : i64} {
  func.func @kernel(%arg0: i32, %arg1: memref<32x256xf32, #tpu.memory_space<vmem>>, %arg2: memref<96x32xf32, #tpu.memory_space<vmem>>, %arg3: memref<96x1xf32, #tpu.memory_space<vmem>>, %arg4: memref<96x9xf32, #tpu.memory_space<vmem>>, %arg5: memref<96x1xf32, #tpu.memory_space<vmem>>, %arg6: memref<9x256xf32, #tpu.memory_space<vmem>>, %arg7: memref<32x1xf32, #tpu.memory_space<vmem>>, %arg8: memref<32x32xf32, #tpu.memory_space<vmem>>, %arg9: memref<32x32xf32, #tpu.memory_space<vmem>>, %arg10: memref<32x1xf32, #tpu.memory_space<vmem>>, %arg11: memref<32x256xf32, #tpu.memory_space<vmem>>) attributes {dimension_semantics = [#tpu.dimension_semantics<parallel>], iteration_bounds = array<i64: 2>, scalar_prefetch = 0 : i64, scratch_operands = 0 : i64, tpu.core_type = #tpu.core_type<tc>, window_params = [{transform_indices = @transform_0, window_bounds = array<i64: 32, 256>}, {pipeline_mode = #tpu.pipeline_mode<synchronous>, transform_indices = @transform_1, window_bounds = array<i64: 96, 32>}, {pipeline_mode = #tpu.pipeline_mode<synchronous>, transform_indices = @transform_2, window_bounds = array<i64: 96, 1>}, {pipeline_mode = #tpu.pipeline_mode<synchronous>, transform_indices = @transform_3, window_bounds = array<i64: 96, 9>}, {pipeline_mode = #tpu.pipeline_mode<synchronous>, transform_indices = @transform_4, window_bounds = array<i64: 96, 1>}, {pipeline_mode = #tpu.pipeline_mode<synchronous>, transform_indices = @transform_5, window_bounds = array<i64: 9, 256>}, {pipeline_mode = #tpu.pipeline_mode<synchronous>, transform_indices = @transform_6, window_bounds = array<i64: 32, 1>}, {pipeline_mode = #tpu.pipeline_mode<synchronous>, transform_indices = @transform_7, window_bounds = array<i64: 32, 32>}, {pipeline_mode = #tpu.pipeline_mode<synchronous>, transform_indices = @transform_8, window_bounds = array<i64: 32, 32>}, {pipeline_mode = #tpu.pipeline_mode<synchronous>, transform_indices = @transform_9, window_bounds = array<i64: 32, 1>}, {transform_indices = @transform_10, window_bounds = array<i64: 32, 256>}]} {
    %c0 = arith.constant 0 : index
    %c0_0 = arith.constant 0 : index
    %0 = vector.load %arg1[%c0, %c0_0] : memref<32x256xf32, #tpu.memory_space<vmem>>, vector<32x256xf32>
    %c0_1 = arith.constant 0 : index
    %c0_2 = arith.constant 0 : index
    %1 = vector.load %arg2[%c0_1, %c0_2] : memref<96x32xf32, #tpu.memory_space<vmem>>, vector<96x32xf32>
    %cst = arith.constant dense<0.000000e+00> : vector<96x256xf32>
    %2 = tpu.matmul %1, %0, %cst {dimension_numbers = #tpu.dot_dimension_numbers<[1], [0], [0], [1], [0, 0, 1, 1], [], []>, precision = #tpu.contract_precision<fp32>} : vector<96x32xf32>, vector<32x256xf32>, vector<96x256xf32> -> vector<96x256xf32>
    %c0_3 = arith.constant 0 : index
    %c0_4 = arith.constant 0 : index
    %3 = vector.load %arg3[%c0_3, %c0_4] : memref<96x1xf32, #tpu.memory_space<vmem>>, vector<96x1xf32>
    %4 = vector.broadcast %3 : vector<96x1xf32> to vector<96x256xf32>
    %5 = arith.addf %2, %4 : vector<96x256xf32>
    %c0_5 = arith.constant 0 : index
    %c0_6 = arith.constant 0 : index
    %6 = vector.load %arg4[%c0_5, %c0_6] : memref<96x9xf32, #tpu.memory_space<vmem>>, vector<96x9xf32>
    %c0_7 = arith.constant 0 : index
    %c0_8 = arith.constant 0 : index
    %7 = vector.load %arg6[%c0_7, %c0_8] : memref<9x256xf32, #tpu.memory_space<vmem>>, vector<9x256xf32>
    %8 = vector.extract_strided_slice %5 {offsets = [0, 247], sizes = [96, 9], strides = [1, 1]} : vector<96x256xf32> to vector<96x9xf32>
    %9 = vector.extract_strided_slice %5 {offsets = [0, 0], sizes = [96, 247], strides = [1, 1]} : vector<96x256xf32> to vector<96x247xf32>
    %10 = tpu.concatenate %8, %9 in 1 : vector<96x9xf32>, vector<96x247xf32> -> vector<96x256xf32>
    %11 = vector.extract_strided_slice %7 {offsets = [0, 0], sizes = [1, 256], strides = [1, 1]} : vector<9x256xf32> to vector<1x256xf32>
    %12 = vector.broadcast %11 : vector<1x256xf32> to vector<96x256xf32>
    %13 = arith.mulf %10, %12 : vector<96x256xf32>
    %14 = vector.extract_strided_slice %6 {offsets = [0, 0], sizes = [96, 1], strides = [1, 1]} : vector<96x9xf32> to vector<96x1xf32>
    %15 = vector.broadcast %14 : vector<96x1xf32> to vector<96x256xf32>
    %16 = arith.mulf %13, %15 : vector<96x256xf32>
    %17 = vector.extract_strided_slice %5 {offsets = [0, 248], sizes = [96, 8], strides = [1, 1]} : vector<96x256xf32> to vector<96x8xf32>
    %18 = vector.extract_strided_slice %5 {offsets = [0, 0], sizes = [96, 248], strides = [1, 1]} : vector<96x256xf32> to vector<96x248xf32>
    %19 = tpu.concatenate %17, %18 in 1 : vector<96x8xf32>, vector<96x248xf32> -> vector<96x256xf32>
    %20 = vector.extract_strided_slice %7 {offsets = [1, 0], sizes = [1, 256], strides = [1, 1]} : vector<9x256xf32> to vector<1x256xf32>
    %21 = vector.broadcast %20 : vector<1x256xf32> to vector<96x256xf32>
    %22 = arith.mulf %19, %21 : vector<96x256xf32>
    %23 = vector.extract_strided_slice %6 {offsets = [0, 1], sizes = [96, 1], strides = [1, 1]} : vector<96x9xf32> to vector<96x1xf32>
    %24 = vector.broadcast %23 : vector<96x1xf32> to vector<96x256xf32>
    %25 = arith.mulf %22, %24 : vector<96x256xf32>
    %26 = arith.addf %16, %25 : vector<96x256xf32>
    %27 = vector.extract_strided_slice %5 {offsets = [0, 249], sizes = [96, 7], strides = [1, 1]} : vector<96x256xf32> to vector<96x7xf32>
    %28 = vector.extract_strided_slice %5 {offsets = [0, 0], sizes = [96, 249], strides = [1, 1]} : vector<96x256xf32> to vector<96x249xf32>
    %29 = tpu.concatenate %27, %28 in 1 : vector<96x7xf32>, vector<96x249xf32> -> vector<96x256xf32>
    %30 = vector.extract_strided_slice %7 {offsets = [2, 0], sizes = [1, 256], strides = [1, 1]} : vector<9x256xf32> to vector<1x256xf32>
    %31 = vector.broadcast %30 : vector<1x256xf32> to vector<96x256xf32>
    %32 = arith.mulf %29, %31 : vector<96x256xf32>
    %33 = vector.extract_strided_slice %6 {offsets = [0, 2], sizes = [96, 1], strides = [1, 1]} : vector<96x9xf32> to vector<96x1xf32>
    %34 = vector.broadcast %33 : vector<96x1xf32> to vector<96x256xf32>
    %35 = arith.mulf %32, %34 : vector<96x256xf32>
    %36 = arith.addf %26, %35 : vector<96x256xf32>
    %37 = vector.extract_strided_slice %5 {offsets = [0, 255], sizes = [96, 1], strides = [1, 1]} : vector<96x256xf32> to vector<96x1xf32>
    %38 = vector.extract_strided_slice %5 {offsets = [0, 0], sizes = [96, 255], strides = [1, 1]} : vector<96x256xf32> to vector<96x255xf32>
    %39 = tpu.concatenate %37, %38 in 1 : vector<96x1xf32>, vector<96x255xf32> -> vector<96x256xf32>
    %40 = vector.extract_strided_slice %7 {offsets = [3, 0], sizes = [1, 256], strides = [1, 1]} : vector<9x256xf32> to vector<1x256xf32>
    %41 = vector.broadcast %40 : vector<1x256xf32> to vector<96x256xf32>
    %42 = arith.mulf %39, %41 : vector<96x256xf32>
    %43 = vector.extract_strided_slice %6 {offsets = [0, 3], sizes = [96, 1], strides = [1, 1]} : vector<96x9xf32> to vector<96x1xf32>
    %44 = vector.broadcast %43 : vector<96x1xf32> to vector<96x256xf32>
    %45 = arith.mulf %42, %44 : vector<96x256xf32>
    %46 = arith.addf %36, %45 : vector<96x256xf32>
    %47 = vector.extract_strided_slice %6 {offsets = [0, 4], sizes = [96, 1], strides = [1, 1]} : vector<96x9xf32> to vector<96x1xf32>
    %48 = vector.broadcast %47 : vector<96x1xf32> to vector<96x256xf32>
    %49 = arith.mulf %5, %48 : vector<96x256xf32>
    %50 = arith.addf %46, %49 : vector<96x256xf32>
    %51 = vector.extract_strided_slice %5 {offsets = [0, 1], sizes = [96, 255], strides = [1, 1]} : vector<96x256xf32> to vector<96x255xf32>
    %52 = vector.extract_strided_slice %5 {offsets = [0, 0], sizes = [96, 1], strides = [1, 1]} : vector<96x256xf32> to vector<96x1xf32>
    %53 = tpu.concatenate %51, %52 in 1 : vector<96x255xf32>, vector<96x1xf32> -> vector<96x256xf32>
    %54 = vector.extract_strided_slice %7 {offsets = [5, 0], sizes = [1, 256], strides = [1, 1]} : vector<9x256xf32> to vector<1x256xf32>
    %55 = vector.broadcast %54 : vector<1x256xf32> to vector<96x256xf32>
    %56 = arith.mulf %53, %55 : vector<96x256xf32>
    %57 = vector.extract_strided_slice %6 {offsets = [0, 5], sizes = [96, 1], strides = [1, 1]} : vector<96x9xf32> to vector<96x1xf32>
    %58 = vector.broadcast %57 : vector<96x1xf32> to vector<96x256xf32>
    %59 = arith.mulf %56, %58 : vector<96x256xf32>
    %60 = arith.addf %50, %59 : vector<96x256xf32>
    %61 = vector.extract_strided_slice %5 {offsets = [0, 7], sizes = [96, 249], strides = [1, 1]} : vector<96x256xf32> to vector<96x249xf32>
    %62 = vector.extract_strided_slice %5 {offsets = [0, 0], sizes = [96, 7], strides = [1, 1]} : vector<96x256xf32> to vector<96x7xf32>
    %63 = tpu.concatenate %61, %62 in 1 : vector<96x249xf32>, vector<96x7xf32> -> vector<96x256xf32>
    %64 = vector.extract_strided_slice %7 {offsets = [6, 0], sizes = [1, 256], strides = [1, 1]} : vector<9x256xf32> to vector<1x256xf32>
    %65 = vector.broadcast %64 : vector<1x256xf32> to vector<96x256xf32>
    %66 = arith.mulf %63, %65 : vector<96x256xf32>
    %67 = vector.extract_strided_slice %6 {offsets = [0, 6], sizes = [96, 1], strides = [1, 1]} : vector<96x9xf32> to vector<96x1xf32>
    %68 = vector.broadcast %67 : vector<96x1xf32> to vector<96x256xf32>
    %69 = arith.mulf %66, %68 : vector<96x256xf32>
    %70 = arith.addf %60, %69 : vector<96x256xf32>
    %71 = vector.extract_strided_slice %5 {offsets = [0, 8], sizes = [96, 248], strides = [1, 1]} : vector<96x256xf32> to vector<96x248xf32>
    %72 = vector.extract_strided_slice %5 {offsets = [0, 0], sizes = [96, 8], strides = [1, 1]} : vector<96x256xf32> to vector<96x8xf32>
    %73 = tpu.concatenate %71, %72 in 1 : vector<96x248xf32>, vector<96x8xf32> -> vector<96x256xf32>
    %74 = vector.extract_strided_slice %7 {offsets = [7, 0], sizes = [1, 256], strides = [1, 1]} : vector<9x256xf32> to vector<1x256xf32>
    %75 = vector.broadcast %74 : vector<1x256xf32> to vector<96x256xf32>
    %76 = arith.mulf %73, %75 : vector<96x256xf32>
    %77 = vector.extract_strided_slice %6 {offsets = [0, 7], sizes = [96, 1], strides = [1, 1]} : vector<96x9xf32> to vector<96x1xf32>
    %78 = vector.broadcast %77 : vector<96x1xf32> to vector<96x256xf32>
    %79 = arith.mulf %76, %78 : vector<96x256xf32>
    %80 = arith.addf %70, %79 : vector<96x256xf32>
    %81 = vector.extract_strided_slice %5 {offsets = [0, 9], sizes = [96, 247], strides = [1, 1]} : vector<96x256xf32> to vector<96x247xf32>
    %82 = vector.extract_strided_slice %5 {offsets = [0, 0], sizes = [96, 9], strides = [1, 1]} : vector<96x256xf32> to vector<96x9xf32>
    %83 = tpu.concatenate %81, %82 in 1 : vector<96x247xf32>, vector<96x9xf32> -> vector<96x256xf32>
    %84 = vector.extract_strided_slice %7 {offsets = [8, 0], sizes = [1, 256], strides = [1, 1]} : vector<9x256xf32> to vector<1x256xf32>
    %85 = vector.broadcast %84 : vector<1x256xf32> to vector<96x256xf32>
    %86 = arith.mulf %83, %85 : vector<96x256xf32>
    %87 = vector.extract_strided_slice %6 {offsets = [0, 8], sizes = [96, 1], strides = [1, 1]} : vector<96x9xf32> to vector<96x1xf32>
    %88 = vector.broadcast %87 : vector<96x1xf32> to vector<96x256xf32>
    %89 = arith.mulf %86, %88 : vector<96x256xf32>
    %90 = arith.addf %80, %89 : vector<96x256xf32>
    %c0_9 = arith.constant 0 : index
    %c0_10 = arith.constant 0 : index
    %91 = vector.load %arg5[%c0_9, %c0_10] : memref<96x1xf32, #tpu.memory_space<vmem>>, vector<96x1xf32>
    %92 = vector.broadcast %91 : vector<96x1xf32> to vector<96x256xf32>
    %93 = arith.addf %90, %92 : vector<96x256xf32>
    %94 = vector.extract_strided_slice %93 {offsets = [0, 0], sizes = [32, 256], strides = [1, 1]} : vector<96x256xf32> to vector<32x256xf32>
    %95 = vector.extract_strided_slice %93 {offsets = [32, 0], sizes = [32, 256], strides = [1, 1]} : vector<96x256xf32> to vector<32x256xf32>
    %96 = vector.extract_strided_slice %93 {offsets = [64, 0], sizes = [32, 256], strides = [1, 1]} : vector<96x256xf32> to vector<32x256xf32>
    %c0_11 = arith.constant 0 : index
    %c0_12 = arith.constant 0 : index
    %97 = vector.load %arg7[%c0_11, %c0_12] : memref<32x1xf32, #tpu.memory_space<vmem>>, vector<32x1xf32>
    %c0_13 = arith.constant 0 : index
    %c0_14 = arith.constant 0 : index
    %98 = vector.load %arg8[%c0_13, %c0_14] : memref<32x32xf32, #tpu.memory_space<vmem>>, vector<32x32xf32>
    %99 = vector.extract_strided_slice %94 {offsets = [0, 0], sizes = [32, 64], strides = [1, 1]} : vector<32x256xf32> to vector<32x64xf32>
    %100 = vector.extract_strided_slice %95 {offsets = [0, 0], sizes = [32, 64], strides = [1, 1]} : vector<32x256xf32> to vector<32x64xf32>
    %101 = vector.extract_strided_slice %96 {offsets = [0, 0], sizes = [32, 64], strides = [1, 1]} : vector<32x256xf32> to vector<32x64xf32>
    %102 = arith.mulf %99, %99 : vector<32x64xf32>
    %cst_15 = arith.constant dense<0.000000e+00> : vector<32xf32>
    %103 = vector.multi_reduction <add>, %102, %cst_15 [1] : vector<32x64xf32> to vector<32xf32>
    %104 = vector.shape_cast %103 : vector<32xf32> to vector<32x1xf32>
    %cst_16 = arith.constant 9.99999996E-13 : f32
    %105 = vector.broadcast %cst_16 : f32 to vector<32x1xf32>
    %106 = arith.addf %104, %105 : vector<32x1xf32>
    %107 = math.rsqrt %106 : vector<32x1xf32>
    %108 = vector.broadcast %107 : vector<32x1xf32> to vector<32x64xf32>
    %109 = arith.mulf %99, %108 : vector<32x64xf32>
    %110 = arith.mulf %100, %100 : vector<32x64xf32>
    %cst_17 = arith.constant dense<0.000000e+00> : vector<32xf32>
    %111 = vector.multi_reduction <add>, %110, %cst_17 [1] : vector<32x64xf32> to vector<32xf32>
    %112 = vector.shape_cast %111 : vector<32xf32> to vector<32x1xf32>
    %cst_18 = arith.constant 9.99999996E-13 : f32
    %113 = vector.broadcast %cst_18 : f32 to vector<32x1xf32>
    %114 = arith.addf %112, %113 : vector<32x1xf32>
    %115 = math.rsqrt %114 : vector<32x1xf32>
    %116 = vector.broadcast %115 : vector<32x1xf32> to vector<32x64xf32>
    %117 = arith.mulf %100, %116 : vector<32x64xf32>
    %cst_19 = arith.constant dense<0.000000e+00> : vector<32x32xf32>
    %118 = tpu.matmul %109, %117, %cst_19 {dimension_numbers = #tpu.dot_dimension_numbers<[1], [1], [0], [0], [0, 0, 1, 0], [], []>, precision = #tpu.contract_precision<fp32>} : vector<32x64xf32>, vector<32x64xf32>, vector<32x32xf32> -> vector<32x32xf32>
    %119 = vector.broadcast %97 : vector<32x1xf32> to vector<32x32xf32>
    %120 = arith.mulf %118, %119 : vector<32x32xf32>
    %cst_20 = arith.constant dense<0xFF800000> : vector<32xf32>
    %121 = vector.multi_reduction <maximumf>, %120, %cst_20 [1] : vector<32x32xf32> to vector<32xf32>
    %122 = vector.shape_cast %121 : vector<32xf32> to vector<32x1xf32>
    %123 = vector.broadcast %122 : vector<32x1xf32> to vector<32x32xf32>
    %124 = arith.subf %120, %123 : vector<32x32xf32>
    %125 = math.exp %124 : vector<32x32xf32>
    %126 = arith.mulf %125, %98 : vector<32x32xf32>
    %cst_21 = arith.constant dense<0.000000e+00> : vector<32xf32>
    %127 = vector.multi_reduction <add>, %126, %cst_21 [1] : vector<32x32xf32> to vector<32xf32>
    %128 = vector.shape_cast %127 : vector<32xf32> to vector<32x1xf32>
    %129 = vector.broadcast %128 : vector<32x1xf32> to vector<32x32xf32>
    %130 = arith.divf %126, %129 : vector<32x32xf32>
    %cst_22 = arith.constant dense<0.000000e+00> : vector<32x64xf32>
    %131 = tpu.matmul %130, %101, %cst_22 {dimension_numbers = #tpu.dot_dimension_numbers<[1], [0], [0], [1], [0, 0, 1, 1], [], []>, precision = #tpu.contract_precision<fp32>} : vector<32x32xf32>, vector<32x64xf32>, vector<32x64xf32> -> vector<32x64xf32>
    %132 = vector.extract_strided_slice %94 {offsets = [0, 64], sizes = [32, 64], strides = [1, 1]} : vector<32x256xf32> to vector<32x64xf32>
    %133 = vector.extract_strided_slice %95 {offsets = [0, 64], sizes = [32, 64], strides = [1, 1]} : vector<32x256xf32> to vector<32x64xf32>
    %134 = vector.extract_strided_slice %96 {offsets = [0, 64], sizes = [32, 64], strides = [1, 1]} : vector<32x256xf32> to vector<32x64xf32>
    %135 = arith.mulf %132, %132 : vector<32x64xf32>
    %cst_23 = arith.constant dense<0.000000e+00> : vector<32xf32>
    %136 = vector.multi_reduction <add>, %135, %cst_23 [1] : vector<32x64xf32> to vector<32xf32>
    %137 = vector.shape_cast %136 : vector<32xf32> to vector<32x1xf32>
    %cst_24 = arith.constant 9.99999996E-13 : f32
    %138 = vector.broadcast %cst_24 : f32 to vector<32x1xf32>
    %139 = arith.addf %137, %138 : vector<32x1xf32>
    %140 = math.rsqrt %139 : vector<32x1xf32>
    %141 = vector.broadcast %140 : vector<32x1xf32> to vector<32x64xf32>
    %142 = arith.mulf %132, %141 : vector<32x64xf32>
    %143 = arith.mulf %133, %133 : vector<32x64xf32>
    %cst_25 = arith.constant dense<0.000000e+00> : vector<32xf32>
    %144 = vector.multi_reduction <add>, %143, %cst_25 [1] : vector<32x64xf32> to vector<32xf32>
    %145 = vector.shape_cast %144 : vector<32xf32> to vector<32x1xf32>
    %cst_26 = arith.constant 9.99999996E-13 : f32
    %146 = vector.broadcast %cst_26 : f32 to vector<32x1xf32>
    %147 = arith.addf %145, %146 : vector<32x1xf32>
    %148 = math.rsqrt %147 : vector<32x1xf32>
    %149 = vector.broadcast %148 : vector<32x1xf32> to vector<32x64xf32>
    %150 = arith.mulf %133, %149 : vector<32x64xf32>
    %cst_27 = arith.constant dense<0.000000e+00> : vector<32x32xf32>
    %151 = tpu.matmul %142, %150, %cst_27 {dimension_numbers = #tpu.dot_dimension_numbers<[1], [1], [0], [0], [0, 0, 1, 0], [], []>, precision = #tpu.contract_precision<fp32>} : vector<32x64xf32>, vector<32x64xf32>, vector<32x32xf32> -> vector<32x32xf32>
    %152 = vector.broadcast %97 : vector<32x1xf32> to vector<32x32xf32>
    %153 = arith.mulf %151, %152 : vector<32x32xf32>
    %cst_28 = arith.constant dense<0xFF800000> : vector<32xf32>
    %154 = vector.multi_reduction <maximumf>, %153, %cst_28 [1] : vector<32x32xf32> to vector<32xf32>
    %155 = vector.shape_cast %154 : vector<32xf32> to vector<32x1xf32>
    %156 = vector.broadcast %155 : vector<32x1xf32> to vector<32x32xf32>
    %157 = arith.subf %153, %156 : vector<32x32xf32>
    %158 = math.exp %157 : vector<32x32xf32>
    %159 = arith.mulf %158, %98 : vector<32x32xf32>
    %cst_29 = arith.constant dense<0.000000e+00> : vector<32xf32>
    %160 = vector.multi_reduction <add>, %159, %cst_29 [1] : vector<32x32xf32> to vector<32xf32>
    %161 = vector.shape_cast %160 : vector<32xf32> to vector<32x1xf32>
    %162 = vector.broadcast %161 : vector<32x1xf32> to vector<32x32xf32>
    %163 = arith.divf %159, %162 : vector<32x32xf32>
    %cst_30 = arith.constant dense<0.000000e+00> : vector<32x64xf32>
    %164 = tpu.matmul %163, %134, %cst_30 {dimension_numbers = #tpu.dot_dimension_numbers<[1], [0], [0], [1], [0, 0, 1, 1], [], []>, precision = #tpu.contract_precision<fp32>} : vector<32x32xf32>, vector<32x64xf32>, vector<32x64xf32> -> vector<32x64xf32>
    %165 = vector.extract_strided_slice %94 {offsets = [0, 128], sizes = [32, 64], strides = [1, 1]} : vector<32x256xf32> to vector<32x64xf32>
    %166 = vector.extract_strided_slice %95 {offsets = [0, 128], sizes = [32, 64], strides = [1, 1]} : vector<32x256xf32> to vector<32x64xf32>
    %167 = vector.extract_strided_slice %96 {offsets = [0, 128], sizes = [32, 64], strides = [1, 1]} : vector<32x256xf32> to vector<32x64xf32>
    %168 = arith.mulf %165, %165 : vector<32x64xf32>
    %cst_31 = arith.constant dense<0.000000e+00> : vector<32xf32>
    %169 = vector.multi_reduction <add>, %168, %cst_31 [1] : vector<32x64xf32> to vector<32xf32>
    %170 = vector.shape_cast %169 : vector<32xf32> to vector<32x1xf32>
    %cst_32 = arith.constant 9.99999996E-13 : f32
    %171 = vector.broadcast %cst_32 : f32 to vector<32x1xf32>
    %172 = arith.addf %170, %171 : vector<32x1xf32>
    %173 = math.rsqrt %172 : vector<32x1xf32>
    %174 = vector.broadcast %173 : vector<32x1xf32> to vector<32x64xf32>
    %175 = arith.mulf %165, %174 : vector<32x64xf32>
    %176 = arith.mulf %166, %166 : vector<32x64xf32>
    %cst_33 = arith.constant dense<0.000000e+00> : vector<32xf32>
    %177 = vector.multi_reduction <add>, %176, %cst_33 [1] : vector<32x64xf32> to vector<32xf32>
    %178 = vector.shape_cast %177 : vector<32xf32> to vector<32x1xf32>
    %cst_34 = arith.constant 9.99999996E-13 : f32
    %179 = vector.broadcast %cst_34 : f32 to vector<32x1xf32>
    %180 = arith.addf %178, %179 : vector<32x1xf32>
    %181 = math.rsqrt %180 : vector<32x1xf32>
    %182 = vector.broadcast %181 : vector<32x1xf32> to vector<32x64xf32>
    %183 = arith.mulf %166, %182 : vector<32x64xf32>
    %cst_35 = arith.constant dense<0.000000e+00> : vector<32x32xf32>
    %184 = tpu.matmul %175, %183, %cst_35 {dimension_numbers = #tpu.dot_dimension_numbers<[1], [1], [0], [0], [0, 0, 1, 0], [], []>, precision = #tpu.contract_precision<fp32>} : vector<32x64xf32>, vector<32x64xf32>, vector<32x32xf32> -> vector<32x32xf32>
    %185 = vector.broadcast %97 : vector<32x1xf32> to vector<32x32xf32>
    %186 = arith.mulf %184, %185 : vector<32x32xf32>
    %cst_36 = arith.constant dense<0xFF800000> : vector<32xf32>
    %187 = vector.multi_reduction <maximumf>, %186, %cst_36 [1] : vector<32x32xf32> to vector<32xf32>
    %188 = vector.shape_cast %187 : vector<32xf32> to vector<32x1xf32>
    %189 = vector.broadcast %188 : vector<32x1xf32> to vector<32x32xf32>
    %190 = arith.subf %186, %189 : vector<32x32xf32>
    %191 = math.exp %190 : vector<32x32xf32>
    %192 = arith.mulf %191, %98 : vector<32x32xf32>
    %cst_37 = arith.constant dense<0.000000e+00> : vector<32xf32>
    %193 = vector.multi_reduction <add>, %192, %cst_37 [1] : vector<32x32xf32> to vector<32xf32>
    %194 = vector.shape_cast %193 : vector<32xf32> to vector<32x1xf32>
    %195 = vector.broadcast %194 : vector<32x1xf32> to vector<32x32xf32>
    %196 = arith.divf %192, %195 : vector<32x32xf32>
    %cst_38 = arith.constant dense<0.000000e+00> : vector<32x64xf32>
    %197 = tpu.matmul %196, %167, %cst_38 {dimension_numbers = #tpu.dot_dimension_numbers<[1], [0], [0], [1], [0, 0, 1, 1], [], []>, precision = #tpu.contract_precision<fp32>} : vector<32x32xf32>, vector<32x64xf32>, vector<32x64xf32> -> vector<32x64xf32>
    %198 = vector.extract_strided_slice %94 {offsets = [0, 192], sizes = [32, 64], strides = [1, 1]} : vector<32x256xf32> to vector<32x64xf32>
    %199 = vector.extract_strided_slice %95 {offsets = [0, 192], sizes = [32, 64], strides = [1, 1]} : vector<32x256xf32> to vector<32x64xf32>
    %200 = vector.extract_strided_slice %96 {offsets = [0, 192], sizes = [32, 64], strides = [1, 1]} : vector<32x256xf32> to vector<32x64xf32>
    %201 = arith.mulf %198, %198 : vector<32x64xf32>
    %cst_39 = arith.constant dense<0.000000e+00> : vector<32xf32>
    %202 = vector.multi_reduction <add>, %201, %cst_39 [1] : vector<32x64xf32> to vector<32xf32>
    %203 = vector.shape_cast %202 : vector<32xf32> to vector<32x1xf32>
    %cst_40 = arith.constant 9.99999996E-13 : f32
    %204 = vector.broadcast %cst_40 : f32 to vector<32x1xf32>
    %205 = arith.addf %203, %204 : vector<32x1xf32>
    %206 = math.rsqrt %205 : vector<32x1xf32>
    %207 = vector.broadcast %206 : vector<32x1xf32> to vector<32x64xf32>
    %208 = arith.mulf %198, %207 : vector<32x64xf32>
    %209 = arith.mulf %199, %199 : vector<32x64xf32>
    %cst_41 = arith.constant dense<0.000000e+00> : vector<32xf32>
    %210 = vector.multi_reduction <add>, %209, %cst_41 [1] : vector<32x64xf32> to vector<32xf32>
    %211 = vector.shape_cast %210 : vector<32xf32> to vector<32x1xf32>
    %cst_42 = arith.constant 9.99999996E-13 : f32
    %212 = vector.broadcast %cst_42 : f32 to vector<32x1xf32>
    %213 = arith.addf %211, %212 : vector<32x1xf32>
    %214 = math.rsqrt %213 : vector<32x1xf32>
    %215 = vector.broadcast %214 : vector<32x1xf32> to vector<32x64xf32>
    %216 = arith.mulf %199, %215 : vector<32x64xf32>
    %cst_43 = arith.constant dense<0.000000e+00> : vector<32x32xf32>
    %217 = tpu.matmul %208, %216, %cst_43 {dimension_numbers = #tpu.dot_dimension_numbers<[1], [1], [0], [0], [0, 0, 1, 0], [], []>, precision = #tpu.contract_precision<fp32>} : vector<32x64xf32>, vector<32x64xf32>, vector<32x32xf32> -> vector<32x32xf32>
    %218 = vector.broadcast %97 : vector<32x1xf32> to vector<32x32xf32>
    %219 = arith.mulf %217, %218 : vector<32x32xf32>
    %cst_44 = arith.constant dense<0xFF800000> : vector<32xf32>
    %220 = vector.multi_reduction <maximumf>, %219, %cst_44 [1] : vector<32x32xf32> to vector<32xf32>
    %221 = vector.shape_cast %220 : vector<32xf32> to vector<32x1xf32>
    %222 = vector.broadcast %221 : vector<32x1xf32> to vector<32x32xf32>
    %223 = arith.subf %219, %222 : vector<32x32xf32>
    %224 = math.exp %223 : vector<32x32xf32>
    %225 = arith.mulf %224, %98 : vector<32x32xf32>
    %cst_45 = arith.constant dense<0.000000e+00> : vector<32xf32>
    %226 = vector.multi_reduction <add>, %225, %cst_45 [1] : vector<32x32xf32> to vector<32xf32>
    %227 = vector.shape_cast %226 : vector<32xf32> to vector<32x1xf32>
    %228 = vector.broadcast %227 : vector<32x1xf32> to vector<32x32xf32>
    %229 = arith.divf %225, %228 : vector<32x32xf32>
    %cst_46 = arith.constant dense<0.000000e+00> : vector<32x64xf32>
    %230 = tpu.matmul %229, %200, %cst_46 {dimension_numbers = #tpu.dot_dimension_numbers<[1], [0], [0], [1], [0, 0, 1, 1], [], []>, precision = #tpu.contract_precision<fp32>} : vector<32x32xf32>, vector<32x64xf32>, vector<32x64xf32> -> vector<32x64xf32>
    %231 = tpu.concatenate %131, %164, %197, %230 in 1 : vector<32x64xf32>, vector<32x64xf32>, vector<32x64xf32>, vector<32x64xf32> -> vector<32x256xf32>
    %c0_47 = arith.constant 0 : index
    %c0_48 = arith.constant 0 : index
    %232 = vector.load %arg9[%c0_47, %c0_48] : memref<32x32xf32, #tpu.memory_space<vmem>>, vector<32x32xf32>
    %cst_49 = arith.constant dense<0.000000e+00> : vector<32x256xf32>
    %233 = tpu.matmul %232, %231, %cst_49 {dimension_numbers = #tpu.dot_dimension_numbers<[1], [0], [0], [1], [0, 0, 1, 1], [], []>, precision = #tpu.contract_precision<fp32>} : vector<32x32xf32>, vector<32x256xf32>, vector<32x256xf32> -> vector<32x256xf32>
    %c0_50 = arith.constant 0 : index
    %c0_51 = arith.constant 0 : index
    %234 = vector.load %arg10[%c0_50, %c0_51] : memref<32x1xf32, #tpu.memory_space<vmem>>, vector<32x1xf32>
    %235 = vector.broadcast %234 : vector<32x1xf32> to vector<32x256xf32>
    %236 = arith.addf %233, %235 : vector<32x256xf32>
    %c0_52 = arith.constant 0 : index
    %c0_53 = arith.constant 0 : index
    %237 = vector.load %arg11[%c0_52, %c0_53] : memref<32x256xf32, #tpu.memory_space<vmem>>, vector<32x256xf32>
    tpu.vector_store %arg11[%c0_52, %c0_53], %236 {strides = array<i32>} : memref<32x256xf32, #tpu.memory_space<vmem>>, vector<32x256xf32>,
    return
  }
  func.func @transform_0(%arg0: i32) -> (i32, i32) {
    %c0_i32 = arith.constant 0 : i32
    %c0_i32_0 = arith.constant 0 : i32
    return %c0_i32, %arg0 : i32, i32
  }
  func.func @transform_1(%arg0: i32) -> (i32, i32) {
    %c0_i32 = arith.constant 0 : i32
    %c0_i32_0 = arith.constant 0 : i32
    %c0_i32_1 = arith.constant 0 : i32
    return %c0_i32, %c0_i32_0 : i32, i32
  }
  func.func @transform_2(%arg0: i32) -> (i32, i32) {
    %c0_i32 = arith.constant 0 : i32
    %c0_i32_0 = arith.constant 0 : i32
    %c0_i32_1 = arith.constant 0 : i32
    return %c0_i32, %c0_i32_0 : i32, i32
  }
  func.func @transform_3(%arg0: i32) -> (i32, i32) {
    %c0_i32 = arith.constant 0 : i32
    %c0_i32_0 = arith.constant 0 : i32
    %c0_i32_1 = arith.constant 0 : i32
    return %c0_i32, %c0_i32_0 : i32, i32
  }
  func.func @transform_4(%arg0: i32) -> (i32, i32) {
    %c0_i32 = arith.constant 0 : i32
    %c0_i32_0 = arith.constant 0 : i32
    %c0_i32_1 = arith.constant 0 : i32
    return %c0_i32, %c0_i32_0 : i32, i32
  }
  func.func @transform_5(%arg0: i32) -> (i32, i32) {
    %c0_i32 = arith.constant 0 : i32
    %c0_i32_0 = arith.constant 0 : i32
    %c0_i32_1 = arith.constant 0 : i32
    return %c0_i32, %c0_i32_0 : i32, i32
  }
  func.func @transform_6(%arg0: i32) -> (i32, i32) {
    %c0_i32 = arith.constant 0 : i32
    %c0_i32_0 = arith.constant 0 : i32
    %c0_i32_1 = arith.constant 0 : i32
    return %c0_i32, %c0_i32_0 : i32, i32
  }
  func.func @transform_7(%arg0: i32) -> (i32, i32) {
    %c0_i32 = arith.constant 0 : i32
    %c0_i32_0 = arith.constant 0 : i32
    %c0_i32_1 = arith.constant 0 : i32
    return %c0_i32, %c0_i32_0 : i32, i32
  }
  func.func @transform_8(%arg0: i32) -> (i32, i32) {
    %c0_i32 = arith.constant 0 : i32
    %c0_i32_0 = arith.constant 0 : i32
    %c0_i32_1 = arith.constant 0 : i32
    return %c0_i32, %c0_i32_0 : i32, i32
  }
  func.func @transform_9(%arg0: i32) -> (i32, i32) {
    %c0_i32 = arith.constant 0 : i32
    %c0_i32_0 = arith.constant 0 : i32
    %c0_i32_1 = arith.constant 0 : i32
    return %c0_i32, %c0_i32_0 : i32, i32
  }
  func.func @transform_10(%arg0: i32) -> (i32, i32) {
    %c0_i32 = arith.constant 0 : i32
    %c0_i32_0 = arith.constant 0 : i32
    return %c0_i32, %arg0 : i32, i32
  }
}

</mosaic_0001>

<llo_original>
// kernel: tile.9
$region0: #{tile.9}
  %s0 = inlined_call_operand.vmem [shape: f32[9,4,64], index: 0, kind: input, shape index: {}]
  %s1 = inlined_call_operand.vmem [shape: f32[9,256], index: 1, kind: output, shape index: {}]
  $region1: #{tile.9} parent=0
    #allocation0 [shape = 'u8[36864]{0}', space=vmem, size = 0x9000, scoped, tag = 'scoped mem for input reshape']
    %s3 = ssub.s32 16, 1
    %s4 = scalar_lea.vmem %s0, 32
    %v5 = vld [vmem:[%s4] sm:%s3]
    %s6 = scalar_lea.vmem [#allocation0], 64
    %7 = vst [vmem:[%s6] sm:%s3] %v5
    %s8 = scalar_lea.vmem %s0, 28
    %v9 = vld [vmem:[%s8] sm:%s3]
    %s10 = scalar_lea.vmem [#allocation0], 56
    %11 = vst [vmem:[%s10] sm:%s3] %v9
    %s12 = scalar_lea.vmem %s0, 24
    %v13 = vld [vmem:[%s12] sm:%s3]
    %s14 = scalar_lea.vmem [#allocation0], 48
    %15 = vst [vmem:[%s14] sm:%s3] %v13
    %s16 = scalar_lea.vmem %s0, 20
    %v17 = vld [vmem:[%s16] sm:%s3]
    %s18 = scalar_lea.vmem [#allocation0], 40
    %19 = vst [vmem:[%s18] sm:%s3] %v17
    %s20 = scalar_lea.vmem %s0, 16
    %v21 = vld [vmem:[%s20] sm:%s3]
    %s22 = scalar_lea.vmem [#allocation0], 32
    %23 = vst [vmem:[%s22] sm:%s3] %v21
    %s24 = scalar_lea.vmem %s0, 12
    %v25 = vld [vmem:[%s24] sm:%s3]
    %s26 = scalar_lea.vmem [#allocation0], 24
    %27 = vst [vmem:[%s26] sm:%s3] %v25
    %s28 = scalar_lea.vmem %s0, 8
    %v29 = vld [vmem:[%s28] sm:%s3]
    %s30 = scalar_lea.vmem [#allocation0], 16
    %31 = vst [vmem:[%s30] sm:%s3] %v29
    %s32 = scalar_lea.vmem %s0, 4
    %v33 = vld [vmem:[%s32] sm:%s3]
    %s34 = scalar_lea.vmem [#allocation0], 8
    %35 = vst [vmem:[%s34] sm:%s3] %v33
    %v36 = vld [vmem:[%s0] sm:%s3]
    %37 = vst [vmem:[#allocation0] sm:%s3] %v36
    %s38 = smov 3
    %v39 = vld [vmem:[#allocation0] ss:$2 sm:%s38]
    %vm40 = vcmask 523264
    %41 = vst.msk [vmem:[%s1] ss:$8 sm:$0x3] %vm40, %v39
    %s42 = scalar_lea.vmem [#allocation0], 8
    %s43 = smov 3
    %v44 = vld [vmem:[%s42] ss:$2 sm:%s43]
    %vm45 = vcmask 523264
    %s46 = scalar_lea.vmem %s1, 1
    %47 = vst.msk [vmem:[%s46] ss:$8 sm:$0x3] %vm45, %v44
    %s48 = scalar_lea.vmem [#allocation0], 16
    %s49 = smov 3
    %v50 = vld [vmem:[%s48] ss:$2 sm:%s49]
    %vm51 = vcmask 523264
    %s52 = scalar_lea.vmem %s1, 2
    %53 = vst.msk [vmem:[%s52] ss:$8 sm:$0x3] %vm51, %v50
    %s54 = scalar_lea.vmem [#allocation0], 24
    %s55 = smov 3
    %v56 = vld [vmem:[%s54] ss:$2 sm:%s55]
    %vm57 = vcmask 523264
    %s58 = scalar_lea.vmem %s1, 3
    %59 = vst.msk [vmem:[%s58] ss:$8 sm:$0x3] %vm57, %v56
    %s60 = scalar_lea.vmem [#allocation0], 32
    %s61 = smov 3
    %v62 = vld [vmem:[%s60] ss:$2 sm:%s61]
    %vm63 = vcmask 523264
    %s64 = scalar_lea.vmem %s1, 4
    %65 = vst.msk [vmem:[%s64] ss:$8 sm:$0x3] %vm63, %v62
    %s66 = scalar_lea.vmem [#allocation0], 40
    %s67 = smov 3
    %v68 = vld [vmem:[%s66] ss:$2 sm:%s67]
    %vm69 = vcmask 523264
    %s70 = scalar_lea.vmem %s1, 5
    %71 = vst.msk [vmem:[%s70] ss:$8 sm:$0x3] %vm69, %v68
    %s72 = scalar_lea.vmem [#allocation0], 48
    %s73 = smov 3
    %v74 = vld [vmem:[%s72] ss:$2 sm:%s73]
    %vm75 = vcmask 523264
    %s76 = scalar_lea.vmem %s1, 6
    %77 = vst.msk [vmem:[%s76] ss:$8 sm:$0x3] %vm75, %v74
    %s78 = scalar_lea.vmem [#allocation0], 56
    %s79 = smov 3
    %v80 = vld [vmem:[%s78] ss:$2 sm:%s79]
    %vm81 = vcmask 523264
    %s82 = scalar_lea.vmem %s1, 7
    %83 = vst.msk [vmem:[%s82] ss:$8 sm:$0x3] %vm81, %v80
    %s84 = scalar_lea.vmem [#allocation0], 64
    %s85 = smov 3
    %v86 = vld [vmem:[%s84] ss:$2 sm:%s85]
    %vm87 = vcmask 523264
    %s88 = scalar_lea.vmem %s1, 16
    %89 = vst.msk [vmem:[%s88] ss:$8 sm:$0x3] %vm87, %v86
    %s90 = scalar_lea.vmem [#allocation0], 1
    %v91 = vld [vmem:[%s90] ss:$8 sm:$0xf]
    %s92 = scalar_lea.vmem [#allocation0], 1
    %v93 = vld [vmem:[%s92] ss:$8 sm:$0xf0]
    %vm94 = vcmask 1047556
    %v95 = vsel %vm94, %v93, %v91
    %96 = vrot.lane.b32.xlu0 %v95, 64
    %v97 = vpop.permute.xlu0 %96
    %vm98 = vcmask 1048064
    %99 = vst.msk [vmem:[%s1] sm:$0xff] %vm98, %v97
    %s100 = scalar_lea.vmem [#allocation0], 3
    %v101 = vld [vmem:[%s100] ss:$8 sm:$0xf]
    %s102 = scalar_lea.vmem [#allocation0], 3
    %v103 = vld [vmem:[%s102] ss:$8 sm:$0xf0]
    %vm104 = vcmask 1047556
    %v105 = vsel %vm104, %v103, %v101
    %106 = vrot.lane.b32.xlu0 %v105, 64
    %v107 = vpop.permute.xlu0 %106
    %vm108 = vcmask 1048064
    %s109 = scalar_lea.vmem %s1, 8
    %110 = vst.msk [vmem:[%s109] sm:$0xff] %vm108, %v107
    %s111 = scalar_lea.vmem [#allocation0], 65
    %s112 = smov 3
    %v113 = vld [vmem:[%s111] ss:$2 sm:%s112]
    %114 = vrot.lane.b32.xlu0 %v113, 64
    %v115 = vpop.permute.xlu0 %114
    %vm116 = vcmask 1048064
    %s117 = scalar_lea.vmem %s1, 16
    %118 = vst.msk [vmem:[%s117] ss:$8 sm:$0x3] %vm116, %v115

// kernel: attention_forward.1
$region0: #{attention_forward.1}
  #allocation0 [shape = 'u32[]', space=smem, size = 0x4, offset = 0x4, fixed_abs, tag = 'smem constant byte address 0x4 - core index']
  #allocation1 [shape = 'u32[72,128]{1,0:T(1,128)}', space=vmem, size = 0x9000, scoped, tag = 'internal scratch']
  %s0 = inlined_call_operand.vmem [shape: f32[32,512], index: 0, kind: input, shape index: {}]
  %s1 = inlined_call_operand.vmem [shape: f32[96,32], index: 1, kind: input, shape index: {}]
  %s2 = inlined_call_operand.vmem [shape: f32[96,1], index: 2, kind: input, shape index: {}]
  %s3 = inlined_call_operand.vmem [shape: f32[96,9], index: 3, kind: input, shape index: {}]
  %s4 = inlined_call_operand.vmem [shape: f32[96,1], index: 4, kind: input, shape index: {}]
  %s5 = inlined_call_operand.vmem [shape: f32[9,256], index: 5, kind: input, shape index: {}]
  %s6 = inlined_call_operand.vmem [shape: f32[32,1], index: 6, kind: input, shape index: {}]
  %s7 = inlined_call_operand.vmem [shape: f32[32,32], index: 7, kind: input, shape index: {}]
  %s8 = inlined_call_operand.vmem [shape: f32[32,32], index: 8, kind: input, shape index: {}]
  %s9 = inlined_call_operand.vmem [shape: f32[32,1], index: 9, kind: input, shape index: {}]
  %s10 = inlined_call_operand.vmem [shape: f32[32,512], index: 10, kind: output, shape index: {}]
  %s11 = sld [smem:[#allocation0]]
  $region115: #{attention_forward.1} parent=0
    _
  %s13 = ssub.s32 1, %s11
  %s14 = scalar_select 0, %s13, %s11
  $region1: #{attention_forward.1} parent=0
    #allocation2 [shape = 'u8[65536]{0}', space=vmem, size = 0x10000, scoped, tag = 'input window, operand 0']
    #allocation3 [shape = 'u8[65536]{0}', space=vmem, size = 0x10000, scoped, tag = 'output window, operand 0']
    loop: start=0, step=1, limit=4
    $region2: #{attention_forward.1} parent=1 // loop_pre_header
      _
    $region3: #{attention_forward.1} parent=1 // loop_header
      %s16 = sphi 0, %s20
      %p17 = scmp.ge.s32.totalorder %s16, 4
      %s26 = sphi 0, %s28
      %s29 = sphi 0, %s26
      %s30 = sphi 0, %s29
      %s46 = sphi 0, %s30
      %s50 = sphi 0, %s50
      %s52 = sphi 0, %s50
      %s53 = sphi 0, %s52
      %s67 = sphi 0, %s53
      %s71 = sphi 0, %s71
      %s73 = sphi 0, %s71
      %s74 = sphi 0, %s73
      %s88 = sphi 0, %s74
      %s92 = sphi 0, %s92
      %s94 = sphi 0, %s92
      %s95 = sphi 0, %s94
      %s109 = sphi 0, %s95
      %s113 = sphi 0, %s113
      %s115 = sphi 0, %s113
      %s116 = sphi 0, %s115
      %s130 = sphi 0, %s116
      %s134 = sphi 0, %s134
      %s136 = sphi 0, %s134
      %s137 = sphi 0, %s136
      %s151 = sphi 0, %s137
      %s155 = sphi 0, %s155
      %s157 = sphi 0, %s155
      %s158 = sphi 0, %s157
      %s172 = sphi 0, %s158
      %s176 = sphi 0, %s176
      %s178 = sphi 0, %s176
      %s179 = sphi 0, %s178
      %s193 = sphi 0, %s179
      %s197 = sphi 0, %s197
      %s199 = sphi 0, %s197
      %s200 = sphi 0, %s199
      %s214 = sphi 0, %s200
      %s218 = sphi 0, %s218
      %s220 = sphi 0, %s218
      %s221 = sphi 0, %s220
      %s235 = sphi 0, %s221
      %s241 = sphi 0, %s243
      %s244 = sphi 0, %s241
      %s245 = sphi 0, %s244
      %s261 = sphi 0, %s245
    $region4: #{attention_forward.1} parent=1 // loop_header_branch
      %19 = sbr.rel (%p17) target = $region8
    $region5: #{attention_forward.1} parent=1 // loop_body
      %s21 = ssub.s32 %s16, 1
      %s22 = ssub.s32 %s16, 2
      %s23 = sadd.s32 %s16, 1
      %s24 = ssub.s32 %s16, %s23
      %p25 = scmp.eq.s32.totalorder %s24, 0
      %s27 = sadd.s32 %s26, 1
      %s28 = scalar_select %p25, %s26, %s27
      %p31 = pneg %p25
      %p32 = scmp.eq.s32.totalorder %s16, 1
      %p33 = por %p31, %p32
      %p34 = scmp.ne.s32.totalorder %s26, %s29
      %p35 = scmp.eq.s32.totalorder %s16, 0
      %p36 = por %p34, %p35
      %p37 = scmp.ne.s32.totalorder %s26, %s29
      %p38 = scmp.eq.s32.totalorder %s21, 1
      %p39 = por %p37, %p38
      %p40 = scmp.ne.s32.totalorder %s29, %s30
      %p41 = scmp.eq.s32.totalorder %s21, 0
      %p42 = por %p40, %p41
      %p43 = scmp.ne.s32.totalorder %s29, %s30
      %p44 = scmp.eq.s32.totalorder %s22, 1
      %p45 = por %p43, %p44
      %p47 = scmp.ne.s32.totalorder %s30, %s46
      %p48 = scmp.eq.s32.totalorder %s22, 0
      %p49 = por %p47, %p48
      %s51 = sadd.s32 %s50, 1
      %p54 = scmp.eq.s32.totalorder %s16, 1
      %p55 = scmp.ne.s32.totalorder %s50, %s52
      %p56 = scmp.eq.s32.totalorder %s16, 0
      %p57 = por %p55, %p56
      %p58 = scmp.ne.s32.totalorder %s50, %s52
      %p59 = scmp.eq.s32.totalorder %s21, 1
      %p60 = por %p58, %p59
      %p61 = scmp.ne.s32.totalorder %s52, %s53
      %p62 = scmp.eq.s32.totalorder %s21, 0
      %p63 = por %p61, %p62
      %p64 = scmp.ne.s32.totalorder %s52, %s53
      %p65 = scmp.eq.s32.totalorder %s22, 1
      %p66 = por %p64, %p65
      %p68 = scmp.ne.s32.totalorder %s53, %s67
      %p69 = scmp.eq.s32.totalorder %s22, 0
      %p70 = por %p68, %p69
      %s72 = sadd.s32 %s71, 1
      %p75 = scmp.eq.s32.totalorder %s16, 1
      %p76 = scmp.ne.s32.totalorder %s71, %s73
      %p77 = scmp.eq.s32.totalorder %s16, 0
      %p78 = por %p76, %p77
      %p79 = scmp.ne.s32.totalorder %s71, %s73
      %p80 = scmp.eq.s32.totalorder %s21, 1
      %p81 = por %p79, %p80
      %p82 = scmp.ne.s32.totalorder %s73, %s74
      %p83 = scmp.eq.s32.totalorder %s21, 0
      %p84 = por %p82, %p83
      %p85 = scmp.ne.s32.totalorder %s73, %s74
      %p86 = scmp.eq.s32.totalorder %s22, 1
      %p87 = por %p85, %p86
      %p89 = scmp.ne.s32.totalorder %s74, %s88
      %p90 = scmp.eq.s32.totalorder %s22, 0
      %p91 = por %p89, %p90
      %s93 = sadd.s32 %s92, 1
      %p96 = scmp.eq.s32.totalorder %s16, 1
      %p97 = scmp.ne.s32.totalorder %s92, %s94
      %p98 = scmp.eq.s32.totalorder %s16, 0
      %p99 = por %p97, %p98
      %p100 = scmp.ne.s32.totalorder %s92, %s94
      %p101 = scmp.eq.s32.totalorder %s21, 1
      %p102 = por %p100, %p101
      %p103 = scmp.ne.s32.totalorder %s94, %s95
      %p104 = scmp.eq.s32.totalorder %s21, 0
      %p105 = por %p103, %p104
      %p106 = scmp.ne.s32.totalorder %s94, %s95
      %p107 = scmp.eq.s32.totalorder %s22, 1
      %p108 = por %p106, %p107
      %p110 = scmp.ne.s32.totalorder %s95, %s109
      %p111 = scmp.eq.s32.totalorder %s22, 0
      %p112 = por %p110, %p111
      %s114 = sadd.s32 %s113, 1
      %p117 = scmp.eq.s32.totalorder %s16, 1
      %p118 = scmp.ne.s32.totalorder %s113, %s115
      %p119 = scmp.eq.s32.totalorder %s16, 0
      %p120 = por %p118, %p119
      %p121 = scmp.ne.s32.totalorder %s113, %s115
      %p122 = scmp.eq.s32.totalorder %s21, 1
      %p123 = por %p121, %p122
      %p124 = scmp.ne.s32.totalorder %s115, %s116
      %p125 = scmp.eq.s32.totalorder %s21, 0
      %p126 = por %p124, %p125
      %p127 = scmp.ne.s32.totalorder %s115, %s116
      %p128 = scmp.eq.s32.totalorder %s22, 1
      %p129 = por %p127, %p128
      %p131 = scmp.ne.s32.totalorder %s116, %s130
      %p132 = scmp.eq.s32.totalorder %s22, 0
      %p133 = por %p131, %p132
      %s135 = sadd.s32 %s134, 1
      %p138 = scmp.eq.s32.totalorder %s16, 1
      %p139 = scmp.ne.s32.totalorder %s134, %s136
      %p140 = scmp.eq.s32.totalorder %s16, 0
      %p141 = por %p139, %p140
      %p142 = scmp.ne.s32.totalorder %s134, %s136
      %p143 = scmp.eq.s32.totalorder %s21, 1
      %p144 = por %p142, %p143
      %p145 = scmp.ne.s32.totalorder %s136, %s137
      %p146 = scmp.eq.s32.totalorder %s21, 0
      %p147 = por %p145, %p146
      %p148 = scmp.ne.s32.totalorder %s136, %s137
      %p149 = scmp.eq.s32.totalorder %s22, 1
      %p150 = por %p148, %p149
      %p152 = scmp.ne.s32.totalorder %s137, %s151
      %p153 = scmp.eq.s32.totalorder %s22, 0
      %p154 = por %p152, %p153
      %s156 = sadd.s32 %s155, 1
      %p159 = scmp.eq.s32.totalorder %s16, 1
      %p160 = scmp.ne.s32.totalorder %s155, %s157
      %p161 = scmp.eq.s32.totalorder %s16, 0
      %p162 = por %p160, %p161
      %p163 = scmp.ne.s32.totalorder %s155, %s157
      %p164 = scmp.eq.s32.totalorder %s21, 1
      %p165 = por %p163, %p164
      %p166 = scmp.ne.s32.totalorder %s157, %s158
      %p167 = scmp.eq.s32.totalorder %s21, 0
      %p168 = por %p166, %p167
      %p169 = scmp.ne.s32.totalorder %s157, %s158
      %p170 = scmp.eq.s32.totalorder %s22, 1
      %p171 = por %p169, %p170
      %p173 = scmp.ne.s32.totalorder %s158, %s172
      %p174 = scmp.eq.s32.totalorder %s22, 0
      %p175 = por %p173, %p174
      %s177 = sadd.s32 %s176, 1
      %p180 = scmp.eq.s32.totalorder %s16, 1
      %p181 = scmp.ne.s32.totalorder %s176, %s178
      %p182 = scmp.eq.s32.totalorder %s16, 0
      %p183 = por %p181, %p182
      %p184 = scmp.ne.s32.totalorder %s176, %s178
      %p185 = scmp.eq.s32.totalorder %s21, 1
      %p186 = por %p184, %p185
      %p187 = scmp.ne.s32.totalorder %s178, %s179
      %p188 = scmp.eq.s32.totalorder %s21, 0
      %p189 = por %p187, %p188
      %p190 = scmp.ne.s32.totalorder %s178, %s179
      %p191 = scmp.eq.s32.totalorder %s22, 1
      %p192 = por %p190, %p191
      %p194 = scmp.ne.s32.totalorder %s179, %s193
      %p195 = scmp.eq.s32.totalorder %s22, 0
      %p196 = por %p194, %p195
      %s198 = sadd.s32 %s197, 1
      %p201 = scmp.eq.s32.totalorder %s16, 1
      %p202 = scmp.ne.s32.totalorder %s197, %s199
      %p203 = scmp.eq.s32.totalorder %s16, 0
      %p204 = por %p202, %p203
      %p205 = scmp.ne.s32.totalorder %s197, %s199
      %p206 = scmp.eq.s32.totalorder %s21, 1
      %p207 = por %p205, %p206
      %p208 = scmp.ne.s32.totalorder %s199, %s200
      %p209 = scmp.eq.s32.totalorder %s21, 0
      %p210 = por %p208, %p209
      %p211 = scmp.ne.s32.totalorder %s199, %s200
      %p212 = scmp.eq.s32.totalorder %s22, 1
      %p213 = por %p211, %p212
      %p215 = scmp.ne.s32.totalorder %s200, %s214
      %p216 = scmp.eq.s32.totalorder %s22, 0
      %p217 = por %p215, %p216
      %s219 = sadd.s32 %s218, 1
      %p222 = scmp.eq.s32.totalorder %s16, 1
      %p223 = scmp.ne.s32.totalorder %s218, %s220
      %p224 = scmp.eq.s32.totalorder %s16, 0
      %p225 = por %p223, %p224
      %p226 = scmp.ne.s32.totalorder %s218, %s220
      %p227 = scmp.eq.s32.totalorder %s21, 1
      %p228 = por %p226, %p227
      %p229 = scmp.ne.s32.totalorder %s220, %s221
      %p230 = scmp.eq.s32.totalorder %s21, 0
      %p231 = por %p229, %p230
      %p232 = scmp.ne.s32.totalorder %s220, %s221
      %p233 = scmp.eq.s32.totalorder %s22, 1
      %p234 = por %p232, %p233
      %p236 = scmp.ne.s32.totalorder %s221, %s235
      %p237 = scmp.eq.s32.totalorder %s22, 0
      %p238 = por %p236, %p237
      %s239 = ssub.s32 %s16, %s23
      %p240 = scmp.eq.s32.totalorder %s239, 0
      %s242 = sadd.s32 %s241, 1
      %s243 = scalar_select %p240, %s241, %s242
      %p246 = pneg %p240
      %p247 = scmp.eq.s32.totalorder %s16, 1
      %p248 = por %p246, %p247
      %p249 = scmp.ne.s32.totalorder %s241, %s244
      %p250 = scmp.eq.s32.totalorder %s16, 0
      %p251 = por %p249, %p250
      %p252 = scmp.ne.s32.totalorder %s241, %s244
      %p253 = scmp.eq.s32.totalorder %s21, 1
      %p254 = por %p252, %p253
      %p255 = scmp.ne.s32.totalorder %s244, %s245
      %p256 = scmp.eq.s32.totalorder %s21, 0
      %p257 = por %p255, %p256
      %p258 = scmp.ne.s32.totalorder %s244, %s245
      %p259 = scmp.eq.s32.totalorder %s22, 1
      %p260 = por %p258, %p259
      %p262 = scmp.ne.s32.totalorder %s245, %s261
      %p263 = scmp.eq.s32.totalorder %s22, 0
      %p264 = por %p262, %p263
      %p265 = scmp.le.s32.totalorder 1, %s16
      %p266 = scmp.lt.s32.totalorder %s16, 3
      %p267 = pnand %p265, %p266
      %p268 = pneg %p267
      // Predicated region
      $region9: #{attention_forward.1} parent=5 // pred_check
        _
      $region10: #{attention_forward.1} parent=5 // pred_check_branch
        %270 = sbr.rel (%p267) target = $region12
      $region11: #{attention_forward.1} parent=5 // pred_region
        %s271 = ssub.s32 %s16, 1
        // Predicated region
        $region13: #{attention_forward.1} parent=11 // pred_check
          %p272 = pneg %p63
        $region14: #{attention_forward.1} parent=11 // pred_check_branch
          %274 = sbr.rel (%p272) target = $region16
        $region15: #{attention_forward.1} parent=11 // pred_region
          _
        $region16: #{attention_forward.1} parent=11 // pred_fallthru
          _
        // Predicated region
        $region17: #{attention_forward.1} parent=11 // pred_check
          %p275 = pneg %p84
        $region18: #{attention_forward.1} parent=11 // pred_check_branch
          %277 = sbr.rel (%p275) target = $region20
        $region19: #{attention_forward.1} parent=11 // pred_region
          _
        $region20: #{attention_forward.1} parent=11 // pred_fallthru
          _
        // Predicated region
        $region21: #{attention_forward.1} parent=11 // pred_check
          %p278 = pneg %p105
        $region22: #{attention_forward.1} parent=11 // pred_check_branch
          %280 = sbr.rel (%p278) target = $region24
        $region23: #{attention_forward.1} parent=11 // pred_region
          _
        $region24: #{attention_forward.1} parent=11 // pred_fallthru
          _
        // Predicated region
        $region25: #{attention_forward.1} parent=11 // pred_check
          %p281 = pneg %p126
        $region26: #{attention_forward.1} parent=11 // pred_check_branch
          %283 = sbr.rel (%p281) target = $region28
        $region27: #{attention_forward.1} parent=11 // pred_region
          _
        $region28: #{attention_forward.1} parent=11 // pred_fallthru
          _
        // Predicated region
        $region29: #{attention_forward.1} parent=11 // pred_check
          %p284 = pneg %p147
        $region30: #{attention_forward.1} parent=11 // pred_check_branch
          %286 = sbr.rel (%p284) target = $region32
        $region31: #{attention_forward.1} parent=11 // pred_region
          _
        $region32: #{attention_forward.1} parent=11 // pred_fallthru
          _
        // Predicated region
        $region33: #{attention_forward.1} parent=11 // pred_check
          %p287 = pneg %p168
        $region34: #{attention_forward.1} parent=11 // pred_check_branch
          %289 = sbr.rel (%p287) target = $region36
        $region35: #{attention_forward.1} parent=11 // pred_region
          _
        $region36: #{attention_forward.1} parent=11 // pred_fallthru
          _
        // Predicated region
        $region37: #{attention_forward.1} parent=11 // pred_check
          %p290 = pneg %p189
        $region38: #{attention_forward.1} parent=11 // pred_check_branch
          %292 = sbr.rel (%p290) target = $region40
        $region39: #{attention_forward.1} parent=11 // pred_region
          _
        $region40: #{attention_forward.1} parent=11 // pred_fallthru
          _
        // Predicated region
        $region41: #{attention_forward.1} parent=11 // pred_check
          %p293 = pneg %p210
        $region42: #{attention_forward.1} parent=11 // pred_check_branch
          %295 = sbr.rel (%p293) target = $region44
        $region43: #{attention_forward.1} parent=11 // pred_region
          _
        $region44: #{attention_forward.1} parent=11 // pred_fallthru
          _
        // Predicated region
        $region45: #{attention_forward.1} parent=11 // pred_check
          %p296 = pneg %p231
        $region46: #{attention_forward.1} parent=11 // pred_check_branch
          %298 = sbr.rel (%p296) target = $region48
        $region47: #{attention_forward.1} parent=11 // pred_region
          _
        $region48: #{attention_forward.1} parent=11 // pred_fallthru
          _
      $region12: #{attention_forward.1} parent=5 // pred_fallthru
        _
      %p299 = scmp.lt.s32.totalorder %s16, 2
      // Predicated region
      $region49: #{attention_forward.1} parent=5 // pred_check
        %p300 = pneg %p299
      $region50: #{attention_forward.1} parent=5 // pred_check_branch
        %302 = sbr.rel (%p300) target = $region52
      $region51: #{attention_forward.1} parent=5 // pred_region
        // Predicated region
        $region53: #{attention_forward.1} parent=51 // pred_check
          %p303 = pneg %p36
        $region54: #{attention_forward.1} parent=51 // pred_check_branch
          %305 = sbr.rel (%p303) target = $region56
        $region55: #{attention_forward.1} parent=51 // pred_region
          %s306 = sand.u32 %s26, 1
          %s307 = sand.u32 %s26, 1
          %s308 = smul.addr %s307, 64
          %s309 = scalar_lea.vmem [#allocation2], %s308
          %s310 = smul.u32 2, %s16
          %s311 = smul.addr %s310, 8
          %s312 = scalar_lea.vmem %s0, %s311
          // Predicated region
          $region57: #{attention_forward.1} parent=55 // pred_check
            _
          $region58: #{attention_forward.1} parent=55 // pred_check_branch
            %314 = sbr.rel (0) target = $region60
          $region59: #{attention_forward.1} parent=55 // pred_region
            // Predicated region
            $region61: #{attention_forward.1} parent=59 // pred_check
              _
            $region62: #{attention_forward.1} parent=59 // pred_check_branch
              %316 = sbr.rel (0) target = $region64
            $region63: #{attention_forward.1} parent=59 // pred_region
              loop: start=0, step=1, limit=1
              $region65: #{attention_forward.1} parent=63 // loop_pre_header
                _
              $region66: #{attention_forward.1} parent=63 // loop_header
                %s318 = sphi 0, %s322
                %p319 = scmp.ge.s32.totalorder %s318, 1
                %s323 = sphi %s312, %s312
                %s324 = sphi %s309, %s309
              $region67: #{attention_forward.1} parent=63 // loop_header_branch
                %321 = sbr.rel (%p319) target = $region71
              $region68: #{attention_forward.1} parent=63 // loop_body
                %v325 = vld [vmem:[%s323] sm:$0xff]
                %326 = vst [vmem:[%s324] sm:$0xff] %v325
                %v327 = vld [vmem:[%s323 + $0x8] sm:$0xff]
                %328 = vst [vmem:[%s324 + $0x8] sm:$0xff] %v327
                %v329 = vld [vmem:[%s323 + $0x20] sm:$0xff]
                %330 = vst [vmem:[%s324 + $0x10] sm:$0xff] %v329
                %v331 = vld [vmem:[%s323 + $0x28] sm:$0xff]
                %332 = vst [vmem:[%s324 + $0x18] sm:$0xff] %v331
                %v333 = vld [vmem:[%s323 + $0x40] sm:$0xff]
                %334 = vst [vmem:[%s324 + $0x20] sm:$0xff] %v333
                %v335 = vld [vmem:[%s323 + $0x48] sm:$0xff]
                %336 = vst [vmem:[%s324 + $0x28] sm:$0xff] %v335
                %v337 = vld [vmem:[%s323 + $0x60] sm:$0xff]
                %338 = vst [vmem:[%s324 + $0x30] sm:$0xff] %v337
                %v339 = vld [vmem:[%s323 + $0x68] sm:$0xff]
                %340 = vst [vmem:[%s324 + $0x38] sm:$0xff] %v339
              $region69: #{attention_forward.1} parent=63 // loop_footer
                %s322 = sadd.s32 1, %s318
              $region70: #{attention_forward.1} parent=63 // loop_footer_branch
                %317 = sbr.rel target = $region66
              $region71: #{attention_forward.1} parent=63 // loop_exit
                _
            $region64: #{attention_forward.1} parent=59 // pred_fallthru
              _
            // Predicated region
            $region72: #{attention_forward.1} parent=59 // pred_check
              _
            $region73: #{attention_forward.1} parent=59 // pred_check_branch
              %342 = sbr.rel target = $region75
            $region74: #{attention_forward.1} parent=59 // pred_region
              _
            $region75: #{attention_forward.1} parent=59 // pred_fallthru
              _
          $region60: #{attention_forward.1} parent=55 // pred_fallthru
            _
          %343 = vnop
        $region56: #{attention_forward.1} parent=51 // pred_fallthru
          _
      $region52: #{attention_forward.1} parent=5 // pred_fallthru
        _
      %p344 = scmp.le.s32.totalorder 1, %s16
      %p345 = scmp.lt.s32.totalorder %s16, 3
      %p346 = pnand %p344, %p345
      %p347 = pneg %p346
      // Predicated region
      $region76: #{attention_forward.1} parent=5 // pred_check
        _
      $region77: #{attention_forward.1} parent=5 // pred_check_branch
        %349 = sbr.rel (%p346) target = $region79
      $region78: #{attention_forward.1} parent=5 // pred_region
        %s350 = ssub.s32 %s16, 1
        %s351 = sand.u32 %s29, 1
        %s352 = sand.u32 %s29, 1
        %s353 = smul.addr %s352, 64
        %s354 = scalar_lea.vmem [#allocation2], %s353
        // Predicated region
        $region80: #{attention_forward.1} parent=78 // pred_check
          %p355 = pneg %p42
        $region81: #{attention_forward.1} parent=78 // pred_check_branch
          %357 = sbr.rel (%p355) target = $region83
        $region82: #{attention_forward.1} parent=78 // pred_region
          _
        $region83: #{attention_forward.1} parent=78 // pred_fallthru
          _
        %s358 = sand.u32 %s29, 1
        %s359 = sand.u32 %s29, 1
        %s360 = smul.addr %s359, 64
        %s361 = scalar_lea.vmem [#allocation2], %s360
        %p362 = pneg %p42
        %p363 = pneg %p39
        %p364 = pneg %p63
        %p365 = pneg %p60
        %p366 = pneg %p84
        %p367 = pneg %p81
        %p368 = pneg %p105
        %p369 = pneg %p102
        %p370 = pneg %p126
        %p371 = pneg %p123
        %p372 = pneg %p147
        %p373 = pneg %p144
        %p374 = pneg %p168
        %p375 = pneg %p165
        %p376 = pneg %p189
        %p377 = pneg %p186
        %p378 = pneg %p210
        %p379 = pneg %p207
        %p380 = pneg %p231
        %p381 = pneg %p228
        %p382 = pneg %p257
        %p383 = pneg %p254
        %s384 = sand.u32 %s244, 1
        %s385 = sand.u32 %s244, 1
        %s386 = smul.addr %s385, 64
        %s387 = scalar_lea.vmem [#allocation3], %s386
        %s388 = smul.u32 2, %s21
        %s389 = smul.u32 2, %s21
        %v390 = vld [vmem:[%s354] sm:$0xff]
        %v391 = vld [vmem:[%s354 + $0x8] sm:$0xff]
        %v392 = vld [vmem:[%s354 + $0x10] sm:$0xff]
        %v393 = vld [vmem:[%s354 + $0x18] sm:$0xff]
        %v394 = vld [vmem:[%s354 + $0x20] sm:$0xff]
        %v395 = vld [vmem:[%s354 + $0x28] sm:$0xff]
        %v396 = vld [vmem:[%s354 + $0x30] sm:$0xff]
        %v397 = vld [vmem:[%s354 + $0x38] sm:$0xff]
        %v398 = vld [vmem:[%s1] sm:$0xff]
        %v399 = vld [vmem:[%s1 + $0x8] sm:$0xff]
        %v400 = vld [vmem:[%s1 + $0x10] sm:$0xff]
        %v401 = vld [vmem:[%s1 + $0x18] sm:$0xff]
        %v402 = vld [vmem:[%s1 + $0x20] sm:$0xff]
        %v403 = vld [vmem:[%s1 + $0x28] sm:$0xff]
        %v404 = vld [vmem:[%s1 + $0x30] sm:$0xff]
        %v405 = vld [vmem:[%s1 + $0x38] sm:$0xff]
        %v406 = vld [vmem:[%s1 + $0x40] sm:$0xff]
        %v407 = vld [vmem:[%s1 + $0x48] sm:$0xff]
        %v408 = vld [vmem:[%s1 + $0x50] sm:$0xff]
        %v409 = vld [vmem:[%s1 + $0x58] sm:$0xff]
        %v410 = vld [vmem:[%s2] sm:$0xff]
        %v411 = vld [vmem:[%s2 + $0x8] sm:$0xff]
        %v412 = vld [vmem:[%s2 + $0x10] sm:$0xff]
        %v413 = vld [vmem:[%s2 + $0x18] sm:$0xff]
        %v414 = vld [vmem:[%s2 + $0x20] sm:$0xff]
        %v415 = vld [vmem:[%s2 + $0x28] sm:$0xff]
        %v416 = vld [vmem:[%s2 + $0x30] sm:$0xff]
        %v417 = vld [vmem:[%s2 + $0x38] sm:$0xff]
        %v418 = vld [vmem:[%s2 + $0x40] sm:$0xff]
        %v419 = vld [vmem:[%s2 + $0x48] sm:$0xff]
        %v420 = vld [vmem:[%s2 + $0x50] sm:$0xff]
        %v421 = vld [vmem:[%s2 + $0x58] sm:$0xff]
        %423 = vset.pattern.permute.xlu0 0
        %424 = vperm.xlu0 %423, %v410
        %v425 = vpop.permute.xlu0 %424
        %428 = vset.pattern.permute.xlu0 0
        %429 = vperm.xlu0 %428, %v411
        %v430 = vpop.permute.xlu0 %429
        %433 = vset.pattern.permute.xlu0 0
        %434 = vperm.xlu0 %433, %v412
        %v435 = vpop.permute.xlu0 %434
        %438 = vset.pattern.permute.xlu0 0
        %439 = vperm.xlu0 %438, %v413
        %v440 = vpop.permute.xlu0 %439
        %443 = vset.pattern.permute.xlu0 0
        %444 = vperm.xlu0 %443, %v414
        %v445 = vpop.permute.xlu0 %444
        %448 = vset.pattern.permute.xlu0 0
        %449 = vperm.xlu0 %448, %v415
        %v450 = vpop.permute.xlu0 %449
        %453 = vset.pattern.permute.xlu0 0
        %454 = vperm.xlu0 %453, %v416
        %v455 = vpop.permute.xlu0 %454
        %458 = vset.pattern.permute.xlu0 0
        %459 = vperm.xlu0 %458, %v417
        %v460 = vpop.permute.xlu0 %459
        %463 = vset.pattern.permute.xlu0 0
        %464 = vperm.xlu0 %463, %v418
        %v465 = vpop.permute.xlu0 %464
        %468 = vset.pattern.permute.xlu0 0
        %469 = vperm.xlu0 %468, %v419
        %v470 = vpop.permute.xlu0 %469
        %473 = vset.pattern.permute.xlu0 0
        %474 = vperm.xlu0 %473, %v420
        %v475 = vpop.permute.xlu0 %474
        %478 = vset.pattern.permute.xlu0 0
        %479 = vperm.xlu0 %478, %v421
        %v480 = vpop.permute.xlu0 %479
        %vm482 = vcmask 261120
        %v484 = vsel %vm482, %v398, 0
        %v487 = vsel %vm482, %v399, 0
        %v490 = vsel %vm482, %v400, 0
        %v493 = vsel %vm482, %v401, 0
        %v496 = vsel %vm482, %v402, 0
        %v499 = vsel %vm482, %v403, 0
        %v502 = vsel %vm482, %v404, 0
        %v505 = vsel %vm482, %v405, 0
        %v508 = vsel %vm482, %v406, 0
        %v511 = vsel %vm482, %v407, 0
        %v514 = vsel %vm482, %v408, 0
        %v517 = vsel %vm482, %v409, 0
        %519 = vmatpush.msra.mxu0 0.0
        %520 = vmatpush.msra.mxu0 0.0
        %521 = vmatpush.msra.mxu0 0.0
        %522 = vmatpush.msra.mxu0 0.0
        %523 = vmatpush.msra.mxu0 0.0
        %524 = vmatpush.msra.mxu0 0.0
        %525 = vmatpush.msra.mxu0 0.0
        %526 = vmatpush.msra.mxu0 0.0
        %527 = vmatpush.msra.mxu0 0.0
        %528 = vmatpush.msra.mxu0 0.0
        %529 = vmatpush.msra.mxu0 0.0
        %530 = vmatpush.msra.mxu0 0.0
        %v531 = vand.u32 %v396, 4294901760
        %532 = vmatpush.msra.mxu0 %v531
        %v533 = vand.u32 %v394, 4294901760
        %534 = vmatpush.msra.mxu0 %v533
        %v535 = vand.u32 %v392, 4294901760
        %536 = vmatpush.msra.mxu0 %v535
        %v537 = vand.u32 %v390, 4294901760
        %538 = vmatpush.msra.mxu0 %v537
        %v539 = vand.u32 %v484, 4294901760
        %v540 = vsub.f32 %v484, %v539
        %v541 = vand.u32 %v540, 4294901760
        %v542 = vsub.f32 %v540, %v541
        %v543 = vand.u32 %v542, 4294901760
        %544 = vmatmul.f32.gmra.mxu0 %v543
        %v545 = vpop.f32.mrf.mxu0
        %v546 = vadd.f32 %v425, %v545
        %v547 = vand.u32 %v487, 4294901760
        %v548 = vsub.f32 %v487, %v547
        %v549 = vand.u32 %v548, 4294901760
        %v550 = vsub.f32 %v548, %v549
        %v551 = vand.u32 %v550, 4294901760
        %552 = vmatmul.f32.gmra.mxu0 %v551
        %v553 = vpop.f32.mrf.mxu0
        %v554 = vadd.f32 %v430, %v553
        %v555 = vand.u32 %v490, 4294901760
        %v556 = vsub.f32 %v490, %v555
        %v557 = vand.u32 %v556, 4294901760
        %v558 = vsub.f32 %v556, %v557
        %v559 = vand.u32 %v558, 4294901760
        %560 = vmatmul.f32.gmra.mxu0 %v559
        %v561 = vpop.f32.mrf.mxu0
        %v562 = vadd.f32 %v435, %v561
        %v563 = vand.u32 %v493, 4294901760
        %v564 = vsub.f32 %v493, %v563
        %v565 = vand.u32 %v564, 4294901760
        %v566 = vsub.f32 %v564, %v565
        %v567 = vand.u32 %v566, 4294901760
        %568 = vmatmul.f32.gmra.mxu0 %v567
        %v569 = vpop.f32.mrf.mxu0
        %v570 = vadd.f32 %v440, %v569
        %v571 = vand.u32 %v496, 4294901760
        %v572 = vsub.f32 %v496, %v571
        %v573 = vand.u32 %v572, 4294901760
        %v574 = vsub.f32 %v572, %v573
        %v575 = vand.u32 %v574, 4294901760
        %576 = vmatmul.f32.gmra.mxu0 %v575
        %v577 = vpop.f32.mrf.mxu0
        %v578 = vadd.f32 %v445, %v577
        %v579 = vand.u32 %v499, 4294901760
        %v580 = vsub.f32 %v499, %v579
        %v581 = vand.u32 %v580, 4294901760
        %v582 = vsub.f32 %v580, %v581
        %v583 = vand.u32 %v582, 4294901760
        %584 = vmatmul.f32.gmra.mxu0 %v583
        %v585 = vpop.f32.mrf.mxu0
        %v586 = vadd.f32 %v450, %v585
        %v587 = vand.u32 %v502, 4294901760
        %v588 = vsub.f32 %v502, %v587
        %v589 = vand.u32 %v588, 4294901760
        %v590 = vsub.f32 %v588, %v589
        %v591 = vand.u32 %v590, 4294901760
        %592 = vmatmul.f32.gmra.mxu0 %v591
        %v593 = vpop.f32.mrf.mxu0
        %v594 = vadd.f32 %v455, %v593
        %v595 = vand.u32 %v505, 4294901760
        %v596 = vsub.f32 %v505, %v595
        %v597 = vand.u32 %v596, 4294901760
        %v598 = vsub.f32 %v596, %v597
        %v599 = vand.u32 %v598, 4294901760
        %600 = vmatmul.f32.gmra.mxu0 %v599
        %v601 = vpop.f32.mrf.mxu0
        %v602 = vadd.f32 %v460, %v601
        %v603 = vand.u32 %v508, 4294901760
        %v604 = vsub.f32 %v508, %v603
        %v605 = vand.u32 %v604, 4294901760
        %v606 = vsub.f32 %v604, %v605
        %v607 = vand.u32 %v606, 4294901760
        %608 = vmatmul.f32.gmra.mxu0 %v607
        %v609 = vpop.f32.mrf.mxu0
        %v610 = vadd.f32 %v465, %v609
        %v611 = vand.u32 %v511, 4294901760
        %v612 = vsub.f32 %v511, %v611
        %v613 = vand.u32 %v612, 4294901760
        %v614 = vsub.f32 %v612, %v613
        %v615 = vand.u32 %v614, 4294901760
        %616 = vmatmul.f32.gmra.mxu0 %v615
        %v617 = vpop.f32.mrf.mxu0
        %v618 = vadd.f32 %v470, %v617
        %v619 = vand.u32 %v514, 4294901760
        %v620 = vsub.f32 %v514, %v619
        %v621 = vand.u32 %v620, 4294901760
        %v622 = vsub.f32 %v620, %v621
        %v623 = vand.u32 %v622, 4294901760
        %624 = vmatmul.f32.gmra.mxu0 %v623
        %v625 = vpop.f32.mrf.mxu0
        %v626 = vadd.f32 %v475, %v625
        %v627 = vand.u32 %v517, 4294901760
        %v628 = vsub.f32 %v517, %v627
        %v629 = vand.u32 %v628, 4294901760
        %v630 = vsub.f32 %v628, %v629
        %v631 = vand.u32 %v630, 4294901760
        %632 = vmatmul.f32.gmra.mxu0 %v631
        %v633 = vpop.f32.mrf.mxu0
        %v634 = vadd.f32 %v480, %v633
        %635 = vdwg.mxu0
        %636 = vmatpush.msra.mxu0 0.0
        %637 = vmatpush.msra.mxu0 0.0
        %638 = vmatpush.msra.mxu0 0.0
        %639 = vmatpush.msra.mxu0 0.0
        %640 = vmatpush.msra.mxu0 0.0
        %641 = vmatpush.msra.mxu0 0.0
        %642 = vmatpush.msra.mxu0 0.0
        %643 = vmatpush.msra.mxu0 0.0
        %644 = vmatpush.msra.mxu0 0.0
        %645 = vmatpush.msra.mxu0 0.0
        %646 = vmatpush.msra.mxu0 0.0
        %647 = vmatpush.msra.mxu0 0.0
        %v648 = vand.u32 %v396, 4294901760
        %v649 = vsub.f32 %v396, %v648
        %v650 = vand.u32 %v649, 4294901760
        %v651 = vsub.f32 %v649, %v650
        %v652 = vand.u32 %v651, 4294901760
        %653 = vmatpush.msra.mxu0 %v652
        %v654 = vand.u32 %v394, 4294901760
        %v655 = vsub.f32 %v394, %v654
        %v656 = vand.u32 %v655, 4294901760
        %v657 = vsub.f32 %v655, %v656
        %v658 = vand.u32 %v657, 4294901760
        %659 = vmatpush.msra.mxu0 %v658
        %v660 = vand.u32 %v392, 4294901760
        %v661 = vsub.f32 %v392, %v660
        %v662 = vand.u32 %v661, 4294901760
        %v663 = vsub.f32 %v661, %v662
        %v664 = vand.u32 %v663, 4294901760
        %665 = vmatpush.msra.mxu0 %v664
        %v666 = vand.u32 %v390, 4294901760
        %v667 = vsub.f32 %v390, %v666
        %v668 = vand.u32 %v667, 4294901760
        %v669 = vsub.f32 %v667, %v668
        %v670 = vand.u32 %v669, 4294901760
        %671 = vmatpush.msra.mxu0 %v670
        %v672 = vand.u32 %v484, 4294901760
        %673 = vmatmul.f32.gmra.mxu0 %v672
        %v674 = vpop.f32.mrf.mxu0
        %v675 = vadd.f32 %v546, %v674
        %v676 = vand.u32 %v487, 4294901760
        %677 = vmatmul.f32.gmra.mxu0 %v676
        %v678 = vpop.f32.mrf.mxu0
        %v679 = vadd.f32 %v554, %v678
        %v680 = vand.u32 %v490, 4294901760
        %681 = vmatmul.f32.gmra.mxu0 %v680
        %v682 = vpop.f32.mrf.mxu0
        %v683 = vadd.f32 %v562, %v682
        %v684 = vand.u32 %v493, 4294901760
        %685 = vmatmul.f32.gmra.mxu0 %v684
        %v686 = vpop.f32.mrf.mxu0
        %v687 = vadd.f32 %v570, %v686
        %v688 = vand.u32 %v496, 4294901760
        %689 = vmatmul.f32.gmra.mxu0 %v688
        %v690 = vpop.f32.mrf.mxu0
        %v691 = vadd.f32 %v578, %v690
        %v692 = vand.u32 %v499, 4294901760
        %693 = vmatmul.f32.gmra.mxu0 %v692
        %v694 = vpop.f32.mrf.mxu0
        %v695 = vadd.f32 %v586, %v694
        %v696 = vand.u32 %v502, 4294901760
        %697 = vmatmul.f32.gmra.mxu0 %v696
        %v698 = vpop.f32.mrf.mxu0
        %v699 = vadd.f32 %v594, %v698
        %v700 = vand.u32 %v505, 4294901760
        %701 = vmatmul.f32.gmra.mxu0 %v700
        %v702 = vpop.f32.mrf.mxu0
        %v703 = vadd.f32 %v602, %v702
        %v704 = vand.u32 %v508, 4294901760
        %705 = vmatmul.f32.gmra.mxu0 %v704
        %v706 = vpop.f32.mrf.mxu0
        %v707 = vadd.f32 %v610, %v706
        %v708 = vand.u32 %v511, 4294901760
        %709 = vmatmul.f32.gmra.mxu0 %v708
        %v710 = vpop.f32.mrf.mxu0
        %v711 = vadd.f32 %v618, %v710
        %v712 = vand.u32 %v514, 4294901760
        %713 = vmatmul.f32.gmra.mxu0 %v712
        %v714 = vpop.f32.mrf.mxu0
        %v715 = vadd.f32 %v626, %v714
        %v716 = vand.u32 %v517, 4294901760
        %717 = vmatmul.f32.gmra.mxu0 %v716
        %v718 = vpop.f32.mrf.mxu0
        %v719 = vadd.f32 %v634, %v718
        %720 = vdwg.mxu0
        %721 = vmatpush.msra.mxu0 0.0
        %722 = vmatpush.msra.mxu0 0.0
        %723 = vmatpush.msra.mxu0 0.0
        %724 = vmatpush.msra.mxu0 0.0
        %725 = vmatpush.msra.mxu0 0.0
        %726 = vmatpush.msra.mxu0 0.0
        %727 = vmatpush.msra.mxu0 0.0
        %728 = vmatpush.msra.mxu0 0.0
        %729 = vmatpush.msra.mxu0 0.0
        %730 = vmatpush.msra.mxu0 0.0
        %731 = vmatpush.msra.mxu0 0.0
        %732 = vmatpush.msra.mxu0 0.0
        %v733 = vand.u32 %v396, 4294901760
        %v734 = vsub.f32 %v396, %v733
        %735 = vmatpush.msra.mxu0 %v734
        %v736 = vand.u32 %v394, 4294901760
        %v737 = vsub.f32 %v394, %v736
        %738 = vmatpush.msra.mxu0 %v737
        %v739 = vand.u32 %v392, 4294901760
        %v740 = vsub.f32 %v392, %v739
        %741 = vmatpush.msra.mxu0 %v740
        %v742 = vand.u32 %v390, 4294901760
        %v743 = vsub.f32 %v390, %v742
        %744 = vmatpush.msra.mxu0 %v743
        %v745 = vand.u32 %v484, 4294901760
        %v746 = vsub.f32 %v484, %v745
        %747 = vmatmul.f32.gmra.mxu0 %v746
        %v748 = vpop.f32.mrf.mxu0
        %v749 = vadd.f32 %v675, %v748
        %v750 = vand.u32 %v487, 4294901760
        %v751 = vsub.f32 %v487, %v750
        %752 = vmatmul.f32.gmra.mxu0 %v751
        %v753 = vpop.f32.mrf.mxu0
        %v754 = vadd.f32 %v679, %v753
        %v755 = vand.u32 %v490, 4294901760
        %v756 = vsub.f32 %v490, %v755
        %757 = vmatmul.f32.gmra.mxu0 %v756
        %v758 = vpop.f32.mrf.mxu0
        %v759 = vadd.f32 %v683, %v758
        %v760 = vand.u32 %v493, 4294901760
        %v761 = vsub.f32 %v493, %v760
        %762 = vmatmul.f32.gmra.mxu0 %v761
        %v763 = vpop.f32.mrf.mxu0
        %v764 = vadd.f32 %v687, %v763
        %v765 = vand.u32 %v496, 4294901760
        %v766 = vsub.f32 %v496, %v765
        %767 = vmatmul.f32.gmra.mxu0 %v766
        %v768 = vpop.f32.mrf.mxu0
        %v769 = vadd.f32 %v691, %v768
        %v770 = vand.u32 %v499, 4294901760
        %v771 = vsub.f32 %v499, %v770
        %772 = vmatmul.f32.gmra.mxu0 %v771
        %v773 = vpop.f32.mrf.mxu0
        %v774 = vadd.f32 %v695, %v773
        %v775 = vand.u32 %v502, 4294901760
        %v776 = vsub.f32 %v502, %v775
        %777 = vmatmul.f32.gmra.mxu0 %v776
        %v778 = vpop.f32.mrf.mxu0
        %v779 = vadd.f32 %v699, %v778
        %v780 = vand.u32 %v505, 4294901760
        %v781 = vsub.f32 %v505, %v780
        %782 = vmatmul.f32.gmra.mxu0 %v781
        %v783 = vpop.f32.mrf.mxu0
        %v784 = vadd.f32 %v703, %v783
        %v785 = vand.u32 %v508, 4294901760
        %v786 = vsub.f32 %v508, %v785
        %787 = vmatmul.f32.gmra.mxu0 %v786
        %v788 = vpop.f32.mrf.mxu0
        %v789 = vadd.f32 %v707, %v788
        %v790 = vand.u32 %v511, 4294901760
        %v791 = vsub.f32 %v511, %v790
        %792 = vmatmul.f32.gmra.mxu0 %v791
        %v793 = vpop.f32.mrf.mxu0
        %v794 = vadd.f32 %v711, %v793
        %v795 = vand.u32 %v514, 4294901760
        %v796 = vsub.f32 %v514, %v795
        %797 = vmatmul.f32.gmra.mxu0 %v796
        %v798 = vpop.f32.mrf.mxu0
        %v799 = vadd.f32 %v715, %v798
        %v800 = vand.u32 %v517, 4294901760
        %v801 = vsub.f32 %v517, %v800
        %802 = vmatmul.f32.gmra.mxu0 %v801
        %v803 = vpop.f32.mrf.mxu0
        %v804 = vadd.f32 %v719, %v803
        %805 = vdwg.mxu0
        %806 = vmatpush.msra.mxu0 0.0
        %807 = vmatpush.msra.mxu0 0.0
        %808 = vmatpush.msra.mxu0 0.0
        %809 = vmatpush.msra.mxu0 0.0
        %810 = vmatpush.msra.mxu0 0.0
        %811 = vmatpush.msra.mxu0 0.0
        %812 = vmatpush.msra.mxu0 0.0
        %813 = vmatpush.msra.mxu0 0.0
        %814 = vmatpush.msra.mxu0 0.0
        %815 = vmatpush.msra.mxu0 0.0
        %816 = vmatpush.msra.mxu0 0.0
        %817 = vmatpush.msra.mxu0 0.0
        %v818 = vand.u32 %v396, 4294901760
        %819 = vmatpush.msra.mxu0 %v818
        %v820 = vand.u32 %v394, 4294901760
        %821 = vmatpush.msra.mxu0 %v820
        %v822 = vand.u32 %v392, 4294901760
        %823 = vmatpush.msra.mxu0 %v822
        %v824 = vand.u32 %v390, 4294901760
        %825 = vmatpush.msra.mxu0 %v824
        %v826 = vand.u32 %v484, 4294901760
        %v827 = vsub.f32 %v484, %v826
        %v828 = vand.u32 %v827, 4294901760
        %829 = vmatmul.f32.gmra.mxu0 %v828
        %v830 = vpop.f32.mrf.mxu0
        %v831 = vadd.f32 %v749, %v830
        %v832 = vand.u32 %v487, 4294901760
        %v833 = vsub.f32 %v487, %v832
        %v834 = vand.u32 %v833, 4294901760
        %835 = vmatmul.f32.gmra.mxu0 %v834
        %v836 = vpop.f32.mrf.mxu0
        %v837 = vadd.f32 %v754, %v836
        %v838 = vand.u32 %v490, 4294901760
        %v839 = vsub.f32 %v490, %v838
        %v840 = vand.u32 %v839, 4294901760
        %841 = vmatmul.f32.gmra.mxu0 %v840
        %v842 = vpop.f32.mrf.mxu0
        %v843 = vadd.f32 %v759, %v842
        %v844 = vand.u32 %v493, 4294901760
        %v845 = vsub.f32 %v493, %v844
        %v846 = vand.u32 %v845, 4294901760
        %847 = vmatmul.f32.gmra.mxu0 %v846
        %v848 = vpop.f32.mrf.mxu0
        %v849 = vadd.f32 %v764, %v848
        %v850 = vand.u32 %v496, 4294901760
        %v851 = vsub.f32 %v496, %v850
        %v852 = vand.u32 %v851, 4294901760
        %853 = vmatmul.f32.gmra.mxu0 %v852
        %v854 = vpop.f32.mrf.mxu0
        %v855 = vadd.f32 %v769, %v854
        %v856 = vand.u32 %v499, 4294901760
        %v857 = vsub.f32 %v499, %v856
        %v858 = vand.u32 %v857, 4294901760
        %859 = vmatmul.f32.gmra.mxu0 %v858
        %v860 = vpop.f32.mrf.mxu0
        %v861 = vadd.f32 %v774, %v860
        %v862 = vand.u32 %v502, 4294901760
        %v863 = vsub.f32 %v502, %v862
        %v864 = vand.u32 %v863, 4294901760
        %865 = vmatmul.f32.gmra.mxu0 %v864
        %v866 = vpop.f32.mrf.mxu0
        %v867 = vadd.f32 %v779, %v866
        %v868 = vand.u32 %v505, 4294901760
        %v869 = vsub.f32 %v505, %v868
        %v870 = vand.u32 %v869, 4294901760
        %871 = vmatmul.f32.gmra.mxu0 %v870
        %v872 = vpop.f32.mrf.mxu0
        %v873 = vadd.f32 %v784, %v872
        %v874 = vand.u32 %v508, 4294901760
        %v875 = vsub.f32 %v508, %v874
        %v876 = vand.u32 %v875, 4294901760
        %877 = vmatmul.f32.gmra.mxu0 %v876
        %v878 = vpop.f32.mrf.mxu0
        %v879 = vadd.f32 %v789, %v878
        %v880 = vand.u32 %v511, 4294901760
        %v881 = vsub.f32 %v511, %v880
        %v882 = vand.u32 %v881, 4294901760
        %883 = vmatmul.f32.gmra.mxu0 %v882
        %v884 = vpop.f32.mrf.mxu0
        %v885 = vadd.f32 %v794, %v884
        %v886 = vand.u32 %v514, 4294901760
        %v887 = vsub.f32 %v514, %v886
        %v888 = vand.u32 %v887, 4294901760
        %889 = vmatmul.f32.gmra.mxu0 %v888
        %v890 = vpop.f32.mrf.mxu0
        %v891 = vadd.f32 %v799, %v890
        %v892 = vand.u32 %v517, 4294901760
        %v893 = vsub.f32 %v517, %v892
        %v894 = vand.u32 %v893, 4294901760
        %895 = vmatmul.f32.gmra.mxu0 %v894
        %v896 = vpop.f32.mrf.mxu0
        %v897 = vadd.f32 %v804, %v896
        %898 = vdwg.mxu0
        %899 = vmatpush.msra.mxu0 0.0
        %900 = vmatpush.msra.mxu0 0.0
        %901 = vmatpush.msra.mxu0 0.0
        %902 = vmatpush.msra.mxu0 0.0
        %903 = vmatpush.msra.mxu0 0.0
        %904 = vmatpush.msra.mxu0 0.0
        %905 = vmatpush.msra.mxu0 0.0
        %906 = vmatpush.msra.mxu0 0.0
        %907 = vmatpush.msra.mxu0 0.0
        %908 = vmatpush.msra.mxu0 0.0
        %909 = vmatpush.msra.mxu0 0.0
        %910 = vmatpush.msra.mxu0 0.0
        %v911 = vand.u32 %v396, 4294901760
        %v912 = vsub.f32 %v396, %v911
        %v913 = vand.u32 %v912, 4294901760
        %914 = vmatpush.msra.mxu0 %v913
        %v915 = vand.u32 %v394, 4294901760
        %v916 = vsub.f32 %v394, %v915
        %v917 = vand.u32 %v916, 4294901760
        %918 = vmatpush.msra.mxu0 %v917
        %v919 = vand.u32 %v392, 4294901760
        %v920 = vsub.f32 %v392, %v919
        %v921 = vand.u32 %v920, 4294901760
        %922 = vmatpush.msra.mxu0 %v921
        %v923 = vand.u32 %v390, 4294901760
        %v924 = vsub.f32 %v390, %v923
        %v925 = vand.u32 %v924, 4294901760
        %926 = vmatpush.msra.mxu0 %v925
        %v927 = vand.u32 %v484, 4294901760
        %928 = vmatmul.f32.gmra.mxu0 %v927
        %v929 = vpop.f32.mrf.mxu0
        %v930 = vadd.f32 %v831, %v929
        %v931 = vand.u32 %v487, 4294901760
        %932 = vmatmul.f32.gmra.mxu0 %v931
        %v933 = vpop.f32.mrf.mxu0
        %v934 = vadd.f32 %v837, %v933
        %v935 = vand.u32 %v490, 4294901760
        %936 = vmatmul.f32.gmra.mxu0 %v935
        %v937 = vpop.f32.mrf.mxu0
        %v938 = vadd.f32 %v843, %v937
        %v939 = vand.u32 %v493, 4294901760
        %940 = vmatmul.f32.gmra.mxu0 %v939
        %v941 = vpop.f32.mrf.mxu0
        %v942 = vadd.f32 %v849, %v941
        %v943 = vand.u32 %v496, 4294901760
        %944 = vmatmul.f32.gmra.mxu0 %v943
        %v945 = vpop.f32.mrf.mxu0
        %v946 = vadd.f32 %v855, %v945
        %v947 = vand.u32 %v499, 4294901760
        %948 = vmatmul.f32.gmra.mxu0 %v947
        %v949 = vpop.f32.mrf.mxu0
        %v950 = vadd.f32 %v861, %v949
        %v951 = vand.u32 %v502, 4294901760
        %952 = vmatmul.f32.gmra.mxu0 %v951
        %v953 = vpop.f32.mrf.mxu0
        %v954 = vadd.f32 %v867, %v953
        %v955 = vand.u32 %v505, 4294901760
        %956 = vmatmul.f32.gmra.mxu0 %v955
        %v957 = vpop.f32.mrf.mxu0
        %v958 = vadd.f32 %v873, %v957
        %v959 = vand.u32 %v508, 4294901760
        %960 = vmatmul.f32.gmra.mxu0 %v959
        %v961 = vpop.f32.mrf.mxu0
        %v962 = vadd.f32 %v879, %v961
        %v963 = vand.u32 %v511, 4294901760
        %964 = vmatmul.f32.gmra.mxu0 %v963
        %v965 = vpop.f32.mrf.mxu0
        %v966 = vadd.f32 %v885, %v965
        %v967 = vand.u32 %v514, 4294901760
        %968 = vmatmul.f32.gmra.mxu0 %v967
        %v969 = vpop.f32.mrf.mxu0
        %v970 = vadd.f32 %v891, %v969
        %v971 = vand.u32 %v517, 4294901760
        %972 = vmatmul.f32.gmra.mxu0 %v971
        %v973 = vpop.f32.mrf.mxu0
        %v974 = vadd.f32 %v897, %v973
        %975 = vdwg.mxu0
        %976 = vmatpush.msra.mxu0 0.0
        %977 = vmatpush.msra.mxu0 0.0
        %978 = vmatpush.msra.mxu0 0.0
        %979 = vmatpush.msra.mxu0 0.0
        %980 = vmatpush.msra.mxu0 0.0
        %981 = vmatpush.msra.mxu0 0.0
        %982 = vmatpush.msra.mxu0 0.0
        %983 = vmatpush.msra.mxu0 0.0
        %984 = vmatpush.msra.mxu0 0.0
        %985 = vmatpush.msra.mxu0 0.0
        %986 = vmatpush.msra.mxu0 0.0
        %987 = vmatpush.msra.mxu0 0.0
        %v988 = vand.u32 %v396, 4294901760
        %989 = vmatpush.msra.mxu0 %v988
        %v990 = vand.u32 %v394, 4294901760
        %991 = vmatpush.msra.mxu0 %v990
        %v992 = vand.u32 %v392, 4294901760
        %993 = vmatpush.msra.mxu0 %v992
        %v994 = vand.u32 %v390, 4294901760
        %995 = vmatpush.msra.mxu0 %v994
        %v996 = vand.u32 %v484, 4294901760
        %997 = vmatmul.f32.gmra.mxu0 %v996
        %v998 = vpop.f32.mrf.mxu0
        %v999 = vadd.f32 %v930, %v998
        %v1000 = vand.u32 %v487, 4294901760
        %1001 = vmatmul.f32.gmra.mxu0 %v1000
        %v1002 = vpop.f32.mrf.mxu0
        %v1003 = vadd.f32 %v934, %v1002
        %v1004 = vand.u32 %v490, 4294901760
        %1005 = vmatmul.f32.gmra.mxu0 %v1004
        %v1006 = vpop.f32.mrf.mxu0
        %v1007 = vadd.f32 %v938, %v1006
        %v1008 = vand.u32 %v493, 4294901760
        %1009 = vmatmul.f32.gmra.mxu0 %v1008
        %v1010 = vpop.f32.mrf.mxu0
        %v1011 = vadd.f32 %v942, %v1010
        %v1012 = vand.u32 %v496, 4294901760
        %1013 = vmatmul.f32.gmra.mxu0 %v1012
        %v1014 = vpop.f32.mrf.mxu0
        %v1015 = vadd.f32 %v946, %v1014
        %v1016 = vand.u32 %v499, 4294901760
        %1017 = vmatmul.f32.gmra.mxu0 %v1016
        %v1018 = vpop.f32.mrf.mxu0
        %v1019 = vadd.f32 %v950, %v1018
        %v1020 = vand.u32 %v502, 4294901760
        %1021 = vmatmul.f32.gmra.mxu0 %v1020
        %v1022 = vpop.f32.mrf.mxu0
        %v1023 = vadd.f32 %v954, %v1022
        %v1024 = vand.u32 %v505, 4294901760
        %1025 = vmatmul.f32.gmra.mxu0 %v1024
        %v1026 = vpop.f32.mrf.mxu0
        %v1027 = vadd.f32 %v958, %v1026
        %v1028 = vand.u32 %v508, 4294901760
        %1029 = vmatmul.f32.gmra.mxu0 %v1028
        %v1030 = vpop.f32.mrf.mxu0
        %v1031 = vadd.f32 %v962, %v1030
        %v1032 = vand.u32 %v511, 4294901760
        %1033 = vmatmul.f32.gmra.mxu0 %v1032
        %v1034 = vpop.f32.mrf.mxu0
        %v1035 = vadd.f32 %v966, %v1034
        %v1036 = vand.u32 %v514, 4294901760
        %1037 = vmatmul.f32.gmra.mxu0 %v1036
        %v1038 = vpop.f32.mrf.mxu0
        %v1039 = vadd.f32 %v970, %v1038
        %v1040 = vand.u32 %v517, 4294901760
        %1041 = vmatmul.f32.gmra.mxu0 %v1040
        %v1042 = vpop.f32.mrf.mxu0
        %v1043 = vadd.f32 %v974, %v1042
        %1044 = vdwg.mxu0
        %1045 = vmatpush.msra.mxu0 0.0
        %1046 = vmatpush.msra.mxu0 0.0
        %1047 = vmatpush.msra.mxu0 0.0
        %1048 = vmatpush.msra.mxu0 0.0
        %1049 = vmatpush.msra.mxu0 0.0
        %1050 = vmatpush.msra.mxu0 0.0
        %1051 = vmatpush.msra.mxu0 0.0
        %1052 = vmatpush.msra.mxu0 0.0
        %1053 = vmatpush.msra.mxu0 0.0
        %1054 = vmatpush.msra.mxu0 0.0
        %1055 = vmatpush.msra.mxu0 0.0
        %1056 = vmatpush.msra.mxu0 0.0
        %v1057 = vand.u32 %v397, 4294901760
        %1058 = vmatpush.msra.mxu0 %v1057
        %v1059 = vand.u32 %v395, 4294901760
        %1060 = vmatpush.msra.mxu0 %v1059
        %v1061 = vand.u32 %v393, 4294901760
        %1062 = vmatpush.msra.mxu0 %v1061
        %v1063 = vand.u32 %v391, 4294901760
        %1064 = vmatpush.msra.mxu0 %v1063
        %v1065 = vand.u32 %v484, 4294901760
        %v1066 = vsub.f32 %v484, %v1065
        %v1067 = vand.u32 %v1066, 4294901760
        %v1068 = vsub.f32 %v1066, %v1067
        %v1069 = vand.u32 %v1068, 4294901760
        %1070 = vmatmul.f32.gmra.mxu0 %v1069
        %v1071 = vpop.f32.mrf.mxu0
        %v1072 = vadd.f32 %v425, %v1071
        %v1073 = vand.u32 %v487, 4294901760
        %v1074 = vsub.f32 %v487, %v1073
        %v1075 = vand.u32 %v1074, 4294901760
        %v1076 = vsub.f32 %v1074, %v1075
        %v1077 = vand.u32 %v1076, 4294901760
        %1078 = vmatmul.f32.gmra.mxu0 %v1077
        %v1079 = vpop.f32.mrf.mxu0
        %v1080 = vadd.f32 %v430, %v1079
        %v1081 = vand.u32 %v490, 4294901760
        %v1082 = vsub.f32 %v490, %v1081
        %v1083 = vand.u32 %v1082, 4294901760
        %v1084 = vsub.f32 %v1082, %v1083
        %v1085 = vand.u32 %v1084, 4294901760
        %1086 = vmatmul.f32.gmra.mxu0 %v1085
        %v1087 = vpop.f32.mrf.mxu0
        %v1088 = vadd.f32 %v435, %v1087
        %v1089 = vand.u32 %v493, 4294901760
        %v1090 = vsub.f32 %v493, %v1089
        %v1091 = vand.u32 %v1090, 4294901760
        %v1092 = vsub.f32 %v1090, %v1091
        %v1093 = vand.u32 %v1092, 4294901760
        %1094 = vmatmul.f32.gmra.mxu0 %v1093
        %v1095 = vpop.f32.mrf.mxu0
        %v1096 = vadd.f32 %v440, %v1095
        %v1097 = vand.u32 %v496, 4294901760
        %v1098 = vsub.f32 %v496, %v1097
        %v1099 = vand.u32 %v1098, 4294901760
        %v1100 = vsub.f32 %v1098, %v1099
        %v1101 = vand.u32 %v1100, 4294901760
        %1102 = vmatmul.f32.gmra.mxu0 %v1101
        %v1103 = vpop.f32.mrf.mxu0
        %v1104 = vadd.f32 %v445, %v1103
        %v1105 = vand.u32 %v499, 4294901760
        %v1106 = vsub.f32 %v499, %v1105
        %v1107 = vand.u32 %v1106, 4294901760
        %v1108 = vsub.f32 %v1106, %v1107
        %v1109 = vand.u32 %v1108, 4294901760
        %1110 = vmatmul.f32.gmra.mxu0 %v1109
        %v1111 = vpop.f32.mrf.mxu0
        %v1112 = vadd.f32 %v450, %v1111
        %v1113 = vand.u32 %v502, 4294901760
        %v1114 = vsub.f32 %v502, %v1113
        %v1115 = vand.u32 %v1114, 4294901760
        %v1116 = vsub.f32 %v1114, %v1115
        %v1117 = vand.u32 %v1116, 4294901760
        %1118 = vmatmul.f32.gmra.mxu0 %v1117
        %v1119 = vpop.f32.mrf.mxu0
        %v1120 = vadd.f32 %v455, %v1119
        %v1121 = vand.u32 %v505, 4294901760
        %v1122 = vsub.f32 %v505, %v1121
        %v1123 = vand.u32 %v1122, 4294901760
        %v1124 = vsub.f32 %v1122, %v1123
        %v1125 = vand.u32 %v1124, 4294901760
        %1126 = vmatmul.f32.gmra.mxu0 %v1125
        %v1127 = vpop.f32.mrf.mxu0
        %v1128 = vadd.f32 %v460, %v1127
        %v1129 = vand.u32 %v508, 4294901760
        %v1130 = vsub.f32 %v508, %v1129
        %v1131 = vand.u32 %v1130, 4294901760
        %v1132 = vsub.f32 %v1130, %v1131
        %v1133 = vand.u32 %v1132, 4294901760
        %1134 = vmatmul.f32.gmra.mxu0 %v1133
        %v1135 = vpop.f32.mrf.mxu0
        %v1136 = vadd.f32 %v465, %v1135
        %v1137 = vand.u32 %v511, 4294901760
        %v1138 = vsub.f32 %v511, %v1137
        %v1139 = vand.u32 %v1138, 4294901760
        %v1140 = vsub.f32 %v1138, %v1139
        %v1141 = vand.u32 %v1140, 4294901760
        %1142 = vmatmul.f32.gmra.mxu0 %v1141
        %v1143 = vpop.f32.mrf.mxu0
        %v1144 = vadd.f32 %v470, %v1143
        %v1145 = vand.u32 %v514, 4294901760
        %v1146 = vsub.f32 %v514, %v1145
        %v1147 = vand.u32 %v1146, 4294901760
        %v1148 = vsub.f32 %v1146, %v1147
        %v1149 = vand.u32 %v1148, 4294901760
        %1150 = vmatmul.f32.gmra.mxu0 %v1149
        %v1151 = vpop.f32.mrf.mxu0
        %v1152 = vadd.f32 %v475, %v1151
        %v1153 = vand.u32 %v517, 4294901760
        %v1154 = vsub.f32 %v517, %v1153
        %v1155 = vand.u32 %v1154, 4294901760
        %v1156 = vsub.f32 %v1154, %v1155
        %v1157 = vand.u32 %v1156, 4294901760
        %1158 = vmatmul.f32.gmra.mxu0 %v1157
        %v1159 = vpop.f32.mrf.mxu0
        %v1160 = vadd.f32 %v480, %v1159
        %1161 = vdwg.mxu0
        %1162 = vmatpush.msra.mxu0 0.0
        %1163 = vmatpush.msra.mxu0 0.0
        %1164 = vmatpush.msra.mxu0 0.0
        %1165 = vmatpush.msra.mxu0 0.0
        %1166 = vmatpush.msra.mxu0 0.0
        %1167 = vmatpush.msra.mxu0 0.0
        %1168 = vmatpush.msra.mxu0 0.0
        %1169 = vmatpush.msra.mxu0 0.0
        %1170 = vmatpush.msra.mxu0 0.0
        %1171 = vmatpush.msra.mxu0 0.0
        %1172 = vmatpush.msra.mxu0 0.0
        %1173 = vmatpush.msra.mxu0 0.0
        %v1174 = vand.u32 %v397, 4294901760
        %v1175 = vsub.f32 %v397, %v1174
        %v1176 = vand.u32 %v1175, 4294901760
        %v1177 = vsub.f32 %v1175, %v1176
        %v1178 = vand.u32 %v1177, 4294901760
        %1179 = vmatpush.msra.mxu0 %v1178
        %v1180 = vand.u32 %v395, 4294901760
        %v1181 = vsub.f32 %v395, %v1180
        %v1182 = vand.u32 %v1181, 4294901760
        %v1183 = vsub.f32 %v1181, %v1182
        %v1184 = vand.u32 %v1183, 4294901760
        %1185 = vmatpush.msra.mxu0 %v1184
        %v1186 = vand.u32 %v393, 4294901760
        %v1187 = vsub.f32 %v393, %v1186
        %v1188 = vand.u32 %v1187, 4294901760
        %v1189 = vsub.f32 %v1187, %v1188
        %v1190 = vand.u32 %v1189, 4294901760
        %1191 = vmatpush.msra.mxu0 %v1190
        %v1192 = vand.u32 %v391, 4294901760
        %v1193 = vsub.f32 %v391, %v1192
        %v1194 = vand.u32 %v1193, 4294901760
        %v1195 = vsub.f32 %v1193, %v1194
        %v1196 = vand.u32 %v1195, 4294901760
        %1197 = vmatpush.msra.mxu0 %v1196
        %v1198 = vand.u32 %v484, 4294901760
        %1199 = vmatmul.f32.gmra.mxu0 %v1198
        %v1200 = vpop.f32.mrf.mxu0
        %v1201 = vadd.f32 %v1072, %v1200
        %v1202 = vand.u32 %v487, 4294901760
        %1203 = vmatmul.f32.gmra.mxu0 %v1202
        %v1204 = vpop.f32.mrf.mxu0
        %v1205 = vadd.f32 %v1080, %v1204
        %v1206 = vand.u32 %v490, 4294901760
        %1207 = vmatmul.f32.gmra.mxu0 %v1206
        %v1208 = vpop.f32.mrf.mxu0
        %v1209 = vadd.f32 %v1088, %v1208
        %v1210 = vand.u32 %v493, 4294901760
        %1211 = vmatmul.f32.gmra.mxu0 %v1210
        %v1212 = vpop.f32.mrf.mxu0
        %v1213 = vadd.f32 %v1096, %v1212
        %v1214 = vand.u32 %v496, 4294901760
        %1215 = vmatmul.f32.gmra.mxu0 %v1214
        %v1216 = vpop.f32.mrf.mxu0
        %v1217 = vadd.f32 %v1104, %v1216
        %v1218 = vand.u32 %v499, 4294901760
        %1219 = vmatmul.f32.gmra.mxu0 %v1218
        %v1220 = vpop.f32.mrf.mxu0
        %v1221 = vadd.f32 %v1112, %v1220
        %v1222 = vand.u32 %v502, 4294901760
        %1223 = vmatmul.f32.gmra.mxu0 %v1222
        %v1224 = vpop.f32.mrf.mxu0
        %v1225 = vadd.f32 %v1120, %v1224
        %v1226 = vand.u32 %v505, 4294901760
        %1227 = vmatmul.f32.gmra.mxu0 %v1226
        %v1228 = vpop.f32.mrf.mxu0
        %v1229 = vadd.f32 %v1128, %v1228
        %v1230 = vand.u32 %v508, 4294901760
        %1231 = vmatmul.f32.gmra.mxu0 %v1230
        %v1232 = vpop.f32.mrf.mxu0
        %v1233 = vadd.f32 %v1136, %v1232
        %v1234 = vand.u32 %v511, 4294901760
        %1235 = vmatmul.f32.gmra.mxu0 %v1234
        %v1236 = vpop.f32.mrf.mxu0
        %v1237 = vadd.f32 %v1144, %v1236
        %v1238 = vand.u32 %v514, 4294901760
        %1239 = vmatmul.f32.gmra.mxu0 %v1238
        %v1240 = vpop.f32.mrf.mxu0
        %v1241 = vadd.f32 %v1152, %v1240
        %v1242 = vand.u32 %v517, 4294901760
        %1243 = vmatmul.f32.gmra.mxu0 %v1242
        %v1244 = vpop.f32.mrf.mxu0
        %v1245 = vadd.f32 %v1160, %v1244
        %1246 = vdwg.mxu0
        %1247 = vmatpush.msra.mxu0 0.0
        %1248 = vmatpush.msra.mxu0 0.0
        %1249 = vmatpush.msra.mxu0 0.0
        %1250 = vmatpush.msra.mxu0 0.0
        %1251 = vmatpush.msra.mxu0 0.0
        %1252 = vmatpush.msra.mxu0 0.0
        %1253 = vmatpush.msra.mxu0 0.0
        %1254 = vmatpush.msra.mxu0 0.0
        %1255 = vmatpush.msra.mxu0 0.0
        %1256 = vmatpush.msra.mxu0 0.0
        %1257 = vmatpush.msra.mxu0 0.0
        %1258 = vmatpush.msra.mxu0 0.0
        %v1259 = vand.u32 %v397, 4294901760
        %v1260 = vsub.f32 %v397, %v1259
        %1261 = vmatpush.msra.mxu0 %v1260
        %v1262 = vand.u32 %v395, 4294901760
        %v1263 = vsub.f32 %v395, %v1262
        %1264 = vmatpush.msra.mxu0 %v1263
        %v1265 = vand.u32 %v393, 4294901760
        %v1266 = vsub.f32 %v393, %v1265
        %1267 = vmatpush.msra.mxu0 %v1266
        %v1268 = vand.u32 %v391, 4294901760
        %v1269 = vsub.f32 %v391, %v1268
        %1270 = vmatpush.msra.mxu0 %v1269
        %v1271 = vand.u32 %v484, 4294901760
        %v1272 = vsub.f32 %v484, %v1271
        %1273 = vmatmul.f32.gmra.mxu0 %v1272
        %v1274 = vpop.f32.mrf.mxu0
        %v1275 = vadd.f32 %v1201, %v1274
        %v1276 = vand.u32 %v487, 4294901760
        %v1277 = vsub.f32 %v487, %v1276
        %1278 = vmatmul.f32.gmra.mxu0 %v1277
        %v1279 = vpop.f32.mrf.mxu0
        %v1280 = vadd.f32 %v1205, %v1279
        %v1281 = vand.u32 %v490, 4294901760
        %v1282 = vsub.f32 %v490, %v1281
        %1283 = vmatmul.f32.gmra.mxu0 %v1282
        %v1284 = vpop.f32.mrf.mxu0
        %v1285 = vadd.f32 %v1209, %v1284
        %v1286 = vand.u32 %v493, 4294901760
        %v1287 = vsub.f32 %v493, %v1286
        %1288 = vmatmul.f32.gmra.mxu0 %v1287
        %v1289 = vpop.f32.mrf.mxu0
        %v1290 = vadd.f32 %v1213, %v1289
        %v1291 = vand.u32 %v496, 4294901760
        %v1292 = vsub.f32 %v496, %v1291
        %1293 = vmatmul.f32.gmra.mxu0 %v1292
        %v1294 = vpop.f32.mrf.mxu0
        %v1295 = vadd.f32 %v1217, %v1294
        %v1296 = vand.u32 %v499, 4294901760
        %v1297 = vsub.f32 %v499, %v1296
        %1298 = vmatmul.f32.gmra.mxu0 %v1297
        %v1299 = vpop.f32.mrf.mxu0
        %v1300 = vadd.f32 %v1221, %v1299
        %v1301 = vand.u32 %v502, 4294901760
        %v1302 = vsub.f32 %v502, %v1301
        %1303 = vmatmul.f32.gmra.mxu0 %v1302
        %v1304 = vpop.f32.mrf.mxu0
        %v1305 = vadd.f32 %v1225, %v1304
        %v1306 = vand.u32 %v505, 4294901760
        %v1307 = vsub.f32 %v505, %v1306
        %1308 = vmatmul.f32.gmra.mxu0 %v1307
        %v1309 = vpop.f32.mrf.mxu0
        %v1310 = vadd.f32 %v1229, %v1309
        %v1311 = vand.u32 %v508, 4294901760
        %v1312 = vsub.f32 %v508, %v1311
        %1313 = vmatmul.f32.gmra.mxu0 %v1312
        %v1314 = vpop.f32.mrf.mxu0
        %v1315 = vadd.f32 %v1233, %v1314
        %v1316 = vand.u32 %v511, 4294901760
        %v1317 = vsub.f32 %v511, %v1316
        %1318 = vmatmul.f32.gmra.mxu0 %v1317
        %v1319 = vpop.f32.mrf.mxu0
        %v1320 = vadd.f32 %v1237, %v1319
        %v1321 = vand.u32 %v514, 4294901760
        %v1322 = vsub.f32 %v514, %v1321
        %1323 = vmatmul.f32.gmra.mxu0 %v1322
        %v1324 = vpop.f32.mrf.mxu0
        %v1325 = vadd.f32 %v1241, %v1324
        %v1326 = vand.u32 %v517, 4294901760
        %v1327 = vsub.f32 %v517, %v1326
        %1328 = vmatmul.f32.gmra.mxu0 %v1327
        %v1329 = vpop.f32.mrf.mxu0
        %v1330 = vadd.f32 %v1245, %v1329
        %1331 = vdwg.mxu0
        %1332 = vmatpush.msra.mxu0 0.0
        %1333 = vmatpush.msra.mxu0 0.0
        %1334 = vmatpush.msra.mxu0 0.0
        %1335 = vmatpush.msra.mxu0 0.0
        %1336 = vmatpush.msra.mxu0 0.0
        %1337 = vmatpush.msra.mxu0 0.0
        %1338 = vmatpush.msra.mxu0 0.0
        %1339 = vmatpush.msra.mxu0 0.0
        %1340 = vmatpush.msra.mxu0 0.0
        %1341 = vmatpush.msra.mxu0 0.0
        %1342 = vmatpush.msra.mxu0 0.0
        %1343 = vmatpush.msra.mxu0 0.0
        %v1344 = vand.u32 %v397, 4294901760
        %1345 = vmatpush.msra.mxu0 %v1344
        %v1346 = vand.u32 %v395, 4294901760
        %1347 = vmatpush.msra.mxu0 %v1346
        %v1348 = vand.u32 %v393, 4294901760
        %1349 = vmatpush.msra.mxu0 %v1348
        %v1350 = vand.u32 %v391, 4294901760
        %1351 = vmatpush.msra.mxu0 %v1350
        %v1352 = vand.u32 %v484, 4294901760
        %v1353 = vsub.f32 %v484, %v1352
        %v1354 = vand.u32 %v1353, 4294901760
        %1355 = vmatmul.f32.gmra.mxu0 %v1354
        %v1356 = vpop.f32.mrf.mxu0
        %v1357 = vadd.f32 %v1275, %v1356
        %v1358 = vand.u32 %v487, 4294901760
        %v1359 = vsub.f32 %v487, %v1358
        %v1360 = vand.u32 %v1359, 4294901760
        %1361 = vmatmul.f32.gmra.mxu0 %v1360
        %v1362 = vpop.f32.mrf.mxu0
        %v1363 = vadd.f32 %v1280, %v1362
        %v1364 = vand.u32 %v490, 4294901760
        %v1365 = vsub.f32 %v490, %v1364
        %v1366 = vand.u32 %v1365, 4294901760
        %1367 = vmatmul.f32.gmra.mxu0 %v1366
        %v1368 = vpop.f32.mrf.mxu0
        %v1369 = vadd.f32 %v1285, %v1368
        %v1370 = vand.u32 %v493, 4294901760
        %v1371 = vsub.f32 %v493, %v1370
        %v1372 = vand.u32 %v1371, 4294901760
        %1373 = vmatmul.f32.gmra.mxu0 %v1372
        %v1374 = vpop.f32.mrf.mxu0
        %v1375 = vadd.f32 %v1290, %v1374
        %v1376 = vand.u32 %v496, 4294901760
        %v1377 = vsub.f32 %v496, %v1376
        %v1378 = vand.u32 %v1377, 4294901760
        %1379 = vmatmul.f32.gmra.mxu0 %v1378
        %v1380 = vpop.f32.mrf.mxu0
        %v1381 = vadd.f32 %v1295, %v1380
        %v1382 = vand.u32 %v499, 4294901760
        %v1383 = vsub.f32 %v499, %v1382
        %v1384 = vand.u32 %v1383, 4294901760
        %1385 = vmatmul.f32.gmra.mxu0 %v1384
        %v1386 = vpop.f32.mrf.mxu0
        %v1387 = vadd.f32 %v1300, %v1386
        %v1388 = vand.u32 %v502, 4294901760
        %v1389 = vsub.f32 %v502, %v1388
        %v1390 = vand.u32 %v1389, 4294901760
        %1391 = vmatmul.f32.gmra.mxu0 %v1390
        %v1392 = vpop.f32.mrf.mxu0
        %v1393 = vadd.f32 %v1305, %v1392
        %v1394 = vand.u32 %v505, 4294901760
        %v1395 = vsub.f32 %v505, %v1394
        %v1396 = vand.u32 %v1395, 4294901760
        %1397 = vmatmul.f32.gmra.mxu0 %v1396
        %v1398 = vpop.f32.mrf.mxu0
        %v1399 = vadd.f32 %v1310, %v1398
        %v1400 = vand.u32 %v508, 4294901760
        %v1401 = vsub.f32 %v508, %v1400
        %v1402 = vand.u32 %v1401, 4294901760
        %1403 = vmatmul.f32.gmra.mxu0 %v1402
        %v1404 = vpop.f32.mrf.mxu0
        %v1405 = vadd.f32 %v1315, %v1404
        %v1406 = vand.u32 %v511, 4294901760
        %v1407 = vsub.f32 %v511, %v1406
        %v1408 = vand.u32 %v1407, 4294901760
        %1409 = vmatmul.f32.gmra.mxu0 %v1408
        %v1410 = vpop.f32.mrf.mxu0
        %v1411 = vadd.f32 %v1320, %v1410
        %v1412 = vand.u32 %v514, 4294901760
        %v1413 = vsub.f32 %v514, %v1412
        %v1414 = vand.u32 %v1413, 4294901760
        %1415 = vmatmul.f32.gmra.mxu0 %v1414
        %v1416 = vpop.f32.mrf.mxu0
        %v1417 = vadd.f32 %v1325, %v1416
        %v1418 = vand.u32 %v517, 4294901760
        %v1419 = vsub.f32 %v517, %v1418
        %v1420 = vand.u32 %v1419, 4294901760
        %1421 = vmatmul.f32.gmra.mxu0 %v1420
        %v1422 = vpop.f32.mrf.mxu0
        %v1423 = vadd.f32 %v1330, %v1422
        %1424 = vdwg.mxu0
        %1425 = vmatpush.msra.mxu0 0.0
        %1426 = vmatpush.msra.mxu0 0.0
        %1427 = vmatpush.msra.mxu0 0.0
        %1428 = vmatpush.msra.mxu0 0.0
        %1429 = vmatpush.msra.mxu0 0.0
        %1430 = vmatpush.msra.mxu0 0.0
        %1431 = vmatpush.msra.mxu0 0.0
        %1432 = vmatpush.msra.mxu0 0.0
        %1433 = vmatpush.msra.mxu0 0.0
        %1434 = vmatpush.msra.mxu0 0.0
        %1435 = vmatpush.msra.mxu0 0.0
        %1436 = vmatpush.msra.mxu0 0.0
        %v1437 = vand.u32 %v397, 4294901760
        %v1438 = vsub.f32 %v397, %v1437
        %v1439 = vand.u32 %v1438, 4294901760
        %1440 = vmatpush.msra.mxu0 %v1439
        %v1441 = vand.u32 %v395, 4294901760
        %v1442 = vsub.f32 %v395, %v1441
        %v1443 = vand.u32 %v1442, 4294901760
        %1444 = vmatpush.msra.mxu0 %v1443
        %v1445 = vand.u32 %v393, 4294901760
        %v1446 = vsub.f32 %v393, %v1445
        %v1447 = vand.u32 %v1446, 4294901760
        %1448 = vmatpush.msra.mxu0 %v1447
        %v1449 = vand.u32 %v391, 4294901760
        %v1450 = vsub.f32 %v391, %v1449
        %v1451 = vand.u32 %v1450, 4294901760
        %1452 = vmatpush.msra.mxu0 %v1451
        %v1453 = vand.u32 %v484, 4294901760
        %1454 = vmatmul.f32.gmra.mxu0 %v1453
        %v1455 = vpop.f32.mrf.mxu0
        %v1456 = vadd.f32 %v1357, %v1455
        %v1457 = vand.u32 %v487, 4294901760
        %1458 = vmatmul.f32.gmra.mxu0 %v1457
        %v1459 = vpop.f32.mrf.mxu0
        %v1460 = vadd.f32 %v1363, %v1459
        %v1461 = vand.u32 %v490, 4294901760
        %1462 = vmatmul.f32.gmra.mxu0 %v1461
        %v1463 = vpop.f32.mrf.mxu0
        %v1464 = vadd.f32 %v1369, %v1463
        %v1465 = vand.u32 %v493, 4294901760
        %1466 = vmatmul.f32.gmra.mxu0 %v1465
        %v1467 = vpop.f32.mrf.mxu0
        %v1468 = vadd.f32 %v1375, %v1467
        %v1469 = vand.u32 %v496, 4294901760
        %1470 = vmatmul.f32.gmra.mxu0 %v1469
        %v1471 = vpop.f32.mrf.mxu0
        %v1472 = vadd.f32 %v1381, %v1471
        %v1473 = vand.u32 %v499, 4294901760
        %1474 = vmatmul.f32.gmra.mxu0 %v1473
        %v1475 = vpop.f32.mrf.mxu0
        %v1476 = vadd.f32 %v1387, %v1475
        %v1477 = vand.u32 %v502, 4294901760
        %1478 = vmatmul.f32.gmra.mxu0 %v1477
        %v1479 = vpop.f32.mrf.mxu0
        %v1480 = vadd.f32 %v1393, %v1479
        %v1481 = vand.u32 %v505, 4294901760
        %1482 = vmatmul.f32.gmra.mxu0 %v1481
        %v1483 = vpop.f32.mrf.mxu0
        %v1484 = vadd.f32 %v1399, %v1483
        %v1485 = vand.u32 %v508, 4294901760
        %1486 = vmatmul.f32.gmra.mxu0 %v1485
        %v1487 = vpop.f32.mrf.mxu0
        %v1488 = vadd.f32 %v1405, %v1487
        %v1489 = vand.u32 %v511, 4294901760
        %1490 = vmatmul.f32.gmra.mxu0 %v1489
        %v1491 = vpop.f32.mrf.mxu0
        %v1492 = vadd.f32 %v1411, %v1491
        %v1493 = vand.u32 %v514, 4294901760
        %1494 = vmatmul.f32.gmra.mxu0 %v1493
        %v1495 = vpop.f32.mrf.mxu0
        %v1496 = vadd.f32 %v1417, %v1495
        %v1497 = vand.u32 %v517, 4294901760
        %1498 = vmatmul.f32.gmra.mxu0 %v1497
        %v1499 = vpop.f32.mrf.mxu0
        %v1500 = vadd.f32 %v1423, %v1499
        %1501 = vdwg.mxu0
        %1502 = vmatpush.msra.mxu0 0.0
        %1503 = vmatpush.msra.mxu0 0.0
        %1504 = vmatpush.msra.mxu0 0.0
        %1505 = vmatpush.msra.mxu0 0.0
        %1506 = vmatpush.msra.mxu0 0.0
        %1507 = vmatpush.msra.mxu0 0.0
        %1508 = vmatpush.msra.mxu0 0.0
        %1509 = vmatpush.msra.mxu0 0.0
        %1510 = vmatpush.msra.mxu0 0.0
        %1511 = vmatpush.msra.mxu0 0.0
        %1512 = vmatpush.msra.mxu0 0.0
        %1513 = vmatpush.msra.mxu0 0.0
        %v1514 = vand.u32 %v397, 4294901760
        %1515 = vmatpush.msra.mxu0 %v1514
        %v1516 = vand.u32 %v395, 4294901760
        %1517 = vmatpush.msra.mxu0 %v1516
        %v1518 = vand.u32 %v393, 4294901760
        %1519 = vmatpush.msra.mxu0 %v1518
        %v1520 = vand.u32 %v391, 4294901760
        %1521 = vmatpush.msra.mxu0 %v1520
        %v1522 = vand.u32 %v484, 4294901760
        %1523 = vmatmul.f32.gmra.mxu0 %v1522
        %v1524 = vpop.f32.mrf.mxu0
        %v1525 = vadd.f32 %v1456, %v1524
        %v1526 = vand.u32 %v487, 4294901760
        %1527 = vmatmul.f32.gmra.mxu0 %v1526
        %v1528 = vpop.f32.mrf.mxu0
        %v1529 = vadd.f32 %v1460, %v1528
        %v1530 = vand.u32 %v490, 4294901760
        %1531 = vmatmul.f32.gmra.mxu0 %v1530
        %v1532 = vpop.f32.mrf.mxu0
        %v1533 = vadd.f32 %v1464, %v1532
        %v1534 = vand.u32 %v493, 4294901760
        %1535 = vmatmul.f32.gmra.mxu0 %v1534
        %v1536 = vpop.f32.mrf.mxu0
        %v1537 = vadd.f32 %v1468, %v1536
        %v1538 = vand.u32 %v496, 4294901760
        %1539 = vmatmul.f32.gmra.mxu0 %v1538
        %v1540 = vpop.f32.mrf.mxu0
        %v1541 = vadd.f32 %v1472, %v1540
        %v1542 = vand.u32 %v499, 4294901760
        %1543 = vmatmul.f32.gmra.mxu0 %v1542
        %v1544 = vpop.f32.mrf.mxu0
        %v1545 = vadd.f32 %v1476, %v1544
        %v1546 = vand.u32 %v502, 4294901760
        %1547 = vmatmul.f32.gmra.mxu0 %v1546
        %v1548 = vpop.f32.mrf.mxu0
        %v1549 = vadd.f32 %v1480, %v1548
        %v1550 = vand.u32 %v505, 4294901760
        %1551 = vmatmul.f32.gmra.mxu0 %v1550
        %v1552 = vpop.f32.mrf.mxu0
        %v1553 = vadd.f32 %v1484, %v1552
        %v1554 = vand.u32 %v508, 4294901760
        %1555 = vmatmul.f32.gmra.mxu0 %v1554
        %v1556 = vpop.f32.mrf.mxu0
        %v1557 = vadd.f32 %v1488, %v1556
        %v1558 = vand.u32 %v511, 4294901760
        %1559 = vmatmul.f32.gmra.mxu0 %v1558
        %v1560 = vpop.f32.mrf.mxu0
        %v1561 = vadd.f32 %v1492, %v1560
        %v1562 = vand.u32 %v514, 4294901760
        %1563 = vmatmul.f32.gmra.mxu0 %v1562
        %v1564 = vpop.f32.mrf.mxu0
        %v1565 = vadd.f32 %v1496, %v1564
        %v1566 = vand.u32 %v517, 4294901760
        %1567 = vmatmul.f32.gmra.mxu0 %v1566
        %v1568 = vpop.f32.mrf.mxu0
        %v1569 = vadd.f32 %v1500, %v1568
        %1570 = vdwg.mxu0
        %v1571 = vld [vmem:[%s3] sm:$0xff]
        %v1572 = vld [vmem:[%s3 + $0x8] sm:$0xff]
        %v1573 = vld [vmem:[%s3 + $0x10] sm:$0xff]
        %v1574 = vld [vmem:[%s3 + $0x18] sm:$0xff]
        %v1575 = vld [vmem:[%s3 + $0x20] sm:$0xff]
        %v1576 = vld [vmem:[%s3 + $0x28] sm:$0xff]
        %v1577 = vld [vmem:[%s3 + $0x30] sm:$0xff]
        %v1578 = vld [vmem:[%s3 + $0x38] sm:$0xff]
        %v1579 = vld [vmem:[%s3 + $0x40] sm:$0xff]
        %v1580 = vld [vmem:[%s3 + $0x48] sm:$0xff]
        %v1581 = vld [vmem:[%s3 + $0x50] sm:$0xff]
        %v1582 = vld [vmem:[%s3 + $0x58] sm:$0xff]
        %v1583 = vld [vmem:[%s5] sm:$0xff]
        %v1584 = vld [vmem:[%s5 + $0x8] sm:$0xff]
        %v1585 = vld [vmem:[%s5 + $0x10] sm:$0x1]
        %v1586 = vld [vmem:[%s5 + $0x18] sm:$0x1]
        %1599 = vrot.lane.b32.xlu0 %v1525, 9
        %v1600 = vpop.permute.xlu0 %1599
        %1601 = vrot.lane.b32.xlu0 %v1529, 9
        %v1602 = vpop.permute.xlu0 %1601
        %1603 = vrot.lane.b32.xlu0 %v1533, 9
        %v1604 = vpop.permute.xlu0 %1603
        %1605 = vrot.lane.b32.xlu0 %v1537, 9
        %v1606 = vpop.permute.xlu0 %1605
        %1607 = vrot.lane.b32.xlu0 %v1541, 9
        %v1608 = vpop.permute.xlu0 %1607
        %1609 = vrot.lane.b32.xlu0 %v1545, 9
        %v1610 = vpop.permute.xlu0 %1609
        %1611 = vrot.lane.b32.xlu0 %v1549, 9
        %v1612 = vpop.permute.xlu0 %1611
        %1613 = vrot.lane.b32.xlu0 %v1553, 9
        %v1614 = vpop.permute.xlu0 %1613
        %1615 = vrot.lane.b32.xlu0 %v1557, 9
        %v1616 = vpop.permute.xlu0 %1615
        %1617 = vrot.lane.b32.xlu0 %v1561, 9
        %v1618 = vpop.permute.xlu0 %1617
        %1619 = vrot.lane.b32.xlu0 %v1565, 9
        %v1620 = vpop.permute.xlu0 %1619
        %1621 = vrot.lane.b32.xlu0 %v1569, 9
        %v1622 = vpop.permute.xlu0 %1621
        %1647 = vrot.lane.b32.xlu0 %v999, 9
        %v1648 = vpop.permute.xlu0 %1647
        %1649 = vrot.lane.b32.xlu0 %v1003, 9
        %v1650 = vpop.permute.xlu0 %1649
        %1651 = vrot.lane.b32.xlu0 %v1007, 9
        %v1652 = vpop.permute.xlu0 %1651
        %1653 = vrot.lane.b32.xlu0 %v1011, 9
        %v1654 = vpop.permute.xlu0 %1653
        %1655 = vrot.lane.b32.xlu0 %v1015, 9
        %v1656 = vpop.permute.xlu0 %1655
        %1657 = vrot.lane.b32.xlu0 %v1019, 9
        %v1658 = vpop.permute.xlu0 %1657
        %1659 = vrot.lane.b32.xlu0 %v1023, 9
        %v1660 = vpop.permute.xlu0 %1659
        %1661 = vrot.lane.b32.xlu0 %v1027, 9
        %v1662 = vpop.permute.xlu0 %1661
        %1663 = vrot.lane.b32.xlu0 %v1031, 9
        %v1664 = vpop.permute.xlu0 %1663
        %1665 = vrot.lane.b32.xlu0 %v1035, 9
        %v1666 = vpop.permute.xlu0 %1665
        %1667 = vrot.lane.b32.xlu0 %v1039, 9
        %v1668 = vpop.permute.xlu0 %1667
        %1669 = vrot.lane.b32.xlu0 %v1043, 9
        %v1670 = vpop.permute.xlu0 %1669
        %vm1671 = vcmask 72704
        %v1672 = vsel %vm1671, %v1648, %v1600
        %v1673 = vsel %vm1671, %v1650, %v1602
        %v1674 = vsel %vm1671, %v1652, %v1604
        %v1675 = vsel %vm1671, %v1654, %v1606
        %v1676 = vsel %vm1671, %v1656, %v1608
        %v1677 = vsel %vm1671, %v1658, %v1610
        %v1678 = vsel %vm1671, %v1660, %v1612
        %v1679 = vsel %vm1671, %v1662, %v1614
        %v1680 = vsel %vm1671, %v1664, %v1616
        %v1681 = vsel %vm1671, %v1666, %v1618
        %v1682 = vsel %vm1671, %v1668, %v1620
        %v1683 = vsel %vm1671, %v1670, %v1622
        %v1708 = vsel %vm1671, %v1600, %v1648
        %v1709 = vsel %vm1671, %v1602, %v1650
        %v1710 = vsel %vm1671, %v1604, %v1652
        %v1711 = vsel %vm1671, %v1606, %v1654
        %v1712 = vsel %vm1671, %v1608, %v1656
        %v1713 = vsel %vm1671, %v1610, %v1658
        %v1714 = vsel %vm1671, %v1612, %v1660
        %v1715 = vsel %vm1671, %v1614, %v1662
        %v1716 = vsel %vm1671, %v1616, %v1664
        %v1717 = vsel %vm1671, %v1618, %v1666
        %v1718 = vsel %vm1671, %v1620, %v1668
        %v1719 = vsel %vm1671, %v1622, %v1670
        %v1720 = vperm.slane %v1583, 0
        %v1721 = vperm.slane %v1584, 0
        %v1722 = vmul.f32 %v1708, %v1720
        %v1723 = vmul.f32 %v1672, %v1721
        %v1724 = vmul.f32 %v1709, %v1720
        %v1725 = vmul.f32 %v1673, %v1721
        %v1726 = vmul.f32 %v1710, %v1720
        %v1727 = vmul.f32 %v1674, %v1721
        %v1728 = vmul.f32 %v1711, %v1720
        %v1729 = vmul.f32 %v1675, %v1721
        %v1730 = vmul.f32 %v1712, %v1720
        %v1731 = vmul.f32 %v1676, %v1721
        %v1732 = vmul.f32 %v1713, %v1720
        %v1733 = vmul.f32 %v1677, %v1721
        %v1734 = vmul.f32 %v1714, %v1720
        %v1735 = vmul.f32 %v1678, %v1721
        %v1736 = vmul.f32 %v1715, %v1720
        %v1737 = vmul.f32 %v1679, %v1721
        %v1738 = vmul.f32 %v1716, %v1720
        %v1739 = vmul.f32 %v1680, %v1721
        %v1740 = vmul.f32 %v1717, %v1720
        %v1741 = vmul.f32 %v1681, %v1721
        %v1742 = vmul.f32 %v1718, %v1720
        %v1743 = vmul.f32 %v1682, %v1721
        %v1744 = vmul.f32 %v1719, %v1720
        %v1745 = vmul.f32 %v1683, %v1721
        %1747 = vset.pattern.permute.xlu0 0
        %1748 = vperm.xlu0 %1747, %v1571
        %v1749 = vpop.permute.xlu0 %1748
        %1752 = vset.pattern.permute.xlu0 0
        %1753 = vperm.xlu0 %1752, %v1572
        %v1754 = vpop.permute.xlu0 %1753
        %1757 = vset.pattern.permute.xlu0 0
        %1758 = vperm.xlu0 %1757, %v1573
        %v1759 = vpop.permute.xlu0 %1758
        %1762 = vset.pattern.permute.xlu0 0
        %1763 = vperm.xlu0 %1762, %v1574
        %v1764 = vpop.permute.xlu0 %1763
        %1767 = vset.pattern.permute.xlu0 0
        %1768 = vperm.xlu0 %1767, %v1575
        %v1769 = vpop.permute.xlu0 %1768
        %1772 = vset.pattern.permute.xlu0 0
        %1773 = vperm.xlu0 %1772, %v1576
        %v1774 = vpop.permute.xlu0 %1773
        %1777 = vset.pattern.permute.xlu0 0
        %1778 = vperm.xlu0 %1777, %v1577
        %v1779 = vpop.permute.xlu0 %1778
        %1782 = vset.pattern.permute.xlu0 0
        %1783 = vperm.xlu0 %1782, %v1578
        %v1784 = vpop.permute.xlu0 %1783
        %1787 = vset.pattern.permute.xlu0 0
        %1788 = vperm.xlu0 %1787, %v1579
        %v1789 = vpop.permute.xlu0 %1788
        %1792 = vset.pattern.permute.xlu0 0
        %1793 = vperm.xlu0 %1792, %v1580
        %v1794 = vpop.permute.xlu0 %1793
        %1797 = vset.pattern.permute.xlu0 0
        %1798 = vperm.xlu0 %1797, %v1581
        %v1799 = vpop.permute.xlu0 %1798
        %1802 = vset.pattern.permute.xlu0 0
        %1803 = vperm.xlu0 %1802, %v1582
        %v1804 = vpop.permute.xlu0 %1803
        %v1806 = vmul.f32 %v1722, %v1749
        %v1807 = vmul.f32 %v1723, %v1749
        %v1808 = vmul.f32 %v1724, %v1754
        %v1809 = vmul.f32 %v1725, %v1754
        %v1810 = vmul.f32 %v1726, %v1759
        %v1811 = vmul.f32 %v1727, %v1759
        %v1812 = vmul.f32 %v1728, %v1764
        %v1813 = vmul.f32 %v1729, %v1764
        %v1814 = vmul.f32 %v1730, %v1769
        %v1815 = vmul.f32 %v1731, %v1769
        %v1816 = vmul.f32 %v1732, %v1774
        %v1817 = vmul.f32 %v1733, %v1774
        %v1818 = vmul.f32 %v1734, %v1779
        %v1819 = vmul.f32 %v1735, %v1779
        %v1820 = vmul.f32 %v1736, %v1784
        %v1821 = vmul.f32 %v1737, %v1784
        %v1822 = vmul.f32 %v1738, %v1789
        %v1823 = vmul.f32 %v1739, %v1789
        %v1824 = vmul.f32 %v1740, %v1794
        %v1825 = vmul.f32 %v1741, %v1794
        %v1826 = vmul.f32 %v1742, %v1799
        %v1827 = vmul.f32 %v1743, %v1799
        %v1828 = vmul.f32 %v1744, %v1804
        %v1829 = vmul.f32 %v1745, %v1804
        %1830 = vrot.lane.b32.xlu0 %v1525, 8
        %v1831 = vpop.permute.xlu0 %1830
        %1832 = vrot.lane.b32.xlu0 %v1529, 8
        %v1833 = vpop.permute.xlu0 %1832
        %1834 = vrot.lane.b32.xlu0 %v1533, 8
        %v1835 = vpop.permute.xlu0 %1834
        %1836 = vrot.lane.b32.xlu0 %v1537, 8
        %v1837 = vpop.permute.xlu0 %1836
        %1838 = vrot.lane.b32.xlu0 %v1541, 8
        %v1839 = vpop.permute.xlu0 %1838
        %1840 = vrot.lane.b32.xlu0 %v1545, 8
        %v1841 = vpop.permute.xlu0 %1840
        %1842 = vrot.lane.b32.xlu0 %v1549, 8
        %v1843 = vpop.permute.xlu0 %1842
        %1844 = vrot.lane.b32.xlu0 %v1553, 8
        %v1845 = vpop.permute.xlu0 %1844
        %1846 = vrot.lane.b32.xlu0 %v1557, 8
        %v1847 = vpop.permute.xlu0 %1846
        %1848 = vrot.lane.b32.xlu0 %v1561, 8
        %v1849 = vpop.permute.xlu0 %1848
        %1850 = vrot.lane.b32.xlu0 %v1565, 8
        %v1851 = vpop.permute.xlu0 %1850
        %1852 = vrot.lane.b32.xlu0 %v1569, 8
        %v1853 = vpop.permute.xlu0 %1852
        %1866 = vrot.lane.b32.xlu0 %v999, 8
        %v1867 = vpop.permute.xlu0 %1866
        %1868 = vrot.lane.b32.xlu0 %v1003, 8
        %v1869 = vpop.permute.xlu0 %1868
        %1870 = vrot.lane.b32.xlu0 %v1007, 8
        %v1871 = vpop.permute.xlu0 %1870
        %1872 = vrot.lane.b32.xlu0 %v1011, 8
        %v1873 = vpop.permute.xlu0 %1872
        %1874 = vrot.lane.b32.xlu0 %v1015, 8
        %v1875 = vpop.permute.xlu0 %1874
        %1876 = vrot.lane.b32.xlu0 %v1019, 8
        %v1877 = vpop.permute.xlu0 %1876
        %1878 = vrot.lane.b32.xlu0 %v1023, 8
        %v1879 = vpop.permute.xlu0 %1878
        %1880 = vrot.lane.b32.xlu0 %v1027, 8
        %v1881 = vpop.permute.xlu0 %1880
        %1882 = vrot.lane.b32.xlu0 %v1031, 8
        %v1883 = vpop.permute.xlu0 %1882
        %1884 = vrot.lane.b32.xlu0 %v1035, 8
        %v1885 = vpop.permute.xlu0 %1884
        %1886 = vrot.lane.b32.xlu0 %v1039, 8
        %v1887 = vpop.permute.xlu0 %1886
        %1888 = vrot.lane.b32.xlu0 %v1043, 8
        %v1889 = vpop.permute.xlu0 %1888
        %vm1890 = vcmask 64512
        %v1891 = vsel %vm1890, %v1867, %v1831
        %v1892 = vsel %vm1890, %v1869, %v1833
        %v1893 = vsel %vm1890, %v1871, %v1835
        %v1894 = vsel %vm1890, %v1873, %v1837
        %v1895 = vsel %vm1890, %v1875, %v1839
        %v1896 = vsel %vm1890, %v1877, %v1841
        %v1897 = vsel %vm1890, %v1879, %v1843
        %v1898 = vsel %vm1890, %v1881, %v1845
        %v1899 = vsel %vm1890, %v1883, %v1847
        %v1900 = vsel %vm1890, %v1885, %v1849
        %v1901 = vsel %vm1890, %v1887, %v1851
        %v1902 = vsel %vm1890, %v1889, %v1853
        %v1927 = vsel %vm1890, %v1831, %v1867
        %v1928 = vsel %vm1890, %v1833, %v1869
        %v1929 = vsel %vm1890, %v1835, %v1871
        %v1930 = vsel %vm1890, %v1837, %v1873
        %v1931 = vsel %vm1890, %v1839, %v1875
        %v1932 = vsel %vm1890, %v1841, %v1877
        %v1933 = vsel %vm1890, %v1843, %v1879
        %v1934 = vsel %vm1890, %v1845, %v1881
        %v1935 = vsel %vm1890, %v1847, %v1883
        %v1936 = vsel %vm1890, %v1849, %v1885
        %v1937 = vsel %vm1890, %v1851, %v1887
        %v1938 = vsel %vm1890, %v1853, %v1889
        %v1939 = vperm.slane %v1583, 1
        %v1940 = vperm.slane %v1584, 1
        %v1941 = vmul.f32 %v1927, %v1939
        %v1942 = vmul.f32 %v1891, %v1940
        %v1943 = vmul.f32 %v1928, %v1939
        %v1944 = vmul.f32 %v1892, %v1940
        %v1945 = vmul.f32 %v1929, %v1939
        %v1946 = vmul.f32 %v1893, %v1940
        %v1947 = vmul.f32 %v1930, %v1939
        %v1948 = vmul.f32 %v1894, %v1940
        %v1949 = vmul.f32 %v1931, %v1939
        %v1950 = vmul.f32 %v1895, %v1940
        %v1951 = vmul.f32 %v1932, %v1939
        %v1952 = vmul.f32 %v1896, %v1940
        %v1953 = vmul.f32 %v1933, %v1939
        %v1954 = vmul.f32 %v1897, %v1940
        %v1955 = vmul.f32 %v1934, %v1939
        %v1956 = vmul.f32 %v1898, %v1940
        %v1957 = vmul.f32 %v1935, %v1939
        %v1958 = vmul.f32 %v1899, %v1940
        %v1959 = vmul.f32 %v1936, %v1939
        %v1960 = vmul.f32 %v1900, %v1940
        %v1961 = vmul.f32 %v1937, %v1939
        %v1962 = vmul.f32 %v1901, %v1940
        %v1963 = vmul.f32 %v1938, %v1939
        %v1964 = vmul.f32 %v1902, %v1940
        %1965 = vset.pattern.permute.xlu0 1
        %1966 = vperm.xlu0 %1965, %v1571
        %v1967 = vpop.permute.xlu0 %1966
        %1969 = vset.pattern.permute.xlu0 1
        %1970 = vperm.xlu0 %1969, %v1572
        %v1971 = vpop.permute.xlu0 %1970
        %1973 = vset.pattern.permute.xlu0 1
        %1974 = vperm.xlu0 %1973, %v1573
        %v1975 = vpop.permute.xlu0 %1974
        %1977 = vset.pattern.permute.xlu0 1
        %1978 = vperm.xlu0 %1977, %v1574
        %v1979 = vpop.permute.xlu0 %1978
        %1981 = vset.pattern.permute.xlu0 1
        %1982 = vperm.xlu0 %1981, %v1575
        %v1983 = vpop.permute.xlu0 %1982
        %1985 = vset.pattern.permute.xlu0 1
        %1986 = vperm.xlu0 %1985, %v1576
        %v1987 = vpop.permute.xlu0 %1986
        %1989 = vset.pattern.permute.xlu0 1
        %1990 = vperm.xlu0 %1989, %v1577
        %v1991 = vpop.permute.xlu0 %1990
        %1993 = vset.pattern.permute.xlu0 1
        %1994 = vperm.xlu0 %1993, %v1578
        %v1995 = vpop.permute.xlu0 %1994
        %1997 = vset.pattern.permute.xlu0 1
        %1998 = vperm.xlu0 %1997, %v1579
        %v1999 = vpop.permute.xlu0 %1998
        %2001 = vset.pattern.permute.xlu0 1
        %2002 = vperm.xlu0 %2001, %v1580
        %v2003 = vpop.permute.xlu0 %2002
        %2005 = vset.pattern.permute.xlu0 1
        %2006 = vperm.xlu0 %2005, %v1581
        %v2007 = vpop.permute.xlu0 %2006
        %2009 = vset.pattern.permute.xlu0 1
        %2010 = vperm.xlu0 %2009, %v1582
        %v2011 = vpop.permute.xlu0 %2010
        %v2013 = vmul.f32 %v1941, %v1967
        %v2014 = vmul.f32 %v1942, %v1967
        %v2015 = vmul.f32 %v1943, %v1971
        %v2016 = vmul.f32 %v1944, %v1971
        %v2017 = vmul.f32 %v1945, %v1975
        %v2018 = vmul.f32 %v1946, %v1975
        %v2019 = vmul.f32 %v1947, %v1979
        %v2020 = vmul.f32 %v1948, %v1979
        %v2021 = vmul.f32 %v1949, %v1983
        %v2022 = vmul.f32 %v1950, %v1983
        %v2023 = vmul.f32 %v1951, %v1987
        %v2024 = vmul.f32 %v1952, %v1987
        %v2025 = vmul.f32 %v1953, %v1991
        %v2026 = vmul.f32 %v1954, %v1991
        %v2027 = vmul.f32 %v1955, %v1995
        %v2028 = vmul.f32 %v1956, %v1995
        %v2029 = vmul.f32 %v1957, %v1999
        %v2030 = vmul.f32 %v1958, %v1999
        %v2031 = vmul.f32 %v1959, %v2003
        %v2032 = vmul.f32 %v1960, %v2003
        %v2033 = vmul.f32 %v1961, %v2007
        %v2034 = vmul.f32 %v1962, %v2007
        %v2035 = vmul.f32 %v1963, %v2011
        %v2036 = vmul.f32 %v1964, %v2011
        %v2037 = vadd.f32 %v1806, %v2013
        %v2038 = vadd.f32 %v1807, %v2014
        %v2039 = vadd.f32 %v1808, %v2015
        %v2040 = vadd.f32 %v1809, %v2016
        %v2041 = vadd.f32 %v1810, %v2017
        %v2042 = vadd.f32 %v1811, %v2018
        %v2043 = vadd.f32 %v1812, %v2019
        %v2044 = vadd.f32 %v1813, %v2020
        %v2045 = vadd.f32 %v1814, %v2021
        %v2046 = vadd.f32 %v1815, %v2022
        %v2047 = vadd.f32 %v1816, %v2023
        %v2048 = vadd.f32 %v1817, %v2024
        %v2049 = vadd.f32 %v1818, %v2025
        %v2050 = vadd.f32 %v1819, %v2026
        %v2051 = vadd.f32 %v1820, %v2027
        %v2052 = vadd.f32 %v1821, %v2028
        %v2053 = vadd.f32 %v1822, %v2029
        %v2054 = vadd.f32 %v1823, %v2030
        %v2055 = vadd.f32 %v1824, %v2031
        %v2056 = vadd.f32 %v1825, %v2032
        %v2057 = vadd.f32 %v1826, %v2033
        %v2058 = vadd.f32 %v1827, %v2034
        %v2059 = vadd.f32 %v1828, %v2035
        %v2060 = vadd.f32 %v1829, %v2036
        %2061 = vrot.lane.b32.xlu0 %v1525, 7
        %v2062 = vpop.permute.xlu0 %2061
        %2063 = vrot.lane.b32.xlu0 %v1529, 7
        %v2064 = vpop.permute.xlu0 %2063
        %2065 = vrot.lane.b32.xlu0 %v1533, 7
        %v2066 = vpop.permute.xlu0 %2065
        %2067 = vrot.lane.b32.xlu0 %v1537, 7
        %v2068 = vpop.permute.xlu0 %2067
        %2069 = vrot.lane.b32.xlu0 %v1541, 7
        %v2070 = vpop.permute.xlu0 %2069
        %2071 = vrot.lane.b32.xlu0 %v1545, 7
        %v2072 = vpop.permute.xlu0 %2071
        %2073 = vrot.lane.b32.xlu0 %v1549, 7
        %v2074 = vpop.permute.xlu0 %2073
        %2075 = vrot.lane.b32.xlu0 %v1553, 7
        %v2076 = vpop.permute.xlu0 %2075
        %2077 = vrot.lane.b32.xlu0 %v1557, 7
        %v2078 = vpop.permute.xlu0 %2077
        %2079 = vrot.lane.b32.xlu0 %v1561, 7
        %v2080 = vpop.permute.xlu0 %2079
        %2081 = vrot.lane.b32.xlu0 %v1565, 7
        %v2082 = vpop.permute.xlu0 %2081
        %2083 = vrot.lane.b32.xlu0 %v1569, 7
        %v2084 = vpop.permute.xlu0 %2083
        %2097 = vrot.lane.b32.xlu0 %v999, 7
        %v2098 = vpop.permute.xlu0 %2097
        %2099 = vrot.lane.b32.xlu0 %v1003, 7
        %v2100 = vpop.permute.xlu0 %2099
        %2101 = vrot.lane.b32.xlu0 %v1007, 7
        %v2102 = vpop.permute.xlu0 %2101
        %2103 = vrot.lane.b32.xlu0 %v1011, 7
        %v2104 = vpop.permute.xlu0 %2103
        %2105 = vrot.lane.b32.xlu0 %v1015, 7
        %v2106 = vpop.permute.xlu0 %2105
        %2107 = vrot.lane.b32.xlu0 %v1019, 7
        %v2108 = vpop.permute.xlu0 %2107
        %2109 = vrot.lane.b32.xlu0 %v1023, 7
        %v2110 = vpop.permute.xlu0 %2109
        %2111 = vrot.lane.b32.xlu0 %v1027, 7
        %v2112 = vpop.permute.xlu0 %2111
        %2113 = vrot.lane.b32.xlu0 %v1031, 7
        %v2114 = vpop.permute.xlu0 %2113
        %2115 = vrot.lane.b32.xlu0 %v1035, 7
        %v2116 = vpop.permute.xlu0 %2115
        %2117 = vrot.lane.b32.xlu0 %v1039, 7
        %v2118 = vpop.permute.xlu0 %2117
        %2119 = vrot.lane.b32.xlu0 %v1043, 7
        %v2120 = vpop.permute.xlu0 %2119
        %vm2121 = vcmask 56320
        %v2122 = vsel %vm2121, %v2098, %v2062
        %v2123 = vsel %vm2121, %v2100, %v2064
        %v2124 = vsel %vm2121, %v2102, %v2066
        %v2125 = vsel %vm2121, %v2104, %v2068
        %v2126 = vsel %vm2121, %v2106, %v2070
        %v2127 = vsel %vm2121, %v2108, %v2072
        %v2128 = vsel %vm2121, %v2110, %v2074
        %v2129 = vsel %vm2121, %v2112, %v2076
        %v2130 = vsel %vm2121, %v2114, %v2078
        %v2131 = vsel %vm2121, %v2116, %v2080
        %v2132 = vsel %vm2121, %v2118, %v2082
        %v2133 = vsel %vm2121, %v2120, %v2084
        %v2158 = vsel %vm2121, %v2062, %v2098
        %v2159 = vsel %vm2121, %v2064, %v2100
        %v2160 = vsel %vm2121, %v2066, %v2102
        %v2161 = vsel %vm2121, %v2068, %v2104
        %v2162 = vsel %vm2121, %v2070, %v2106
        %v2163 = vsel %vm2121, %v2072, %v2108
        %v2164 = vsel %vm2121, %v2074, %v2110
        %v2165 = vsel %vm2121, %v2076, %v2112
        %v2166 = vsel %vm2121, %v2078, %v2114
        %v2167 = vsel %vm2121, %v2080, %v2116
        %v2168 = vsel %vm2121, %v2082, %v2118
        %v2169 = vsel %vm2121, %v2084, %v2120
        %v2170 = vperm.slane %v1583, 2
        %v2171 = vperm.slane %v1584, 2
        %v2172 = vmul.f32 %v2158, %v2170
        %v2173 = vmul.f32 %v2122, %v2171
        %v2174 = vmul.f32 %v2159, %v2170
        %v2175 = vmul.f32 %v2123, %v2171
        %v2176 = vmul.f32 %v2160, %v2170
        %v2177 = vmul.f32 %v2124, %v2171
        %v2178 = vmul.f32 %v2161, %v2170
        %v2179 = vmul.f32 %v2125, %v2171
        %v2180 = vmul.f32 %v2162, %v2170
        %v2181 = vmul.f32 %v2126, %v2171
        %v2182 = vmul.f32 %v2163, %v2170
        %v2183 = vmul.f32 %v2127, %v2171
        %v2184 = vmul.f32 %v2164, %v2170
        %v2185 = vmul.f32 %v2128, %v2171
        %v2186 = vmul.f32 %v2165, %v2170
        %v2187 = vmul.f32 %v2129, %v2171
        %v2188 = vmul.f32 %v2166, %v2170
        %v2189 = vmul.f32 %v2130, %v2171
        %v2190 = vmul.f32 %v2167, %v2170
        %v2191 = vmul.f32 %v2131, %v2171
        %v2192 = vmul.f32 %v2168, %v2170
        %v2193 = vmul.f32 %v2132, %v2171
        %v2194 = vmul.f32 %v2169, %v2170
        %v2195 = vmul.f32 %v2133, %v2171
        %2196 = vset.pattern.permute.xlu0 2
        %2197 = vperm.xlu0 %2196, %v1571
        %v2198 = vpop.permute.xlu0 %2197
        %2200 = vset.pattern.permute.xlu0 2
        %2201 = vperm.xlu0 %2200, %v1572
        %v2202 = vpop.permute.xlu0 %2201
        %2204 = vset.pattern.permute.xlu0 2
        %2205 = vperm.xlu0 %2204, %v1573
        %v2206 = vpop.permute.xlu0 %2205
        %2208 = vset.pattern.permute.xlu0 2
        %2209 = vperm.xlu0 %2208, %v1574
        %v2210 = vpop.permute.xlu0 %2209
        %2212 = vset.pattern.permute.xlu0 2
        %2213 = vperm.xlu0 %2212, %v1575
        %v2214 = vpop.permute.xlu0 %2213
        %2216 = vset.pattern.permute.xlu0 2
        %2217 = vperm.xlu0 %2216, %v1576
        %v2218 = vpop.permute.xlu0 %2217
        %2220 = vset.pattern.permute.xlu0 2
        %2221 = vperm.xlu0 %2220, %v1577
        %v2222 = vpop.permute.xlu0 %2221
        %2224 = vset.pattern.permute.xlu0 2
        %2225 = vperm.xlu0 %2224, %v1578
        %v2226 = vpop.permute.xlu0 %2225
        %2228 = vset.pattern.permute.xlu0 2
        %2229 = vperm.xlu0 %2228, %v1579
        %v2230 = vpop.permute.xlu0 %2229
        %2232 = vset.pattern.permute.xlu0 2
        %2233 = vperm.xlu0 %2232, %v1580
        %v2234 = vpop.permute.xlu0 %2233
        %2236 = vset.pattern.permute.xlu0 2
        %2237 = vperm.xlu0 %2236, %v1581
        %v2238 = vpop.permute.xlu0 %2237
        %2240 = vset.pattern.permute.xlu0 2
        %2241 = vperm.xlu0 %2240, %v1582
        %v2242 = vpop.permute.xlu0 %2241
        %v2244 = vmul.f32 %v2172, %v2198
        %v2245 = vmul.f32 %v2173, %v2198
        %v2246 = vmul.f32 %v2174, %v2202
        %v2247 = vmul.f32 %v2175, %v2202
        %v2248 = vmul.f32 %v2176, %v2206
        %v2249 = vmul.f32 %v2177, %v2206
        %v2250 = vmul.f32 %v2178, %v2210
        %v2251 = vmul.f32 %v2179, %v2210
        %v2252 = vmul.f32 %v2180, %v2214
        %v2253 = vmul.f32 %v2181, %v2214
        %v2254 = vmul.f32 %v2182, %v2218
        %v2255 = vmul.f32 %v2183, %v2218
        %v2256 = vmul.f32 %v2184, %v2222
        %v2257 = vmul.f32 %v2185, %v2222
        %v2258 = vmul.f32 %v2186, %v2226
        %v2259 = vmul.f32 %v2187, %v2226
        %v2260 = vmul.f32 %v2188, %v2230
        %v2261 = vmul.f32 %v2189, %v2230
        %v2262 = vmul.f32 %v2190, %v2234
        %v2263 = vmul.f32 %v2191, %v2234
        %v2264 = vmul.f32 %v2192, %v2238
        %v2265 = vmul.f32 %v2193, %v2238
        %v2266 = vmul.f32 %v2194, %v2242
        %v2267 = vmul.f32 %v2195, %v2242
        %v2268 = vadd.f32 %v2037, %v2244
        %v2269 = vadd.f32 %v2038, %v2245
        %v2270 = vadd.f32 %v2039, %v2246
        %v2271 = vadd.f32 %v2040, %v2247
        %v2272 = vadd.f32 %v2041, %v2248
        %v2273 = vadd.f32 %v2042, %v2249
        %v2274 = vadd.f32 %v2043, %v2250
        %v2275 = vadd.f32 %v2044, %v2251
        %v2276 = vadd.f32 %v2045, %v2252
        %v2277 = vadd.f32 %v2046, %v2253
        %v2278 = vadd.f32 %v2047, %v2254
        %v2279 = vadd.f32 %v2048, %v2255
        %v2280 = vadd.f32 %v2049, %v2256
        %v2281 = vadd.f32 %v2050, %v2257
        %v2282 = vadd.f32 %v2051, %v2258
        %v2283 = vadd.f32 %v2052, %v2259
        %v2284 = vadd.f32 %v2053, %v2260
        %v2285 = vadd.f32 %v2054, %v2261
        %v2286 = vadd.f32 %v2055, %v2262
        %v2287 = vadd.f32 %v2056, %v2263
        %v2288 = vadd.f32 %v2057, %v2264
        %v2289 = vadd.f32 %v2058, %v2265
        %v2290 = vadd.f32 %v2059, %v2266
        %v2291 = vadd.f32 %v2060, %v2267
        %2292 = vrot.lane.b32.xlu0 %v1525, 1
        %v2293 = vpop.permute.xlu0 %2292
        %2294 = vrot.lane.b32.xlu0 %v1529, 1
        %v2295 = vpop.permute.xlu0 %2294
        %2296 = vrot.lane.b32.xlu0 %v1533, 1
        %v2297 = vpop.permute.xlu0 %2296
        %2298 = vrot.lane.b32.xlu0 %v1537, 1
        %v2299 = vpop.permute.xlu0 %2298
        %2300 = vrot.lane.b32.xlu0 %v1541, 1
        %v2301 = vpop.permute.xlu0 %2300
        %2302 = vrot.lane.b32.xlu0 %v1545, 1
        %v2303 = vpop.permute.xlu0 %2302
        %2304 = vrot.lane.b32.xlu0 %v1549, 1
        %v2305 = vpop.permute.xlu0 %2304
        %2306 = vrot.lane.b32.xlu0 %v1553, 1
        %v2307 = vpop.permute.xlu0 %2306
        %2308 = vrot.lane.b32.xlu0 %v1557, 1
        %v2309 = vpop.permute.xlu0 %2308
        %2310 = vrot.lane.b32.xlu0 %v1561, 1
        %v2311 = vpop.permute.xlu0 %2310
        %2312 = vrot.lane.b32.xlu0 %v1565, 1
        %v2313 = vpop.permute.xlu0 %2312
        %2314 = vrot.lane.b32.xlu0 %v1569, 1
        %v2315 = vpop.permute.xlu0 %2314
        %2328 = vrot.lane.b32.xlu0 %v999, 1
        %v2329 = vpop.permute.xlu0 %2328
        %2330 = vrot.lane.b32.xlu0 %v1003, 1
        %v2331 = vpop.permute.xlu0 %2330
        %2332 = vrot.lane.b32.xlu0 %v1007, 1
        %v2333 = vpop.permute.xlu0 %2332
        %2334 = vrot.lane.b32.xlu0 %v1011, 1
        %v2335 = vpop.permute.xlu0 %2334
        %2336 = vrot.lane.b32.xlu0 %v1015, 1
        %v2337 = vpop.permute.xlu0 %2336
        %2338 = vrot.lane.b32.xlu0 %v1019, 1
        %v2339 = vpop.permute.xlu0 %2338
        %2340 = vrot.lane.b32.xlu0 %v1023, 1
        %v2341 = vpop.permute.xlu0 %2340
        %2342 = vrot.lane.b32.xlu0 %v1027, 1
        %v2343 = vpop.permute.xlu0 %2342
        %2344 = vrot.lane.b32.xlu0 %v1031, 1
        %v2345 = vpop.permute.xlu0 %2344
        %2346 = vrot.lane.b32.xlu0 %v1035, 1
        %v2347 = vpop.permute.xlu0 %2346
        %2348 = vrot.lane.b32.xlu0 %v1039, 1
        %v2349 = vpop.permute.xlu0 %2348
        %2350 = vrot.lane.b32.xlu0 %v1043, 1
        %v2351 = vpop.permute.xlu0 %2350
        %vm2352 = vcmask 7168
        %v2353 = vsel %vm2352, %v2329, %v2293
        %v2354 = vsel %vm2352, %v2331, %v2295
        %v2355 = vsel %vm2352, %v2333, %v2297
        %v2356 = vsel %vm2352, %v2335, %v2299
        %v2357 = vsel %vm2352, %v2337, %v2301
        %v2358 = vsel %vm2352, %v2339, %v2303
        %v2359 = vsel %vm2352, %v2341, %v2305
        %v2360 = vsel %vm2352, %v2343, %v2307
        %v2361 = vsel %vm2352, %v2345, %v2309
        %v2362 = vsel %vm2352, %v2347, %v2311
        %v2363 = vsel %vm2352, %v2349, %v2313
        %v2364 = vsel %vm2352, %v2351, %v2315
        %v2389 = vsel %vm2352, %v2293, %v2329
        %v2390 = vsel %vm2352, %v2295, %v2331
        %v2391 = vsel %vm2352, %v2297, %v2333
        %v2392 = vsel %vm2352, %v2299, %v2335
        %v2393 = vsel %vm2352, %v2301, %v2337
        %v2394 = vsel %vm2352, %v2303, %v2339
        %v2395 = vsel %vm2352, %v2305, %v2341
        %v2396 = vsel %vm2352, %v2307, %v2343
        %v2397 = vsel %vm2352, %v2309, %v2345
        %v2398 = vsel %vm2352, %v2311, %v2347
        %v2399 = vsel %vm2352, %v2313, %v2349
        %v2400 = vsel %vm2352, %v2315, %v2351
        %v2401 = vperm.slane %v1583, 3
        %v2402 = vperm.slane %v1584, 3
        %v2403 = vmul.f32 %v2389, %v2401
        %v2404 = vmul.f32 %v2353, %v2402
        %v2405 = vmul.f32 %v2390, %v2401
        %v2406 = vmul.f32 %v2354, %v2402
        %v2407 = vmul.f32 %v2391, %v2401
        %v2408 = vmul.f32 %v2355, %v2402
        %v2409 = vmul.f32 %v2392, %v2401
        %v2410 = vmul.f32 %v2356, %v2402
        %v2411 = vmul.f32 %v2393, %v2401
        %v2412 = vmul.f32 %v2357, %v2402
        %v2413 = vmul.f32 %v2394, %v2401
        %v2414 = vmul.f32 %v2358, %v2402
        %v2415 = vmul.f32 %v2395, %v2401
        %v2416 = vmul.f32 %v2359, %v2402
        %v2417 = vmul.f32 %v2396, %v2401
        %v2418 = vmul.f32 %v2360, %v2402
        %v2419 = vmul.f32 %v2397, %v2401
        %v2420 = vmul.f32 %v2361, %v2402
        %v2421 = vmul.f32 %v2398, %v2401
        %v2422 = vmul.f32 %v2362, %v2402
        %v2423 = vmul.f32 %v2399, %v2401
        %v2424 = vmul.f32 %v2363, %v2402
        %v2425 = vmul.f32 %v2400, %v2401
        %v2426 = vmul.f32 %v2364, %v2402
        %2427 = vset.pattern.permute.xlu0 3
        %2428 = vperm.xlu0 %2427, %v1571
        %v2429 = vpop.permute.xlu0 %2428
        %2431 = vset.pattern.permute.xlu0 3
        %2432 = vperm.xlu0 %2431, %v1572
        %v2433 = vpop.permute.xlu0 %2432
        %2435 = vset.pattern.permute.xlu0 3
        %2436 = vperm.xlu0 %2435, %v1573
        %v2437 = vpop.permute.xlu0 %2436
        %2439 = vset.pattern.permute.xlu0 3
        %2440 = vperm.xlu0 %2439, %v1574
        %v2441 = vpop.permute.xlu0 %2440
        %2443 = vset.pattern.permute.xlu0 3
        %2444 = vperm.xlu0 %2443, %v1575
        %v2445 = vpop.permute.xlu0 %2444
        %2447 = vset.pattern.permute.xlu0 3
        %2448 = vperm.xlu0 %2447, %v1576
        %v2449 = vpop.permute.xlu0 %2448
        %2451 = vset.pattern.permute.xlu0 3
        %2452 = vperm.xlu0 %2451, %v1577
        %v2453 = vpop.permute.xlu0 %2452
        %2455 = vset.pattern.permute.xlu0 3
        %2456 = vperm.xlu0 %2455, %v1578
        %v2457 = vpop.permute.xlu0 %2456
        %2459 = vset.pattern.permute.xlu0 3
        %2460 = vperm.xlu0 %2459, %v1579
        %v2461 = vpop.permute.xlu0 %2460
        %2463 = vset.pattern.permute.xlu0 3
        %2464 = vperm.xlu0 %2463, %v1580
        %v2465 = vpop.permute.xlu0 %2464
        %2467 = vset.pattern.permute.xlu0 3
        %2468 = vperm.xlu0 %2467, %v1581
        %v2469 = vpop.permute.xlu0 %2468
        %2471 = vset.pattern.permute.xlu0 3
        %2472 = vperm.xlu0 %2471, %v1582
        %v2473 = vpop.permute.xlu0 %2472
        %v2475 = vmul.f32 %v2403, %v2429
        %v2476 = vmul.f32 %v2404, %v2429
        %v2477 = vmul.f32 %v2405, %v2433
        %v2478 = vmul.f32 %v2406, %v2433
        %v2479 = vmul.f32 %v2407, %v2437
        %v2480 = vmul.f32 %v2408, %v2437
        %v2481 = vmul.f32 %v2409, %v2441
        %v2482 = vmul.f32 %v2410, %v2441
        %v2483 = vmul.f32 %v2411, %v2445
        %v2484 = vmul.f32 %v2412, %v2445
        %v2485 = vmul.f32 %v2413, %v2449
        %v2486 = vmul.f32 %v2414, %v2449
        %v2487 = vmul.f32 %v2415, %v2453
        %v2488 = vmul.f32 %v2416, %v2453
        %v2489 = vmul.f32 %v2417, %v2457
        %v2490 = vmul.f32 %v2418, %v2457
        %v2491 = vmul.f32 %v2419, %v2461
        %v2492 = vmul.f32 %v2420, %v2461
        %v2493 = vmul.f32 %v2421, %v2465
        %v2494 = vmul.f32 %v2422, %v2465
        %v2495 = vmul.f32 %v2423, %v2469
        %v2496 = vmul.f32 %v2424, %v2469
        %v2497 = vmul.f32 %v2425, %v2473
        %v2498 = vmul.f32 %v2426, %v2473
        %v2499 = vadd.f32 %v2268, %v2475
        %v2500 = vadd.f32 %v2269, %v2476
        %v2501 = vadd.f32 %v2270, %v2477
        %v2502 = vadd.f32 %v2271, %v2478
        %v2503 = vadd.f32 %v2272, %v2479
        %v2504 = vadd.f32 %v2273, %v2480
        %v2505 = vadd.f32 %v2274, %v2481
        %v2506 = vadd.f32 %v2275, %v2482
        %v2507 = vadd.f32 %v2276, %v2483
        %v2508 = vadd.f32 %v2277, %v2484
        %v2509 = vadd.f32 %v2278, %v2485
        %v2510 = vadd.f32 %v2279, %v2486
        %v2511 = vadd.f32 %v2280, %v2487
        %v2512 = vadd.f32 %v2281, %v2488
        %v2513 = vadd.f32 %v2282, %v2489
        %v2514 = vadd.f32 %v2283, %v2490
        %v2515 = vadd.f32 %v2284, %v2491
        %v2516 = vadd.f32 %v2285, %v2492
        %v2517 = vadd.f32 %v2286, %v2493
        %v2518 = vadd.f32 %v2287, %v2494
        %v2519 = vadd.f32 %v2288, %v2495
        %v2520 = vadd.f32 %v2289, %v2496
        %v2521 = vadd.f32 %v2290, %v2497
        %v2522 = vadd.f32 %v2291, %v2498
        %2523 = vset.pattern.permute.xlu0 4
        %2524 = vperm.xlu0 %2523, %v1571
        %v2525 = vpop.permute.xlu0 %2524
        %2527 = vset.pattern.permute.xlu0 4
        %2528 = vperm.xlu0 %2527, %v1572
        %v2529 = vpop.permute.xlu0 %2528
        %2531 = vset.pattern.permute.xlu0 4
        %2532 = vperm.xlu0 %2531, %v1573
        %v2533 = vpop.permute.xlu0 %2532
        %2535 = vset.pattern.permute.xlu0 4
        %2536 = vperm.xlu0 %2535, %v1574
        %v2537 = vpop.permute.xlu0 %2536
        %2539 = vset.pattern.permute.xlu0 4
        %2540 = vperm.xlu0 %2539, %v1575
        %v2541 = vpop.permute.xlu0 %2540
        %2543 = vset.pattern.permute.xlu0 4
        %2544 = vperm.xlu0 %2543, %v1576
        %v2545 = vpop.permute.xlu0 %2544
        %2547 = vset.pattern.permute.xlu0 4
        %2548 = vperm.xlu0 %2547, %v1577
        %v2549 = vpop.permute.xlu0 %2548
        %2551 = vset.pattern.permute.xlu0 4
        %2552 = vperm.xlu0 %2551, %v1578
        %v2553 = vpop.permute.xlu0 %2552
        %2555 = vset.pattern.permute.xlu0 4
        %2556 = vperm.xlu0 %2555, %v1579
        %v2557 = vpop.permute.xlu0 %2556
        %2559 = vset.pattern.permute.xlu0 4
        %2560 = vperm.xlu0 %2559, %v1580
        %v2561 = vpop.permute.xlu0 %2560
        %2563 = vset.pattern.permute.xlu0 4
        %2564 = vperm.xlu0 %2563, %v1581
        %v2565 = vpop.permute.xlu0 %2564
        %2567 = vset.pattern.permute.xlu0 4
        %2568 = vperm.xlu0 %2567, %v1582
        %v2569 = vpop.permute.xlu0 %2568
        %v2571 = vmul.f32 %v999, %v2525
        %v2572 = vmul.f32 %v1525, %v2525
        %v2573 = vmul.f32 %v1003, %v2529
        %v2574 = vmul.f32 %v1529, %v2529
        %v2575 = vmul.f32 %v1007, %v2533
        %v2576 = vmul.f32 %v1533, %v2533
        %v2577 = vmul.f32 %v1011, %v2537
        %v2578 = vmul.f32 %v1537, %v2537
        %v2579 = vmul.f32 %v1015, %v2541
        %v2580 = vmul.f32 %v1541, %v2541
        %v2581 = vmul.f32 %v1019, %v2545
        %v2582 = vmul.f32 %v1545, %v2545
        %v2583 = vmul.f32 %v1023, %v2549
        %v2584 = vmul.f32 %v1549, %v2549
        %v2585 = vmul.f32 %v1027, %v2553
        %v2586 = vmul.f32 %v1553, %v2553
        %v2587 = vmul.f32 %v1031, %v2557
        %v2588 = vmul.f32 %v1557, %v2557
        %v2589 = vmul.f32 %v1035, %v2561
        %v2590 = vmul.f32 %v1561, %v2561
        %v2591 = vmul.f32 %v1039, %v2565
        %v2592 = vmul.f32 %v1565, %v2565
        %v2593 = vmul.f32 %v1043, %v2569
        %v2594 = vmul.f32 %v1569, %v2569
        %v2595 = vadd.f32 %v2499, %v2571
        %v2596 = vadd.f32 %v2500, %v2572
        %v2597 = vadd.f32 %v2501, %v2573
        %v2598 = vadd.f32 %v2502, %v2574
        %v2599 = vadd.f32 %v2503, %v2575
        %v2600 = vadd.f32 %v2504, %v2576
        %v2601 = vadd.f32 %v2505, %v2577
        %v2602 = vadd.f32 %v2506, %v2578
        %v2603 = vadd.f32 %v2507, %v2579
        %v2604 = vadd.f32 %v2508, %v2580
        %v2605 = vadd.f32 %v2509, %v2581
        %v2606 = vadd.f32 %v2510, %v2582
        %v2607 = vadd.f32 %v2511, %v2583
        %v2608 = vadd.f32 %v2512, %v2584
        %v2609 = vadd.f32 %v2513, %v2585
        %v2610 = vadd.f32 %v2514, %v2586
        %v2611 = vadd.f32 %v2515, %v2587
        %v2612 = vadd.f32 %v2516, %v2588
        %v2613 = vadd.f32 %v2517, %v2589
        %v2614 = vadd.f32 %v2518, %v2590
        %v2615 = vadd.f32 %v2519, %v2591
        %v2616 = vadd.f32 %v2520, %v2592
        %v2617 = vadd.f32 %v2521, %v2593
        %v2618 = vadd.f32 %v2522, %v2594
        %2619 = vrot.lane.b32.xlu0 %v999, 127
        %v2620 = vpop.permute.xlu0 %2619
        %2621 = vrot.lane.b32.xlu0 %v1525, 127
        %v2622 = vpop.permute.xlu0 %2621
        %2623 = vrot.lane.b32.xlu0 %v1003, 127
        %v2624 = vpop.permute.xlu0 %2623
        %2625 = vrot.lane.b32.xlu0 %v1529, 127
        %v2626 = vpop.permute.xlu0 %2625
        %2627 = vrot.lane.b32.xlu0 %v1007, 127
        %v2628 = vpop.permute.xlu0 %2627
        %2629 = vrot.lane.b32.xlu0 %v1533, 127
        %v2630 = vpop.permute.xlu0 %2629
        %2631 = vrot.lane.b32.xlu0 %v1011, 127
        %v2632 = vpop.permute.xlu0 %2631
        %2633 = vrot.lane.b32.xlu0 %v1537, 127
        %v2634 = vpop.permute.xlu0 %2633
        %2635 = vrot.lane.b32.xlu0 %v1015, 127
        %v2636 = vpop.permute.xlu0 %2635
        %2637 = vrot.lane.b32.xlu0 %v1541, 127
        %v2638 = vpop.permute.xlu0 %2637
        %2639 = vrot.lane.b32.xlu0 %v1019, 127
        %v2640 = vpop.permute.xlu0 %2639
        %2641 = vrot.lane.b32.xlu0 %v1545, 127
        %v2642 = vpop.permute.xlu0 %2641
        %2643 = vrot.lane.b32.xlu0 %v1023, 127
        %v2644 = vpop.permute.xlu0 %2643
        %2645 = vrot.lane.b32.xlu0 %v1549, 127
        %v2646 = vpop.permute.xlu0 %2645
        %2647 = vrot.lane.b32.xlu0 %v1027, 127
        %v2648 = vpop.permute.xlu0 %2647
        %2649 = vrot.lane.b32.xlu0 %v1553, 127
        %v2650 = vpop.permute.xlu0 %2649
        %2651 = vrot.lane.b32.xlu0 %v1031, 127
        %v2652 = vpop.permute.xlu0 %2651
        %2653 = vrot.lane.b32.xlu0 %v1557, 127
        %v2654 = vpop.permute.xlu0 %2653
        %2655 = vrot.lane.b32.xlu0 %v1035, 127
        %v2656 = vpop.permute.xlu0 %2655
        %2657 = vrot.lane.b32.xlu0 %v1561, 127
        %v2658 = vpop.permute.xlu0 %2657
        %2659 = vrot.lane.b32.xlu0 %v1039, 127
        %v2660 = vpop.permute.xlu0 %2659
        %2661 = vrot.lane.b32.xlu0 %v1565, 127
        %v2662 = vpop.permute.xlu0 %2661
        %2663 = vrot.lane.b32.xlu0 %v1043, 127
        %v2664 = vpop.permute.xlu0 %2663
        %2665 = vrot.lane.b32.xlu0 %v1569, 127
        %v2666 = vpop.permute.xlu0 %2665
        %vm2667 = vcmask 1039360
        %v2668 = vsel %vm2667, %v2620, %v2622
        %v2669 = vsel %vm2667, %v2624, %v2626
        %v2670 = vsel %vm2667, %v2628, %v2630
        %v2671 = vsel %vm2667, %v2632, %v2634
        %v2672 = vsel %vm2667, %v2636, %v2638
        %v2673 = vsel %vm2667, %v2640, %v2642
        %v2674 = vsel %vm2667, %v2644, %v2646
        %v2675 = vsel %vm2667, %v2648, %v2650
        %v2676 = vsel %vm2667, %v2652, %v2654
        %v2677 = vsel %vm2667, %v2656, %v2658
        %v2678 = vsel %vm2667, %v2660, %v2662
        %v2679 = vsel %vm2667, %v2664, %v2666
        %v2716 = vsel %vm2667, %v2622, %v2620
        %v2717 = vsel %vm2667, %v2626, %v2624
        %v2718 = vsel %vm2667, %v2630, %v2628
        %v2719 = vsel %vm2667, %v2634, %v2632
        %v2720 = vsel %vm2667, %v2638, %v2636
        %v2721 = vsel %vm2667, %v2642, %v2640
        %v2722 = vsel %vm2667, %v2646, %v2644
        %v2723 = vsel %vm2667, %v2650, %v2648
        %v2724 = vsel %vm2667, %v2654, %v2652
        %v2725 = vsel %vm2667, %v2658, %v2656
        %v2726 = vsel %vm2667, %v2662, %v2660
        %v2727 = vsel %vm2667, %v2666, %v2664
        %v2728 = vperm.slane %v1583, 5
        %v2729 = vperm.slane %v1584, 5
        %v2730 = vmul.f32 %v2668, %v2728
        %v2731 = vmul.f32 %v2716, %v2729
        %v2732 = vmul.f32 %v2669, %v2728
        %v2733 = vmul.f32 %v2717, %v2729
        %v2734 = vmul.f32 %v2670, %v2728
        %v2735 = vmul.f32 %v2718, %v2729
        %v2736 = vmul.f32 %v2671, %v2728
        %v2737 = vmul.f32 %v2719, %v2729
        %v2738 = vmul.f32 %v2672, %v2728
        %v2739 = vmul.f32 %v2720, %v2729
        %v2740 = vmul.f32 %v2673, %v2728
        %v2741 = vmul.f32 %v2721, %v2729
        %v2742 = vmul.f32 %v2674, %v2728
        %v2743 = vmul.f32 %v2722, %v2729
        %v2744 = vmul.f32 %v2675, %v2728
        %v2745 = vmul.f32 %v2723, %v2729
        %v2746 = vmul.f32 %v2676, %v2728
        %v2747 = vmul.f32 %v2724, %v2729
        %v2748 = vmul.f32 %v2677, %v2728
        %v2749 = vmul.f32 %v2725, %v2729
        %v2750 = vmul.f32 %v2678, %v2728
        %v2751 = vmul.f32 %v2726, %v2729
        %v2752 = vmul.f32 %v2679, %v2728
        %v2753 = vmul.f32 %v2727, %v2729
        %2754 = vset.pattern.permute.xlu0 5
        %2755 = vperm.xlu0 %2754, %v1571
        %v2756 = vpop.permute.xlu0 %2755
        %2758 = vset.pattern.permute.xlu0 5
        %2759 = vperm.xlu0 %2758, %v1572
        %v2760 = vpop.permute.xlu0 %2759
        %2762 = vset.pattern.permute.xlu0 5
        %2763 = vperm.xlu0 %2762, %v1573
        %v2764 = vpop.permute.xlu0 %2763
        %2766 = vset.pattern.permute.xlu0 5
        %2767 = vperm.xlu0 %2766, %v1574
        %v2768 = vpop.permute.xlu0 %2767
        %2770 = vset.pattern.permute.xlu0 5
        %2771 = vperm.xlu0 %2770, %v1575
        %v2772 = vpop.permute.xlu0 %2771
        %2774 = vset.pattern.permute.xlu0 5
        %2775 = vperm.xlu0 %2774, %v1576
        %v2776 = vpop.permute.xlu0 %2775
        %2778 = vset.pattern.permute.xlu0 5
        %2779 = vperm.xlu0 %2778, %v1577
        %v2780 = vpop.permute.xlu0 %2779
        %2782 = vset.pattern.permute.xlu0 5
        %2783 = vperm.xlu0 %2782, %v1578
        %v2784 = vpop.permute.xlu0 %2783
        %2786 = vset.pattern.permute.xlu0 5
        %2787 = vperm.xlu0 %2786, %v1579
        %v2788 = vpop.permute.xlu0 %2787
        %2790 = vset.pattern.permute.xlu0 5
        %2791 = vperm.xlu0 %2790, %v1580
        %v2792 = vpop.permute.xlu0 %2791
        %2794 = vset.pattern.permute.xlu0 5
        %2795 = vperm.xlu0 %2794, %v1581
        %v2796 = vpop.permute.xlu0 %2795
        %2798 = vset.pattern.permute.xlu0 5
        %2799 = vperm.xlu0 %2798, %v1582
        %v2800 = vpop.permute.xlu0 %2799
        %v2802 = vmul.f32 %v2730, %v2756
        %v2803 = vmul.f32 %v2731, %v2756
        %v2804 = vmul.f32 %v2732, %v2760
        %v2805 = vmul.f32 %v2733, %v2760
        %v2806 = vmul.f32 %v2734, %v2764
        %v2807 = vmul.f32 %v2735, %v2764
        %v2808 = vmul.f32 %v2736, %v2768
        %v2809 = vmul.f32 %v2737, %v2768
        %v2810 = vmul.f32 %v2738, %v2772
        %v2811 = vmul.f32 %v2739, %v2772
        %v2812 = vmul.f32 %v2740, %v2776
        %v2813 = vmul.f32 %v2741, %v2776
        %v2814 = vmul.f32 %v2742, %v2780
        %v2815 = vmul.f32 %v2743, %v2780
        %v2816 = vmul.f32 %v2744, %v2784
        %v2817 = vmul.f32 %v2745, %v2784
        %v2818 = vmul.f32 %v2746, %v2788
        %v2819 = vmul.f32 %v2747, %v2788
        %v2820 = vmul.f32 %v2748, %v2792
        %v2821 = vmul.f32 %v2749, %v2792
        %v2822 = vmul.f32 %v2750, %v2796
        %v2823 = vmul.f32 %v2751, %v2796
        %v2824 = vmul.f32 %v2752, %v2800
        %v2825 = vmul.f32 %v2753, %v2800
        %v2826 = vadd.f32 %v2595, %v2802
        %v2827 = vadd.f32 %v2596, %v2803
        %v2828 = vadd.f32 %v2597, %v2804
        %v2829 = vadd.f32 %v2598, %v2805
        %v2830 = vadd.f32 %v2599, %v2806
        %v2831 = vadd.f32 %v2600, %v2807
        %v2832 = vadd.f32 %v2601, %v2808
        %v2833 = vadd.f32 %v2602, %v2809
        %v2834 = vadd.f32 %v2603, %v2810
        %v2835 = vadd.f32 %v2604, %v2811
        %v2836 = vadd.f32 %v2605, %v2812
        %v2837 = vadd.f32 %v2606, %v2813
        %v2838 = vadd.f32 %v2607, %v2814
        %v2839 = vadd.f32 %v2608, %v2815
        %v2840 = vadd.f32 %v2609, %v2816
        %v2841 = vadd.f32 %v2610, %v2817
        %v2842 = vadd.f32 %v2611, %v2818
        %v2843 = vadd.f32 %v2612, %v2819
        %v2844 = vadd.f32 %v2613, %v2820
        %v2845 = vadd.f32 %v2614, %v2821
        %v2846 = vadd.f32 %v2615, %v2822
        %v2847 = vadd.f32 %v2616, %v2823
        %v2848 = vadd.f32 %v2617, %v2824
        %v2849 = vadd.f32 %v2618, %v2825
        %2850 = vrot.lane.b32.xlu0 %v999, 121
        %v2851 = vpop.permute.xlu0 %2850
        %2852 = vrot.lane.b32.xlu0 %v1525, 121
        %v2853 = vpop.permute.xlu0 %2852
        %2854 = vrot.lane.b32.xlu0 %v1003, 121
        %v2855 = vpop.permute.xlu0 %2854
        %2856 = vrot.lane.b32.xlu0 %v1529, 121
        %v2857 = vpop.permute.xlu0 %2856
        %2858 = vrot.lane.b32.xlu0 %v1007, 121
        %v2859 = vpop.permute.xlu0 %2858
        %2860 = vrot.lane.b32.xlu0 %v1533, 121
        %v2861 = vpop.permute.xlu0 %2860
        %2862 = vrot.lane.b32.xlu0 %v1011, 121
        %v2863 = vpop.permute.xlu0 %2862
        %2864 = vrot.lane.b32.xlu0 %v1537, 121
        %v2865 = vpop.permute.xlu0 %2864
        %2866 = vrot.lane.b32.xlu0 %v1015, 121
        %v2867 = vpop.permute.xlu0 %2866
        %2868 = vrot.lane.b32.xlu0 %v1541, 121
        %v2869 = vpop.permute.xlu0 %2868
        %2870 = vrot.lane.b32.xlu0 %v1019, 121
        %v2871 = vpop.permute.xlu0 %2870
        %2872 = vrot.lane.b32.xlu0 %v1545, 121
        %v2873 = vpop.permute.xlu0 %2872
        %2874 = vrot.lane.b32.xlu0 %v1023, 121
        %v2875 = vpop.permute.xlu0 %2874
        %2876 = vrot.lane.b32.xlu0 %v1549, 121
        %v2877 = vpop.permute.xlu0 %2876
        %2878 = vrot.lane.b32.xlu0 %v1027, 121
        %v2879 = vpop.permute.xlu0 %2878
        %2880 = vrot.lane.b32.xlu0 %v1553, 121
        %v2881 = vpop.permute.xlu0 %2880
        %2882 = vrot.lane.b32.xlu0 %v1031, 121
        %v2883 = vpop.permute.xlu0 %2882
        %2884 = vrot.lane.b32.xlu0 %v1557, 121
        %v2885 = vpop.permute.xlu0 %2884
        %2886 = vrot.lane.b32.xlu0 %v1035, 121
        %v2887 = vpop.permute.xlu0 %2886
        %2888 = vrot.lane.b32.xlu0 %v1561, 121
        %v2889 = vpop.permute.xlu0 %2888
        %2890 = vrot.lane.b32.xlu0 %v1039, 121
        %v2891 = vpop.permute.xlu0 %2890
        %2892 = vrot.lane.b32.xlu0 %v1565, 121
        %v2893 = vpop.permute.xlu0 %2892
        %2894 = vrot.lane.b32.xlu0 %v1043, 121
        %v2895 = vpop.permute.xlu0 %2894
        %2896 = vrot.lane.b32.xlu0 %v1569, 121
        %v2897 = vpop.permute.xlu0 %2896
        %vm2898 = vcmask 990208
        %v2899 = vsel %vm2898, %v2851, %v2853
        %v2900 = vsel %vm2898, %v2855, %v2857
        %v2901 = vsel %vm2898, %v2859, %v2861
        %v2902 = vsel %vm2898, %v2863, %v2865
        %v2903 = vsel %vm2898, %v2867, %v2869
        %v2904 = vsel %vm2898, %v2871, %v2873
        %v2905 = vsel %vm2898, %v2875, %v2877
        %v2906 = vsel %vm2898, %v2879, %v2881
        %v2907 = vsel %vm2898, %v2883, %v2885
        %v2908 = vsel %vm2898, %v2887, %v2889
        %v2909 = vsel %vm2898, %v2891, %v2893
        %v2910 = vsel %vm2898, %v2895, %v2897
        %v2947 = vsel %vm2898, %v2853, %v2851
        %v2948 = vsel %vm2898, %v2857, %v2855
        %v2949 = vsel %vm2898, %v2861, %v2859
        %v2950 = vsel %vm2898, %v2865, %v2863
        %v2951 = vsel %vm2898, %v2869, %v2867
        %v2952 = vsel %vm2898, %v2873, %v2871
        %v2953 = vsel %vm2898, %v2877, %v2875
        %v2954 = vsel %vm2898, %v2881, %v2879
        %v2955 = vsel %vm2898, %v2885, %v2883
        %v2956 = vsel %vm2898, %v2889, %v2887
        %v2957 = vsel %vm2898, %v2893, %v2891
        %v2958 = vsel %vm2898, %v2897, %v2895
        %v2959 = vperm.slane %v1583, 6
        %v2960 = vperm.slane %v1584, 6
        %v2961 = vmul.f32 %v2899, %v2959
        %v2962 = vmul.f32 %v2947, %v2960
        %v2963 = vmul.f32 %v2900, %v2959
        %v2964 = vmul.f32 %v2948, %v2960
        %v2965 = vmul.f32 %v2901, %v2959
        %v2966 = vmul.f32 %v2949, %v2960
        %v2967 = vmul.f32 %v2902, %v2959
        %v2968 = vmul.f32 %v2950, %v2960
        %v2969 = vmul.f32 %v2903, %v2959
        %v2970 = vmul.f32 %v2951, %v2960
        %v2971 = vmul.f32 %v2904, %v2959
        %v2972 = vmul.f32 %v2952, %v2960
        %v2973 = vmul.f32 %v2905, %v2959
        %v2974 = vmul.f32 %v2953, %v2960
        %v2975 = vmul.f32 %v2906, %v2959
        %v2976 = vmul.f32 %v2954, %v2960
        %v2977 = vmul.f32 %v2907, %v2959
        %v2978 = vmul.f32 %v2955, %v2960
        %v2979 = vmul.f32 %v2908, %v2959
        %v2980 = vmul.f32 %v2956, %v2960
        %v2981 = vmul.f32 %v2909, %v2959
        %v2982 = vmul.f32 %v2957, %v2960
        %v2983 = vmul.f32 %v2910, %v2959
        %v2984 = vmul.f32 %v2958, %v2960
        %2985 = vset.pattern.permute.xlu0 6
        %2986 = vperm.xlu0 %2985, %v1571
        %v2987 = vpop.permute.xlu0 %2986
        %2989 = vset.pattern.permute.xlu0 6
        %2990 = vperm.xlu0 %2989, %v1572
        %v2991 = vpop.permute.xlu0 %2990
        %2993 = vset.pattern.permute.xlu0 6
        %2994 = vperm.xlu0 %2993, %v1573
        %v2995 = vpop.permute.xlu0 %2994
        %2997 = vset.pattern.permute.xlu0 6
        %2998 = vperm.xlu0 %2997, %v1574
        %v2999 = vpop.permute.xlu0 %2998
        %3001 = vset.pattern.permute.xlu0 6
        %3002 = vperm.xlu0 %3001, %v1575
        %v3003 = vpop.permute.xlu0 %3002
        %3005 = vset.pattern.permute.xlu0 6
        %3006 = vperm.xlu0 %3005, %v1576
        %v3007 = vpop.permute.xlu0 %3006
        %3009 = vset.pattern.permute.xlu0 6
        %3010 = vperm.xlu0 %3009, %v1577
        %v3011 = vpop.permute.xlu0 %3010
        %3013 = vset.pattern.permute.xlu0 6
        %3014 = vperm.xlu0 %3013, %v1578
        %v3015 = vpop.permute.xlu0 %3014
        %3017 = vset.pattern.permute.xlu0 6
        %3018 = vperm.xlu0 %3017, %v1579
        %v3019 = vpop.permute.xlu0 %3018
        %3021 = vset.pattern.permute.xlu0 6
        %3022 = vperm.xlu0 %3021, %v1580
        %v3023 = vpop.permute.xlu0 %3022
        %3025 = vset.pattern.permute.xlu0 6
        %3026 = vperm.xlu0 %3025, %v1581
        %v3027 = vpop.permute.xlu0 %3026
        %3029 = vset.pattern.permute.xlu0 6
        %3030 = vperm.xlu0 %3029, %v1582
        %v3031 = vpop.permute.xlu0 %3030
        %v3033 = vmul.f32 %v2961, %v2987
        %v3034 = vmul.f32 %v2962, %v2987
        %v3035 = vmul.f32 %v2963, %v2991
        %v3036 = vmul.f32 %v2964, %v2991
        %v3037 = vmul.f32 %v2965, %v2995
        %v3038 = vmul.f32 %v2966, %v2995
        %v3039 = vmul.f32 %v2967, %v2999
        %v3040 = vmul.f32 %v2968, %v2999
        %v3041 = vmul.f32 %v2969, %v3003
        %v3042 = vmul.f32 %v2970, %v3003
        %v3043 = vmul.f32 %v2971, %v3007
        %v3044 = vmul.f32 %v2972, %v3007
        %v3045 = vmul.f32 %v2973, %v3011
        %v3046 = vmul.f32 %v2974, %v3011
        %v3047 = vmul.f32 %v2975, %v3015
        %v3048 = vmul.f32 %v2976, %v3015
        %v3049 = vmul.f32 %v2977, %v3019
        %v3050 = vmul.f32 %v2978, %v3019
        %v3051 = vmul.f32 %v2979, %v3023
        %v3052 = vmul.f32 %v2980, %v3023
        %v3053 = vmul.f32 %v2981, %v3027
        %v3054 = vmul.f32 %v2982, %v3027
        %v3055 = vmul.f32 %v2983, %v3031
        %v3056 = vmul.f32 %v2984, %v3031
        %v3057 = vadd.f32 %v2826, %v3033
        %v3058 = vadd.f32 %v2827, %v3034
        %v3059 = vadd.f32 %v2828, %v3035
        %v3060 = vadd.f32 %v2829, %v3036
        %v3061 = vadd.f32 %v2830, %v3037
        %v3062 = vadd.f32 %v2831, %v3038
        %v3063 = vadd.f32 %v2832, %v3039
        %v3064 = vadd.f32 %v2833, %v3040
        %v3065 = vadd.f32 %v2834, %v3041
        %v3066 = vadd.f32 %v2835, %v3042
        %v3067 = vadd.f32 %v2836, %v3043
        %v3068 = vadd.f32 %v2837, %v3044
        %v3069 = vadd.f32 %v2838, %v3045
        %v3070 = vadd.f32 %v2839, %v3046
        %v3071 = vadd.f32 %v2840, %v3047
        %v3072 = vadd.f32 %v2841, %v3048
        %v3073 = vadd.f32 %v2842, %v3049
        %v3074 = vadd.f32 %v2843, %v3050
        %v3075 = vadd.f32 %v2844, %v3051
        %v3076 = vadd.f32 %v2845, %v3052
        %v3077 = vadd.f32 %v2846, %v3053
        %v3078 = vadd.f32 %v2847, %v3054
        %v3079 = vadd.f32 %v2848, %v3055
        %v3080 = vadd.f32 %v2849, %v3056
        %3081 = vrot.lane.b32.xlu0 %v999, 120
        %v3082 = vpop.permute.xlu0 %3081
        %3083 = vrot.lane.b32.xlu0 %v1525, 120
        %v3084 = vpop.permute.xlu0 %3083
        %3085 = vrot.lane.b32.xlu0 %v1003, 120
        %v3086 = vpop.permute.xlu0 %3085
        %3087 = vrot.lane.b32.xlu0 %v1529, 120
        %v3088 = vpop.permute.xlu0 %3087
        %3089 = vrot.lane.b32.xlu0 %v1007, 120
        %v3090 = vpop.permute.xlu0 %3089
        %3091 = vrot.lane.b32.xlu0 %v1533, 120
        %v3092 = vpop.permute.xlu0 %3091
        %3093 = vrot.lane.b32.xlu0 %v1011, 120
        %v3094 = vpop.permute.xlu0 %3093
        %3095 = vrot.lane.b32.xlu0 %v1537, 120
        %v3096 = vpop.permute.xlu0 %3095
        %3097 = vrot.lane.b32.xlu0 %v1015, 120
        %v3098 = vpop.permute.xlu0 %3097
        %3099 = vrot.lane.b32.xlu0 %v1541, 120
        %v3100 = vpop.permute.xlu0 %3099
        %3101 = vrot.lane.b32.xlu0 %v1019, 120
        %v3102 = vpop.permute.xlu0 %3101
        %3103 = vrot.lane.b32.xlu0 %v1545, 120
        %v3104 = vpop.permute.xlu0 %3103
        %3105 = vrot.lane.b32.xlu0 %v1023, 120
        %v3106 = vpop.permute.xlu0 %3105
        %3107 = vrot.lane.b32.xlu0 %v1549, 120
        %v3108 = vpop.permute.xlu0 %3107
        %3109 = vrot.lane.b32.xlu0 %v1027, 120
        %v3110 = vpop.permute.xlu0 %3109
        %3111 = vrot.lane.b32.xlu0 %v1553, 120
        %v3112 = vpop.permute.xlu0 %3111
        %3113 = vrot.lane.b32.xlu0 %v1031, 120
        %v3114 = vpop.permute.xlu0 %3113
        %3115 = vrot.lane.b32.xlu0 %v1557, 120
        %v3116 = vpop.permute.xlu0 %3115
        %3117 = vrot.lane.b32.xlu0 %v1035, 120
        %v3118 = vpop.permute.xlu0 %3117
        %3119 = vrot.lane.b32.xlu0 %v1561, 120
        %v3120 = vpop.permute.xlu0 %3119
        %3121 = vrot.lane.b32.xlu0 %v1039, 120
        %v3122 = vpop.permute.xlu0 %3121
        %3123 = vrot.lane.b32.xlu0 %v1565, 120
        %v3124 = vpop.permute.xlu0 %3123
        %3125 = vrot.lane.b32.xlu0 %v1043, 120
        %v3126 = vpop.permute.xlu0 %3125
        %3127 = vrot.lane.b32.xlu0 %v1569, 120
        %v3128 = vpop.permute.xlu0 %3127
        %vm3129 = vcmask 982016
        %v3130 = vsel %vm3129, %v3082, %v3084
        %v3131 = vsel %vm3129, %v3086, %v3088
        %v3132 = vsel %vm3129, %v3090, %v3092
        %v3133 = vsel %vm3129, %v3094, %v3096
        %v3134 = vsel %vm3129, %v3098, %v3100
        %v3135 = vsel %vm3129, %v3102, %v3104
        %v3136 = vsel %vm3129, %v3106, %v3108
        %v3137 = vsel %vm3129, %v3110, %v3112
        %v3138 = vsel %vm3129, %v3114, %v3116
        %v3139 = vsel %vm3129, %v3118, %v3120
        %v3140 = vsel %vm3129, %v3122, %v3124
        %v3141 = vsel %vm3129, %v3126, %v3128
        %v3178 = vsel %vm3129, %v3084, %v3082
        %v3179 = vsel %vm3129, %v3088, %v3086
        %v3180 = vsel %vm3129, %v3092, %v3090
        %v3181 = vsel %vm3129, %v3096, %v3094
        %v3182 = vsel %vm3129, %v3100, %v3098
        %v3183 = vsel %vm3129, %v3104, %v3102
        %v3184 = vsel %vm3129, %v3108, %v3106
        %v3185 = vsel %vm3129, %v3112, %v3110
        %v3186 = vsel %vm3129, %v3116, %v3114
        %v3187 = vsel %vm3129, %v3120, %v3118
        %v3188 = vsel %vm3129, %v3124, %v3122
        %v3189 = vsel %vm3129, %v3128, %v3126
        %v3190 = vperm.slane %v1583, 7
        %v3191 = vperm.slane %v1584, 7
        %v3192 = vmul.f32 %v3130, %v3190
        %v3193 = vmul.f32 %v3178, %v3191
        %v3194 = vmul.f32 %v3131, %v3190
        %v3195 = vmul.f32 %v3179, %v3191
        %v3196 = vmul.f32 %v3132, %v3190
        %v3197 = vmul.f32 %v3180, %v3191
        %v3198 = vmul.f32 %v3133, %v3190
        %v3199 = vmul.f32 %v3181, %v3191
        %v3200 = vmul.f32 %v3134, %v3190
        %v3201 = vmul.f32 %v3182, %v3191
        %v3202 = vmul.f32 %v3135, %v3190
        %v3203 = vmul.f32 %v3183, %v3191
        %v3204 = vmul.f32 %v3136, %v3190
        %v3205 = vmul.f32 %v3184, %v3191
        %v3206 = vmul.f32 %v3137, %v3190
        %v3207 = vmul.f32 %v3185, %v3191
        %v3208 = vmul.f32 %v3138, %v3190
        %v3209 = vmul.f32 %v3186, %v3191
        %v3210 = vmul.f32 %v3139, %v3190
        %v3211 = vmul.f32 %v3187, %v3191
        %v3212 = vmul.f32 %v3140, %v3190
        %v3213 = vmul.f32 %v3188, %v3191
        %v3214 = vmul.f32 %v3141, %v3190
        %v3215 = vmul.f32 %v3189, %v3191
        %3216 = vset.pattern.permute.xlu0 7
        %3217 = vperm.xlu0 %3216, %v1571
        %v3218 = vpop.permute.xlu0 %3217
        %3220 = vset.pattern.permute.xlu0 7
        %3221 = vperm.xlu0 %3220, %v1572
        %v3222 = vpop.permute.xlu0 %3221
        %3224 = vset.pattern.permute.xlu0 7
        %3225 = vperm.xlu0 %3224, %v1573
        %v3226 = vpop.permute.xlu0 %3225
        %3228 = vset.pattern.permute.xlu0 7
        %3229 = vperm.xlu0 %3228, %v1574
        %v3230 = vpop.permute.xlu0 %3229
        %3232 = vset.pattern.permute.xlu0 7
        %3233 = vperm.xlu0 %3232, %v1575
        %v3234 = vpop.permute.xlu0 %3233
        %3236 = vset.pattern.permute.xlu0 7
        %3237 = vperm.xlu0 %3236, %v1576
        %v3238 = vpop.permute.xlu0 %3237
        %3240 = vset.pattern.permute.xlu0 7
        %3241 = vperm.xlu0 %3240, %v1577
        %v3242 = vpop.permute.xlu0 %3241
        %3244 = vset.pattern.permute.xlu0 7
        %3245 = vperm.xlu0 %3244, %v1578
        %v3246 = vpop.permute.xlu0 %3245
        %3248 = vset.pattern.permute.xlu0 7
        %3249 = vperm.xlu0 %3248, %v1579
        %v3250 = vpop.permute.xlu0 %3249
        %3252 = vset.pattern.permute.xlu0 7
        %3253 = vperm.xlu0 %3252, %v1580
        %v3254 = vpop.permute.xlu0 %3253
        %3256 = vset.pattern.permute.xlu0 7
        %3257 = vperm.xlu0 %3256, %v1581
        %v3258 = vpop.permute.xlu0 %3257
        %3260 = vset.pattern.permute.xlu0 7
        %3261 = vperm.xlu0 %3260, %v1582
        %v3262 = vpop.permute.xlu0 %3261
        %v3264 = vmul.f32 %v3192, %v3218
        %v3265 = vmul.f32 %v3193, %v3218
        %v3266 = vmul.f32 %v3194, %v3222
        %v3267 = vmul.f32 %v3195, %v3222
        %v3268 = vmul.f32 %v3196, %v3226
        %v3269 = vmul.f32 %v3197, %v3226
        %v3270 = vmul.f32 %v3198, %v3230
        %v3271 = vmul.f32 %v3199, %v3230
        %v3272 = vmul.f32 %v3200, %v3234
        %v3273 = vmul.f32 %v3201, %v3234
        %v3274 = vmul.f32 %v3202, %v3238
        %v3275 = vmul.f32 %v3203, %v3238
        %v3276 = vmul.f32 %v3204, %v3242
        %v3277 = vmul.f32 %v3205, %v3242
        %v3278 = vmul.f32 %v3206, %v3246
        %v3279 = vmul.f32 %v3207, %v3246
        %v3280 = vmul.f32 %v3208, %v3250
        %v3281 = vmul.f32 %v3209, %v3250
        %v3282 = vmul.f32 %v3210, %v3254
        %v3283 = vmul.f32 %v3211, %v3254
        %v3284 = vmul.f32 %v3212, %v3258
        %v3285 = vmul.f32 %v3213, %v3258
        %v3286 = vmul.f32 %v3214, %v3262
        %v3287 = vmul.f32 %v3215, %v3262
        %v3288 = vadd.f32 %v3057, %v3264
        %v3289 = vadd.f32 %v3058, %v3265
        %v3290 = vadd.f32 %v3059, %v3266
        %v3291 = vadd.f32 %v3060, %v3267
        %v3292 = vadd.f32 %v3061, %v3268
        %v3293 = vadd.f32 %v3062, %v3269
        %v3294 = vadd.f32 %v3063, %v3270
        %v3295 = vadd.f32 %v3064, %v3271
        %v3296 = vadd.f32 %v3065, %v3272
        %v3297 = vadd.f32 %v3066, %v3273
        %v3298 = vadd.f32 %v3067, %v3274
        %v3299 = vadd.f32 %v3068, %v3275
        %v3300 = vadd.f32 %v3069, %v3276
        %v3301 = vadd.f32 %v3070, %v3277
        %v3302 = vadd.f32 %v3071, %v3278
        %v3303 = vadd.f32 %v3072, %v3279
        %v3304 = vadd.f32 %v3073, %v3280
        %v3305 = vadd.f32 %v3074, %v3281
        %v3306 = vadd.f32 %v3075, %v3282
        %v3307 = vadd.f32 %v3076, %v3283
        %v3308 = vadd.f32 %v3077, %v3284
        %v3309 = vadd.f32 %v3078, %v3285
        %v3310 = vadd.f32 %v3079, %v3286
        %v3311 = vadd.f32 %v3080, %v3287
        %3312 = vrot.lane.b32.xlu0 %v999, 119
        %v3313 = vpop.permute.xlu0 %3312
        %3314 = vrot.lane.b32.xlu0 %v1525, 119
        %v3315 = vpop.permute.xlu0 %3314
        %3316 = vrot.lane.b32.xlu0 %v1003, 119
        %v3317 = vpop.permute.xlu0 %3316
        %3318 = vrot.lane.b32.xlu0 %v1529, 119
        %v3319 = vpop.permute.xlu0 %3318
        %3320 = vrot.lane.b32.xlu0 %v1007, 119
        %v3321 = vpop.permute.xlu0 %3320
        %3322 = vrot.lane.b32.xlu0 %v1533, 119
        %v3323 = vpop.permute.xlu0 %3322
        %3324 = vrot.lane.b32.xlu0 %v1011, 119
        %v3325 = vpop.permute.xlu0 %3324
        %3326 = vrot.lane.b32.xlu0 %v1537, 119
        %v3327 = vpop.permute.xlu0 %3326
        %3328 = vrot.lane.b32.xlu0 %v1015, 119
        %v3329 = vpop.permute.xlu0 %3328
        %3330 = vrot.lane.b32.xlu0 %v1541, 119
        %v3331 = vpop.permute.xlu0 %3330
        %3332 = vrot.lane.b32.xlu0 %v1019, 119
        %v3333 = vpop.permute.xlu0 %3332
        %3334 = vrot.lane.b32.xlu0 %v1545, 119
        %v3335 = vpop.permute.xlu0 %3334
        %3336 = vrot.lane.b32.xlu0 %v1023, 119
        %v3337 = vpop.permute.xlu0 %3336
        %3338 = vrot.lane.b32.xlu0 %v1549, 119
        %v3339 = vpop.permute.xlu0 %3338
        %3340 = vrot.lane.b32.xlu0 %v1027, 119
        %v3341 = vpop.permute.xlu0 %3340
        %3342 = vrot.lane.b32.xlu0 %v1553, 119
        %v3343 = vpop.permute.xlu0 %3342
        %3344 = vrot.lane.b32.xlu0 %v1031, 119
        %v3345 = vpop.permute.xlu0 %3344
        %3346 = vrot.lane.b32.xlu0 %v1557, 119
        %v3347 = vpop.permute.xlu0 %3346
        %3348 = vrot.lane.b32.xlu0 %v1035, 119
        %v3349 = vpop.permute.xlu0 %3348
        %3350 = vrot.lane.b32.xlu0 %v1561, 119
        %v3351 = vpop.permute.xlu0 %3350
        %3352 = vrot.lane.b32.xlu0 %v1039, 119
        %v3353 = vpop.permute.xlu0 %3352
        %3354 = vrot.lane.b32.xlu0 %v1565, 119
        %v3355 = vpop.permute.xlu0 %3354
        %3356 = vrot.lane.b32.xlu0 %v1043, 119
        %v3357 = vpop.permute.xlu0 %3356
        %3358 = vrot.lane.b32.xlu0 %v1569, 119
        %v3359 = vpop.permute.xlu0 %3358
        %vm3360 = vcmask 973824
        %v3361 = vsel %vm3360, %v3313, %v3315
        %v3362 = vsel %vm3360, %v3317, %v3319
        %v3363 = vsel %vm3360, %v3321, %v3323
        %v3364 = vsel %vm3360, %v3325, %v3327
        %v3365 = vsel %vm3360, %v3329, %v3331
        %v3366 = vsel %vm3360, %v3333, %v3335
        %v3367 = vsel %vm3360, %v3337, %v3339
        %v3368 = vsel %vm3360, %v3341, %v3343
        %v3369 = vsel %vm3360, %v3345, %v3347
        %v3370 = vsel %vm3360, %v3349, %v3351
        %v3371 = vsel %vm3360, %v3353, %v3355
        %v3372 = vsel %vm3360, %v3357, %v3359
        %v3409 = vsel %vm3360, %v3315, %v3313
        %v3410 = vsel %vm3360, %v3319, %v3317
        %v3411 = vsel %vm3360, %v3323, %v3321
        %v3412 = vsel %vm3360, %v3327, %v3325
        %v3413 = vsel %vm3360, %v3331, %v3329
        %v3414 = vsel %vm3360, %v3335, %v3333
        %v3415 = vsel %vm3360, %v3339, %v3337
        %v3416 = vsel %vm3360, %v3343, %v3341
        %v3417 = vsel %vm3360, %v3347, %v3345
        %v3418 = vsel %vm3360, %v3351, %v3349
        %v3419 = vsel %vm3360, %v3355, %v3353
        %v3420 = vsel %vm3360, %v3359, %v3357
        %v3421 = vperm.slane %v1585, 0
        %v3422 = vperm.slane %v1586, 0
        %v3423 = vmul.f32 %v3361, %v3421
        %v3424 = vmul.f32 %v3409, %v3422
        %v3425 = vmul.f32 %v3362, %v3421
        %v3426 = vmul.f32 %v3410, %v3422
        %v3427 = vmul.f32 %v3363, %v3421
        %v3428 = vmul.f32 %v3411, %v3422
        %v3429 = vmul.f32 %v3364, %v3421
        %v3430 = vmul.f32 %v3412, %v3422
        %v3431 = vmul.f32 %v3365, %v3421
        %v3432 = vmul.f32 %v3413, %v3422
        %v3433 = vmul.f32 %v3366, %v3421
        %v3434 = vmul.f32 %v3414, %v3422
        %v3435 = vmul.f32 %v3367, %v3421
        %v3436 = vmul.f32 %v3415, %v3422
        %v3437 = vmul.f32 %v3368, %v3421
        %v3438 = vmul.f32 %v3416, %v3422
        %v3439 = vmul.f32 %v3369, %v3421
        %v3440 = vmul.f32 %v3417, %v3422
        %v3441 = vmul.f32 %v3370, %v3421
        %v3442 = vmul.f32 %v3418, %v3422
        %v3443 = vmul.f32 %v3371, %v3421
        %v3444 = vmul.f32 %v3419, %v3422
        %v3445 = vmul.f32 %v3372, %v3421
        %v3446 = vmul.f32 %v3420, %v3422
        %3447 = vset.pattern.permute.xlu0 8
        %3448 = vperm.xlu0 %3447, %v1571
        %v3449 = vpop.permute.xlu0 %3448
        %3451 = vset.pattern.permute.xlu0 8
        %3452 = vperm.xlu0 %3451, %v1572
        %v3453 = vpop.permute.xlu0 %3452
        %3455 = vset.pattern.permute.xlu0 8
        %3456 = vperm.xlu0 %3455, %v1573
        %v3457 = vpop.permute.xlu0 %3456
        %3459 = vset.pattern.permute.xlu0 8
        %3460 = vperm.xlu0 %3459, %v1574
        %v3461 = vpop.permute.xlu0 %3460
        %3463 = vset.pattern.permute.xlu0 8
        %3464 = vperm.xlu0 %3463, %v1575
        %v3465 = vpop.permute.xlu0 %3464
        %3467 = vset.pattern.permute.xlu0 8
        %3468 = vperm.xlu0 %3467, %v1576
        %v3469 = vpop.permute.xlu0 %3468
        %3471 = vset.pattern.permute.xlu0 8
        %3472 = vperm.xlu0 %3471, %v1577
        %v3473 = vpop.permute.xlu0 %3472
        %3475 = vset.pattern.permute.xlu0 8
        %3476 = vperm.xlu0 %3475, %v1578
        %v3477 = vpop.permute.xlu0 %3476
        %3479 = vset.pattern.permute.xlu0 8
        %3480 = vperm.xlu0 %3479, %v1579
        %v3481 = vpop.permute.xlu0 %3480
        %3483 = vset.pattern.permute.xlu0 8
        %3484 = vperm.xlu0 %3483, %v1580
        %v3485 = vpop.permute.xlu0 %3484
        %3487 = vset.pattern.permute.xlu0 8
        %3488 = vperm.xlu0 %3487, %v1581
        %v3489 = vpop.permute.xlu0 %3488
        %3491 = vset.pattern.permute.xlu0 8
        %3492 = vperm.xlu0 %3491, %v1582
        %v3493 = vpop.permute.xlu0 %3492
        %v3495 = vmul.f32 %v3423, %v3449
        %v3496 = vmul.f32 %v3424, %v3449
        %v3497 = vmul.f32 %v3425, %v3453
        %v3498 = vmul.f32 %v3426, %v3453
        %v3499 = vmul.f32 %v3427, %v3457
        %v3500 = vmul.f32 %v3428, %v3457
        %v3501 = vmul.f32 %v3429, %v3461
        %v3502 = vmul.f32 %v3430, %v3461
        %v3503 = vmul.f32 %v3431, %v3465
        %v3504 = vmul.f32 %v3432, %v3465
        %v3505 = vmul.f32 %v3433, %v3469
        %v3506 = vmul.f32 %v3434, %v3469
        %v3507 = vmul.f32 %v3435, %v3473
        %v3508 = vmul.f32 %v3436, %v3473
        %v3509 = vmul.f32 %v3437, %v3477
        %v3510 = vmul.f32 %v3438, %v3477
        %v3511 = vmul.f32 %v3439, %v3481
        %v3512 = vmul.f32 %v3440, %v3481
        %v3513 = vmul.f32 %v3441, %v3485
        %v3514 = vmul.f32 %v3442, %v3485
        %v3515 = vmul.f32 %v3443, %v3489
        %v3516 = vmul.f32 %v3444, %v3489
        %v3517 = vmul.f32 %v3445, %v3493
        %v3518 = vmul.f32 %v3446, %v3493
        %v3519 = vadd.f32 %v3288, %v3495
        %v3520 = vadd.f32 %v3289, %v3496
        %v3521 = vadd.f32 %v3290, %v3497
        %v3522 = vadd.f32 %v3291, %v3498
        %v3523 = vadd.f32 %v3292, %v3499
        %v3524 = vadd.f32 %v3293, %v3500
        %v3525 = vadd.f32 %v3294, %v3501
        %v3526 = vadd.f32 %v3295, %v3502
        %v3527 = vadd.f32 %v3296, %v3503
        %v3528 = vadd.f32 %v3297, %v3504
        %v3529 = vadd.f32 %v3298, %v3505
        %v3530 = vadd.f32 %v3299, %v3506
        %v3531 = vadd.f32 %v3300, %v3507
        %v3532 = vadd.f32 %v3301, %v3508
        %v3533 = vadd.f32 %v3302, %v3509
        %v3534 = vadd.f32 %v3303, %v3510
        %v3535 = vadd.f32 %v3304, %v3511
        %v3536 = vadd.f32 %v3305, %v3512
        %v3537 = vadd.f32 %v3306, %v3513
        %v3538 = vadd.f32 %v3307, %v3514
        %v3539 = vadd.f32 %v3308, %v3515
        %v3540 = vadd.f32 %v3309, %v3516
        %v3541 = vadd.f32 %v3310, %v3517
        %v3542 = vadd.f32 %v3311, %v3518
        %v3543 = vld [vmem:[%s4] sm:$0xff]
        %v3544 = vld [vmem:[%s4 + $0x8] sm:$0xff]
        %v3545 = vld [vmem:[%s4 + $0x10] sm:$0xff]
        %v3546 = vld [vmem:[%s4 + $0x18] sm:$0xff]
        %v3547 = vld [vmem:[%s4 + $0x20] sm:$0xff]
        %v3548 = vld [vmem:[%s4 + $0x28] sm:$0xff]
        %v3549 = vld [vmem:[%s4 + $0x30] sm:$0xff]
        %v3550 = vld [vmem:[%s4 + $0x38] sm:$0xff]
        %v3551 = vld [vmem:[%s4 + $0x40] sm:$0xff]
        %v3552 = vld [vmem:[%s4 + $0x48] sm:$0xff]
        %v3553 = vld [vmem:[%s4 + $0x50] sm:$0xff]
        %v3554 = vld [vmem:[%s4 + $0x58] sm:$0xff]
        %3556 = vset.pattern.permute.xlu0 0
        %3557 = vperm.xlu0 %3556, %v3543
        %v3558 = vpop.permute.xlu0 %3557
        %3561 = vset.pattern.permute.xlu0 0
        %3562 = vperm.xlu0 %3561, %v3544
        %v3563 = vpop.permute.xlu0 %3562
        %3566 = vset.pattern.permute.xlu0 0
        %3567 = vperm.xlu0 %3566, %v3545
        %v3568 = vpop.permute.xlu0 %3567
        %3571 = vset.pattern.permute.xlu0 0
        %3572 = vperm.xlu0 %3571, %v3546
        %v3573 = vpop.permute.xlu0 %3572
        %3576 = vset.pattern.permute.xlu0 0
        %3577 = vperm.xlu0 %3576, %v3547
        %v3578 = vpop.permute.xlu0 %3577
        %3581 = vset.pattern.permute.xlu0 0
        %3582 = vperm.xlu0 %3581, %v3548
        %v3583 = vpop.permute.xlu0 %3582
        %3586 = vset.pattern.permute.xlu0 0
        %3587 = vperm.xlu0 %3586, %v3549
        %v3588 = vpop.permute.xlu0 %3587
        %3591 = vset.pattern.permute.xlu0 0
        %3592 = vperm.xlu0 %3591, %v3550
        %v3593 = vpop.permute.xlu0 %3592
        %3596 = vset.pattern.permute.xlu0 0
        %3597 = vperm.xlu0 %3596, %v3551
        %v3598 = vpop.permute.xlu0 %3597
        %3601 = vset.pattern.permute.xlu0 0
        %3602 = vperm.xlu0 %3601, %v3552
        %v3603 = vpop.permute.xlu0 %3602
        %3606 = vset.pattern.permute.xlu0 0
        %3607 = vperm.xlu0 %3606, %v3553
        %v3608 = vpop.permute.xlu0 %3607
        %3611 = vset.pattern.permute.xlu0 0
        %3612 = vperm.xlu0 %3611, %v3554
        %v3613 = vpop.permute.xlu0 %3612
        %v3615 = vadd.f32 %v3519, %v3558
        %v3616 = vadd.f32 %v3520, %v3558
        %v3617 = vadd.f32 %v3521, %v3563
        %v3618 = vadd.f32 %v3522, %v3563
        %v3619 = vadd.f32 %v3523, %v3568
        %v3620 = vadd.f32 %v3524, %v3568
        %v3621 = vadd.f32 %v3525, %v3573
        %v3622 = vadd.f32 %v3526, %v3573
        %v3623 = vadd.f32 %v3527, %v3578
        %v3624 = vadd.f32 %v3528, %v3578
        %v3625 = vadd.f32 %v3529, %v3583
        %v3626 = vadd.f32 %v3530, %v3583
        %v3627 = vadd.f32 %v3531, %v3588
        %v3628 = vadd.f32 %v3532, %v3588
        %v3629 = vadd.f32 %v3533, %v3593
        %v3630 = vadd.f32 %v3534, %v3593
        %v3631 = vadd.f32 %v3535, %v3598
        %v3632 = vadd.f32 %v3536, %v3598
        %v3633 = vadd.f32 %v3537, %v3603
        %v3634 = vadd.f32 %v3538, %v3603
        %v3635 = vadd.f32 %v3539, %v3608
        %v3636 = vadd.f32 %v3540, %v3608
        %v3637 = vadd.f32 %v3541, %v3613
        %v3638 = vadd.f32 %v3542, %v3613
        %v3639 = vld [vmem:[%s6] sm:$0xff]
        %v3640 = vld [vmem:[%s6 + $0x8] sm:$0xff]
        %v3641 = vld [vmem:[%s6 + $0x10] sm:$0xff]
        %v3642 = vld [vmem:[%s6 + $0x18] sm:$0xff]
        %v3643 = vld [vmem:[%s7] sm:$0xff]
        %v3644 = vld [vmem:[%s7 + $0x8] sm:$0xff]
        %v3645 = vld [vmem:[%s7 + $0x10] sm:$0xff]
        %v3646 = vld [vmem:[%s7 + $0x18] sm:$0xff]
        %v3647 = vmul.f32 %v3615, %v3615
        %v3648 = vmul.f32 %v3617, %v3617
        %v3649 = vmul.f32 %v3619, %v3619
        %v3650 = vmul.f32 %v3621, %v3621
        %vm3651 = vcmask 523264
        %v3652 = vsel %vm3651, %v3647, 0.0
        %3653 = vadd.xlane.f32.xlu0 %v3652
        %v3654 = vpop.xlane.xlu0 %3653
        %v3655 = vsel %vm3651, %v3648, 0.0
        %3656 = vadd.xlane.f32.xlu0 %v3655
        %v3657 = vpop.xlane.xlu0 %3656
        %v3658 = vsel %vm3651, %v3649, 0.0
        %3659 = vadd.xlane.f32.xlu0 %v3658
        %v3660 = vpop.xlane.xlu0 %3659
        %v3661 = vsel %vm3651, %v3650, 0.0
        %3662 = vadd.xlane.f32.xlu0 %v3661
        %v3663 = vpop.xlane.xlu0 %3662
        %v3664 = vadd.f32 %v3654, 1e-12
        %v3665 = vadd.f32 %v3657, 1e-12
        %v3666 = vadd.f32 %v3660, 1e-12
        %v3667 = vadd.f32 %v3663, 1e-12
        %v3668 = vrsqrt.pop %v3664
        %v3669 = vmul.f32 %v3668, %v3664
        %v3670 = vmul.f32 %v3669, %v3668
        %v3671 = vmul.f32 0.5, %v3670
        %v3672 = vsub.f32 1.5, %v3671
        %v3673 = vmul.f32 %v3668, %v3672
        %vm3674 = vweird.f32 %v3664
        %vm3675 = vweird.f32 %v3668
        %vm3676 = vmor %vm3674, %vm3675
        %v3677 = vsel %vm3676, %v3668, %v3673
        %v3678 = vrsqrt.pop %v3665
        %v3679 = vmul.f32 %v3678, %v3665
        %v3680 = vmul.f32 %v3679, %v3678
        %v3681 = vmul.f32 0.5, %v3680
        %v3682 = vsub.f32 1.5, %v3681
        %v3683 = vmul.f32 %v3678, %v3682
        %vm3684 = vweird.f32 %v3665
        %vm3685 = vweird.f32 %v3678
        %vm3686 = vmor %vm3684, %vm3685
        %v3687 = vsel %vm3686, %v3678, %v3683
        %v3688 = vrsqrt.pop %v3666
        %v3689 = vmul.f32 %v3688, %v3666
        %v3690 = vmul.f32 %v3689, %v3688
        %v3691 = vmul.f32 0.5, %v3690
        %v3692 = vsub.f32 1.5, %v3691
        %v3693 = vmul.f32 %v3688, %v3692
        %vm3694 = vweird.f32 %v3666
        %vm3695 = vweird.f32 %v3688
        %vm3696 = vmor %vm3694, %vm3695
        %v3697 = vsel %vm3696, %v3688, %v3693
        %v3698 = vrsqrt.pop %v3667
        %v3699 = vmul.f32 %v3698, %v3667
        %v3700 = vmul.f32 %v3699, %v3698
        %v3701 = vmul.f32 0.5, %v3700
        %v3702 = vsub.f32 1.5, %v3701
        %v3703 = vmul.f32 %v3698, %v3702
        %vm3704 = vweird.f32 %v3667
        %vm3705 = vweird.f32 %v3698
        %vm3706 = vmor %vm3704, %vm3705
        %v3707 = vsel %vm3706, %v3698, %v3703
        %v3708 = vmul.f32 %v3615, %v3677
        %v3709 = vmul.f32 %v3617, %v3687
        %v3710 = vmul.f32 %v3619, %v3697
        %v3711 = vmul.f32 %v3621, %v3707
        %v3712 = vmul.f32 %v3623, %v3623
        %v3713 = vmul.f32 %v3625, %v3625
        %v3714 = vmul.f32 %v3627, %v3627
        %v3715 = vmul.f32 %v3629, %v3629
        %v3716 = vsel %vm3651, %v3712, 0.0
        %3717 = vadd.xlane.f32.xlu0 %v3716
        %v3718 = vpop.xlane.xlu0 %3717
        %v3719 = vsel %vm3651, %v3713, 0.0
        %3720 = vadd.xlane.f32.xlu0 %v3719
        %v3721 = vpop.xlane.xlu0 %3720
        %v3722 = vsel %vm3651, %v3714, 0.0
        %3723 = vadd.xlane.f32.xlu0 %v3722
        %v3724 = vpop.xlane.xlu0 %3723
        %v3725 = vsel %vm3651, %v3715, 0.0
        %3726 = vadd.xlane.f32.xlu0 %v3725
        %v3727 = vpop.xlane.xlu0 %3726
        %v3728 = vadd.f32 %v3718, 1e-12
        %v3729 = vadd.f32 %v3721, 1e-12
        %v3730 = vadd.f32 %v3724, 1e-12
        %v3731 = vadd.f32 %v3727, 1e-12
        %v3732 = vrsqrt.pop %v3728
        %v3733 = vmul.f32 %v3732, %v3728
        %v3734 = vmul.f32 %v3733, %v3732
        %v3735 = vmul.f32 0.5, %v3734
        %v3736 = vsub.f32 1.5, %v3735
        %v3737 = vmul.f32 %v3732, %v3736
        %vm3738 = vweird.f32 %v3728
        %vm3739 = vweird.f32 %v3732
        %vm3740 = vmor %vm3738, %vm3739
        %v3741 = vsel %vm3740, %v3732, %v3737
        %v3742 = vrsqrt.pop %v3729
        %v3743 = vmul.f32 %v3742, %v3729
        %v3744 = vmul.f32 %v3743, %v3742
        %v3745 = vmul.f32 0.5, %v3744
        %v3746 = vsub.f32 1.5, %v3745
        %v3747 = vmul.f32 %v3742, %v3746
        %vm3748 = vweird.f32 %v3729
        %vm3749 = vweird.f32 %v3742
        %vm3750 = vmor %vm3748, %vm3749
        %v3751 = vsel %vm3750, %v3742, %v3747
        %v3752 = vrsqrt.pop %v3730
        %v3753 = vmul.f32 %v3752, %v3730
        %v3754 = vmul.f32 %v3753, %v3752
        %v3755 = vmul.f32 0.5, %v3754
        %v3756 = vsub.f32 1.5, %v3755
        %v3757 = vmul.f32 %v3752, %v3756
        %vm3758 = vweird.f32 %v3730
        %vm3759 = vweird.f32 %v3752
        %vm3760 = vmor %vm3758, %vm3759
        %v3761 = vsel %vm3760, %v3752, %v3757
        %v3762 = vrsqrt.pop %v3731
        %v3763 = vmul.f32 %v3762, %v3731
        %v3764 = vmul.f32 %v3763, %v3762
        %v3765 = vmul.f32 0.5, %v3764
        %v3766 = vsub.f32 1.5, %v3765
        %v3767 = vmul.f32 %v3762, %v3766
        %vm3768 = vweird.f32 %v3731
        %vm3769 = vweird.f32 %v3762
        %vm3770 = vmor %vm3768, %vm3769
        %v3771 = vsel %vm3770, %v3762, %v3767
        %v3772 = vmul.f32 %v3623, %v3741
        %v3773 = vmul.f32 %v3625, %v3751
        %v3774 = vmul.f32 %v3627, %v3761
        %v3775 = vmul.f32 %v3629, %v3771
        %v3777 = vsel %vm3651, %v3708, 0
        %v3780 = vsel %vm3651, %v3709, 0
        %v3783 = vsel %vm3651, %v3710, 0
        %v3786 = vsel %vm3651, %v3711, 0
        %v3789 = vsel %vm3651, %v3772, 0
        %v3792 = vsel %vm3651, %v3773, 0
        %v3795 = vsel %vm3651, %v3774, 0
        %v3798 = vsel %vm3651, %v3775, 0
        %3800 = vmatpush.xpose.msra.mxu0 0.0
        %3801 = vmatpush.xpose.msra.mxu0 0.0
        %3802 = vmatpush.xpose.msra.mxu0 0.0
        %3803 = vmatpush.xpose.msra.mxu0 0.0
        %3804 = vmatpush.xpose.msra.mxu0 0.0
        %3805 = vmatpush.xpose.msra.mxu0 0.0
        %3806 = vmatpush.xpose.msra.mxu0 0.0
        %3807 = vmatpush.xpose.msra.mxu0 0.0
        %3808 = vmatpush.xpose.msra.mxu0 0.0
        %3809 = vmatpush.xpose.msra.mxu0 0.0
        %3810 = vmatpush.xpose.msra.mxu0 0.0
        %3811 = vmatpush.xpose.msra.mxu0 0.0
        %v3812 = vand.u32 %v3798, 4294901760
        %3813 = vmatpush.xpose.msra.mxu0 %v3812
        %v3814 = vand.u32 %v3795, 4294901760
        %3815 = vmatpush.xpose.msra.mxu0 %v3814
        %v3816 = vand.u32 %v3792, 4294901760
        %3817 = vmatpush.xpose.msra.mxu0 %v3816
        %v3818 = vand.u32 %v3789, 4294901760
        %3819 = vmatpush.xpose.msra.mxu0 %v3818
        %v3820 = vand.u32 %v3777, 4294901760
        %v3821 = vsub.f32 %v3777, %v3820
        %v3822 = vand.u32 %v3821, 4294901760
        %v3823 = vsub.f32 %v3821, %v3822
        %v3824 = vand.u32 %v3823, 4294901760
        %3825 = vmatmul.f32.gmra.mxu0 %v3824
        %v3826 = vpop.f32.mrf.mxu0
        %v3827 = vadd.f32 0.0, %v3826
        %v3828 = vand.u32 %v3780, 4294901760
        %v3829 = vsub.f32 %v3780, %v3828
        %v3830 = vand.u32 %v3829, 4294901760
        %v3831 = vsub.f32 %v3829, %v3830
        %v3832 = vand.u32 %v3831, 4294901760
        %3833 = vmatmul.f32.gmra.mxu0 %v3832
        %v3834 = vpop.f32.mrf.mxu0
        %v3835 = vadd.f32 0.0, %v3834
        %v3836 = vand.u32 %v3783, 4294901760
        %v3837 = vsub.f32 %v3783, %v3836
        %v3838 = vand.u32 %v3837, 4294901760
        %v3839 = vsub.f32 %v3837, %v3838
        %v3840 = vand.u32 %v3839, 4294901760
        %3841 = vmatmul.f32.gmra.mxu0 %v3840
        %v3842 = vpop.f32.mrf.mxu0
        %v3843 = vadd.f32 0.0, %v3842
        %v3844 = vand.u32 %v3786, 4294901760
        %v3845 = vsub.f32 %v3786, %v3844
        %v3846 = vand.u32 %v3845, 4294901760
        %v3847 = vsub.f32 %v3845, %v3846
        %v3848 = vand.u32 %v3847, 4294901760
        %3849 = vmatmul.f32.gmra.mxu0 %v3848
        %v3850 = vpop.f32.mrf.mxu0
        %v3851 = vadd.f32 0.0, %v3850
        %3852 = vdwg.mxu0
        %3853 = vmatpush.xpose.msra.mxu0 0.0
        %3854 = vmatpush.xpose.msra.mxu0 0.0
        %3855 = vmatpush.xpose.msra.mxu0 0.0
        %3856 = vmatpush.xpose.msra.mxu0 0.0
        %3857 = vmatpush.xpose.msra.mxu0 0.0
        %3858 = vmatpush.xpose.msra.mxu0 0.0
        %3859 = vmatpush.xpose.msra.mxu0 0.0
        %3860 = vmatpush.xpose.msra.mxu0 0.0
        %3861 = vmatpush.xpose.msra.mxu0 0.0
        %3862 = vmatpush.xpose.msra.mxu0 0.0
        %3863 = vmatpush.xpose.msra.mxu0 0.0
        %3864 = vmatpush.xpose.msra.mxu0 0.0
        %v3865 = vand.u32 %v3798, 4294901760
        %v3866 = vsub.f32 %v3798, %v3865
        %v3867 = vand.u32 %v3866, 4294901760
        %v3868 = vsub.f32 %v3866, %v3867
        %v3869 = vand.u32 %v3868, 4294901760
        %3870 = vmatpush.xpose.msra.mxu0 %v3869
        %v3871 = vand.u32 %v3795, 4294901760
        %v3872 = vsub.f32 %v3795, %v3871
        %v3873 = vand.u32 %v3872, 4294901760
        %v3874 = vsub.f32 %v3872, %v3873
        %v3875 = vand.u32 %v3874, 4294901760
        %3876 = vmatpush.xpose.msra.mxu0 %v3875
        %v3877 = vand.u32 %v3792, 4294901760
        %v3878 = vsub.f32 %v3792, %v3877
        %v3879 = vand.u32 %v3878, 4294901760
        %v3880 = vsub.f32 %v3878, %v3879
        %v3881 = vand.u32 %v3880, 4294901760
        %3882 = vmatpush.xpose.msra.mxu0 %v3881
        %v3883 = vand.u32 %v3789, 4294901760
        %v3884 = vsub.f32 %v3789, %v3883
        %v3885 = vand.u32 %v3884, 4294901760
        %v3886 = vsub.f32 %v3884, %v3885
        %v3887 = vand.u32 %v3886, 4294901760
        %3888 = vmatpush.xpose.msra.mxu0 %v3887
        %v3889 = vand.u32 %v3777, 4294901760
        %3890 = vmatmul.f32.gmra.mxu0 %v3889
        %v3891 = vpop.f32.mrf.mxu0
        %v3892 = vadd.f32 %v3827, %v3891
        %v3893 = vand.u32 %v3780, 4294901760
        %3894 = vmatmul.f32.gmra.mxu0 %v3893
        %v3895 = vpop.f32.mrf.mxu0
        %v3896 = vadd.f32 %v3835, %v3895
        %v3897 = vand.u32 %v3783, 4294901760
        %3898 = vmatmul.f32.gmra.mxu0 %v3897
        %v3899 = vpop.f32.mrf.mxu0
        %v3900 = vadd.f32 %v3843, %v3899
        %v3901 = vand.u32 %v3786, 4294901760
        %3902 = vmatmul.f32.gmra.mxu0 %v3901
        %v3903 = vpop.f32.mrf.mxu0
        %v3904 = vadd.f32 %v3851, %v3903
        %3905 = vdwg.mxu0
        %3906 = vmatpush.xpose.msra.mxu0 0.0
        %3907 = vmatpush.xpose.msra.mxu0 0.0
        %3908 = vmatpush.xpose.msra.mxu0 0.0
        %3909 = vmatpush.xpose.msra.mxu0 0.0
        %3910 = vmatpush.xpose.msra.mxu0 0.0
        %3911 = vmatpush.xpose.msra.mxu0 0.0
        %3912 = vmatpush.xpose.msra.mxu0 0.0
        %3913 = vmatpush.xpose.msra.mxu0 0.0
        %3914 = vmatpush.xpose.msra.mxu0 0.0
        %3915 = vmatpush.xpose.msra.mxu0 0.0
        %3916 = vmatpush.xpose.msra.mxu0 0.0
        %3917 = vmatpush.xpose.msra.mxu0 0.0
        %v3918 = vand.u32 %v3798, 4294901760
        %v3919 = vsub.f32 %v3798, %v3918
        %3920 = vmatpush.xpose.msra.mxu0 %v3919
        %v3921 = vand.u32 %v3795, 4294901760
        %v3922 = vsub.f32 %v3795, %v3921
        %3923 = vmatpush.xpose.msra.mxu0 %v3922
        %v3924 = vand.u32 %v3792, 4294901760
        %v3925 = vsub.f32 %v3792, %v3924
        %3926 = vmatpush.xpose.msra.mxu0 %v3925
        %v3927 = vand.u32 %v3789, 4294901760
        %v3928 = vsub.f32 %v3789, %v3927
        %3929 = vmatpush.xpose.msra.mxu0 %v3928
        %v3930 = vand.u32 %v3777, 4294901760
        %v3931 = vsub.f32 %v3777, %v3930
        %3932 = vmatmul.f32.gmra.mxu0 %v3931
        %v3933 = vpop.f32.mrf.mxu0
        %v3934 = vadd.f32 %v3892, %v3933
        %v3935 = vand.u32 %v3780, 4294901760
        %v3936 = vsub.f32 %v3780, %v3935
        %3937 = vmatmul.f32.gmra.mxu0 %v3936
        %v3938 = vpop.f32.mrf.mxu0
        %v3939 = vadd.f32 %v3896, %v3938
        %v3940 = vand.u32 %v3783, 4294901760
        %v3941 = vsub.f32 %v3783, %v3940
        %3942 = vmatmul.f32.gmra.mxu0 %v3941
        %v3943 = vpop.f32.mrf.mxu0
        %v3944 = vadd.f32 %v3900, %v3943
        %v3945 = vand.u32 %v3786, 4294901760
        %v3946 = vsub.f32 %v3786, %v3945
        %3947 = vmatmul.f32.gmra.mxu0 %v3946
        %v3948 = vpop.f32.mrf.mxu0
        %v3949 = vadd.f32 %v3904, %v3948
        %3950 = vdwg.mxu0
        %3951 = vmatpush.xpose.msra.mxu0 0.0
        %3952 = vmatpush.xpose.msra.mxu0 0.0
        %3953 = vmatpush.xpose.msra.mxu0 0.0
        %3954 = vmatpush.xpose.msra.mxu0 0.0
        %3955 = vmatpush.xpose.msra.mxu0 0.0
        %3956 = vmatpush.xpose.msra.mxu0 0.0
        %3957 = vmatpush.xpose.msra.mxu0 0.0
        %3958 = vmatpush.xpose.msra.mxu0 0.0
        %3959 = vmatpush.xpose.msra.mxu0 0.0
        %3960 = vmatpush.xpose.msra.mxu0 0.0
        %3961 = vmatpush.xpose.msra.mxu0 0.0
        %3962 = vmatpush.xpose.msra.mxu0 0.0
        %v3963 = vand.u32 %v3798, 4294901760
        %3964 = vmatpush.xpose.msra.mxu0 %v3963
        %v3965 = vand.u32 %v3795, 4294901760
        %3966 = vmatpush.xpose.msra.mxu0 %v3965
        %v3967 = vand.u32 %v3792, 4294901760
        %3968 = vmatpush.xpose.msra.mxu0 %v3967
        %v3969 = vand.u32 %v3789, 4294901760
        %3970 = vmatpush.xpose.msra.mxu0 %v3969
        %v3971 = vand.u32 %v3777, 4294901760
        %v3972 = vsub.f32 %v3777, %v3971
        %v3973 = vand.u32 %v3972, 4294901760
        %3974 = vmatmul.f32.gmra.mxu0 %v3973
        %v3975 = vpop.f32.mrf.mxu0
        %v3976 = vadd.f32 %v3934, %v3975
        %v3977 = vand.u32 %v3780, 4294901760
        %v3978 = vsub.f32 %v3780, %v3977
        %v3979 = vand.u32 %v3978, 4294901760
        %3980 = vmatmul.f32.gmra.mxu0 %v3979
        %v3981 = vpop.f32.mrf.mxu0
        %v3982 = vadd.f32 %v3939, %v3981
        %v3983 = vand.u32 %v3783, 4294901760
        %v3984 = vsub.f32 %v3783, %v3983
        %v3985 = vand.u32 %v3984, 4294901760
        %3986 = vmatmul.f32.gmra.mxu0 %v3985
        %v3987 = vpop.f32.mrf.mxu0
        %v3988 = vadd.f32 %v3944, %v3987
        %v3989 = vand.u32 %v3786, 4294901760
        %v3990 = vsub.f32 %v3786, %v3989
        %v3991 = vand.u32 %v3990, 4294901760
        %3992 = vmatmul.f32.gmra.mxu0 %v3991
        %v3993 = vpop.f32.mrf.mxu0
        %v3994 = vadd.f32 %v3949, %v3993
        %3995 = vdwg.mxu0
        %3996 = vmatpush.xpose.msra.mxu0 0.0
        %3997 = vmatpush.xpose.msra.mxu0 0.0
        %3998 = vmatpush.xpose.msra.mxu0 0.0
        %3999 = vmatpush.xpose.msra.mxu0 0.0
        %4000 = vmatpush.xpose.msra.mxu0 0.0
        %4001 = vmatpush.xpose.msra.mxu0 0.0
        %4002 = vmatpush.xpose.msra.mxu0 0.0
        %4003 = vmatpush.xpose.msra.mxu0 0.0
        %4004 = vmatpush.xpose.msra.mxu0 0.0
        %4005 = vmatpush.xpose.msra.mxu0 0.0
        %4006 = vmatpush.xpose.msra.mxu0 0.0
        %4007 = vmatpush.xpose.msra.mxu0 0.0
        %v4008 = vand.u32 %v3798, 4294901760
        %v4009 = vsub.f32 %v3798, %v4008
        %v4010 = vand.u32 %v4009, 4294901760
        %4011 = vmatpush.xpose.msra.mxu0 %v4010
        %v4012 = vand.u32 %v3795, 4294901760
        %v4013 = vsub.f32 %v3795, %v4012
        %v4014 = vand.u32 %v4013, 4294901760
        %4015 = vmatpush.xpose.msra.mxu0 %v4014
        %v4016 = vand.u32 %v3792, 4294901760
        %v4017 = vsub.f32 %v3792, %v4016
        %v4018 = vand.u32 %v4017, 4294901760
        %4019 = vmatpush.xpose.msra.mxu0 %v4018
        %v4020 = vand.u32 %v3789, 4294901760
        %v4021 = vsub.f32 %v3789, %v4020
        %v4022 = vand.u32 %v4021, 4294901760
        %4023 = vmatpush.xpose.msra.mxu0 %v4022
        %v4024 = vand.u32 %v3777, 4294901760
        %4025 = vmatmul.f32.gmra.mxu0 %v4024
        %v4026 = vpop.f32.mrf.mxu0
        %v4027 = vadd.f32 %v3976, %v4026
        %v4028 = vand.u32 %v3780, 4294901760
        %4029 = vmatmul.f32.gmra.mxu0 %v4028
        %v4030 = vpop.f32.mrf.mxu0
        %v4031 = vadd.f32 %v3982, %v4030
        %v4032 = vand.u32 %v3783, 4294901760
        %4033 = vmatmul.f32.gmra.mxu0 %v4032
        %v4034 = vpop.f32.mrf.mxu0
        %v4035 = vadd.f32 %v3988, %v4034
        %v4036 = vand.u32 %v3786, 4294901760
        %4037 = vmatmul.f32.gmra.mxu0 %v4036
        %v4038 = vpop.f32.mrf.mxu0
        %v4039 = vadd.f32 %v3994, %v4038
        %4040 = vdwg.mxu0
        %4041 = vmatpush.xpose.msra.mxu0 0.0
        %4042 = vmatpush.xpose.msra.mxu0 0.0
        %4043 = vmatpush.xpose.msra.mxu0 0.0
        %4044 = vmatpush.xpose.msra.mxu0 0.0
        %4045 = vmatpush.xpose.msra.mxu0 0.0
        %4046 = vmatpush.xpose.msra.mxu0 0.0
        %4047 = vmatpush.xpose.msra.mxu0 0.0
        %4048 = vmatpush.xpose.msra.mxu0 0.0
        %4049 = vmatpush.xpose.msra.mxu0 0.0
        %4050 = vmatpush.xpose.msra.mxu0 0.0
        %4051 = vmatpush.xpose.msra.mxu0 0.0
        %4052 = vmatpush.xpose.msra.mxu0 0.0
        %v4053 = vand.u32 %v3798, 4294901760
        %4054 = vmatpush.xpose.msra.mxu0 %v4053
        %v4055 = vand.u32 %v3795, 4294901760
        %4056 = vmatpush.xpose.msra.mxu0 %v4055
        %v4057 = vand.u32 %v3792, 4294901760
        %4058 = vmatpush.xpose.msra.mxu0 %v4057
        %v4059 = vand.u32 %v3789, 4294901760
        %4060 = vmatpush.xpose.msra.mxu0 %v4059
        %v4061 = vand.u32 %v3777, 4294901760
        %4062 = vmatmul.f32.gmra.mxu0 %v4061
        %v4063 = vpop.f32.mrf.mxu0
        %v4064 = vadd.f32 %v4027, %v4063
        %v4065 = vand.u32 %v3780, 4294901760
        %4066 = vmatmul.f32.gmra.mxu0 %v4065
        %v4067 = vpop.f32.mrf.mxu0
        %v4068 = vadd.f32 %v4031, %v4067
        %v4069 = vand.u32 %v3783, 4294901760
        %4070 = vmatmul.f32.gmra.mxu0 %v4069
        %v4071 = vpop.f32.mrf.mxu0
        %v4072 = vadd.f32 %v4035, %v4071
        %v4073 = vand.u32 %v3786, 4294901760
        %4074 = vmatmul.f32.gmra.mxu0 %v4073
        %v4075 = vpop.f32.mrf.mxu0
        %v4076 = vadd.f32 %v4039, %v4075
        %4077 = vdwg.mxu0
        %4079 = vset.pattern.permute.xlu0 0
        %4080 = vperm.xlu0 %4079, %v3639
        %v4081 = vpop.permute.xlu0 %4080
        %4084 = vset.pattern.permute.xlu0 0
        %4085 = vperm.xlu0 %4084, %v3640
        %v4086 = vpop.permute.xlu0 %4085
        %4089 = vset.pattern.permute.xlu0 0
        %4090 = vperm.xlu0 %4089, %v3641
        %v4091 = vpop.permute.xlu0 %4090
        %4094 = vset.pattern.permute.xlu0 0
        %4095 = vperm.xlu0 %4094, %v3642
        %v4096 = vpop.permute.xlu0 %4095
        %v4098 = vmul.f32 %v4064, %v4081
        %v4099 = vmul.f32 %v4068, %v4086
        %v4100 = vmul.f32 %v4072, %v4091
        %v4101 = vmul.f32 %v4076, %v4096
        %v4102 = vsel %vm482, %v4098, -inf
        %4103 = vmax.xlane.f32.xlu0 %v4102
        %v4104 = vpop.xlane.xlu0 %4103
        %v4105 = vsel %vm482, %v4099, -inf
        %4106 = vmax.xlane.f32.xlu0 %v4105
        %v4107 = vpop.xlane.xlu0 %4106
        %v4108 = vsel %vm482, %v4100, -inf
        %4109 = vmax.xlane.f32.xlu0 %v4108
        %v4110 = vpop.xlane.xlu0 %4109
        %v4111 = vsel %vm482, %v4101, -inf
        %4112 = vmax.xlane.f32.xlu0 %v4111
        %v4113 = vpop.xlane.xlu0 %4112
        %v4114 = vsub.f32 %v4098, %v4104
        %v4115 = vsub.f32 %v4099, %v4107
        %v4116 = vsub.f32 %v4100, %v4110
        %v4117 = vsub.f32 %v4101, %v4113
        %v4118 = vmul.f32 %v4114, 1.442695
        %v4119 = vpow.pop %v4118
        %v4120 = vmul.f32 %v4115, 1.442695
        %v4121 = vpow.pop %v4120
        %v4122 = vmul.f32 %v4116, 1.442695
        %v4123 = vpow.pop %v4122
        %v4124 = vmul.f32 %v4117, 1.442695
        %v4125 = vpow.pop %v4124
        %v4126 = vmul.f32 %v4119, %v3643
        %v4127 = vmul.f32 %v4121, %v3644
        %v4128 = vmul.f32 %v4123, %v3645
        %v4129 = vmul.f32 %v4125, %v3646
        %v4130 = vsel %vm482, %v4126, 0.0
        %4131 = vadd.xlane.f32.xlu0 %v4130
        %v4132 = vpop.xlane.xlu0 %4131
        %v4133 = vsel %vm482, %v4127, 0.0
        %4134 = vadd.xlane.f32.xlu0 %v4133
        %v4135 = vpop.xlane.xlu0 %4134
        %v4136 = vsel %vm482, %v4128, 0.0
        %4137 = vadd.xlane.f32.xlu0 %v4136
        %v4138 = vpop.xlane.xlu0 %4137
        %v4139 = vsel %vm482, %v4129, 0.0
        %4140 = vadd.xlane.f32.xlu0 %v4139
        %v4141 = vpop.xlane.xlu0 %4140
        %v4142 = vrcp.pop %v4132
        %v4143 = vmul.f32 %v4132, %v4142
        %v4144 = vsub.f32 1.0, %v4143
        %v4145 = vmul.f32 %v4142, %v4144
        %v4146 = vadd.f32 %v4142, %v4145
        %vm4147 = vweird.f32 %v4132
        %vm4148 = vweird.f32 %v4142
        %vm4149 = vmor %vm4147, %vm4148
        %v4150 = vsel %vm4149, %v4142, %v4146
        %v4151 = vand.u32 2147483647, %v4132
        %vm4152 = vcmp.eq.f32.partialorder %v4151, 8.507059e+37
        %v4153 = vand.u32 %v4132, 2147483648
        %v4154 = vor.u32 1.1754944e-38, %v4153
        %v4155 = vsel %vm4152, %v4154, %v4150
        %v4156 = vmul.f32 %v4126, %v4155
        %v4157 = vrcp.pop %v4135
        %v4158 = vmul.f32 %v4135, %v4157
        %v4159 = vsub.f32 1.0, %v4158
        %v4160 = vmul.f32 %v4157, %v4159
        %v4161 = vadd.f32 %v4157, %v4160
        %vm4162 = vweird.f32 %v4135
        %vm4163 = vweird.f32 %v4157
        %vm4164 = vmor %vm4162, %vm4163
        %v4165 = vsel %vm4164, %v4157, %v4161
        %v4166 = vand.u32 2147483647, %v4135
        %vm4167 = vcmp.eq.f32.partialorder %v4166, 8.507059e+37
        %v4168 = vand.u32 %v4135, 2147483648
        %v4169 = vor.u32 1.1754944e-38, %v4168
        %v4170 = vsel %vm4167, %v4169, %v4165
        %v4171 = vmul.f32 %v4127, %v4170
        %v4172 = vrcp.pop %v4138
        %v4173 = vmul.f32 %v4138, %v4172
        %v4174 = vsub.f32 1.0, %v4173
        %v4175 = vmul.f32 %v4172, %v4174
        %v4176 = vadd.f32 %v4172, %v4175
        %vm4177 = vweird.f32 %v4138
        %vm4178 = vweird.f32 %v4172
        %vm4179 = vmor %vm4177, %vm4178
        %v4180 = vsel %vm4179, %v4172, %v4176
        %v4181 = vand.u32 2147483647, %v4138
        %vm4182 = vcmp.eq.f32.partialorder %v4181, 8.507059e+37
        %v4183 = vand.u32 %v4138, 2147483648
        %v4184 = vor.u32 1.1754944e-38, %v4183
        %v4185 = vsel %vm4182, %v4184, %v4180
        %v4186 = vmul.f32 %v4128, %v4185
        %v4187 = vrcp.pop %v4141
        %v4188 = vmul.f32 %v4141, %v4187
        %v4189 = vsub.f32 1.0, %v4188
        %v4190 = vmul.f32 %v4187, %v4189
        %v4191 = vadd.f32 %v4187, %v4190
        %vm4192 = vweird.f32 %v4141
        %vm4193 = vweird.f32 %v4187
        %vm4194 = vmor %vm4192, %vm4193
        %v4195 = vsel %vm4194, %v4187, %v4191
        %v4196 = vand.u32 2147483647, %v4141
        %vm4197 = vcmp.eq.f32.partialorder %v4196, 8.507059e+37
        %v4198 = vand.u32 %v4141, 2147483648
        %v4199 = vor.u32 1.1754944e-38, %v4198
        %v4200 = vsel %vm4197, %v4199, %v4195
        %v4201 = vmul.f32 %v4129, %v4200
        %v4203 = vsel %vm482, %v4156, 0
        %v4206 = vsel %vm482, %v4171, 0
        %v4209 = vsel %vm482, %v4186, 0
        %v4212 = vsel %vm482, %v4201, 0
        %4214 = vmatpush.msra.mxu0 0.0
        %4215 = vmatpush.msra.mxu0 0.0
        %4216 = vmatpush.msra.mxu0 0.0
        %4217 = vmatpush.msra.mxu0 0.0
        %4218 = vmatpush.msra.mxu0 0.0
        %4219 = vmatpush.msra.mxu0 0.0
        %4220 = vmatpush.msra.mxu0 0.0
        %4221 = vmatpush.msra.mxu0 0.0
        %4222 = vmatpush.msra.mxu0 0.0
        %4223 = vmatpush.msra.mxu0 0.0
        %4224 = vmatpush.msra.mxu0 0.0
        %4225 = vmatpush.msra.mxu0 0.0
        %v4226 = vand.u32 %v3637, 4294901760
        %4227 = vmatpush.msra.mxu0 %v4226
        %v4228 = vand.u32 %v3635, 4294901760
        %4229 = vmatpush.msra.mxu0 %v4228
        %v4230 = vand.u32 %v3633, 4294901760
        %4231 = vmatpush.msra.mxu0 %v4230
        %v4232 = vand.u32 %v3631, 4294901760
        %4233 = vmatpush.msra.mxu0 %v4232
        %v4234 = vand.u32 %v4203, 4294901760
        %v4235 = vsub.f32 %v4203, %v4234
        %v4236 = vand.u32 %v4235, 4294901760
        %v4237 = vsub.f32 %v4235, %v4236
        %v4238 = vand.u32 %v4237, 4294901760
        %4239 = vmatmul.f32.gmra.mxu0 %v4238
        %v4240 = vpop.f32.mrf.mxu0
        %v4241 = vadd.f32 0.0, %v4240
        %v4242 = vand.u32 %v4206, 4294901760
        %v4243 = vsub.f32 %v4206, %v4242
        %v4244 = vand.u32 %v4243, 4294901760
        %v4245 = vsub.f32 %v4243, %v4244
        %v4246 = vand.u32 %v4245, 4294901760
        %4247 = vmatmul.f32.gmra.mxu0 %v4246
        %v4248 = vpop.f32.mrf.mxu0
        %v4249 = vadd.f32 0.0, %v4248
        %v4250 = vand.u32 %v4209, 4294901760
        %v4251 = vsub.f32 %v4209, %v4250
        %v4252 = vand.u32 %v4251, 4294901760
        %v4253 = vsub.f32 %v4251, %v4252
        %v4254 = vand.u32 %v4253, 4294901760
        %4255 = vmatmul.f32.gmra.mxu0 %v4254
        %v4256 = vpop.f32.mrf.mxu0
        %v4257 = vadd.f32 0.0, %v4256
        %v4258 = vand.u32 %v4212, 4294901760
        %v4259 = vsub.f32 %v4212, %v4258
        %v4260 = vand.u32 %v4259, 4294901760
        %v4261 = vsub.f32 %v4259, %v4260
        %v4262 = vand.u32 %v4261, 4294901760
        %4263 = vmatmul.f32.gmra.mxu0 %v4262
        %v4264 = vpop.f32.mrf.mxu0
        %v4265 = vadd.f32 0.0, %v4264
        %4266 = vdwg.mxu0
        %4267 = vmatpush.msra.mxu0 0.0
        %4268 = vmatpush.msra.mxu0 0.0
        %4269 = vmatpush.msra.mxu0 0.0
        %4270 = vmatpush.msra.mxu0 0.0
        %4271 = vmatpush.msra.mxu0 0.0
        %4272 = vmatpush.msra.mxu0 0.0
        %4273 = vmatpush.msra.mxu0 0.0
        %4274 = vmatpush.msra.mxu0 0.0
        %4275 = vmatpush.msra.mxu0 0.0
        %4276 = vmatpush.msra.mxu0 0.0
        %4277 = vmatpush.msra.mxu0 0.0
        %4278 = vmatpush.msra.mxu0 0.0
        %v4279 = vand.u32 %v3637, 4294901760
        %v4280 = vsub.f32 %v3637, %v4279
        %v4281 = vand.u32 %v4280, 4294901760
        %v4282 = vsub.f32 %v4280, %v4281
        %v4283 = vand.u32 %v4282, 4294901760
        %4284 = vmatpush.msra.mxu0 %v4283
        %v4285 = vand.u32 %v3635, 4294901760
        %v4286 = vsub.f32 %v3635, %v4285
        %v4287 = vand.u32 %v4286, 4294901760
        %v4288 = vsub.f32 %v4286, %v4287
        %v4289 = vand.u32 %v4288, 4294901760
        %4290 = vmatpush.msra.mxu0 %v4289
        %v4291 = vand.u32 %v3633, 4294901760
        %v4292 = vsub.f32 %v3633, %v4291
        %v4293 = vand.u32 %v4292, 4294901760
        %v4294 = vsub.f32 %v4292, %v4293
        %v4295 = vand.u32 %v4294, 4294901760
        %4296 = vmatpush.msra.mxu0 %v4295
        %v4297 = vand.u32 %v3631, 4294901760
        %v4298 = vsub.f32 %v3631, %v4297
        %v4299 = vand.u32 %v4298, 4294901760
        %v4300 = vsub.f32 %v4298, %v4299
        %v4301 = vand.u32 %v4300, 4294901760
        %4302 = vmatpush.msra.mxu0 %v4301
        %v4303 = vand.u32 %v4203, 4294901760
        %4304 = vmatmul.f32.gmra.mxu0 %v4303
        %v4305 = vpop.f32.mrf.mxu0
        %v4306 = vadd.f32 %v4241, %v4305
        %v4307 = vand.u32 %v4206, 4294901760
        %4308 = vmatmul.f32.gmra.mxu0 %v4307
        %v4309 = vpop.f32.mrf.mxu0
        %v4310 = vadd.f32 %v4249, %v4309
        %v4311 = vand.u32 %v4209, 4294901760
        %4312 = vmatmul.f32.gmra.mxu0 %v4311
        %v4313 = vpop.f32.mrf.mxu0
        %v4314 = vadd.f32 %v4257, %v4313
        %v4315 = vand.u32 %v4212, 4294901760
        %4316 = vmatmul.f32.gmra.mxu0 %v4315
        %v4317 = vpop.f32.mrf.mxu0
        %v4318 = vadd.f32 %v4265, %v4317
        %4319 = vdwg.mxu0
        %4320 = vmatpush.msra.mxu0 0.0
        %4321 = vmatpush.msra.mxu0 0.0
        %4322 = vmatpush.msra.mxu0 0.0
        %4323 = vmatpush.msra.mxu0 0.0
        %4324 = vmatpush.msra.mxu0 0.0
        %4325 = vmatpush.msra.mxu0 0.0
        %4326 = vmatpush.msra.mxu0 0.0
        %4327 = vmatpush.msra.mxu0 0.0
        %4328 = vmatpush.msra.mxu0 0.0
        %4329 = vmatpush.msra.mxu0 0.0
        %4330 = vmatpush.msra.mxu0 0.0
        %4331 = vmatpush.msra.mxu0 0.0
        %v4332 = vand.u32 %v3637, 4294901760
        %v4333 = vsub.f32 %v3637, %v4332
        %4334 = vmatpush.msra.mxu0 %v4333
        %v4335 = vand.u32 %v3635, 4294901760
        %v4336 = vsub.f32 %v3635, %v4335
        %4337 = vmatpush.msra.mxu0 %v4336
        %v4338 = vand.u32 %v3633, 4294901760
        %v4339 = vsub.f32 %v3633, %v4338
        %4340 = vmatpush.msra.mxu0 %v4339
        %v4341 = vand.u32 %v3631, 4294901760
        %v4342 = vsub.f32 %v3631, %v4341
        %4343 = vmatpush.msra.mxu0 %v4342
        %v4344 = vand.u32 %v4203, 4294901760
        %v4345 = vsub.f32 %v4203, %v4344
        %4346 = vmatmul.f32.gmra.mxu0 %v4345
        %v4347 = vpop.f32.mrf.mxu0
        %v4348 = vadd.f32 %v4306, %v4347
        %v4349 = vand.u32 %v4206, 4294901760
        %v4350 = vsub.f32 %v4206, %v4349
        %4351 = vmatmul.f32.gmra.mxu0 %v4350
        %v4352 = vpop.f32.mrf.mxu0
        %v4353 = vadd.f32 %v4310, %v4352
        %v4354 = vand.u32 %v4209, 4294901760
        %v4355 = vsub.f32 %v4209, %v4354
        %4356 = vmatmul.f32.gmra.mxu0 %v4355
        %v4357 = vpop.f32.mrf.mxu0
        %v4358 = vadd.f32 %v4314, %v4357
        %v4359 = vand.u32 %v4212, 4294901760
        %v4360 = vsub.f32 %v4212, %v4359
        %4361 = vmatmul.f32.gmra.mxu0 %v4360
        %v4362 = vpop.f32.mrf.mxu0
        %v4363 = vadd.f32 %v4318, %v4362
        %4364 = vdwg.mxu0
        %4365 = vmatpush.msra.mxu0 0.0
        %4366 = vmatpush.msra.mxu0 0.0
        %4367 = vmatpush.msra.mxu0 0.0
        %4368 = vmatpush.msra.mxu0 0.0
        %4369 = vmatpush.msra.mxu0 0.0
        %4370 = vmatpush.msra.mxu0 0.0
        %4371 = vmatpush.msra.mxu0 0.0
        %4372 = vmatpush.msra.mxu0 0.0
        %4373 = vmatpush.msra.mxu0 0.0
        %4374 = vmatpush.msra.mxu0 0.0
        %4375 = vmatpush.msra.mxu0 0.0
        %4376 = vmatpush.msra.mxu0 0.0
        %v4377 = vand.u32 %v3637, 4294901760
        %4378 = vmatpush.msra.mxu0 %v4377
        %v4379 = vand.u32 %v3635, 4294901760
        %4380 = vmatpush.msra.mxu0 %v4379
        %v4381 = vand.u32 %v3633, 4294901760
        %4382 = vmatpush.msra.mxu0 %v4381
        %v4383 = vand.u32 %v3631, 4294901760
        %4384 = vmatpush.msra.mxu0 %v4383
        %v4385 = vand.u32 %v4203, 4294901760
        %v4386 = vsub.f32 %v4203, %v4385
        %v4387 = vand.u32 %v4386, 4294901760
        %4388 = vmatmul.f32.gmra.mxu0 %v4387
        %v4389 = vpop.f32.mrf.mxu0
        %v4390 = vadd.f32 %v4348, %v4389
        %v4391 = vand.u32 %v4206, 4294901760
        %v4392 = vsub.f32 %v4206, %v4391
        %v4393 = vand.u32 %v4392, 4294901760
        %4394 = vmatmul.f32.gmra.mxu0 %v4393
        %v4395 = vpop.f32.mrf.mxu0
        %v4396 = vadd.f32 %v4353, %v4395
        %v4397 = vand.u32 %v4209, 4294901760
        %v4398 = vsub.f32 %v4209, %v4397
        %v4399 = vand.u32 %v4398, 4294901760
        %4400 = vmatmul.f32.gmra.mxu0 %v4399
        %v4401 = vpop.f32.mrf.mxu0
        %v4402 = vadd.f32 %v4358, %v4401
        %v4403 = vand.u32 %v4212, 4294901760
        %v4404 = vsub.f32 %v4212, %v4403
        %v4405 = vand.u32 %v4404, 4294901760
        %4406 = vmatmul.f32.gmra.mxu0 %v4405
        %v4407 = vpop.f32.mrf.mxu0
        %v4408 = vadd.f32 %v4363, %v4407
        %4409 = vdwg.mxu0
        %4410 = vmatpush.msra.mxu0 0.0
        %4411 = vmatpush.msra.mxu0 0.0
        %4412 = vmatpush.msra.mxu0 0.0
        %4413 = vmatpush.msra.mxu0 0.0
        %4414 = vmatpush.msra.mxu0 0.0
        %4415 = vmatpush.msra.mxu0 0.0
        %4416 = vmatpush.msra.mxu0 0.0
        %4417 = vmatpush.msra.mxu0 0.0
        %4418 = vmatpush.msra.mxu0 0.0
        %4419 = vmatpush.msra.mxu0 0.0
        %4420 = vmatpush.msra.mxu0 0.0
        %4421 = vmatpush.msra.mxu0 0.0
        %v4422 = vand.u32 %v3637, 4294901760
        %v4423 = vsub.f32 %v3637, %v4422
        %v4424 = vand.u32 %v4423, 4294901760
        %4425 = vmatpush.msra.mxu0 %v4424
        %v4426 = vand.u32 %v3635, 4294901760
        %v4427 = vsub.f32 %v3635, %v4426
        %v4428 = vand.u32 %v4427, 4294901760
        %4429 = vmatpush.msra.mxu0 %v4428
        %v4430 = vand.u32 %v3633, 4294901760
        %v4431 = vsub.f32 %v3633, %v4430
        %v4432 = vand.u32 %v4431, 4294901760
        %4433 = vmatpush.msra.mxu0 %v4432
        %v4434 = vand.u32 %v3631, 4294901760
        %v4435 = vsub.f32 %v3631, %v4434
        %v4436 = vand.u32 %v4435, 4294901760
        %4437 = vmatpush.msra.mxu0 %v4436
        %v4438 = vand.u32 %v4203, 4294901760
        %4439 = vmatmul.f32.gmra.mxu0 %v4438
        %v4440 = vpop.f32.mrf.mxu0
        %v4441 = vadd.f32 %v4390, %v4440
        %v4442 = vand.u32 %v4206, 4294901760
        %4443 = vmatmul.f32.gmra.mxu0 %v4442
        %v4444 = vpop.f32.mrf.mxu0
        %v4445 = vadd.f32 %v4396, %v4444
        %v4446 = vand.u32 %v4209, 4294901760
        %4447 = vmatmul.f32.gmra.mxu0 %v4446
        %v4448 = vpop.f32.mrf.mxu0
        %v4449 = vadd.f32 %v4402, %v4448
        %v4450 = vand.u32 %v4212, 4294901760
        %4451 = vmatmul.f32.gmra.mxu0 %v4450
        %v4452 = vpop.f32.mrf.mxu0
        %v4453 = vadd.f32 %v4408, %v4452
        %4454 = vdwg.mxu0
        %4455 = vmatpush.msra.mxu0 0.0
        %4456 = vmatpush.msra.mxu0 0.0
        %4457 = vmatpush.msra.mxu0 0.0
        %4458 = vmatpush.msra.mxu0 0.0
        %4459 = vmatpush.msra.mxu0 0.0
        %4460 = vmatpush.msra.mxu0 0.0
        %4461 = vmatpush.msra.mxu0 0.0
        %4462 = vmatpush.msra.mxu0 0.0
        %4463 = vmatpush.msra.mxu0 0.0
        %4464 = vmatpush.msra.mxu0 0.0
        %4465 = vmatpush.msra.mxu0 0.0
        %4466 = vmatpush.msra.mxu0 0.0
        %v4467 = vand.u32 %v3637, 4294901760
        %4468 = vmatpush.msra.mxu0 %v4467
        %v4469 = vand.u32 %v3635, 4294901760
        %4470 = vmatpush.msra.mxu0 %v4469
        %v4471 = vand.u32 %v3633, 4294901760
        %4472 = vmatpush.msra.mxu0 %v4471
        %v4473 = vand.u32 %v3631, 4294901760
        %4474 = vmatpush.msra.mxu0 %v4473
        %v4475 = vand.u32 %v4203, 4294901760
        %4476 = vmatmul.f32.gmra.mxu0 %v4475
        %v4477 = vpop.f32.mrf.mxu0
        %v4478 = vadd.f32 %v4441, %v4477
        %v4479 = vand.u32 %v4206, 4294901760
        %4480 = vmatmul.f32.gmra.mxu0 %v4479
        %v4481 = vpop.f32.mrf.mxu0
        %v4482 = vadd.f32 %v4445, %v4481
        %v4483 = vand.u32 %v4209, 4294901760
        %4484 = vmatmul.f32.gmra.mxu0 %v4483
        %v4485 = vpop.f32.mrf.mxu0
        %v4486 = vadd.f32 %v4449, %v4485
        %v4487 = vand.u32 %v4212, 4294901760
        %4488 = vmatmul.f32.gmra.mxu0 %v4487
        %v4489 = vpop.f32.mrf.mxu0
        %v4490 = vadd.f32 %v4453, %v4489
        %4491 = vdwg.mxu0
        %4496 = vrot.lane.b32.xlu0 %v3647, 64
        %v4497 = vpop.permute.xlu0 %4496
        %4498 = vrot.lane.b32.xlu0 %v3648, 64
        %v4499 = vpop.permute.xlu0 %4498
        %4500 = vrot.lane.b32.xlu0 %v3649, 64
        %v4501 = vpop.permute.xlu0 %4500
        %4502 = vrot.lane.b32.xlu0 %v3650, 64
        %v4503 = vpop.permute.xlu0 %4502
        %v4508 = vsel %vm3651, %v4497, 0.0
        %4509 = vadd.xlane.f32.xlu0 %v4508
        %v4510 = vpop.xlane.xlu0 %4509
        %v4511 = vsel %vm3651, %v4499, 0.0
        %4512 = vadd.xlane.f32.xlu0 %v4511
        %v4513 = vpop.xlane.xlu0 %4512
        %v4514 = vsel %vm3651, %v4501, 0.0
        %4515 = vadd.xlane.f32.xlu0 %v4514
        %v4516 = vpop.xlane.xlu0 %4515
        %v4517 = vsel %vm3651, %v4503, 0.0
        %4518 = vadd.xlane.f32.xlu0 %v4517
        %v4519 = vpop.xlane.xlu0 %4518
        %v4520 = vadd.f32 %v4510, 1e-12
        %v4521 = vadd.f32 %v4513, 1e-12
        %v4522 = vadd.f32 %v4516, 1e-12
        %v4523 = vadd.f32 %v4519, 1e-12
        %v4524 = vrsqrt.pop %v4520
        %v4525 = vmul.f32 %v4524, %v4520
        %v4526 = vmul.f32 %v4525, %v4524
        %v4527 = vmul.f32 0.5, %v4526
        %v4528 = vsub.f32 1.5, %v4527
        %v4529 = vmul.f32 %v4524, %v4528
        %vm4530 = vweird.f32 %v4520
        %vm4531 = vweird.f32 %v4524
        %vm4532 = vmor %vm4530, %vm4531
        %v4533 = vsel %vm4532, %v4524, %v4529
        %v4534 = vrsqrt.pop %v4521
        %v4535 = vmul.f32 %v4534, %v4521
        %v4536 = vmul.f32 %v4535, %v4534
        %v4537 = vmul.f32 0.5, %v4536
        %v4538 = vsub.f32 1.5, %v4537
        %v4539 = vmul.f32 %v4534, %v4538
        %vm4540 = vweird.f32 %v4521
        %vm4541 = vweird.f32 %v4534
        %vm4542 = vmor %vm4540, %vm4541
        %v4543 = vsel %vm4542, %v4534, %v4539
        %v4544 = vrsqrt.pop %v4522
        %v4545 = vmul.f32 %v4544, %v4522
        %v4546 = vmul.f32 %v4545, %v4544
        %v4547 = vmul.f32 0.5, %v4546
        %v4548 = vsub.f32 1.5, %v4547
        %v4549 = vmul.f32 %v4544, %v4548
        %vm4550 = vweird.f32 %v4522
        %vm4551 = vweird.f32 %v4544
        %vm4552 = vmor %vm4550, %vm4551
        %v4553 = vsel %vm4552, %v4544, %v4549
        %v4554 = vrsqrt.pop %v4523
        %v4555 = vmul.f32 %v4554, %v4523
        %v4556 = vmul.f32 %v4555, %v4554
        %v4557 = vmul.f32 0.5, %v4556
        %v4558 = vsub.f32 1.5, %v4557
        %v4559 = vmul.f32 %v4554, %v4558
        %vm4560 = vweird.f32 %v4523
        %vm4561 = vweird.f32 %v4554
        %vm4562 = vmor %vm4560, %vm4561
        %v4563 = vsel %vm4562, %v4554, %v4559
        %v4564 = vmul.f32 %v3615, %v4533
        %v4565 = vmul.f32 %v3617, %v4543
        %v4566 = vmul.f32 %v3619, %v4553
        %v4567 = vmul.f32 %v3621, %v4563
        %4572 = vrot.lane.b32.xlu0 %v3712, 64
        %v4573 = vpop.permute.xlu0 %4572
        %4574 = vrot.lane.b32.xlu0 %v3713, 64
        %v4575 = vpop.permute.xlu0 %4574
        %4576 = vrot.lane.b32.xlu0 %v3714, 64
        %v4577 = vpop.permute.xlu0 %4576
        %4578 = vrot.lane.b32.xlu0 %v3715, 64
        %v4579 = vpop.permute.xlu0 %4578
        %v4584 = vsel %vm3651, %v4573, 0.0
        %4585 = vadd.xlane.f32.xlu0 %v4584
        %v4586 = vpop.xlane.xlu0 %4585
        %v4587 = vsel %vm3651, %v4575, 0.0
        %4588 = vadd.xlane.f32.xlu0 %v4587
        %v4589 = vpop.xlane.xlu0 %4588
        %v4590 = vsel %vm3651, %v4577, 0.0
        %4591 = vadd.xlane.f32.xlu0 %v4590
        %v4592 = vpop.xlane.xlu0 %4591
        %v4593 = vsel %vm3651, %v4579, 0.0
        %4594 = vadd.xlane.f32.xlu0 %v4593
        %v4595 = vpop.xlane.xlu0 %4594
        %v4596 = vadd.f32 %v4586, 1e-12
        %v4597 = vadd.f32 %v4589, 1e-12
        %v4598 = vadd.f32 %v4592, 1e-12
        %v4599 = vadd.f32 %v4595, 1e-12
        %v4600 = vrsqrt.pop %v4596
        %v4601 = vmul.f32 %v4600, %v4596
        %v4602 = vmul.f32 %v4601, %v4600
        %v4603 = vmul.f32 0.5, %v4602
        %v4604 = vsub.f32 1.5, %v4603
        %v4605 = vmul.f32 %v4600, %v4604
        %vm4606 = vweird.f32 %v4596
        %vm4607 = vweird.f32 %v4600
        %vm4608 = vmor %vm4606, %vm4607
        %v4609 = vsel %vm4608, %v4600, %v4605
        %v4610 = vrsqrt.pop %v4597
        %v4611 = vmul.f32 %v4610, %v4597
        %v4612 = vmul.f32 %v4611, %v4610
        %v4613 = vmul.f32 0.5, %v4612
        %v4614 = vsub.f32 1.5, %v4613
        %v4615 = vmul.f32 %v4610, %v4614
        %vm4616 = vweird.f32 %v4597
        %vm4617 = vweird.f32 %v4610
        %vm4618 = vmor %vm4616, %vm4617
        %v4619 = vsel %vm4618, %v4610, %v4615
        %v4620 = vrsqrt.pop %v4598
        %v4621 = vmul.f32 %v4620, %v4598
        %v4622 = vmul.f32 %v4621, %v4620
        %v4623 = vmul.f32 0.5, %v4622
        %v4624 = vsub.f32 1.5, %v4623
        %v4625 = vmul.f32 %v4620, %v4624
        %vm4626 = vweird.f32 %v4598
        %vm4627 = vweird.f32 %v4620
        %vm4628 = vmor %vm4626, %vm4627
        %v4629 = vsel %vm4628, %v4620, %v4625
        %v4630 = vrsqrt.pop %v4599
        %v4631 = vmul.f32 %v4630, %v4599
        %v4632 = vmul.f32 %v4631, %v4630
        %v4633 = vmul.f32 0.5, %v4632
        %v4634 = vsub.f32 1.5, %v4633
        %v4635 = vmul.f32 %v4630, %v4634
        %vm4636 = vweird.f32 %v4599
        %vm4637 = vweird.f32 %v4630
        %vm4638 = vmor %vm4636, %vm4637
        %v4639 = vsel %vm4638, %v4630, %v4635
        %v4640 = vmul.f32 %v3623, %v4609
        %v4641 = vmul.f32 %v3625, %v4619
        %v4642 = vmul.f32 %v3627, %v4629
        %v4643 = vmul.f32 %v3629, %v4639
        %4648 = vrot.lane.b32.xlu0 %v4564, 64
        %v4649 = vpop.permute.xlu0 %4648
        %4650 = vrot.lane.b32.xlu0 %v4565, 64
        %v4651 = vpop.permute.xlu0 %4650
        %4652 = vrot.lane.b32.xlu0 %v4566, 64
        %v4653 = vpop.permute.xlu0 %4652
        %4654 = vrot.lane.b32.xlu0 %v4567, 64
        %v4655 = vpop.permute.xlu0 %4654
        %4660 = vrot.lane.b32.xlu0 %v4640, 64
        %v4661 = vpop.permute.xlu0 %4660
        %4662 = vrot.lane.b32.xlu0 %v4641, 64
        %v4663 = vpop.permute.xlu0 %4662
        %4664 = vrot.lane.b32.xlu0 %v4642, 64
        %v4665 = vpop.permute.xlu0 %4664
        %4666 = vrot.lane.b32.xlu0 %v4643, 64
        %v4667 = vpop.permute.xlu0 %4666
        %v4668 = vsel %vm3651, %v4649, 0
        %v4670 = vsel %vm3651, %v4651, 0
        %v4672 = vsel %vm3651, %v4653, 0
        %v4674 = vsel %vm3651, %v4655, 0
        %v4676 = vsel %vm3651, %v4661, 0
        %v4678 = vsel %vm3651, %v4663, 0
        %v4680 = vsel %vm3651, %v4665, 0
        %v4682 = vsel %vm3651, %v4667, 0
        %4684 = vmatpush.xpose.msra.mxu0 0.0
        %4685 = vmatpush.xpose.msra.mxu0 0.0
        %4686 = vmatpush.xpose.msra.mxu0 0.0
        %4687 = vmatpush.xpose.msra.mxu0 0.0
        %4688 = vmatpush.xpose.msra.mxu0 0.0
        %4689 = vmatpush.xpose.msra.mxu0 0.0
        %4690 = vmatpush.xpose.msra.mxu0 0.0
        %4691 = vmatpush.xpose.msra.mxu0 0.0
        %4692 = vmatpush.xpose.msra.mxu0 0.0
        %4693 = vmatpush.xpose.msra.mxu0 0.0
        %4694 = vmatpush.xpose.msra.mxu0 0.0
        %4695 = vmatpush.xpose.msra.mxu0 0.0
        %v4696 = vand.u32 %v4682, 4294901760
        %4697 = vmatpush.xpose.msra.mxu0 %v4696
        %v4698 = vand.u32 %v4680, 4294901760
        %4699 = vmatpush.xpose.msra.mxu0 %v4698
        %v4700 = vand.u32 %v4678, 4294901760
        %4701 = vmatpush.xpose.msra.mxu0 %v4700
        %v4702 = vand.u32 %v4676, 4294901760
        %4703 = vmatpush.xpose.msra.mxu0 %v4702
        %v4704 = vand.u32 %v4668, 4294901760
        %v4705 = vsub.f32 %v4668, %v4704
        %v4706 = vand.u32 %v4705, 4294901760
        %v4707 = vsub.f32 %v4705, %v4706
        %v4708 = vand.u32 %v4707, 4294901760
        %4709 = vmatmul.f32.gmra.mxu0 %v4708
        %v4710 = vpop.f32.mrf.mxu0
        %v4711 = vadd.f32 0.0, %v4710
        %v4712 = vand.u32 %v4670, 4294901760
        %v4713 = vsub.f32 %v4670, %v4712
        %v4714 = vand.u32 %v4713, 4294901760
        %v4715 = vsub.f32 %v4713, %v4714
        %v4716 = vand.u32 %v4715, 4294901760
        %4717 = vmatmul.f32.gmra.mxu0 %v4716
        %v4718 = vpop.f32.mrf.mxu0
        %v4719 = vadd.f32 0.0, %v4718
        %v4720 = vand.u32 %v4672, 4294901760
        %v4721 = vsub.f32 %v4672, %v4720
        %v4722 = vand.u32 %v4721, 4294901760
        %v4723 = vsub.f32 %v4721, %v4722
        %v4724 = vand.u32 %v4723, 4294901760
        %4725 = vmatmul.f32.gmra.mxu0 %v4724
        %v4726 = vpop.f32.mrf.mxu0
        %v4727 = vadd.f32 0.0, %v4726
        %v4728 = vand.u32 %v4674, 4294901760
        %v4729 = vsub.f32 %v4674, %v4728
        %v4730 = vand.u32 %v4729, 4294901760
        %v4731 = vsub.f32 %v4729, %v4730
        %v4732 = vand.u32 %v4731, 4294901760
        %4733 = vmatmul.f32.gmra.mxu0 %v4732
        %v4734 = vpop.f32.mrf.mxu0
        %v4735 = vadd.f32 0.0, %v4734
        %4736 = vdwg.mxu0
        %4737 = vmatpush.xpose.msra.mxu0 0.0
        %4738 = vmatpush.xpose.msra.mxu0 0.0
        %4739 = vmatpush.xpose.msra.mxu0 0.0
        %4740 = vmatpush.xpose.msra.mxu0 0.0
        %4741 = vmatpush.xpose.msra.mxu0 0.0
        %4742 = vmatpush.xpose.msra.mxu0 0.0
        %4743 = vmatpush.xpose.msra.mxu0 0.0
        %4744 = vmatpush.xpose.msra.mxu0 0.0
        %4745 = vmatpush.xpose.msra.mxu0 0.0
        %4746 = vmatpush.xpose.msra.mxu0 0.0
        %4747 = vmatpush.xpose.msra.mxu0 0.0
        %4748 = vmatpush.xpose.msra.mxu0 0.0
        %v4749 = vand.u32 %v4682, 4294901760
        %v4750 = vsub.f32 %v4682, %v4749
        %v4751 = vand.u32 %v4750, 4294901760
        %v4752 = vsub.f32 %v4750, %v4751
        %v4753 = vand.u32 %v4752, 4294901760
        %4754 = vmatpush.xpose.msra.mxu0 %v4753
        %v4755 = vand.u32 %v4680, 4294901760
        %v4756 = vsub.f32 %v4680, %v4755
        %v4757 = vand.u32 %v4756, 4294901760
        %v4758 = vsub.f32 %v4756, %v4757
        %v4759 = vand.u32 %v4758, 4294901760
        %4760 = vmatpush.xpose.msra.mxu0 %v4759
        %v4761 = vand.u32 %v4678, 4294901760
        %v4762 = vsub.f32 %v4678, %v4761
        %v4763 = vand.u32 %v4762, 4294901760
        %v4764 = vsub.f32 %v4762, %v4763
        %v4765 = vand.u32 %v4764, 4294901760
        %4766 = vmatpush.xpose.msra.mxu0 %v4765
        %v4767 = vand.u32 %v4676, 4294901760
        %v4768 = vsub.f32 %v4676, %v4767
        %v4769 = vand.u32 %v4768, 4294901760
        %v4770 = vsub.f32 %v4768, %v4769
        %v4771 = vand.u32 %v4770, 4294901760
        %4772 = vmatpush.xpose.msra.mxu0 %v4771
        %v4773 = vand.u32 %v4668, 4294901760
        %4774 = vmatmul.f32.gmra.mxu0 %v4773
        %v4775 = vpop.f32.mrf.mxu0
        %v4776 = vadd.f32 %v4711, %v4775
        %v4777 = vand.u32 %v4670, 4294901760
        %4778 = vmatmul.f32.gmra.mxu0 %v4777
        %v4779 = vpop.f32.mrf.mxu0
        %v4780 = vadd.f32 %v4719, %v4779
        %v4781 = vand.u32 %v4672, 4294901760
        %4782 = vmatmul.f32.gmra.mxu0 %v4781
        %v4783 = vpop.f32.mrf.mxu0
        %v4784 = vadd.f32 %v4727, %v4783
        %v4785 = vand.u32 %v4674, 4294901760
        %4786 = vmatmul.f32.gmra.mxu0 %v4785
        %v4787 = vpop.f32.mrf.mxu0
        %v4788 = vadd.f32 %v4735, %v4787
        %4789 = vdwg.mxu0
        %4790 = vmatpush.xpose.msra.mxu0 0.0
        %4791 = vmatpush.xpose.msra.mxu0 0.0
        %4792 = vmatpush.xpose.msra.mxu0 0.0
        %4793 = vmatpush.xpose.msra.mxu0 0.0
        %4794 = vmatpush.xpose.msra.mxu0 0.0
        %4795 = vmatpush.xpose.msra.mxu0 0.0
        %4796 = vmatpush.xpose.msra.mxu0 0.0
        %4797 = vmatpush.xpose.msra.mxu0 0.0
        %4798 = vmatpush.xpose.msra.mxu0 0.0
        %4799 = vmatpush.xpose.msra.mxu0 0.0
        %4800 = vmatpush.xpose.msra.mxu0 0.0
        %4801 = vmatpush.xpose.msra.mxu0 0.0
        %v4802 = vand.u32 %v4682, 4294901760
        %v4803 = vsub.f32 %v4682, %v4802
        %4804 = vmatpush.xpose.msra.mxu0 %v4803
        %v4805 = vand.u32 %v4680, 4294901760
        %v4806 = vsub.f32 %v4680, %v4805
        %4807 = vmatpush.xpose.msra.mxu0 %v4806
        %v4808 = vand.u32 %v4678, 4294901760
        %v4809 = vsub.f32 %v4678, %v4808
        %4810 = vmatpush.xpose.msra.mxu0 %v4809
        %v4811 = vand.u32 %v4676, 4294901760
        %v4812 = vsub.f32 %v4676, %v4811
        %4813 = vmatpush.xpose.msra.mxu0 %v4812
        %v4814 = vand.u32 %v4668, 4294901760
        %v4815 = vsub.f32 %v4668, %v4814
        %4816 = vmatmul.f32.gmra.mxu0 %v4815
        %v4817 = vpop.f32.mrf.mxu0
        %v4818 = vadd.f32 %v4776, %v4817
        %v4819 = vand.u32 %v4670, 4294901760
        %v4820 = vsub.f32 %v4670, %v4819
        %4821 = vmatmul.f32.gmra.mxu0 %v4820
        %v4822 = vpop.f32.mrf.mxu0
        %v4823 = vadd.f32 %v4780, %v4822
        %v4824 = vand.u32 %v4672, 4294901760
        %v4825 = vsub.f32 %v4672, %v4824
        %4826 = vmatmul.f32.gmra.mxu0 %v4825
        %v4827 = vpop.f32.mrf.mxu0
        %v4828 = vadd.f32 %v4784, %v4827
        %v4829 = vand.u32 %v4674, 4294901760
        %v4830 = vsub.f32 %v4674, %v4829
        %4831 = vmatmul.f32.gmra.mxu0 %v4830
        %v4832 = vpop.f32.mrf.mxu0
        %v4833 = vadd.f32 %v4788, %v4832
        %4834 = vdwg.mxu0
        %4835 = vmatpush.xpose.msra.mxu0 0.0
        %4836 = vmatpush.xpose.msra.mxu0 0.0
        %4837 = vmatpush.xpose.msra.mxu0 0.0
        %4838 = vmatpush.xpose.msra.mxu0 0.0
        %4839 = vmatpush.xpose.msra.mxu0 0.0
        %4840 = vmatpush.xpose.msra.mxu0 0.0
        %4841 = vmatpush.xpose.msra.mxu0 0.0
        %4842 = vmatpush.xpose.msra.mxu0 0.0
        %4843 = vmatpush.xpose.msra.mxu0 0.0
        %4844 = vmatpush.xpose.msra.mxu0 0.0
        %4845 = vmatpush.xpose.msra.mxu0 0.0
        %4846 = vmatpush.xpose.msra.mxu0 0.0
        %v4847 = vand.u32 %v4682, 4294901760
        %4848 = vmatpush.xpose.msra.mxu0 %v4847
        %v4849 = vand.u32 %v4680, 4294901760
        %4850 = vmatpush.xpose.msra.mxu0 %v4849
        %v4851 = vand.u32 %v4678, 4294901760
        %4852 = vmatpush.xpose.msra.mxu0 %v4851
        %v4853 = vand.u32 %v4676, 4294901760
        %4854 = vmatpush.xpose.msra.mxu0 %v4853
        %v4855 = vand.u32 %v4668, 4294901760
        %v4856 = vsub.f32 %v4668, %v4855
        %v4857 = vand.u32 %v4856, 4294901760
        %4858 = vmatmul.f32.gmra.mxu0 %v4857
        %v4859 = vpop.f32.mrf.mxu0
        %v4860 = vadd.f32 %v4818, %v4859
        %v4861 = vand.u32 %v4670, 4294901760
        %v4862 = vsub.f32 %v4670, %v4861
        %v4863 = vand.u32 %v4862, 4294901760
        %4864 = vmatmul.f32.gmra.mxu0 %v4863
        %v4865 = vpop.f32.mrf.mxu0
        %v4866 = vadd.f32 %v4823, %v4865
        %v4867 = vand.u32 %v4672, 4294901760
        %v4868 = vsub.f32 %v4672, %v4867
        %v4869 = vand.u32 %v4868, 4294901760
        %4870 = vmatmul.f32.gmra.mxu0 %v4869
        %v4871 = vpop.f32.mrf.mxu0
        %v4872 = vadd.f32 %v4828, %v4871
        %v4873 = vand.u32 %v4674, 4294901760
        %v4874 = vsub.f32 %v4674, %v4873
        %v4875 = vand.u32 %v4874, 4294901760
        %4876 = vmatmul.f32.gmra.mxu0 %v4875
        %v4877 = vpop.f32.mrf.mxu0
        %v4878 = vadd.f32 %v4833, %v4877
        %4879 = vdwg.mxu0
        %4880 = vmatpush.xpose.msra.mxu0 0.0
        %4881 = vmatpush.xpose.msra.mxu0 0.0
        %4882 = vmatpush.xpose.msra.mxu0 0.0
        %4883 = vmatpush.xpose.msra.mxu0 0.0
        %4884 = vmatpush.xpose.msra.mxu0 0.0
        %4885 = vmatpush.xpose.msra.mxu0 0.0
        %4886 = vmatpush.xpose.msra.mxu0 0.0
        %4887 = vmatpush.xpose.msra.mxu0 0.0
        %4888 = vmatpush.xpose.msra.mxu0 0.0
        %4889 = vmatpush.xpose.msra.mxu0 0.0
        %4890 = vmatpush.xpose.msra.mxu0 0.0
        %4891 = vmatpush.xpose.msra.mxu0 0.0
        %v4892 = vand.u32 %v4682, 4294901760
        %v4893 = vsub.f32 %v4682, %v4892
        %v4894 = vand.u32 %v4893, 4294901760
        %4895 = vmatpush.xpose.msra.mxu0 %v4894
        %v4896 = vand.u32 %v4680, 4294901760
        %v4897 = vsub.f32 %v4680, %v4896
        %v4898 = vand.u32 %v4897, 4294901760
        %4899 = vmatpush.xpose.msra.mxu0 %v4898
        %v4900 = vand.u32 %v4678, 4294901760
        %v4901 = vsub.f32 %v4678, %v4900
        %v4902 = vand.u32 %v4901, 4294901760
        %4903 = vmatpush.xpose.msra.mxu0 %v4902
        %v4904 = vand.u32 %v4676, 4294901760
        %v4905 = vsub.f32 %v4676, %v4904
        %v4906 = vand.u32 %v4905, 4294901760
        %4907 = vmatpush.xpose.msra.mxu0 %v4906
        %v4908 = vand.u32 %v4668, 4294901760
        %4909 = vmatmul.f32.gmra.mxu0 %v4908
        %v4910 = vpop.f32.mrf.mxu0
        %v4911 = vadd.f32 %v4860, %v4910
        %v4912 = vand.u32 %v4670, 4294901760
        %4913 = vmatmul.f32.gmra.mxu0 %v4912
        %v4914 = vpop.f32.mrf.mxu0
        %v4915 = vadd.f32 %v4866, %v4914
        %v4916 = vand.u32 %v4672, 4294901760
        %4917 = vmatmul.f32.gmra.mxu0 %v4916
        %v4918 = vpop.f32.mrf.mxu0
        %v4919 = vadd.f32 %v4872, %v4918
        %v4920 = vand.u32 %v4674, 4294901760
        %4921 = vmatmul.f32.gmra.mxu0 %v4920
        %v4922 = vpop.f32.mrf.mxu0
        %v4923 = vadd.f32 %v4878, %v4922
        %4924 = vdwg.mxu0
        %4925 = vmatpush.xpose.msra.mxu0 0.0
        %4926 = vmatpush.xpose.msra.mxu0 0.0
        %4927 = vmatpush.xpose.msra.mxu0 0.0
        %4928 = vmatpush.xpose.msra.mxu0 0.0
        %4929 = vmatpush.xpose.msra.mxu0 0.0
        %4930 = vmatpush.xpose.msra.mxu0 0.0
        %4931 = vmatpush.xpose.msra.mxu0 0.0
        %4932 = vmatpush.xpose.msra.mxu0 0.0
        %4933 = vmatpush.xpose.msra.mxu0 0.0
        %4934 = vmatpush.xpose.msra.mxu0 0.0
        %4935 = vmatpush.xpose.msra.mxu0 0.0
        %4936 = vmatpush.xpose.msra.mxu0 0.0
        %v4937 = vand.u32 %v4682, 4294901760
        %4938 = vmatpush.xpose.msra.mxu0 %v4937
        %v4939 = vand.u32 %v4680, 4294901760
        %4940 = vmatpush.xpose.msra.mxu0 %v4939
        %v4941 = vand.u32 %v4678, 4294901760
        %4942 = vmatpush.xpose.msra.mxu0 %v4941
        %v4943 = vand.u32 %v4676, 4294901760
        %4944 = vmatpush.xpose.msra.mxu0 %v4943
        %v4945 = vand.u32 %v4668, 4294901760
        %4946 = vmatmul.f32.gmra.mxu0 %v4945
        %v4947 = vpop.f32.mrf.mxu0
        %v4948 = vadd.f32 %v4911, %v4947
        %v4949 = vand.u32 %v4670, 4294901760
        %4950 = vmatmul.f32.gmra.mxu0 %v4949
        %v4951 = vpop.f32.mrf.mxu0
        %v4952 = vadd.f32 %v4915, %v4951
        %v4953 = vand.u32 %v4672, 4294901760
        %4954 = vmatmul.f32.gmra.mxu0 %v4953
        %v4955 = vpop.f32.mrf.mxu0
        %v4956 = vadd.f32 %v4919, %v4955
        %v4957 = vand.u32 %v4674, 4294901760
        %4958 = vmatmul.f32.gmra.mxu0 %v4957
        %v4959 = vpop.f32.mrf.mxu0
        %v4960 = vadd.f32 %v4923, %v4959
        %4961 = vdwg.mxu0
        %v4962 = vmul.f32 %v4948, %v4081
        %v4963 = vmul.f32 %v4952, %v4086
        %v4964 = vmul.f32 %v4956, %v4091
        %v4965 = vmul.f32 %v4960, %v4096
        %v4966 = vsel %vm482, %v4962, -inf
        %4967 = vmax.xlane.f32.xlu0 %v4966
        %v4968 = vpop.xlane.xlu0 %4967
        %v4969 = vsel %vm482, %v4963, -inf
        %4970 = vmax.xlane.f32.xlu0 %v4969
        %v4971 = vpop.xlane.xlu0 %4970
        %v4972 = vsel %vm482, %v4964, -inf
        %4973 = vmax.xlane.f32.xlu0 %v4972
        %v4974 = vpop.xlane.xlu0 %4973
        %v4975 = vsel %vm482, %v4965, -inf
        %4976 = vmax.xlane.f32.xlu0 %v4975
        %v4977 = vpop.xlane.xlu0 %4976
        %v4978 = vsub.f32 %v4962, %v4968
        %v4979 = vsub.f32 %v4963, %v4971
        %v4980 = vsub.f32 %v4964, %v4974
        %v4981 = vsub.f32 %v4965, %v4977
        %v4982 = vmul.f32 %v4978, 1.442695
        %v4983 = vpow.pop %v4982
        %v4984 = vmul.f32 %v4979, 1.442695
        %v4985 = vpow.pop %v4984
        %v4986 = vmul.f32 %v4980, 1.442695
        %v4987 = vpow.pop %v4986
        %v4988 = vmul.f32 %v4981, 1.442695
        %v4989 = vpow.pop %v4988
        %v4990 = vmul.f32 %v4983, %v3643
        %v4991 = vmul.f32 %v4985, %v3644
        %v4992 = vmul.f32 %v4987, %v3645
        %v4993 = vmul.f32 %v4989, %v3646
        %v4994 = vsel %vm482, %v4990, 0.0
        %4995 = vadd.xlane.f32.xlu0 %v4994
        %v4996 = vpop.xlane.xlu0 %4995
        %v4997 = vsel %vm482, %v4991, 0.0
        %4998 = vadd.xlane.f32.xlu0 %v4997
        %v4999 = vpop.xlane.xlu0 %4998
        %v5000 = vsel %vm482, %v4992, 0.0
        %5001 = vadd.xlane.f32.xlu0 %v5000
        %v5002 = vpop.xlane.xlu0 %5001
        %v5003 = vsel %vm482, %v4993, 0.0
        %5004 = vadd.xlane.f32.xlu0 %v5003
        %v5005 = vpop.xlane.xlu0 %5004
        %v5006 = vrcp.pop %v4996
        %v5007 = vmul.f32 %v4996, %v5006
        %v5008 = vsub.f32 1.0, %v5007
        %v5009 = vmul.f32 %v5006, %v5008
        %v5010 = vadd.f32 %v5006, %v5009
        %vm5011 = vweird.f32 %v4996
        %vm5012 = vweird.f32 %v5006
        %vm5013 = vmor %vm5011, %vm5012
        %v5014 = vsel %vm5013, %v5006, %v5010
        %v5015 = vand.u32 2147483647, %v4996
        %vm5016 = vcmp.eq.f32.partialorder %v5015, 8.507059e+37
        %v5017 = vand.u32 %v4996, 2147483648
        %v5018 = vor.u32 1.1754944e-38, %v5017
        %v5019 = vsel %vm5016, %v5018, %v5014
        %v5020 = vmul.f32 %v4990, %v5019
        %v5021 = vrcp.pop %v4999
        %v5022 = vmul.f32 %v4999, %v5021
        %v5023 = vsub.f32 1.0, %v5022
        %v5024 = vmul.f32 %v5021, %v5023
        %v5025 = vadd.f32 %v5021, %v5024
        %vm5026 = vweird.f32 %v4999
        %vm5027 = vweird.f32 %v5021
        %vm5028 = vmor %vm5026, %vm5027
        %v5029 = vsel %vm5028, %v5021, %v5025
        %v5030 = vand.u32 2147483647, %v4999
        %vm5031 = vcmp.eq.f32.partialorder %v5030, 8.507059e+37
        %v5032 = vand.u32 %v4999, 2147483648
        %v5033 = vor.u32 1.1754944e-38, %v5032
        %v5034 = vsel %vm5031, %v5033, %v5029
        %v5035 = vmul.f32 %v4991, %v5034
        %v5036 = vrcp.pop %v5002
        %v5037 = vmul.f32 %v5002, %v5036
        %v5038 = vsub.f32 1.0, %v5037
        %v5039 = vmul.f32 %v5036, %v5038
        %v5040 = vadd.f32 %v5036, %v5039
        %vm5041 = vweird.f32 %v5002
        %vm5042 = vweird.f32 %v5036
        %vm5043 = vmor %vm5041, %vm5042
        %v5044 = vsel %vm5043, %v5036, %v5040
        %v5045 = vand.u32 2147483647, %v5002
        %vm5046 = vcmp.eq.f32.partialorder %v5045, 8.507059e+37
        %v5047 = vand.u32 %v5002, 2147483648
        %v5048 = vor.u32 1.1754944e-38, %v5047
        %v5049 = vsel %vm5046, %v5048, %v5044
        %v5050 = vmul.f32 %v4992, %v5049
        %v5051 = vrcp.pop %v5005
        %v5052 = vmul.f32 %v5005, %v5051
        %v5053 = vsub.f32 1.0, %v5052
        %v5054 = vmul.f32 %v5051, %v5053
        %v5055 = vadd.f32 %v5051, %v5054
        %vm5056 = vweird.f32 %v5005
        %vm5057 = vweird.f32 %v5051
        %vm5058 = vmor %vm5056, %vm5057
        %v5059 = vsel %vm5058, %v5051, %v5055
        %v5060 = vand.u32 2147483647, %v5005
        %vm5061 = vcmp.eq.f32.partialorder %v5060, 8.507059e+37
        %v5062 = vand.u32 %v5005, 2147483648
        %v5063 = vor.u32 1.1754944e-38, %v5062
        %v5064 = vsel %vm5061, %v5063, %v5059
        %v5065 = vmul.f32 %v4993, %v5064
        %5070 = vrot.lane.b32.xlu0 %v3631, 64
        %v5071 = vpop.permute.xlu0 %5070
        %5072 = vrot.lane.b32.xlu0 %v3633, 64
        %v5073 = vpop.permute.xlu0 %5072
        %5074 = vrot.lane.b32.xlu0 %v3635, 64
        %v5075 = vpop.permute.xlu0 %5074
        %5076 = vrot.lane.b32.xlu0 %v3637, 64
        %v5077 = vpop.permute.xlu0 %5076
        %v5083 = vsel %vm482, %v5020, 0
        %v5086 = vsel %vm482, %v5035, 0
        %v5089 = vsel %vm482, %v5050, 0
        %v5092 = vsel %vm482, %v5065, 0
        %5094 = vmatpush.msra.mxu0 0.0
        %5095 = vmatpush.msra.mxu0 0.0
        %5096 = vmatpush.msra.mxu0 0.0
        %5097 = vmatpush.msra.mxu0 0.0
        %5098 = vmatpush.msra.mxu0 0.0
        %5099 = vmatpush.msra.mxu0 0.0
        %5100 = vmatpush.msra.mxu0 0.0
        %5101 = vmatpush.msra.mxu0 0.0
        %5102 = vmatpush.msra.mxu0 0.0
        %5103 = vmatpush.msra.mxu0 0.0
        %5104 = vmatpush.msra.mxu0 0.0
        %5105 = vmatpush.msra.mxu0 0.0
        %v5106 = vand.u32 %v5077, 4294901760
        %5107 = vmatpush.msra.mxu0 %v5106
        %v5108 = vand.u32 %v5075, 4294901760
        %5109 = vmatpush.msra.mxu0 %v5108
        %v5110 = vand.u32 %v5073, 4294901760
        %5111 = vmatpush.msra.mxu0 %v5110
        %v5112 = vand.u32 %v5071, 4294901760
        %5113 = vmatpush.msra.mxu0 %v5112
        %v5114 = vand.u32 %v5083, 4294901760
        %v5115 = vsub.f32 %v5083, %v5114
        %v5116 = vand.u32 %v5115, 4294901760
        %v5117 = vsub.f32 %v5115, %v5116
        %v5118 = vand.u32 %v5117, 4294901760
        %5119 = vmatmul.f32.gmra.mxu0 %v5118
        %v5120 = vpop.f32.mrf.mxu0
        %v5121 = vadd.f32 0.0, %v5120
        %v5122 = vand.u32 %v5086, 4294901760
        %v5123 = vsub.f32 %v5086, %v5122
        %v5124 = vand.u32 %v5123, 4294901760
        %v5125 = vsub.f32 %v5123, %v5124
        %v5126 = vand.u32 %v5125, 4294901760
        %5127 = vmatmul.f32.gmra.mxu0 %v5126
        %v5128 = vpop.f32.mrf.mxu0
        %v5129 = vadd.f32 0.0, %v5128
        %v5130 = vand.u32 %v5089, 4294901760
        %v5131 = vsub.f32 %v5089, %v5130
        %v5132 = vand.u32 %v5131, 4294901760
        %v5133 = vsub.f32 %v5131, %v5132
        %v5134 = vand.u32 %v5133, 4294901760
        %5135 = vmatmul.f32.gmra.mxu0 %v5134
        %v5136 = vpop.f32.mrf.mxu0
        %v5137 = vadd.f32 0.0, %v5136
        %v5138 = vand.u32 %v5092, 4294901760
        %v5139 = vsub.f32 %v5092, %v5138
        %v5140 = vand.u32 %v5139, 4294901760
        %v5141 = vsub.f32 %v5139, %v5140
        %v5142 = vand.u32 %v5141, 4294901760
        %5143 = vmatmul.f32.gmra.mxu0 %v5142
        %v5144 = vpop.f32.mrf.mxu0
        %v5145 = vadd.f32 0.0, %v5144
        %5146 = vdwg.mxu0
        %5147 = vmatpush.msra.mxu0 0.0
        %5148 = vmatpush.msra.mxu0 0.0
        %5149 = vmatpush.msra.mxu0 0.0
        %5150 = vmatpush.msra.mxu0 0.0
        %5151 = vmatpush.msra.mxu0 0.0
        %5152 = vmatpush.msra.mxu0 0.0
        %5153 = vmatpush.msra.mxu0 0.0
        %5154 = vmatpush.msra.mxu0 0.0
        %5155 = vmatpush.msra.mxu0 0.0
        %5156 = vmatpush.msra.mxu0 0.0
        %5157 = vmatpush.msra.mxu0 0.0
        %5158 = vmatpush.msra.mxu0 0.0
        %v5159 = vand.u32 %v5077, 4294901760
        %v5160 = vsub.f32 %v5077, %v5159
        %v5161 = vand.u32 %v5160, 4294901760
        %v5162 = vsub.f32 %v5160, %v5161
        %v5163 = vand.u32 %v5162, 4294901760
        %5164 = vmatpush.msra.mxu0 %v5163
        %v5165 = vand.u32 %v5075, 4294901760
        %v5166 = vsub.f32 %v5075, %v5165
        %v5167 = vand.u32 %v5166, 4294901760
        %v5168 = vsub.f32 %v5166, %v5167
        %v5169 = vand.u32 %v5168, 4294901760
        %5170 = vmatpush.msra.mxu0 %v5169
        %v5171 = vand.u32 %v5073, 4294901760
        %v5172 = vsub.f32 %v5073, %v5171
        %v5173 = vand.u32 %v5172, 4294901760
        %v5174 = vsub.f32 %v5172, %v5173
        %v5175 = vand.u32 %v5174, 4294901760
        %5176 = vmatpush.msra.mxu0 %v5175
        %v5177 = vand.u32 %v5071, 4294901760
        %v5178 = vsub.f32 %v5071, %v5177
        %v5179 = vand.u32 %v5178, 4294901760
        %v5180 = vsub.f32 %v5178, %v5179
        %v5181 = vand.u32 %v5180, 4294901760
        %5182 = vmatpush.msra.mxu0 %v5181
        %v5183 = vand.u32 %v5083, 4294901760
        %5184 = vmatmul.f32.gmra.mxu0 %v5183
        %v5185 = vpop.f32.mrf.mxu0
        %v5186 = vadd.f32 %v5121, %v5185
        %v5187 = vand.u32 %v5086, 4294901760
        %5188 = vmatmul.f32.gmra.mxu0 %v5187
        %v5189 = vpop.f32.mrf.mxu0
        %v5190 = vadd.f32 %v5129, %v5189
        %v5191 = vand.u32 %v5089, 4294901760
        %5192 = vmatmul.f32.gmra.mxu0 %v5191
        %v5193 = vpop.f32.mrf.mxu0
        %v5194 = vadd.f32 %v5137, %v5193
        %v5195 = vand.u32 %v5092, 4294901760
        %5196 = vmatmul.f32.gmra.mxu0 %v5195
        %v5197 = vpop.f32.mrf.mxu0
        %v5198 = vadd.f32 %v5145, %v5197
        %5199 = vdwg.mxu0
        %5200 = vmatpush.msra.mxu0 0.0
        %5201 = vmatpush.msra.mxu0 0.0
        %5202 = vmatpush.msra.mxu0 0.0
        %5203 = vmatpush.msra.mxu0 0.0
        %5204 = vmatpush.msra.mxu0 0.0
        %5205 = vmatpush.msra.mxu0 0.0
        %5206 = vmatpush.msra.mxu0 0.0
        %5207 = vmatpush.msra.mxu0 0.0
        %5208 = vmatpush.msra.mxu0 0.0
        %5209 = vmatpush.msra.mxu0 0.0
        %5210 = vmatpush.msra.mxu0 0.0
        %5211 = vmatpush.msra.mxu0 0.0
        %v5212 = vand.u32 %v5077, 4294901760
        %v5213 = vsub.f32 %v5077, %v5212
        %5214 = vmatpush.msra.mxu0 %v5213
        %v5215 = vand.u32 %v5075, 4294901760
        %v5216 = vsub.f32 %v5075, %v5215
        %5217 = vmatpush.msra.mxu0 %v5216
        %v5218 = vand.u32 %v5073, 4294901760
        %v5219 = vsub.f32 %v5073, %v5218
        %5220 = vmatpush.msra.mxu0 %v5219
        %v5221 = vand.u32 %v5071, 4294901760
        %v5222 = vsub.f32 %v5071, %v5221
        %5223 = vmatpush.msra.mxu0 %v5222
        %v5224 = vand.u32 %v5083, 4294901760
        %v5225 = vsub.f32 %v5083, %v5224
        %5226 = vmatmul.f32.gmra.mxu0 %v5225
        %v5227 = vpop.f32.mrf.mxu0
        %v5228 = vadd.f32 %v5186, %v5227
        %v5229 = vand.u32 %v5086, 4294901760
        %v5230 = vsub.f32 %v5086, %v5229
        %5231 = vmatmul.f32.gmra.mxu0 %v5230
        %v5232 = vpop.f32.mrf.mxu0
        %v5233 = vadd.f32 %v5190, %v5232
        %v5234 = vand.u32 %v5089, 4294901760
        %v5235 = vsub.f32 %v5089, %v5234
        %5236 = vmatmul.f32.gmra.mxu0 %v5235
        %v5237 = vpop.f32.mrf.mxu0
        %v5238 = vadd.f32 %v5194, %v5237
        %v5239 = vand.u32 %v5092, 4294901760
        %v5240 = vsub.f32 %v5092, %v5239
        %5241 = vmatmul.f32.gmra.mxu0 %v5240
        %v5242 = vpop.f32.mrf.mxu0
        %v5243 = vadd.f32 %v5198, %v5242
        %5244 = vdwg.mxu0
        %5245 = vmatpush.msra.mxu0 0.0
        %5246 = vmatpush.msra.mxu0 0.0
        %5247 = vmatpush.msra.mxu0 0.0
        %5248 = vmatpush.msra.mxu0 0.0
        %5249 = vmatpush.msra.mxu0 0.0
        %5250 = vmatpush.msra.mxu0 0.0
        %5251 = vmatpush.msra.mxu0 0.0
        %5252 = vmatpush.msra.mxu0 0.0
        %5253 = vmatpush.msra.mxu0 0.0
        %5254 = vmatpush.msra.mxu0 0.0
        %5255 = vmatpush.msra.mxu0 0.0
        %5256 = vmatpush.msra.mxu0 0.0
        %v5257 = vand.u32 %v5077, 4294901760
        %5258 = vmatpush.msra.mxu0 %v5257
        %v5259 = vand.u32 %v5075, 4294901760
        %5260 = vmatpush.msra.mxu0 %v5259
        %v5261 = vand.u32 %v5073, 4294901760
        %5262 = vmatpush.msra.mxu0 %v5261
        %v5263 = vand.u32 %v5071, 4294901760
        %5264 = vmatpush.msra.mxu0 %v5263
        %v5265 = vand.u32 %v5083, 4294901760
        %v5266 = vsub.f32 %v5083, %v5265
        %v5267 = vand.u32 %v5266, 4294901760
        %5268 = vmatmul.f32.gmra.mxu0 %v5267
        %v5269 = vpop.f32.mrf.mxu0
        %v5270 = vadd.f32 %v5228, %v5269
        %v5271 = vand.u32 %v5086, 4294901760
        %v5272 = vsub.f32 %v5086, %v5271
        %v5273 = vand.u32 %v5272, 4294901760
        %5274 = vmatmul.f32.gmra.mxu0 %v5273
        %v5275 = vpop.f32.mrf.mxu0
        %v5276 = vadd.f32 %v5233, %v5275
        %v5277 = vand.u32 %v5089, 4294901760
        %v5278 = vsub.f32 %v5089, %v5277
        %v5279 = vand.u32 %v5278, 4294901760
        %5280 = vmatmul.f32.gmra.mxu0 %v5279
        %v5281 = vpop.f32.mrf.mxu0
        %v5282 = vadd.f32 %v5238, %v5281
        %v5283 = vand.u32 %v5092, 4294901760
        %v5284 = vsub.f32 %v5092, %v5283
        %v5285 = vand.u32 %v5284, 4294901760
        %5286 = vmatmul.f32.gmra.mxu0 %v5285
        %v5287 = vpop.f32.mrf.mxu0
        %v5288 = vadd.f32 %v5243, %v5287
        %5289 = vdwg.mxu0
        %5290 = vmatpush.msra.mxu0 0.0
        %5291 = vmatpush.msra.mxu0 0.0
        %5292 = vmatpush.msra.mxu0 0.0
        %5293 = vmatpush.msra.mxu0 0.0
        %5294 = vmatpush.msra.mxu0 0.0
        %5295 = vmatpush.msra.mxu0 0.0
        %5296 = vmatpush.msra.mxu0 0.0
        %5297 = vmatpush.msra.mxu0 0.0
        %5298 = vmatpush.msra.mxu0 0.0
        %5299 = vmatpush.msra.mxu0 0.0
        %5300 = vmatpush.msra.mxu0 0.0
        %5301 = vmatpush.msra.mxu0 0.0
        %v5302 = vand.u32 %v5077, 4294901760
        %v5303 = vsub.f32 %v5077, %v5302
        %v5304 = vand.u32 %v5303, 4294901760
        %5305 = vmatpush.msra.mxu0 %v5304
        %v5306 = vand.u32 %v5075, 4294901760
        %v5307 = vsub.f32 %v5075, %v5306
        %v5308 = vand.u32 %v5307, 4294901760
        %5309 = vmatpush.msra.mxu0 %v5308
        %v5310 = vand.u32 %v5073, 4294901760
        %v5311 = vsub.f32 %v5073, %v5310
        %v5312 = vand.u32 %v5311, 4294901760
        %5313 = vmatpush.msra.mxu0 %v5312
        %v5314 = vand.u32 %v5071, 4294901760
        %v5315 = vsub.f32 %v5071, %v5314
        %v5316 = vand.u32 %v5315, 4294901760
        %5317 = vmatpush.msra.mxu0 %v5316
        %v5318 = vand.u32 %v5083, 4294901760
        %5319 = vmatmul.f32.gmra.mxu0 %v5318
        %v5320 = vpop.f32.mrf.mxu0
        %v5321 = vadd.f32 %v5270, %v5320
        %v5322 = vand.u32 %v5086, 4294901760
        %5323 = vmatmul.f32.gmra.mxu0 %v5322
        %v5324 = vpop.f32.mrf.mxu0
        %v5325 = vadd.f32 %v5276, %v5324
        %v5326 = vand.u32 %v5089, 4294901760
        %5327 = vmatmul.f32.gmra.mxu0 %v5326
        %v5328 = vpop.f32.mrf.mxu0
        %v5329 = vadd.f32 %v5282, %v5328
        %v5330 = vand.u32 %v5092, 4294901760
        %5331 = vmatmul.f32.gmra.mxu0 %v5330
        %v5332 = vpop.f32.mrf.mxu0
        %v5333 = vadd.f32 %v5288, %v5332
        %5334 = vdwg.mxu0
        %5335 = vmatpush.msra.mxu0 0.0
        %5336 = vmatpush.msra.mxu0 0.0
        %5337 = vmatpush.msra.mxu0 0.0
        %5338 = vmatpush.msra.mxu0 0.0
        %5339 = vmatpush.msra.mxu0 0.0
        %5340 = vmatpush.msra.mxu0 0.0
        %5341 = vmatpush.msra.mxu0 0.0
        %5342 = vmatpush.msra.mxu0 0.0
        %5343 = vmatpush.msra.mxu0 0.0
        %5344 = vmatpush.msra.mxu0 0.0
        %5345 = vmatpush.msra.mxu0 0.0
        %5346 = vmatpush.msra.mxu0 0.0
        %v5347 = vand.u32 %v5077, 4294901760
        %5348 = vmatpush.msra.mxu0 %v5347
        %v5349 = vand.u32 %v5075, 4294901760
        %5350 = vmatpush.msra.mxu0 %v5349
        %v5351 = vand.u32 %v5073, 4294901760
        %5352 = vmatpush.msra.mxu0 %v5351
        %v5353 = vand.u32 %v5071, 4294901760
        %5354 = vmatpush.msra.mxu0 %v5353
        %v5355 = vand.u32 %v5083, 4294901760
        %5356 = vmatmul.f32.gmra.mxu0 %v5355
        %v5357 = vpop.f32.mrf.mxu0
        %v5358 = vadd.f32 %v5321, %v5357
        %v5359 = vand.u32 %v5086, 4294901760
        %5360 = vmatmul.f32.gmra.mxu0 %v5359
        %v5361 = vpop.f32.mrf.mxu0
        %v5362 = vadd.f32 %v5325, %v5361
        %v5363 = vand.u32 %v5089, 4294901760
        %5364 = vmatmul.f32.gmra.mxu0 %v5363
        %v5365 = vpop.f32.mrf.mxu0
        %v5366 = vadd.f32 %v5329, %v5365
        %v5367 = vand.u32 %v5092, 4294901760
        %5368 = vmatmul.f32.gmra.mxu0 %v5367
        %v5369 = vpop.f32.mrf.mxu0
        %v5370 = vadd.f32 %v5333, %v5369
        %5371 = vdwg.mxu0
        %v5372 = vmul.f32 %v3616, %v3616
        %v5373 = vmul.f32 %v3618, %v3618
        %v5374 = vmul.f32 %v3620, %v3620
        %v5375 = vmul.f32 %v3622, %v3622
        %v5376 = vsel %vm3651, %v5372, 0.0
        %5377 = vadd.xlane.f32.xlu0 %v5376
        %v5378 = vpop.xlane.xlu0 %5377
        %v5379 = vsel %vm3651, %v5373, 0.0
        %5380 = vadd.xlane.f32.xlu0 %v5379
        %v5381 = vpop.xlane.xlu0 %5380
        %v5382 = vsel %vm3651, %v5374, 0.0
        %5383 = vadd.xlane.f32.xlu0 %v5382
        %v5384 = vpop.xlane.xlu0 %5383
        %v5385 = vsel %vm3651, %v5375, 0.0
        %5386 = vadd.xlane.f32.xlu0 %v5385
        %v5387 = vpop.xlane.xlu0 %5386
        %v5388 = vadd.f32 %v5378, 1e-12
        %v5389 = vadd.f32 %v5381, 1e-12
        %v5390 = vadd.f32 %v5384, 1e-12
        %v5391 = vadd.f32 %v5387, 1e-12
        %v5392 = vrsqrt.pop %v5388
        %v5393 = vmul.f32 %v5392, %v5388
        %v5394 = vmul.f32 %v5393, %v5392
        %v5395 = vmul.f32 0.5, %v5394
        %v5396 = vsub.f32 1.5, %v5395
        %v5397 = vmul.f32 %v5392, %v5396
        %vm5398 = vweird.f32 %v5388
        %vm5399 = vweird.f32 %v5392
        %vm5400 = vmor %vm5398, %vm5399
        %v5401 = vsel %vm5400, %v5392, %v5397
        %v5402 = vrsqrt.pop %v5389
        %v5403 = vmul.f32 %v5402, %v5389
        %v5404 = vmul.f32 %v5403, %v5402
        %v5405 = vmul.f32 0.5, %v5404
        %v5406 = vsub.f32 1.5, %v5405
        %v5407 = vmul.f32 %v5402, %v5406
        %vm5408 = vweird.f32 %v5389
        %vm5409 = vweird.f32 %v5402
        %vm5410 = vmor %vm5408, %vm5409
        %v5411 = vsel %vm5410, %v5402, %v5407
        %v5412 = vrsqrt.pop %v5390
        %v5413 = vmul.f32 %v5412, %v5390
        %v5414 = vmul.f32 %v5413, %v5412
        %v5415 = vmul.f32 0.5, %v5414
        %v5416 = vsub.f32 1.5, %v5415
        %v5417 = vmul.f32 %v5412, %v5416
        %vm5418 = vweird.f32 %v5390
        %vm5419 = vweird.f32 %v5412
        %vm5420 = vmor %vm5418, %vm5419
        %v5421 = vsel %vm5420, %v5412, %v5417
        %v5422 = vrsqrt.pop %v5391
        %v5423 = vmul.f32 %v5422, %v5391
        %v5424 = vmul.f32 %v5423, %v5422
        %v5425 = vmul.f32 0.5, %v5424
        %v5426 = vsub.f32 1.5, %v5425
        %v5427 = vmul.f32 %v5422, %v5426
        %vm5428 = vweird.f32 %v5391
        %vm5429 = vweird.f32 %v5422
        %vm5430 = vmor %vm5428, %vm5429
        %v5431 = vsel %vm5430, %v5422, %v5427
        %v5432 = vmul.f32 %v3616, %v5401
        %v5433 = vmul.f32 %v3618, %v5411
        %v5434 = vmul.f32 %v3620, %v5421
        %v5435 = vmul.f32 %v3622, %v5431
        %v5436 = vmul.f32 %v3624, %v3624
        %v5437 = vmul.f32 %v3626, %v3626
        %v5438 = vmul.f32 %v3628, %v3628
        %v5439 = vmul.f32 %v3630, %v3630
        %v5440 = vsel %vm3651, %v5436, 0.0
        %5441 = vadd.xlane.f32.xlu0 %v5440
        %v5442 = vpop.xlane.xlu0 %5441
        %v5443 = vsel %vm3651, %v5437, 0.0
        %5444 = vadd.xlane.f32.xlu0 %v5443
        %v5445 = vpop.xlane.xlu0 %5444
        %v5446 = vsel %vm3651, %v5438, 0.0
        %5447 = vadd.xlane.f32.xlu0 %v5446
        %v5448 = vpop.xlane.xlu0 %5447
        %v5449 = vsel %vm3651, %v5439, 0.0
        %5450 = vadd.xlane.f32.xlu0 %v5449
        %v5451 = vpop.xlane.xlu0 %5450
        %v5452 = vadd.f32 %v5442, 1e-12
        %v5453 = vadd.f32 %v5445, 1e-12
        %v5454 = vadd.f32 %v5448, 1e-12
        %v5455 = vadd.f32 %v5451, 1e-12
        %v5456 = vrsqrt.pop %v5452
        %v5457 = vmul.f32 %v5456, %v5452
        %v5458 = vmul.f32 %v5457, %v5456
        %v5459 = vmul.f32 0.5, %v5458
        %v5460 = vsub.f32 1.5, %v5459
        %v5461 = vmul.f32 %v5456, %v5460
        %vm5462 = vweird.f32 %v5452
        %vm5463 = vweird.f32 %v5456
        %vm5464 = vmor %vm5462, %vm5463
        %v5465 = vsel %vm5464, %v5456, %v5461
        %v5466 = vrsqrt.pop %v5453
        %v5467 = vmul.f32 %v5466, %v5453
        %v5468 = vmul.f32 %v5467, %v5466
        %v5469 = vmul.f32 0.5, %v5468
        %v5470 = vsub.f32 1.5, %v5469
        %v5471 = vmul.f32 %v5466, %v5470
        %vm5472 = vweird.f32 %v5453
        %vm5473 = vweird.f32 %v5466
        %vm5474 = vmor %vm5472, %vm5473
        %v5475 = vsel %vm5474, %v5466, %v5471
        %v5476 = vrsqrt.pop %v5454
        %v5477 = vmul.f32 %v5476, %v5454
        %v5478 = vmul.f32 %v5477, %v5476
        %v5479 = vmul.f32 0.5, %v5478
        %v5480 = vsub.f32 1.5, %v5479
        %v5481 = vmul.f32 %v5476, %v5480
        %vm5482 = vweird.f32 %v5454
        %vm5483 = vweird.f32 %v5476
        %vm5484 = vmor %vm5482, %vm5483
        %v5485 = vsel %vm5484, %v5476, %v5481
        %v5486 = vrsqrt.pop %v5455
        %v5487 = vmul.f32 %v5486, %v5455
        %v5488 = vmul.f32 %v5487, %v5486
        %v5489 = vmul.f32 0.5, %v5488
        %v5490 = vsub.f32 1.5, %v5489
        %v5491 = vmul.f32 %v5486, %v5490
        %vm5492 = vweird.f32 %v5455
        %vm5493 = vweird.f32 %v5486
        %vm5494 = vmor %vm5492, %vm5493
        %v5495 = vsel %vm5494, %v5486, %v5491
        %v5496 = vmul.f32 %v3624, %v5465
        %v5497 = vmul.f32 %v3626, %v5475
        %v5498 = vmul.f32 %v3628, %v5485
        %v5499 = vmul.f32 %v3630, %v5495
        %v5501 = vsel %vm3651, %v5432, 0
        %v5504 = vsel %vm3651, %v5433, 0
        %v5507 = vsel %vm3651, %v5434, 0
        %v5510 = vsel %vm3651, %v5435, 0
        %v5513 = vsel %vm3651, %v5496, 0
        %v5516 = vsel %vm3651, %v5497, 0
        %v5519 = vsel %vm3651, %v5498, 0
        %v5522 = vsel %vm3651, %v5499, 0
        %5524 = vmatpush.xpose.msra.mxu0 0.0
        %5525 = vmatpush.xpose.msra.mxu0 0.0
        %5526 = vmatpush.xpose.msra.mxu0 0.0
        %5527 = vmatpush.xpose.msra.mxu0 0.0
        %5528 = vmatpush.xpose.msra.mxu0 0.0
        %5529 = vmatpush.xpose.msra.mxu0 0.0
        %5530 = vmatpush.xpose.msra.mxu0 0.0
        %5531 = vmatpush.xpose.msra.mxu0 0.0
        %5532 = vmatpush.xpose.msra.mxu0 0.0
        %5533 = vmatpush.xpose.msra.mxu0 0.0
        %5534 = vmatpush.xpose.msra.mxu0 0.0
        %5535 = vmatpush.xpose.msra.mxu0 0.0
        %v5536 = vand.u32 %v5522, 4294901760
        %5537 = vmatpush.xpose.msra.mxu0 %v5536
        %v5538 = vand.u32 %v5519, 4294901760
        %5539 = vmatpush.xpose.msra.mxu0 %v5538
        %v5540 = vand.u32 %v5516, 4294901760
        %5541 = vmatpush.xpose.msra.mxu0 %v5540
        %v5542 = vand.u32 %v5513, 4294901760
        %5543 = vmatpush.xpose.msra.mxu0 %v5542
        %v5544 = vand.u32 %v5501, 4294901760
        %v5545 = vsub.f32 %v5501, %v5544
        %v5546 = vand.u32 %v5545, 4294901760
        %v5547 = vsub.f32 %v5545, %v5546
        %v5548 = vand.u32 %v5547, 4294901760
        %5549 = vmatmul.f32.gmra.mxu0 %v5548
        %v5550 = vpop.f32.mrf.mxu0
        %v5551 = vadd.f32 0.0, %v5550
        %v5552 = vand.u32 %v5504, 4294901760
        %v5553 = vsub.f32 %v5504, %v5552
        %v5554 = vand.u32 %v5553, 4294901760
        %v5555 = vsub.f32 %v5553, %v5554
        %v5556 = vand.u32 %v5555, 4294901760
        %5557 = vmatmul.f32.gmra.mxu0 %v5556
        %v5558 = vpop.f32.mrf.mxu0
        %v5559 = vadd.f32 0.0, %v5558
        %v5560 = vand.u32 %v5507, 4294901760
        %v5561 = vsub.f32 %v5507, %v5560
        %v5562 = vand.u32 %v5561, 4294901760
        %v5563 = vsub.f32 %v5561, %v5562
        %v5564 = vand.u32 %v5563, 4294901760
        %5565 = vmatmul.f32.gmra.mxu0 %v5564
        %v5566 = vpop.f32.mrf.mxu0
        %v5567 = vadd.f32 0.0, %v5566
        %v5568 = vand.u32 %v5510, 4294901760
        %v5569 = vsub.f32 %v5510, %v5568
        %v5570 = vand.u32 %v5569, 4294901760
        %v5571 = vsub.f32 %v5569, %v5570
        %v5572 = vand.u32 %v5571, 4294901760
        %5573 = vmatmul.f32.gmra.mxu0 %v5572
        %v5574 = vpop.f32.mrf.mxu0
        %v5575 = vadd.f32 0.0, %v5574
        %5576 = vdwg.mxu0
        %5577 = vmatpush.xpose.msra.mxu0 0.0
        %5578 = vmatpush.xpose.msra.mxu0 0.0
        %5579 = vmatpush.xpose.msra.mxu0 0.0
        %5580 = vmatpush.xpose.msra.mxu0 0.0
        %5581 = vmatpush.xpose.msra.mxu0 0.0
        %5582 = vmatpush.xpose.msra.mxu0 0.0
        %5583 = vmatpush.xpose.msra.mxu0 0.0
        %5584 = vmatpush.xpose.msra.mxu0 0.0
        %5585 = vmatpush.xpose.msra.mxu0 0.0
        %5586 = vmatpush.xpose.msra.mxu0 0.0
        %5587 = vmatpush.xpose.msra.mxu0 0.0
        %5588 = vmatpush.xpose.msra.mxu0 0.0
        %v5589 = vand.u32 %v5522, 4294901760
        %v5590 = vsub.f32 %v5522, %v5589
        %v5591 = vand.u32 %v5590, 4294901760
        %v5592 = vsub.f32 %v5590, %v5591
        %v5593 = vand.u32 %v5592, 4294901760
        %5594 = vmatpush.xpose.msra.mxu0 %v5593
        %v5595 = vand.u32 %v5519, 4294901760
        %v5596 = vsub.f32 %v5519, %v5595
        %v5597 = vand.u32 %v5596, 4294901760
        %v5598 = vsub.f32 %v5596, %v5597
        %v5599 = vand.u32 %v5598, 4294901760
        %5600 = vmatpush.xpose.msra.mxu0 %v5599
        %v5601 = vand.u32 %v5516, 4294901760
        %v5602 = vsub.f32 %v5516, %v5601
        %v5603 = vand.u32 %v5602, 4294901760
        %v5604 = vsub.f32 %v5602, %v5603
        %v5605 = vand.u32 %v5604, 4294901760
        %5606 = vmatpush.xpose.msra.mxu0 %v5605
        %v5607 = vand.u32 %v5513, 4294901760
        %v5608 = vsub.f32 %v5513, %v5607
        %v5609 = vand.u32 %v5608, 4294901760
        %v5610 = vsub.f32 %v5608, %v5609
        %v5611 = vand.u32 %v5610, 4294901760
        %5612 = vmatpush.xpose.msra.mxu0 %v5611
        %v5613 = vand.u32 %v5501, 4294901760
        %5614 = vmatmul.f32.gmra.mxu0 %v5613
        %v5615 = vpop.f32.mrf.mxu0
        %v5616 = vadd.f32 %v5551, %v5615
        %v5617 = vand.u32 %v5504, 4294901760
        %5618 = vmatmul.f32.gmra.mxu0 %v5617
        %v5619 = vpop.f32.mrf.mxu0
        %v5620 = vadd.f32 %v5559, %v5619
        %v5621 = vand.u32 %v5507, 4294901760
        %5622 = vmatmul.f32.gmra.mxu0 %v5621
        %v5623 = vpop.f32.mrf.mxu0
        %v5624 = vadd.f32 %v5567, %v5623
        %v5625 = vand.u32 %v5510, 4294901760
        %5626 = vmatmul.f32.gmra.mxu0 %v5625
        %v5627 = vpop.f32.mrf.mxu0
        %v5628 = vadd.f32 %v5575, %v5627
        %5629 = vdwg.mxu0
        %5630 = vmatpush.xpose.msra.mxu0 0.0
        %5631 = vmatpush.xpose.msra.mxu0 0.0
        %5632 = vmatpush.xpose.msra.mxu0 0.0
        %5633 = vmatpush.xpose.msra.mxu0 0.0
        %5634 = vmatpush.xpose.msra.mxu0 0.0
        %5635 = vmatpush.xpose.msra.mxu0 0.0
        %5636 = vmatpush.xpose.msra.mxu0 0.0
        %5637 = vmatpush.xpose.msra.mxu0 0.0
        %5638 = vmatpush.xpose.msra.mxu0 0.0
        %5639 = vmatpush.xpose.msra.mxu0 0.0
        %5640 = vmatpush.xpose.msra.mxu0 0.0
        %5641 = vmatpush.xpose.msra.mxu0 0.0
        %v5642 = vand.u32 %v5522, 4294901760
        %v5643 = vsub.f32 %v5522, %v5642
        %5644 = vmatpush.xpose.msra.mxu0 %v5643
        %v5645 = vand.u32 %v5519, 4294901760
        %v5646 = vsub.f32 %v5519, %v5645
        %5647 = vmatpush.xpose.msra.mxu0 %v5646
        %v5648 = vand.u32 %v5516, 4294901760
        %v5649 = vsub.f32 %v5516, %v5648
        %5650 = vmatpush.xpose.msra.mxu0 %v5649
        %v5651 = vand.u32 %v5513, 4294901760
        %v5652 = vsub.f32 %v5513, %v5651
        %5653 = vmatpush.xpose.msra.mxu0 %v5652
        %v5654 = vand.u32 %v5501, 4294901760
        %v5655 = vsub.f32 %v5501, %v5654
        %5656 = vmatmul.f32.gmra.mxu0 %v5655
        %v5657 = vpop.f32.mrf.mxu0
        %v5658 = vadd.f32 %v5616, %v5657
        %v5659 = vand.u32 %v5504, 4294901760
        %v5660 = vsub.f32 %v5504, %v5659
        %5661 = vmatmul.f32.gmra.mxu0 %v5660
        %v5662 = vpop.f32.mrf.mxu0
        %v5663 = vadd.f32 %v5620, %v5662
        %v5664 = vand.u32 %v5507, 4294901760
        %v5665 = vsub.f32 %v5507, %v5664
        %5666 = vmatmul.f32.gmra.mxu0 %v5665
        %v5667 = vpop.f32.mrf.mxu0
        %v5668 = vadd.f32 %v5624, %v5667
        %v5669 = vand.u32 %v5510, 4294901760
        %v5670 = vsub.f32 %v5510, %v5669
        %5671 = vmatmul.f32.gmra.mxu0 %v5670
        %v5672 = vpop.f32.mrf.mxu0
        %v5673 = vadd.f32 %v5628, %v5672
        %5674 = vdwg.mxu0
        %5675 = vmatpush.xpose.msra.mxu0 0.0
        %5676 = vmatpush.xpose.msra.mxu0 0.0
        %5677 = vmatpush.xpose.msra.mxu0 0.0
        %5678 = vmatpush.xpose.msra.mxu0 0.0
        %5679 = vmatpush.xpose.msra.mxu0 0.0
        %5680 = vmatpush.xpose.msra.mxu0 0.0
        %5681 = vmatpush.xpose.msra.mxu0 0.0
        %5682 = vmatpush.xpose.msra.mxu0 0.0
        %5683 = vmatpush.xpose.msra.mxu0 0.0
        %5684 = vmatpush.xpose.msra.mxu0 0.0
        %5685 = vmatpush.xpose.msra.mxu0 0.0
        %5686 = vmatpush.xpose.msra.mxu0 0.0
        %v5687 = vand.u32 %v5522, 4294901760
        %5688 = vmatpush.xpose.msra.mxu0 %v5687
        %v5689 = vand.u32 %v5519, 4294901760
        %5690 = vmatpush.xpose.msra.mxu0 %v5689
        %v5691 = vand.u32 %v5516, 4294901760
        %5692 = vmatpush.xpose.msra.mxu0 %v5691
        %v5693 = vand.u32 %v5513, 4294901760
        %5694 = vmatpush.xpose.msra.mxu0 %v5693
        %v5695 = vand.u32 %v5501, 4294901760
        %v5696 = vsub.f32 %v5501, %v5695
        %v5697 = vand.u32 %v5696, 4294901760
        %5698 = vmatmul.f32.gmra.mxu0 %v5697
        %v5699 = vpop.f32.mrf.mxu0
        %v5700 = vadd.f32 %v5658, %v5699
        %v5701 = vand.u32 %v5504, 4294901760
        %v5702 = vsub.f32 %v5504, %v5701
        %v5703 = vand.u32 %v5702, 4294901760
        %5704 = vmatmul.f32.gmra.mxu0 %v5703
        %v5705 = vpop.f32.mrf.mxu0
        %v5706 = vadd.f32 %v5663, %v5705
        %v5707 = vand.u32 %v5507, 4294901760
        %v5708 = vsub.f32 %v5507, %v5707
        %v5709 = vand.u32 %v5708, 4294901760
        %5710 = vmatmul.f32.gmra.mxu0 %v5709
        %v5711 = vpop.f32.mrf.mxu0
        %v5712 = vadd.f32 %v5668, %v5711
        %v5713 = vand.u32 %v5510, 4294901760
        %v5714 = vsub.f32 %v5510, %v5713
        %v5715 = vand.u32 %v5714, 4294901760
        %5716 = vmatmul.f32.gmra.mxu0 %v5715
        %v5717 = vpop.f32.mrf.mxu0
        %v5718 = vadd.f32 %v5673, %v5717
        %5719 = vdwg.mxu0
        %5720 = vmatpush.xpose.msra.mxu0 0.0
        %5721 = vmatpush.xpose.msra.mxu0 0.0
        %5722 = vmatpush.xpose.msra.mxu0 0.0
        %5723 = vmatpush.xpose.msra.mxu0 0.0
        %5724 = vmatpush.xpose.msra.mxu0 0.0
        %5725 = vmatpush.xpose.msra.mxu0 0.0
        %5726 = vmatpush.xpose.msra.mxu0 0.0
        %5727 = vmatpush.xpose.msra.mxu0 0.0
        %5728 = vmatpush.xpose.msra.mxu0 0.0
        %5729 = vmatpush.xpose.msra.mxu0 0.0
        %5730 = vmatpush.xpose.msra.mxu0 0.0
        %5731 = vmatpush.xpose.msra.mxu0 0.0
        %v5732 = vand.u32 %v5522, 4294901760
        %v5733 = vsub.f32 %v5522, %v5732
        %v5734 = vand.u32 %v5733, 4294901760
        %5735 = vmatpush.xpose.msra.mxu0 %v5734
        %v5736 = vand.u32 %v5519, 4294901760
        %v5737 = vsub.f32 %v5519, %v5736
        %v5738 = vand.u32 %v5737, 4294901760
        %5739 = vmatpush.xpose.msra.mxu0 %v5738
        %v5740 = vand.u32 %v5516, 4294901760
        %v5741 = vsub.f32 %v5516, %v5740
        %v5742 = vand.u32 %v5741, 4294901760
        %5743 = vmatpush.xpose.msra.mxu0 %v5742
        %v5744 = vand.u32 %v5513, 4294901760
        %v5745 = vsub.f32 %v5513, %v5744
        %v5746 = vand.u32 %v5745, 4294901760
        %5747 = vmatpush.xpose.msra.mxu0 %v5746
        %v5748 = vand.u32 %v5501, 4294901760
        %5749 = vmatmul.f32.gmra.mxu0 %v5748
        %v5750 = vpop.f32.mrf.mxu0
        %v5751 = vadd.f32 %v5700, %v5750
        %v5752 = vand.u32 %v5504, 4294901760
        %5753 = vmatmul.f32.gmra.mxu0 %v5752
        %v5754 = vpop.f32.mrf.mxu0
        %v5755 = vadd.f32 %v5706, %v5754
        %v5756 = vand.u32 %v5507, 4294901760
        %5757 = vmatmul.f32.gmra.mxu0 %v5756
        %v5758 = vpop.f32.mrf.mxu0
        %v5759 = vadd.f32 %v5712, %v5758
        %v5760 = vand.u32 %v5510, 4294901760
        %5761 = vmatmul.f32.gmra.mxu0 %v5760
        %v5762 = vpop.f32.mrf.mxu0
        %v5763 = vadd.f32 %v5718, %v5762
        %5764 = vdwg.mxu0
        %5765 = vmatpush.xpose.msra.mxu0 0.0
        %5766 = vmatpush.xpose.msra.mxu0 0.0
        %5767 = vmatpush.xpose.msra.mxu0 0.0
        %5768 = vmatpush.xpose.msra.mxu0 0.0
        %5769 = vmatpush.xpose.msra.mxu0 0.0
        %5770 = vmatpush.xpose.msra.mxu0 0.0
        %5771 = vmatpush.xpose.msra.mxu0 0.0
        %5772 = vmatpush.xpose.msra.mxu0 0.0
        %5773 = vmatpush.xpose.msra.mxu0 0.0
        %5774 = vmatpush.xpose.msra.mxu0 0.0
        %5775 = vmatpush.xpose.msra.mxu0 0.0
        %5776 = vmatpush.xpose.msra.mxu0 0.0
        %v5777 = vand.u32 %v5522, 4294901760
        %5778 = vmatpush.xpose.msra.mxu0 %v5777
        %v5779 = vand.u32 %v5519, 4294901760
        %5780 = vmatpush.xpose.msra.mxu0 %v5779
        %v5781 = vand.u32 %v5516, 4294901760
        %5782 = vmatpush.xpose.msra.mxu0 %v5781
        %v5783 = vand.u32 %v5513, 4294901760
        %5784 = vmatpush.xpose.msra.mxu0 %v5783
        %v5785 = vand.u32 %v5501, 4294901760
        %5786 = vmatmul.f32.gmra.mxu0 %v5785
        %v5787 = vpop.f32.mrf.mxu0
        %v5788 = vadd.f32 %v5751, %v5787
        %v5789 = vand.u32 %v5504, 4294901760
        %5790 = vmatmul.f32.gmra.mxu0 %v5789
        %v5791 = vpop.f32.mrf.mxu0
        %v5792 = vadd.f32 %v5755, %v5791
        %v5793 = vand.u32 %v5507, 4294901760
        %5794 = vmatmul.f32.gmra.mxu0 %v5793
        %v5795 = vpop.f32.mrf.mxu0
        %v5796 = vadd.f32 %v5759, %v5795
        %v5797 = vand.u32 %v5510, 4294901760
        %5798 = vmatmul.f32.gmra.mxu0 %v5797
        %v5799 = vpop.f32.mrf.mxu0
        %v5800 = vadd.f32 %v5763, %v5799
        %5801 = vdwg.mxu0
        %v5802 = vmul.f32 %v5788, %v4081
        %v5803 = vmul.f32 %v5792, %v4086
        %v5804 = vmul.f32 %v5796, %v4091
        %v5805 = vmul.f32 %v5800, %v4096
        %v5806 = vsel %vm482, %v5802, -inf
        %5807 = vmax.xlane.f32.xlu0 %v5806
        %v5808 = vpop.xlane.xlu0 %5807
        %v5809 = vsel %vm482, %v5803, -inf
        %5810 = vmax.xlane.f32.xlu0 %v5809
        %v5811 = vpop.xlane.xlu0 %5810
        %v5812 = vsel %vm482, %v5804, -inf
        %5813 = vmax.xlane.f32.xlu0 %v5812
        %v5814 = vpop.xlane.xlu0 %5813
        %v5815 = vsel %vm482, %v5805, -inf
        %5816 = vmax.xlane.f32.xlu0 %v5815
        %v5817 = vpop.xlane.xlu0 %5816
        %v5818 = vsub.f32 %v5802, %v5808
        %v5819 = vsub.f32 %v5803, %v5811
        %v5820 = vsub.f32 %v5804, %v5814
        %v5821 = vsub.f32 %v5805, %v5817
        %v5822 = vmul.f32 %v5818, 1.442695
        %v5823 = vpow.pop %v5822
        %v5824 = vmul.f32 %v5819, 1.442695
        %v5825 = vpow.pop %v5824
        %v5826 = vmul.f32 %v5820, 1.442695
        %v5827 = vpow.pop %v5826
        %v5828 = vmul.f32 %v5821, 1.442695
        %v5829 = vpow.pop %v5828
        %v5830 = vmul.f32 %v5823, %v3643
        %v5831 = vmul.f32 %v5825, %v3644
        %v5832 = vmul.f32 %v5827, %v3645
        %v5833 = vmul.f32 %v5829, %v3646
        %v5834 = vsel %vm482, %v5830, 0.0
        %5835 = vadd.xlane.f32.xlu0 %v5834
        %v5836 = vpop.xlane.xlu0 %5835
        %v5837 = vsel %vm482, %v5831, 0.0
        %5838 = vadd.xlane.f32.xlu0 %v5837
        %v5839 = vpop.xlane.xlu0 %5838
        %v5840 = vsel %vm482, %v5832, 0.0
        %5841 = vadd.xlane.f32.xlu0 %v5840
        %v5842 = vpop.xlane.xlu0 %5841
        %v5843 = vsel %vm482, %v5833, 0.0
        %5844 = vadd.xlane.f32.xlu0 %v5843
        %v5845 = vpop.xlane.xlu0 %5844
        %v5846 = vrcp.pop %v5836
        %v5847 = vmul.f32 %v5836, %v5846
        %v5848 = vsub.f32 1.0, %v5847
        %v5849 = vmul.f32 %v5846, %v5848
        %v5850 = vadd.f32 %v5846, %v5849
        %vm5851 = vweird.f32 %v5836
        %vm5852 = vweird.f32 %v5846
        %vm5853 = vmor %vm5851, %vm5852
        %v5854 = vsel %vm5853, %v5846, %v5850
        %v5855 = vand.u32 2147483647, %v5836
        %vm5856 = vcmp.eq.f32.partialorder %v5855, 8.507059e+37
        %v5857 = vand.u32 %v5836, 2147483648
        %v5858 = vor.u32 1.1754944e-38, %v5857
        %v5859 = vsel %vm5856, %v5858, %v5854
        %v5860 = vmul.f32 %v5830, %v5859
        %v5861 = vrcp.pop %v5839
        %v5862 = vmul.f32 %v5839, %v5861
        %v5863 = vsub.f32 1.0, %v5862
        %v5864 = vmul.f32 %v5861, %v5863
        %v5865 = vadd.f32 %v5861, %v5864
        %vm5866 = vweird.f32 %v5839
        %vm5867 = vweird.f32 %v5861
        %vm5868 = vmor %vm5866, %vm5867
        %v5869 = vsel %vm5868, %v5861, %v5865
        %v5870 = vand.u32 2147483647, %v5839
        %vm5871 = vcmp.eq.f32.partialorder %v5870, 8.507059e+37
        %v5872 = vand.u32 %v5839, 2147483648
        %v5873 = vor.u32 1.1754944e-38, %v5872
        %v5874 = vsel %vm5871, %v5873, %v5869
        %v5875 = vmul.f32 %v5831, %v5874
        %v5876 = vrcp.pop %v5842
        %v5877 = vmul.f32 %v5842, %v5876
        %v5878 = vsub.f32 1.0, %v5877
        %v5879 = vmul.f32 %v5876, %v5878
        %v5880 = vadd.f32 %v5876, %v5879
        %vm5881 = vweird.f32 %v5842
        %vm5882 = vweird.f32 %v5876
        %vm5883 = vmor %vm5881, %vm5882
        %v5884 = vsel %vm5883, %v5876, %v5880
        %v5885 = vand.u32 2147483647, %v5842
        %vm5886 = vcmp.eq.f32.partialorder %v5885, 8.507059e+37
        %v5887 = vand.u32 %v5842, 2147483648
        %v5888 = vor.u32 1.1754944e-38, %v5887
        %v5889 = vsel %vm5886, %v5888, %v5884
        %v5890 = vmul.f32 %v5832, %v5889
        %v5891 = vrcp.pop %v5845
        %v5892 = vmul.f32 %v5845, %v5891
        %v5893 = vsub.f32 1.0, %v5892
        %v5894 = vmul.f32 %v5891, %v5893
        %v5895 = vadd.f32 %v5891, %v5894
        %vm5896 = vweird.f32 %v5845
        %vm5897 = vweird.f32 %v5891
        %vm5898 = vmor %vm5896, %vm5897
        %v5899 = vsel %vm5898, %v5891, %v5895
        %v5900 = vand.u32 2147483647, %v5845
        %vm5901 = vcmp.eq.f32.partialorder %v5900, 8.507059e+37
        %v5902 = vand.u32 %v5845, 2147483648
        %v5903 = vor.u32 1.1754944e-38, %v5902
        %v5904 = vsel %vm5901, %v5903, %v5899
        %v5905 = vmul.f32 %v5833, %v5904
        %v5907 = vsel %vm482, %v5860, 0
        %v5910 = vsel %vm482, %v5875, 0
        %v5913 = vsel %vm482, %v5890, 0
        %v5916 = vsel %vm482, %v5905, 0
        %5918 = vmatpush.msra.mxu0 0.0
        %5919 = vmatpush.msra.mxu0 0.0
        %5920 = vmatpush.msra.mxu0 0.0
        %5921 = vmatpush.msra.mxu0 0.0
        %5922 = vmatpush.msra.mxu0 0.0
        %5923 = vmatpush.msra.mxu0 0.0
        %5924 = vmatpush.msra.mxu0 0.0
        %5925 = vmatpush.msra.mxu0 0.0
        %5926 = vmatpush.msra.mxu0 0.0
        %5927 = vmatpush.msra.mxu0 0.0
        %5928 = vmatpush.msra.mxu0 0.0
        %5929 = vmatpush.msra.mxu0 0.0
        %v5930 = vand.u32 %v3638, 4294901760
        %5931 = vmatpush.msra.mxu0 %v5930
        %v5932 = vand.u32 %v3636, 4294901760
        %5933 = vmatpush.msra.mxu0 %v5932
        %v5934 = vand.u32 %v3634, 4294901760
        %5935 = vmatpush.msra.mxu0 %v5934
        %v5936 = vand.u32 %v3632, 4294901760
        %5937 = vmatpush.msra.mxu0 %v5936
        %v5938 = vand.u32 %v5907, 4294901760
        %v5939 = vsub.f32 %v5907, %v5938
        %v5940 = vand.u32 %v5939, 4294901760
        %v5941 = vsub.f32 %v5939, %v5940
        %v5942 = vand.u32 %v5941, 4294901760
        %5943 = vmatmul.f32.gmra.mxu0 %v5942
        %v5944 = vpop.f32.mrf.mxu0
        %v5945 = vadd.f32 0.0, %v5944
        %v5946 = vand.u32 %v5910, 4294901760
        %v5947 = vsub.f32 %v5910, %v5946
        %v5948 = vand.u32 %v5947, 4294901760
        %v5949 = vsub.f32 %v5947, %v5948
        %v5950 = vand.u32 %v5949, 4294901760
        %5951 = vmatmul.f32.gmra.mxu0 %v5950
        %v5952 = vpop.f32.mrf.mxu0
        %v5953 = vadd.f32 0.0, %v5952
        %v5954 = vand.u32 %v5913, 4294901760
        %v5955 = vsub.f32 %v5913, %v5954
        %v5956 = vand.u32 %v5955, 4294901760
        %v5957 = vsub.f32 %v5955, %v5956
        %v5958 = vand.u32 %v5957, 4294901760
        %5959 = vmatmul.f32.gmra.mxu0 %v5958
        %v5960 = vpop.f32.mrf.mxu0
        %v5961 = vadd.f32 0.0, %v5960
        %v5962 = vand.u32 %v5916, 4294901760
        %v5963 = vsub.f32 %v5916, %v5962
        %v5964 = vand.u32 %v5963, 4294901760
        %v5965 = vsub.f32 %v5963, %v5964
        %v5966 = vand.u32 %v5965, 4294901760
        %5967 = vmatmul.f32.gmra.mxu0 %v5966
        %v5968 = vpop.f32.mrf.mxu0
        %v5969 = vadd.f32 0.0, %v5968
        %5970 = vdwg.mxu0
        %5971 = vmatpush.msra.mxu0 0.0
        %5972 = vmatpush.msra.mxu0 0.0
        %5973 = vmatpush.msra.mxu0 0.0
        %5974 = vmatpush.msra.mxu0 0.0
        %5975 = vmatpush.msra.mxu0 0.0
        %5976 = vmatpush.msra.mxu0 0.0
        %5977 = vmatpush.msra.mxu0 0.0
        %5978 = vmatpush.msra.mxu0 0.0
        %5979 = vmatpush.msra.mxu0 0.0
        %5980 = vmatpush.msra.mxu0 0.0
        %5981 = vmatpush.msra.mxu0 0.0
        %5982 = vmatpush.msra.mxu0 0.0
        %v5983 = vand.u32 %v3638, 4294901760
        %v5984 = vsub.f32 %v3638, %v5983
        %v5985 = vand.u32 %v5984, 4294901760
        %v5986 = vsub.f32 %v5984, %v5985
        %v5987 = vand.u32 %v5986, 4294901760
        %5988 = vmatpush.msra.mxu0 %v5987
        %v5989 = vand.u32 %v3636, 4294901760
        %v5990 = vsub.f32 %v3636, %v5989
        %v5991 = vand.u32 %v5990, 4294901760
        %v5992 = vsub.f32 %v5990, %v5991
        %v5993 = vand.u32 %v5992, 4294901760
        %5994 = vmatpush.msra.mxu0 %v5993
        %v5995 = vand.u32 %v3634, 4294901760
        %v5996 = vsub.f32 %v3634, %v5995
        %v5997 = vand.u32 %v5996, 4294901760
        %v5998 = vsub.f32 %v5996, %v5997
        %v5999 = vand.u32 %v5998, 4294901760
        %6000 = vmatpush.msra.mxu0 %v5999
        %v6001 = vand.u32 %v3632, 4294901760
        %v6002 = vsub.f32 %v3632, %v6001
        %v6003 = vand.u32 %v6002, 4294901760
        %v6004 = vsub.f32 %v6002, %v6003
        %v6005 = vand.u32 %v6004, 4294901760
        %6006 = vmatpush.msra.mxu0 %v6005
        %v6007 = vand.u32 %v5907, 4294901760
        %6008 = vmatmul.f32.gmra.mxu0 %v6007
        %v6009 = vpop.f32.mrf.mxu0
        %v6010 = vadd.f32 %v5945, %v6009
        %v6011 = vand.u32 %v5910, 4294901760
        %6012 = vmatmul.f32.gmra.mxu0 %v6011
        %v6013 = vpop.f32.mrf.mxu0
        %v6014 = vadd.f32 %v5953, %v6013
        %v6015 = vand.u32 %v5913, 4294901760
        %6016 = vmatmul.f32.gmra.mxu0 %v6015
        %v6017 = vpop.f32.mrf.mxu0
        %v6018 = vadd.f32 %v5961, %v6017
        %v6019 = vand.u32 %v5916, 4294901760
        %6020 = vmatmul.f32.gmra.mxu0 %v6019
        %v6021 = vpop.f32.mrf.mxu0
        %v6022 = vadd.f32 %v5969, %v6021
        %6023 = vdwg.mxu0
        %6024 = vmatpush.msra.mxu0 0.0
        %6025 = vmatpush.msra.mxu0 0.0
        %6026 = vmatpush.msra.mxu0 0.0
        %6027 = vmatpush.msra.mxu0 0.0
        %6028 = vmatpush.msra.mxu0 0.0
        %6029 = vmatpush.msra.mxu0 0.0
        %6030 = vmatpush.msra.mxu0 0.0
        %6031 = vmatpush.msra.mxu0 0.0
        %6032 = vmatpush.msra.mxu0 0.0
        %6033 = vmatpush.msra.mxu0 0.0
        %6034 = vmatpush.msra.mxu0 0.0
        %6035 = vmatpush.msra.mxu0 0.0
        %v6036 = vand.u32 %v3638, 4294901760
        %v6037 = vsub.f32 %v3638, %v6036
        %6038 = vmatpush.msra.mxu0 %v6037
        %v6039 = vand.u32 %v3636, 4294901760
        %v6040 = vsub.f32 %v3636, %v6039
        %6041 = vmatpush.msra.mxu0 %v6040
        %v6042 = vand.u32 %v3634, 4294901760
        %v6043 = vsub.f32 %v3634, %v6042
        %6044 = vmatpush.msra.mxu0 %v6043
        %v6045 = vand.u32 %v3632, 4294901760
        %v6046 = vsub.f32 %v3632, %v6045
        %6047 = vmatpush.msra.mxu0 %v6046
        %v6048 = vand.u32 %v5907, 4294901760
        %v6049 = vsub.f32 %v5907, %v6048
        %6050 = vmatmul.f32.gmra.mxu0 %v6049
        %v6051 = vpop.f32.mrf.mxu0
        %v6052 = vadd.f32 %v6010, %v6051
        %v6053 = vand.u32 %v5910, 4294901760
        %v6054 = vsub.f32 %v5910, %v6053
        %6055 = vmatmul.f32.gmra.mxu0 %v6054
        %v6056 = vpop.f32.mrf.mxu0
        %v6057 = vadd.f32 %v6014, %v6056
        %v6058 = vand.u32 %v5913, 4294901760
        %v6059 = vsub.f32 %v5913, %v6058
        %6060 = vmatmul.f32.gmra.mxu0 %v6059
        %v6061 = vpop.f32.mrf.mxu0
        %v6062 = vadd.f32 %v6018, %v6061
        %v6063 = vand.u32 %v5916, 4294901760
        %v6064 = vsub.f32 %v5916, %v6063
        %6065 = vmatmul.f32.gmra.mxu0 %v6064
        %v6066 = vpop.f32.mrf.mxu0
        %v6067 = vadd.f32 %v6022, %v6066
        %6068 = vdwg.mxu0
        %6069 = vmatpush.msra.mxu0 0.0
        %6070 = vmatpush.msra.mxu0 0.0
        %6071 = vmatpush.msra.mxu0 0.0
        %6072 = vmatpush.msra.mxu0 0.0
        %6073 = vmatpush.msra.mxu0 0.0
        %6074 = vmatpush.msra.mxu0 0.0
        %6075 = vmatpush.msra.mxu0 0.0
        %6076 = vmatpush.msra.mxu0 0.0
        %6077 = vmatpush.msra.mxu0 0.0
        %6078 = vmatpush.msra.mxu0 0.0
        %6079 = vmatpush.msra.mxu0 0.0
        %6080 = vmatpush.msra.mxu0 0.0
        %v6081 = vand.u32 %v3638, 4294901760
        %6082 = vmatpush.msra.mxu0 %v6081
        %v6083 = vand.u32 %v3636, 4294901760
        %6084 = vmatpush.msra.mxu0 %v6083
        %v6085 = vand.u32 %v3634, 4294901760
        %6086 = vmatpush.msra.mxu0 %v6085
        %v6087 = vand.u32 %v3632, 4294901760
        %6088 = vmatpush.msra.mxu0 %v6087
        %v6089 = vand.u32 %v5907, 4294901760
        %v6090 = vsub.f32 %v5907, %v6089
        %v6091 = vand.u32 %v6090, 4294901760
        %6092 = vmatmul.f32.gmra.mxu0 %v6091
        %v6093 = vpop.f32.mrf.mxu0
        %v6094 = vadd.f32 %v6052, %v6093
        %v6095 = vand.u32 %v5910, 4294901760
        %v6096 = vsub.f32 %v5910, %v6095
        %v6097 = vand.u32 %v6096, 4294901760
        %6098 = vmatmul.f32.gmra.mxu0 %v6097
        %v6099 = vpop.f32.mrf.mxu0
        %v6100 = vadd.f32 %v6057, %v6099
        %v6101 = vand.u32 %v5913, 4294901760
        %v6102 = vsub.f32 %v5913, %v6101
        %v6103 = vand.u32 %v6102, 4294901760
        %6104 = vmatmul.f32.gmra.mxu0 %v6103
        %v6105 = vpop.f32.mrf.mxu0
        %v6106 = vadd.f32 %v6062, %v6105
        %v6107 = vand.u32 %v5916, 4294901760
        %v6108 = vsub.f32 %v5916, %v6107
        %v6109 = vand.u32 %v6108, 4294901760
        %6110 = vmatmul.f32.gmra.mxu0 %v6109
        %v6111 = vpop.f32.mrf.mxu0
        %v6112 = vadd.f32 %v6067, %v6111
        %6113 = vdwg.mxu0
        %6114 = vmatpush.msra.mxu0 0.0
        %6115 = vmatpush.msra.mxu0 0.0
        %6116 = vmatpush.msra.mxu0 0.0
        %6117 = vmatpush.msra.mxu0 0.0
        %6118 = vmatpush.msra.mxu0 0.0
        %6119 = vmatpush.msra.mxu0 0.0
        %6120 = vmatpush.msra.mxu0 0.0
        %6121 = vmatpush.msra.mxu0 0.0
        %6122 = vmatpush.msra.mxu0 0.0
        %6123 = vmatpush.msra.mxu0 0.0
        %6124 = vmatpush.msra.mxu0 0.0
        %6125 = vmatpush.msra.mxu0 0.0
        %v6126 = vand.u32 %v3638, 4294901760
        %v6127 = vsub.f32 %v3638, %v6126
        %v6128 = vand.u32 %v6127, 4294901760
        %6129 = vmatpush.msra.mxu0 %v6128
        %v6130 = vand.u32 %v3636, 4294901760
        %v6131 = vsub.f32 %v3636, %v6130
        %v6132 = vand.u32 %v6131, 4294901760
        %6133 = vmatpush.msra.mxu0 %v6132
        %v6134 = vand.u32 %v3634, 4294901760
        %v6135 = vsub.f32 %v3634, %v6134
        %v6136 = vand.u32 %v6135, 4294901760
        %6137 = vmatpush.msra.mxu0 %v6136
        %v6138 = vand.u32 %v3632, 4294901760
        %v6139 = vsub.f32 %v3632, %v6138
        %v6140 = vand.u32 %v6139, 4294901760
        %6141 = vmatpush.msra.mxu0 %v6140
        %v6142 = vand.u32 %v5907, 4294901760
        %6143 = vmatmul.f32.gmra.mxu0 %v6142
        %v6144 = vpop.f32.mrf.mxu0
        %v6145 = vadd.f32 %v6094, %v6144
        %v6146 = vand.u32 %v5910, 4294901760
        %6147 = vmatmul.f32.gmra.mxu0 %v6146
        %v6148 = vpop.f32.mrf.mxu0
        %v6149 = vadd.f32 %v6100, %v6148
        %v6150 = vand.u32 %v5913, 4294901760
        %6151 = vmatmul.f32.gmra.mxu0 %v6150
        %v6152 = vpop.f32.mrf.mxu0
        %v6153 = vadd.f32 %v6106, %v6152
        %v6154 = vand.u32 %v5916, 4294901760
        %6155 = vmatmul.f32.gmra.mxu0 %v6154
        %v6156 = vpop.f32.mrf.mxu0
        %v6157 = vadd.f32 %v6112, %v6156
        %6158 = vdwg.mxu0
        %6159 = vmatpush.msra.mxu0 0.0
        %6160 = vmatpush.msra.mxu0 0.0
        %6161 = vmatpush.msra.mxu0 0.0
        %6162 = vmatpush.msra.mxu0 0.0
        %6163 = vmatpush.msra.mxu0 0.0
        %6164 = vmatpush.msra.mxu0 0.0
        %6165 = vmatpush.msra.mxu0 0.0
        %6166 = vmatpush.msra.mxu0 0.0
        %6167 = vmatpush.msra.mxu0 0.0
        %6168 = vmatpush.msra.mxu0 0.0
        %6169 = vmatpush.msra.mxu0 0.0
        %6170 = vmatpush.msra.mxu0 0.0
        %v6171 = vand.u32 %v3638, 4294901760
        %6172 = vmatpush.msra.mxu0 %v6171
        %v6173 = vand.u32 %v3636, 4294901760
        %6174 = vmatpush.msra.mxu0 %v6173
        %v6175 = vand.u32 %v3634, 4294901760
        %6176 = vmatpush.msra.mxu0 %v6175
        %v6177 = vand.u32 %v3632, 4294901760
        %6178 = vmatpush.msra.mxu0 %v6177
        %v6179 = vand.u32 %v5907, 4294901760
        %6180 = vmatmul.f32.gmra.mxu0 %v6179
        %v6181 = vpop.f32.mrf.mxu0
        %v6182 = vadd.f32 %v6145, %v6181
        %v6183 = vand.u32 %v5910, 4294901760
        %6184 = vmatmul.f32.gmra.mxu0 %v6183
        %v6185 = vpop.f32.mrf.mxu0
        %v6186 = vadd.f32 %v6149, %v6185
        %v6187 = vand.u32 %v5913, 4294901760
        %6188 = vmatmul.f32.gmra.mxu0 %v6187
        %v6189 = vpop.f32.mrf.mxu0
        %v6190 = vadd.f32 %v6153, %v6189
        %v6191 = vand.u32 %v5916, 4294901760
        %6192 = vmatmul.f32.gmra.mxu0 %v6191
        %v6193 = vpop.f32.mrf.mxu0
        %v6194 = vadd.f32 %v6157, %v6193
        %6195 = vdwg.mxu0
        %6200 = vrot.lane.b32.xlu0 %v5372, 64
        %v6201 = vpop.permute.xlu0 %6200
        %6202 = vrot.lane.b32.xlu0 %v5373, 64
        %v6203 = vpop.permute.xlu0 %6202
        %6204 = vrot.lane.b32.xlu0 %v5374, 64
        %v6205 = vpop.permute.xlu0 %6204
        %6206 = vrot.lane.b32.xlu0 %v5375, 64
        %v6207 = vpop.permute.xlu0 %6206
        %v6212 = vsel %vm3651, %v6201, 0.0
        %6213 = vadd.xlane.f32.xlu0 %v6212
        %v6214 = vpop.xlane.xlu0 %6213
        %v6215 = vsel %vm3651, %v6203, 0.0
        %6216 = vadd.xlane.f32.xlu0 %v6215
        %v6217 = vpop.xlane.xlu0 %6216
        %v6218 = vsel %vm3651, %v6205, 0.0
        %6219 = vadd.xlane.f32.xlu0 %v6218
        %v6220 = vpop.xlane.xlu0 %6219
        %v6221 = vsel %vm3651, %v6207, 0.0
        %6222 = vadd.xlane.f32.xlu0 %v6221
        %v6223 = vpop.xlane.xlu0 %6222
        %v6224 = vadd.f32 %v6214, 1e-12
        %v6225 = vadd.f32 %v6217, 1e-12
        %v6226 = vadd.f32 %v6220, 1e-12
        %v6227 = vadd.f32 %v6223, 1e-12
        %v6228 = vrsqrt.pop %v6224
        %v6229 = vmul.f32 %v6228, %v6224
        %v6230 = vmul.f32 %v6229, %v6228
        %v6231 = vmul.f32 0.5, %v6230
        %v6232 = vsub.f32 1.5, %v6231
        %v6233 = vmul.f32 %v6228, %v6232
        %vm6234 = vweird.f32 %v6224
        %vm6235 = vweird.f32 %v6228
        %vm6236 = vmor %vm6234, %vm6235
        %v6237 = vsel %vm6236, %v6228, %v6233
        %v6238 = vrsqrt.pop %v6225
        %v6239 = vmul.f32 %v6238, %v6225
        %v6240 = vmul.f32 %v6239, %v6238
        %v6241 = vmul.f32 0.5, %v6240
        %v6242 = vsub.f32 1.5, %v6241
        %v6243 = vmul.f32 %v6238, %v6242
        %vm6244 = vweird.f32 %v6225
        %vm6245 = vweird.f32 %v6238
        %vm6246 = vmor %vm6244, %vm6245
        %v6247 = vsel %vm6246, %v6238, %v6243
        %v6248 = vrsqrt.pop %v6226
        %v6249 = vmul.f32 %v6248, %v6226
        %v6250 = vmul.f32 %v6249, %v6248
        %v6251 = vmul.f32 0.5, %v6250
        %v6252 = vsub.f32 1.5, %v6251
        %v6253 = vmul.f32 %v6248, %v6252
        %vm6254 = vweird.f32 %v6226
        %vm6255 = vweird.f32 %v6248
        %vm6256 = vmor %vm6254, %vm6255
        %v6257 = vsel %vm6256, %v6248, %v6253
        %v6258 = vrsqrt.pop %v6227
        %v6259 = vmul.f32 %v6258, %v6227
        %v6260 = vmul.f32 %v6259, %v6258
        %v6261 = vmul.f32 0.5, %v6260
        %v6262 = vsub.f32 1.5, %v6261
        %v6263 = vmul.f32 %v6258, %v6262
        %vm6264 = vweird.f32 %v6227
        %vm6265 = vweird.f32 %v6258
        %vm6266 = vmor %vm6264, %vm6265
        %v6267 = vsel %vm6266, %v6258, %v6263
        %v6268 = vmul.f32 %v3616, %v6237
        %v6269 = vmul.f32 %v3618, %v6247
        %v6270 = vmul.f32 %v3620, %v6257
        %v6271 = vmul.f32 %v3622, %v6267
        %6276 = vrot.lane.b32.xlu0 %v5436, 64
        %v6277 = vpop.permute.xlu0 %6276
        %6278 = vrot.lane.b32.xlu0 %v5437, 64
        %v6279 = vpop.permute.xlu0 %6278
        %6280 = vrot.lane.b32.xlu0 %v5438, 64
        %v6281 = vpop.permute.xlu0 %6280
        %6282 = vrot.lane.b32.xlu0 %v5439, 64
        %v6283 = vpop.permute.xlu0 %6282
        %v6288 = vsel %vm3651, %v6277, 0.0
        %6289 = vadd.xlane.f32.xlu0 %v6288
        %v6290 = vpop.xlane.xlu0 %6289
        %v6291 = vsel %vm3651, %v6279, 0.0
        %6292 = vadd.xlane.f32.xlu0 %v6291
        %v6293 = vpop.xlane.xlu0 %6292
        %v6294 = vsel %vm3651, %v6281, 0.0
        %6295 = vadd.xlane.f32.xlu0 %v6294
        %v6296 = vpop.xlane.xlu0 %6295
        %v6297 = vsel %vm3651, %v6283, 0.0
        %6298 = vadd.xlane.f32.xlu0 %v6297
        %v6299 = vpop.xlane.xlu0 %6298
        %v6300 = vadd.f32 %v6290, 1e-12
        %v6301 = vadd.f32 %v6293, 1e-12
        %v6302 = vadd.f32 %v6296, 1e-12
        %v6303 = vadd.f32 %v6299, 1e-12
        %v6304 = vrsqrt.pop %v6300
        %v6305 = vmul.f32 %v6304, %v6300
        %v6306 = vmul.f32 %v6305, %v6304
        %v6307 = vmul.f32 0.5, %v6306
        %v6308 = vsub.f32 1.5, %v6307
        %v6309 = vmul.f32 %v6304, %v6308
        %vm6310 = vweird.f32 %v6300
        %vm6311 = vweird.f32 %v6304
        %vm6312 = vmor %vm6310, %vm6311
        %v6313 = vsel %vm6312, %v6304, %v6309
        %v6314 = vrsqrt.pop %v6301
        %v6315 = vmul.f32 %v6314, %v6301
        %v6316 = vmul.f32 %v6315, %v6314
        %v6317 = vmul.f32 0.5, %v6316
        %v6318 = vsub.f32 1.5, %v6317
        %v6319 = vmul.f32 %v6314, %v6318
        %vm6320 = vweird.f32 %v6301
        %vm6321 = vweird.f32 %v6314
        %vm6322 = vmor %vm6320, %vm6321
        %v6323 = vsel %vm6322, %v6314, %v6319
        %v6324 = vrsqrt.pop %v6302
        %v6325 = vmul.f32 %v6324, %v6302
        %v6326 = vmul.f32 %v6325, %v6324
        %v6327 = vmul.f32 0.5, %v6326
        %v6328 = vsub.f32 1.5, %v6327
        %v6329 = vmul.f32 %v6324, %v6328
        %vm6330 = vweird.f32 %v6302
        %vm6331 = vweird.f32 %v6324
        %vm6332 = vmor %vm6330, %vm6331
        %v6333 = vsel %vm6332, %v6324, %v6329
        %v6334 = vrsqrt.pop %v6303
        %v6335 = vmul.f32 %v6334, %v6303
        %v6336 = vmul.f32 %v6335, %v6334
        %v6337 = vmul.f32 0.5, %v6336
        %v6338 = vsub.f32 1.5, %v6337
        %v6339 = vmul.f32 %v6334, %v6338
        %vm6340 = vweird.f32 %v6303
        %vm6341 = vweird.f32 %v6334
        %vm6342 = vmor %vm6340, %vm6341
        %v6343 = vsel %vm6342, %v6334, %v6339
        %v6344 = vmul.f32 %v3624, %v6313
        %v6345 = vmul.f32 %v3626, %v6323
        %v6346 = vmul.f32 %v3628, %v6333
        %v6347 = vmul.f32 %v3630, %v6343
        %6352 = vrot.lane.b32.xlu0 %v6268, 64
        %v6353 = vpop.permute.xlu0 %6352
        %6354 = vrot.lane.b32.xlu0 %v6269, 64
        %v6355 = vpop.permute.xlu0 %6354
        %6356 = vrot.lane.b32.xlu0 %v6270, 64
        %v6357 = vpop.permute.xlu0 %6356
        %6358 = vrot.lane.b32.xlu0 %v6271, 64
        %v6359 = vpop.permute.xlu0 %6358
        %6364 = vrot.lane.b32.xlu0 %v6344, 64
        %v6365 = vpop.permute.xlu0 %6364
        %6366 = vrot.lane.b32.xlu0 %v6345, 64
        %v6367 = vpop.permute.xlu0 %6366
        %6368 = vrot.lane.b32.xlu0 %v6346, 64
        %v6369 = vpop.permute.xlu0 %6368
        %6370 = vrot.lane.b32.xlu0 %v6347, 64
        %v6371 = vpop.permute.xlu0 %6370
        %v6372 = vsel %vm3651, %v6353, 0
        %v6374 = vsel %vm3651, %v6355, 0
        %v6376 = vsel %vm3651, %v6357, 0
        %v6378 = vsel %vm3651, %v6359, 0
        %v6380 = vsel %vm3651, %v6365, 0
        %v6382 = vsel %vm3651, %v6367, 0
        %v6384 = vsel %vm3651, %v6369, 0
        %v6386 = vsel %vm3651, %v6371, 0
        %6388 = vmatpush.xpose.msra.mxu0 0.0
        %6389 = vmatpush.xpose.msra.mxu0 0.0
        %6390 = vmatpush.xpose.msra.mxu0 0.0
        %6391 = vmatpush.xpose.msra.mxu0 0.0
        %6392 = vmatpush.xpose.msra.mxu0 0.0
        %6393 = vmatpush.xpose.msra.mxu0 0.0
        %6394 = vmatpush.xpose.msra.mxu0 0.0
        %6395 = vmatpush.xpose.msra.mxu0 0.0
        %6396 = vmatpush.xpose.msra.mxu0 0.0
        %6397 = vmatpush.xpose.msra.mxu0 0.0
        %6398 = vmatpush.xpose.msra.mxu0 0.0
        %6399 = vmatpush.xpose.msra.mxu0 0.0
        %v6400 = vand.u32 %v6386, 4294901760
        %6401 = vmatpush.xpose.msra.mxu0 %v6400
        %v6402 = vand.u32 %v6384, 4294901760
        %6403 = vmatpush.xpose.msra.mxu0 %v6402
        %v6404 = vand.u32 %v6382, 4294901760
        %6405 = vmatpush.xpose.msra.mxu0 %v6404
        %v6406 = vand.u32 %v6380, 4294901760
        %6407 = vmatpush.xpose.msra.mxu0 %v6406
        %v6408 = vand.u32 %v6372, 4294901760
        %v6409 = vsub.f32 %v6372, %v6408
        %v6410 = vand.u32 %v6409, 4294901760
        %v6411 = vsub.f32 %v6409, %v6410
        %v6412 = vand.u32 %v6411, 4294901760
        %6413 = vmatmul.f32.gmra.mxu0 %v6412
        %v6414 = vpop.f32.mrf.mxu0
        %v6415 = vadd.f32 0.0, %v6414
        %v6416 = vand.u32 %v6374, 4294901760
        %v6417 = vsub.f32 %v6374, %v6416
        %v6418 = vand.u32 %v6417, 4294901760
        %v6419 = vsub.f32 %v6417, %v6418
        %v6420 = vand.u32 %v6419, 4294901760
        %6421 = vmatmul.f32.gmra.mxu0 %v6420
        %v6422 = vpop.f32.mrf.mxu0
        %v6423 = vadd.f32 0.0, %v6422
        %v6424 = vand.u32 %v6376, 4294901760
        %v6425 = vsub.f32 %v6376, %v6424
        %v6426 = vand.u32 %v6425, 4294901760
        %v6427 = vsub.f32 %v6425, %v6426
        %v6428 = vand.u32 %v6427, 4294901760
        %6429 = vmatmul.f32.gmra.mxu0 %v6428
        %v6430 = vpop.f32.mrf.mxu0
        %v6431 = vadd.f32 0.0, %v6430
        %v6432 = vand.u32 %v6378, 4294901760
        %v6433 = vsub.f32 %v6378, %v6432
        %v6434 = vand.u32 %v6433, 4294901760
        %v6435 = vsub.f32 %v6433, %v6434
        %v6436 = vand.u32 %v6435, 4294901760
        %6437 = vmatmul.f32.gmra.mxu0 %v6436
        %v6438 = vpop.f32.mrf.mxu0
        %v6439 = vadd.f32 0.0, %v6438
        %6440 = vdwg.mxu0
        %6441 = vmatpush.xpose.msra.mxu0 0.0
        %6442 = vmatpush.xpose.msra.mxu0 0.0
        %6443 = vmatpush.xpose.msra.mxu0 0.0
        %6444 = vmatpush.xpose.msra.mxu0 0.0
        %6445 = vmatpush.xpose.msra.mxu0 0.0
        %6446 = vmatpush.xpose.msra.mxu0 0.0
        %6447 = vmatpush.xpose.msra.mxu0 0.0
        %6448 = vmatpush.xpose.msra.mxu0 0.0
        %6449 = vmatpush.xpose.msra.mxu0 0.0
        %6450 = vmatpush.xpose.msra.mxu0 0.0
        %6451 = vmatpush.xpose.msra.mxu0 0.0
        %6452 = vmatpush.xpose.msra.mxu0 0.0
        %v6453 = vand.u32 %v6386, 4294901760
        %v6454 = vsub.f32 %v6386, %v6453
        %v6455 = vand.u32 %v6454, 4294901760
        %v6456 = vsub.f32 %v6454, %v6455
        %v6457 = vand.u32 %v6456, 4294901760
        %6458 = vmatpush.xpose.msra.mxu0 %v6457
        %v6459 = vand.u32 %v6384, 4294901760
        %v6460 = vsub.f32 %v6384, %v6459
        %v6461 = vand.u32 %v6460, 4294901760
        %v6462 = vsub.f32 %v6460, %v6461
        %v6463 = vand.u32 %v6462, 4294901760
        %6464 = vmatpush.xpose.msra.mxu0 %v6463
        %v6465 = vand.u32 %v6382, 4294901760
        %v6466 = vsub.f32 %v6382, %v6465
        %v6467 = vand.u32 %v6466, 4294901760
        %v6468 = vsub.f32 %v6466, %v6467
        %v6469 = vand.u32 %v6468, 4294901760
        %6470 = vmatpush.xpose.msra.mxu0 %v6469
        %v6471 = vand.u32 %v6380, 4294901760
        %v6472 = vsub.f32 %v6380, %v6471
        %v6473 = vand.u32 %v6472, 4294901760
        %v6474 = vsub.f32 %v6472, %v6473
        %v6475 = vand.u32 %v6474, 4294901760
        %6476 = vmatpush.xpose.msra.mxu0 %v6475
        %v6477 = vand.u32 %v6372, 4294901760
        %6478 = vmatmul.f32.gmra.mxu0 %v6477
        %v6479 = vpop.f32.mrf.mxu0
        %v6480 = vadd.f32 %v6415, %v6479
        %v6481 = vand.u32 %v6374, 4294901760
        %6482 = vmatmul.f32.gmra.mxu0 %v6481
        %v6483 = vpop.f32.mrf.mxu0
        %v6484 = vadd.f32 %v6423, %v6483
        %v6485 = vand.u32 %v6376, 4294901760
        %6486 = vmatmul.f32.gmra.mxu0 %v6485
        %v6487 = vpop.f32.mrf.mxu0
        %v6488 = vadd.f32 %v6431, %v6487
        %v6489 = vand.u32 %v6378, 4294901760
        %6490 = vmatmul.f32.gmra.mxu0 %v6489
        %v6491 = vpop.f32.mrf.mxu0
        %v6492 = vadd.f32 %v6439, %v6491
        %6493 = vdwg.mxu0
        %6494 = vmatpush.xpose.msra.mxu0 0.0
        %6495 = vmatpush.xpose.msra.mxu0 0.0
        %6496 = vmatpush.xpose.msra.mxu0 0.0
        %6497 = vmatpush.xpose.msra.mxu0 0.0
        %6498 = vmatpush.xpose.msra.mxu0 0.0
        %6499 = vmatpush.xpose.msra.mxu0 0.0
        %6500 = vmatpush.xpose.msra.mxu0 0.0
        %6501 = vmatpush.xpose.msra.mxu0 0.0
        %6502 = vmatpush.xpose.msra.mxu0 0.0
        %6503 = vmatpush.xpose.msra.mxu0 0.0
        %6504 = vmatpush.xpose.msra.mxu0 0.0
        %6505 = vmatpush.xpose.msra.mxu0 0.0
        %v6506 = vand.u32 %v6386, 4294901760
        %v6507 = vsub.f32 %v6386, %v6506
        %6508 = vmatpush.xpose.msra.mxu0 %v6507
        %v6509 = vand.u32 %v6384, 4294901760
        %v6510 = vsub.f32 %v6384, %v6509
        %6511 = vmatpush.xpose.msra.mxu0 %v6510
        %v6512 = vand.u32 %v6382, 4294901760
        %v6513 = vsub.f32 %v6382, %v6512
        %6514 = vmatpush.xpose.msra.mxu0 %v6513
        %v6515 = vand.u32 %v6380, 4294901760
        %v6516 = vsub.f32 %v6380, %v6515
        %6517 = vmatpush.xpose.msra.mxu0 %v6516
        %v6518 = vand.u32 %v6372, 4294901760
        %v6519 = vsub.f32 %v6372, %v6518
        %6520 = vmatmul.f32.gmra.mxu0 %v6519
        %v6521 = vpop.f32.mrf.mxu0
        %v6522 = vadd.f32 %v6480, %v6521
        %v6523 = vand.u32 %v6374, 4294901760
        %v6524 = vsub.f32 %v6374, %v6523
        %6525 = vmatmul.f32.gmra.mxu0 %v6524
        %v6526 = vpop.f32.mrf.mxu0
        %v6527 = vadd.f32 %v6484, %v6526
        %v6528 = vand.u32 %v6376, 4294901760
        %v6529 = vsub.f32 %v6376, %v6528
        %6530 = vmatmul.f32.gmra.mxu0 %v6529
        %v6531 = vpop.f32.mrf.mxu0
        %v6532 = vadd.f32 %v6488, %v6531
        %v6533 = vand.u32 %v6378, 4294901760
        %v6534 = vsub.f32 %v6378, %v6533
        %6535 = vmatmul.f32.gmra.mxu0 %v6534
        %v6536 = vpop.f32.mrf.mxu0
        %v6537 = vadd.f32 %v6492, %v6536
        %6538 = vdwg.mxu0
        %6539 = vmatpush.xpose.msra.mxu0 0.0
        %6540 = vmatpush.xpose.msra.mxu0 0.0
        %6541 = vmatpush.xpose.msra.mxu0 0.0
        %6542 = vmatpush.xpose.msra.mxu0 0.0
        %6543 = vmatpush.xpose.msra.mxu0 0.0
        %6544 = vmatpush.xpose.msra.mxu0 0.0
        %6545 = vmatpush.xpose.msra.mxu0 0.0
        %6546 = vmatpush.xpose.msra.mxu0 0.0
        %6547 = vmatpush.xpose.msra.mxu0 0.0
        %6548 = vmatpush.xpose.msra.mxu0 0.0
        %6549 = vmatpush.xpose.msra.mxu0 0.0
        %6550 = vmatpush.xpose.msra.mxu0 0.0
        %v6551 = vand.u32 %v6386, 4294901760
        %6552 = vmatpush.xpose.msra.mxu0 %v6551
        %v6553 = vand.u32 %v6384, 4294901760
        %6554 = vmatpush.xpose.msra.mxu0 %v6553
        %v6555 = vand.u32 %v6382, 4294901760
        %6556 = vmatpush.xpose.msra.mxu0 %v6555
        %v6557 = vand.u32 %v6380, 4294901760
        %6558 = vmatpush.xpose.msra.mxu0 %v6557
        %v6559 = vand.u32 %v6372, 4294901760
        %v6560 = vsub.f32 %v6372, %v6559
        %v6561 = vand.u32 %v6560, 4294901760
        %6562 = vmatmul.f32.gmra.mxu0 %v6561
        %v6563 = vpop.f32.mrf.mxu0
        %v6564 = vadd.f32 %v6522, %v6563
        %v6565 = vand.u32 %v6374, 4294901760
        %v6566 = vsub.f32 %v6374, %v6565
        %v6567 = vand.u32 %v6566, 4294901760
        %6568 = vmatmul.f32.gmra.mxu0 %v6567
        %v6569 = vpop.f32.mrf.mxu0
        %v6570 = vadd.f32 %v6527, %v6569
        %v6571 = vand.u32 %v6376, 4294901760
        %v6572 = vsub.f32 %v6376, %v6571
        %v6573 = vand.u32 %v6572, 4294901760
        %6574 = vmatmul.f32.gmra.mxu0 %v6573
        %v6575 = vpop.f32.mrf.mxu0
        %v6576 = vadd.f32 %v6532, %v6575
        %v6577 = vand.u32 %v6378, 4294901760
        %v6578 = vsub.f32 %v6378, %v6577
        %v6579 = vand.u32 %v6578, 4294901760
        %6580 = vmatmul.f32.gmra.mxu0 %v6579
        %v6581 = vpop.f32.mrf.mxu0
        %v6582 = vadd.f32 %v6537, %v6581
        %6583 = vdwg.mxu0
        %6584 = vmatpush.xpose.msra.mxu0 0.0
        %6585 = vmatpush.xpose.msra.mxu0 0.0
        %6586 = vmatpush.xpose.msra.mxu0 0.0
        %6587 = vmatpush.xpose.msra.mxu0 0.0
        %6588 = vmatpush.xpose.msra.mxu0 0.0
        %6589 = vmatpush.xpose.msra.mxu0 0.0
        %6590 = vmatpush.xpose.msra.mxu0 0.0
        %6591 = vmatpush.xpose.msra.mxu0 0.0
        %6592 = vmatpush.xpose.msra.mxu0 0.0
        %6593 = vmatpush.xpose.msra.mxu0 0.0
        %6594 = vmatpush.xpose.msra.mxu0 0.0
        %6595 = vmatpush.xpose.msra.mxu0 0.0
        %v6596 = vand.u32 %v6386, 4294901760
        %v6597 = vsub.f32 %v6386, %v6596
        %v6598 = vand.u32 %v6597, 4294901760
        %6599 = vmatpush.xpose.msra.mxu0 %v6598
        %v6600 = vand.u32 %v6384, 4294901760
        %v6601 = vsub.f32 %v6384, %v6600
        %v6602 = vand.u32 %v6601, 4294901760
        %6603 = vmatpush.xpose.msra.mxu0 %v6602
        %v6604 = vand.u32 %v6382, 4294901760
        %v6605 = vsub.f32 %v6382, %v6604
        %v6606 = vand.u32 %v6605, 4294901760
        %6607 = vmatpush.xpose.msra.mxu0 %v6606
        %v6608 = vand.u32 %v6380, 4294901760
        %v6609 = vsub.f32 %v6380, %v6608
        %v6610 = vand.u32 %v6609, 4294901760
        %6611 = vmatpush.xpose.msra.mxu0 %v6610
        %v6612 = vand.u32 %v6372, 4294901760
        %6613 = vmatmul.f32.gmra.mxu0 %v6612
        %v6614 = vpop.f32.mrf.mxu0
        %v6615 = vadd.f32 %v6564, %v6614
        %v6616 = vand.u32 %v6374, 4294901760
        %6617 = vmatmul.f32.gmra.mxu0 %v6616
        %v6618 = vpop.f32.mrf.mxu0
        %v6619 = vadd.f32 %v6570, %v6618
        %v6620 = vand.u32 %v6376, 4294901760
        %6621 = vmatmul.f32.gmra.mxu0 %v6620
        %v6622 = vpop.f32.mrf.mxu0
        %v6623 = vadd.f32 %v6576, %v6622
        %v6624 = vand.u32 %v6378, 4294901760
        %6625 = vmatmul.f32.gmra.mxu0 %v6624
        %v6626 = vpop.f32.mrf.mxu0
        %v6627 = vadd.f32 %v6582, %v6626
        %6628 = vdwg.mxu0
        %6629 = vmatpush.xpose.msra.mxu0 0.0
        %6630 = vmatpush.xpose.msra.mxu0 0.0
        %6631 = vmatpush.xpose.msra.mxu0 0.0
        %6632 = vmatpush.xpose.msra.mxu0 0.0
        %6633 = vmatpush.xpose.msra.mxu0 0.0
        %6634 = vmatpush.xpose.msra.mxu0 0.0
        %6635 = vmatpush.xpose.msra.mxu0 0.0
        %6636 = vmatpush.xpose.msra.mxu0 0.0
        %6637 = vmatpush.xpose.msra.mxu0 0.0
        %6638 = vmatpush.xpose.msra.mxu0 0.0
        %6639 = vmatpush.xpose.msra.mxu0 0.0
        %6640 = vmatpush.xpose.msra.mxu0 0.0
        %v6641 = vand.u32 %v6386, 4294901760
        %6642 = vmatpush.xpose.msra.mxu0 %v6641
        %v6643 = vand.u32 %v6384, 4294901760
        %6644 = vmatpush.xpose.msra.mxu0 %v6643
        %v6645 = vand.u32 %v6382, 4294901760
        %6646 = vmatpush.xpose.msra.mxu0 %v6645
        %v6647 = vand.u32 %v6380, 4294901760
        %6648 = vmatpush.xpose.msra.mxu0 %v6647
        %v6649 = vand.u32 %v6372, 4294901760
        %6650 = vmatmul.f32.gmra.mxu0 %v6649
        %v6651 = vpop.f32.mrf.mxu0
        %v6652 = vadd.f32 %v6615, %v6651
        %v6653 = vand.u32 %v6374, 4294901760
        %6654 = vmatmul.f32.gmra.mxu0 %v6653
        %v6655 = vpop.f32.mrf.mxu0
        %v6656 = vadd.f32 %v6619, %v6655
        %v6657 = vand.u32 %v6376, 4294901760
        %6658 = vmatmul.f32.gmra.mxu0 %v6657
        %v6659 = vpop.f32.mrf.mxu0
        %v6660 = vadd.f32 %v6623, %v6659
        %v6661 = vand.u32 %v6378, 4294901760
        %6662 = vmatmul.f32.gmra.mxu0 %v6661
        %v6663 = vpop.f32.mrf.mxu0
        %v6664 = vadd.f32 %v6627, %v6663
        %6665 = vdwg.mxu0
        %v6666 = vmul.f32 %v6652, %v4081
        %v6667 = vmul.f32 %v6656, %v4086
        %v6668 = vmul.f32 %v6660, %v4091
        %v6669 = vmul.f32 %v6664, %v4096
        %v6670 = vsel %vm482, %v6666, -inf
        %6671 = vmax.xlane.f32.xlu0 %v6670
        %v6672 = vpop.xlane.xlu0 %6671
        %v6673 = vsel %vm482, %v6667, -inf
        %6674 = vmax.xlane.f32.xlu0 %v6673
        %v6675 = vpop.xlane.xlu0 %6674
        %v6676 = vsel %vm482, %v6668, -inf
        %6677 = vmax.xlane.f32.xlu0 %v6676
        %v6678 = vpop.xlane.xlu0 %6677
        %v6679 = vsel %vm482, %v6669, -inf
        %6680 = vmax.xlane.f32.xlu0 %v6679
        %v6681 = vpop.xlane.xlu0 %6680
        %v6682 = vsub.f32 %v6666, %v6672
        %v6683 = vsub.f32 %v6667, %v6675
        %v6684 = vsub.f32 %v6668, %v6678
        %v6685 = vsub.f32 %v6669, %v6681
        %v6686 = vmul.f32 %v6682, 1.442695
        %v6687 = vpow.pop %v6686
        %v6688 = vmul.f32 %v6683, 1.442695
        %v6689 = vpow.pop %v6688
        %v6690 = vmul.f32 %v6684, 1.442695
        %v6691 = vpow.pop %v6690
        %v6692 = vmul.f32 %v6685, 1.442695
        %v6693 = vpow.pop %v6692
        %v6694 = vmul.f32 %v6687, %v3643
        %v6695 = vmul.f32 %v6689, %v3644
        %v6696 = vmul.f32 %v6691, %v3645
        %v6697 = vmul.f32 %v6693, %v3646
        %v6698 = vsel %vm482, %v6694, 0.0
        %6699 = vadd.xlane.f32.xlu0 %v6698
        %v6700 = vpop.xlane.xlu0 %6699
        %v6701 = vsel %vm482, %v6695, 0.0
        %6702 = vadd.xlane.f32.xlu0 %v6701
        %v6703 = vpop.xlane.xlu0 %6702
        %v6704 = vsel %vm482, %v6696, 0.0
        %6705 = vadd.xlane.f32.xlu0 %v6704
        %v6706 = vpop.xlane.xlu0 %6705
        %v6707 = vsel %vm482, %v6697, 0.0
        %6708 = vadd.xlane.f32.xlu0 %v6707
        %v6709 = vpop.xlane.xlu0 %6708
        %v6710 = vrcp.pop %v6700
        %v6711 = vmul.f32 %v6700, %v6710
        %v6712 = vsub.f32 1.0, %v6711
        %v6713 = vmul.f32 %v6710, %v6712
        %v6714 = vadd.f32 %v6710, %v6713
        %vm6715 = vweird.f32 %v6700
        %vm6716 = vweird.f32 %v6710
        %vm6717 = vmor %vm6715, %vm6716
        %v6718 = vsel %vm6717, %v6710, %v6714
        %v6719 = vand.u32 2147483647, %v6700
        %vm6720 = vcmp.eq.f32.partialorder %v6719, 8.507059e+37
        %v6721 = vand.u32 %v6700, 2147483648
        %v6722 = vor.u32 1.1754944e-38, %v6721
        %v6723 = vsel %vm6720, %v6722, %v6718
        %v6724 = vmul.f32 %v6694, %v6723
        %v6725 = vrcp.pop %v6703
        %v6726 = vmul.f32 %v6703, %v6725
        %v6727 = vsub.f32 1.0, %v6726
        %v6728 = vmul.f32 %v6725, %v6727
        %v6729 = vadd.f32 %v6725, %v6728
        %vm6730 = vweird.f32 %v6703
        %vm6731 = vweird.f32 %v6725
        %vm6732 = vmor %vm6730, %vm6731
        %v6733 = vsel %vm6732, %v6725, %v6729
        %v6734 = vand.u32 2147483647, %v6703
        %vm6735 = vcmp.eq.f32.partialorder %v6734, 8.507059e+37
        %v6736 = vand.u32 %v6703, 2147483648
        %v6737 = vor.u32 1.1754944e-38, %v6736
        %v6738 = vsel %vm6735, %v6737, %v6733
        %v6739 = vmul.f32 %v6695, %v6738
        %v6740 = vrcp.pop %v6706
        %v6741 = vmul.f32 %v6706, %v6740
        %v6742 = vsub.f32 1.0, %v6741
        %v6743 = vmul.f32 %v6740, %v6742
        %v6744 = vadd.f32 %v6740, %v6743
        %vm6745 = vweird.f32 %v6706
        %vm6746 = vweird.f32 %v6740
        %vm6747 = vmor %vm6745, %vm6746
        %v6748 = vsel %vm6747, %v6740, %v6744
        %v6749 = vand.u32 2147483647, %v6706
        %vm6750 = vcmp.eq.f32.partialorder %v6749, 8.507059e+37
        %v6751 = vand.u32 %v6706, 2147483648
        %v6752 = vor.u32 1.1754944e-38, %v6751
        %v6753 = vsel %vm6750, %v6752, %v6748
        %v6754 = vmul.f32 %v6696, %v6753
        %v6755 = vrcp.pop %v6709
        %v6756 = vmul.f32 %v6709, %v6755
        %v6757 = vsub.f32 1.0, %v6756
        %v6758 = vmul.f32 %v6755, %v6757
        %v6759 = vadd.f32 %v6755, %v6758
        %vm6760 = vweird.f32 %v6709
        %vm6761 = vweird.f32 %v6755
        %vm6762 = vmor %vm6760, %vm6761
        %v6763 = vsel %vm6762, %v6755, %v6759
        %v6764 = vand.u32 2147483647, %v6709
        %vm6765 = vcmp.eq.f32.partialorder %v6764, 8.507059e+37
        %v6766 = vand.u32 %v6709, 2147483648
        %v6767 = vor.u32 1.1754944e-38, %v6766
        %v6768 = vsel %vm6765, %v6767, %v6763
        %v6769 = vmul.f32 %v6697, %v6768
        %6774 = vrot.lane.b32.xlu0 %v3632, 64
        %v6775 = vpop.permute.xlu0 %6774
        %6776 = vrot.lane.b32.xlu0 %v3634, 64
        %v6777 = vpop.permute.xlu0 %6776
        %6778 = vrot.lane.b32.xlu0 %v3636, 64
        %v6779 = vpop.permute.xlu0 %6778
        %6780 = vrot.lane.b32.xlu0 %v3638, 64
        %v6781 = vpop.permute.xlu0 %6780
        %v6787 = vsel %vm482, %v6724, 0
        %v6790 = vsel %vm482, %v6739, 0
        %v6793 = vsel %vm482, %v6754, 0
        %v6796 = vsel %vm482, %v6769, 0
        %6798 = vmatpush.msra.mxu0 0.0
        %6799 = vmatpush.msra.mxu0 0.0
        %6800 = vmatpush.msra.mxu0 0.0
        %6801 = vmatpush.msra.mxu0 0.0
        %6802 = vmatpush.msra.mxu0 0.0
        %6803 = vmatpush.msra.mxu0 0.0
        %6804 = vmatpush.msra.mxu0 0.0
        %6805 = vmatpush.msra.mxu0 0.0
        %6806 = vmatpush.msra.mxu0 0.0
        %6807 = vmatpush.msra.mxu0 0.0
        %6808 = vmatpush.msra.mxu0 0.0
        %6809 = vmatpush.msra.mxu0 0.0
        %v6810 = vand.u32 %v6781, 4294901760
        %6811 = vmatpush.msra.mxu0 %v6810
        %v6812 = vand.u32 %v6779, 4294901760
        %6813 = vmatpush.msra.mxu0 %v6812
        %v6814 = vand.u32 %v6777, 4294901760
        %6815 = vmatpush.msra.mxu0 %v6814
        %v6816 = vand.u32 %v6775, 4294901760
        %6817 = vmatpush.msra.mxu0 %v6816
        %v6818 = vand.u32 %v6787, 4294901760
        %v6819 = vsub.f32 %v6787, %v6818
        %v6820 = vand.u32 %v6819, 4294901760
        %v6821 = vsub.f32 %v6819, %v6820
        %v6822 = vand.u32 %v6821, 4294901760
        %6823 = vmatmul.f32.gmra.mxu0 %v6822
        %v6824 = vpop.f32.mrf.mxu0
        %v6825 = vadd.f32 0.0, %v6824
        %v6826 = vand.u32 %v6790, 4294901760
        %v6827 = vsub.f32 %v6790, %v6826
        %v6828 = vand.u32 %v6827, 4294901760
        %v6829 = vsub.f32 %v6827, %v6828
        %v6830 = vand.u32 %v6829, 4294901760
        %6831 = vmatmul.f32.gmra.mxu0 %v6830
        %v6832 = vpop.f32.mrf.mxu0
        %v6833 = vadd.f32 0.0, %v6832
        %v6834 = vand.u32 %v6793, 4294901760
        %v6835 = vsub.f32 %v6793, %v6834
        %v6836 = vand.u32 %v6835, 4294901760
        %v6837 = vsub.f32 %v6835, %v6836
        %v6838 = vand.u32 %v6837, 4294901760
        %6839 = vmatmul.f32.gmra.mxu0 %v6838
        %v6840 = vpop.f32.mrf.mxu0
        %v6841 = vadd.f32 0.0, %v6840
        %v6842 = vand.u32 %v6796, 4294901760
        %v6843 = vsub.f32 %v6796, %v6842
        %v6844 = vand.u32 %v6843, 4294901760
        %v6845 = vsub.f32 %v6843, %v6844
        %v6846 = vand.u32 %v6845, 4294901760
        %6847 = vmatmul.f32.gmra.mxu0 %v6846
        %v6848 = vpop.f32.mrf.mxu0
        %v6849 = vadd.f32 0.0, %v6848
        %6850 = vdwg.mxu0
        %6851 = vmatpush.msra.mxu0 0.0
        %6852 = vmatpush.msra.mxu0 0.0
        %6853 = vmatpush.msra.mxu0 0.0
        %6854 = vmatpush.msra.mxu0 0.0
        %6855 = vmatpush.msra.mxu0 0.0
        %6856 = vmatpush.msra.mxu0 0.0
        %6857 = vmatpush.msra.mxu0 0.0
        %6858 = vmatpush.msra.mxu0 0.0
        %6859 = vmatpush.msra.mxu0 0.0
        %6860 = vmatpush.msra.mxu0 0.0
        %6861 = vmatpush.msra.mxu0 0.0
        %6862 = vmatpush.msra.mxu0 0.0
        %v6863 = vand.u32 %v6781, 4294901760
        %v6864 = vsub.f32 %v6781, %v6863
        %v6865 = vand.u32 %v6864, 4294901760
        %v6866 = vsub.f32 %v6864, %v6865
        %v6867 = vand.u32 %v6866, 4294901760
        %6868 = vmatpush.msra.mxu0 %v6867
        %v6869 = vand.u32 %v6779, 4294901760
        %v6870 = vsub.f32 %v6779, %v6869
        %v6871 = vand.u32 %v6870, 4294901760
        %v6872 = vsub.f32 %v6870, %v6871
        %v6873 = vand.u32 %v6872, 4294901760
        %6874 = vmatpush.msra.mxu0 %v6873
        %v6875 = vand.u32 %v6777, 4294901760
        %v6876 = vsub.f32 %v6777, %v6875
        %v6877 = vand.u32 %v6876, 4294901760
        %v6878 = vsub.f32 %v6876, %v6877
        %v6879 = vand.u32 %v6878, 4294901760
        %6880 = vmatpush.msra.mxu0 %v6879
        %v6881 = vand.u32 %v6775, 4294901760
        %v6882 = vsub.f32 %v6775, %v6881
        %v6883 = vand.u32 %v6882, 4294901760
        %v6884 = vsub.f32 %v6882, %v6883
        %v6885 = vand.u32 %v6884, 4294901760
        %6886 = vmatpush.msra.mxu0 %v6885
        %v6887 = vand.u32 %v6787, 4294901760
        %6888 = vmatmul.f32.gmra.mxu0 %v6887
        %v6889 = vpop.f32.mrf.mxu0
        %v6890 = vadd.f32 %v6825, %v6889
        %v6891 = vand.u32 %v6790, 4294901760
        %6892 = vmatmul.f32.gmra.mxu0 %v6891
        %v6893 = vpop.f32.mrf.mxu0
        %v6894 = vadd.f32 %v6833, %v6893
        %v6895 = vand.u32 %v6793, 4294901760
        %6896 = vmatmul.f32.gmra.mxu0 %v6895
        %v6897 = vpop.f32.mrf.mxu0
        %v6898 = vadd.f32 %v6841, %v6897
        %v6899 = vand.u32 %v6796, 4294901760
        %6900 = vmatmul.f32.gmra.mxu0 %v6899
        %v6901 = vpop.f32.mrf.mxu0
        %v6902 = vadd.f32 %v6849, %v6901
        %6903 = vdwg.mxu0
        %6904 = vmatpush.msra.mxu0 0.0
        %6905 = vmatpush.msra.mxu0 0.0
        %6906 = vmatpush.msra.mxu0 0.0
        %6907 = vmatpush.msra.mxu0 0.0
        %6908 = vmatpush.msra.mxu0 0.0
        %6909 = vmatpush.msra.mxu0 0.0
        %6910 = vmatpush.msra.mxu0 0.0
        %6911 = vmatpush.msra.mxu0 0.0
        %6912 = vmatpush.msra.mxu0 0.0
        %6913 = vmatpush.msra.mxu0 0.0
        %6914 = vmatpush.msra.mxu0 0.0
        %6915 = vmatpush.msra.mxu0 0.0
        %v6916 = vand.u32 %v6781, 4294901760
        %v6917 = vsub.f32 %v6781, %v6916
        %6918 = vmatpush.msra.mxu0 %v6917
        %v6919 = vand.u32 %v6779, 4294901760
        %v6920 = vsub.f32 %v6779, %v6919
        %6921 = vmatpush.msra.mxu0 %v6920
        %v6922 = vand.u32 %v6777, 4294901760
        %v6923 = vsub.f32 %v6777, %v6922
        %6924 = vmatpush.msra.mxu0 %v6923
        %v6925 = vand.u32 %v6775, 4294901760
        %v6926 = vsub.f32 %v6775, %v6925
        %6927 = vmatpush.msra.mxu0 %v6926
        %v6928 = vand.u32 %v6787, 4294901760
        %v6929 = vsub.f32 %v6787, %v6928
        %6930 = vmatmul.f32.gmra.mxu0 %v6929
        %v6931 = vpop.f32.mrf.mxu0
        %v6932 = vadd.f32 %v6890, %v6931
        %v6933 = vand.u32 %v6790, 4294901760
        %v6934 = vsub.f32 %v6790, %v6933
        %6935 = vmatmul.f32.gmra.mxu0 %v6934
        %v6936 = vpop.f32.mrf.mxu0
        %v6937 = vadd.f32 %v6894, %v6936
        %v6938 = vand.u32 %v6793, 4294901760
        %v6939 = vsub.f32 %v6793, %v6938
        %6940 = vmatmul.f32.gmra.mxu0 %v6939
        %v6941 = vpop.f32.mrf.mxu0
        %v6942 = vadd.f32 %v6898, %v6941
        %v6943 = vand.u32 %v6796, 4294901760
        %v6944 = vsub.f32 %v6796, %v6943
        %6945 = vmatmul.f32.gmra.mxu0 %v6944
        %v6946 = vpop.f32.mrf.mxu0
        %v6947 = vadd.f32 %v6902, %v6946
        %6948 = vdwg.mxu0
        %6949 = vmatpush.msra.mxu0 0.0
        %6950 = vmatpush.msra.mxu0 0.0
        %6951 = vmatpush.msra.mxu0 0.0
        %6952 = vmatpush.msra.mxu0 0.0
        %6953 = vmatpush.msra.mxu0 0.0
        %6954 = vmatpush.msra.mxu0 0.0
        %6955 = vmatpush.msra.mxu0 0.0
        %6956 = vmatpush.msra.mxu0 0.0
        %6957 = vmatpush.msra.mxu0 0.0
        %6958 = vmatpush.msra.mxu0 0.0
        %6959 = vmatpush.msra.mxu0 0.0
        %6960 = vmatpush.msra.mxu0 0.0
        %v6961 = vand.u32 %v6781, 4294901760
        %6962 = vmatpush.msra.mxu0 %v6961
        %v6963 = vand.u32 %v6779, 4294901760
        %6964 = vmatpush.msra.mxu0 %v6963
        %v6965 = vand.u32 %v6777, 4294901760
        %6966 = vmatpush.msra.mxu0 %v6965
        %v6967 = vand.u32 %v6775, 4294901760
        %6968 = vmatpush.msra.mxu0 %v6967
        %v6969 = vand.u32 %v6787, 4294901760
        %v6970 = vsub.f32 %v6787, %v6969
        %v6971 = vand.u32 %v6970, 4294901760
        %6972 = vmatmul.f32.gmra.mxu0 %v6971
        %v6973 = vpop.f32.mrf.mxu0
        %v6974 = vadd.f32 %v6932, %v6973
        %v6975 = vand.u32 %v6790, 4294901760
        %v6976 = vsub.f32 %v6790, %v6975
        %v6977 = vand.u32 %v6976, 4294901760
        %6978 = vmatmul.f32.gmra.mxu0 %v6977
        %v6979 = vpop.f32.mrf.mxu0
        %v6980 = vadd.f32 %v6937, %v6979
        %v6981 = vand.u32 %v6793, 4294901760
        %v6982 = vsub.f32 %v6793, %v6981
        %v6983 = vand.u32 %v6982, 4294901760
        %6984 = vmatmul.f32.gmra.mxu0 %v6983
        %v6985 = vpop.f32.mrf.mxu0
        %v6986 = vadd.f32 %v6942, %v6985
        %v6987 = vand.u32 %v6796, 4294901760
        %v6988 = vsub.f32 %v6796, %v6987
        %v6989 = vand.u32 %v6988, 4294901760
        %6990 = vmatmul.f32.gmra.mxu0 %v6989
        %v6991 = vpop.f32.mrf.mxu0
        %v6992 = vadd.f32 %v6947, %v6991
        %6993 = vdwg.mxu0
        %6994 = vmatpush.msra.mxu0 0.0
        %6995 = vmatpush.msra.mxu0 0.0
        %6996 = vmatpush.msra.mxu0 0.0
        %6997 = vmatpush.msra.mxu0 0.0
        %6998 = vmatpush.msra.mxu0 0.0
        %6999 = vmatpush.msra.mxu0 0.0
        %7000 = vmatpush.msra.mxu0 0.0
        %7001 = vmatpush.msra.mxu0 0.0
        %7002 = vmatpush.msra.mxu0 0.0
        %7003 = vmatpush.msra.mxu0 0.0
        %7004 = vmatpush.msra.mxu0 0.0
        %7005 = vmatpush.msra.mxu0 0.0
        %v7006 = vand.u32 %v6781, 4294901760
        %v7007 = vsub.f32 %v6781, %v7006
        %v7008 = vand.u32 %v7007, 4294901760
        %7009 = vmatpush.msra.mxu0 %v7008
        %v7010 = vand.u32 %v6779, 4294901760
        %v7011 = vsub.f32 %v6779, %v7010
        %v7012 = vand.u32 %v7011, 4294901760
        %7013 = vmatpush.msra.mxu0 %v7012
        %v7014 = vand.u32 %v6777, 4294901760
        %v7015 = vsub.f32 %v6777, %v7014
        %v7016 = vand.u32 %v7015, 4294901760
        %7017 = vmatpush.msra.mxu0 %v7016
        %v7018 = vand.u32 %v6775, 4294901760
        %v7019 = vsub.f32 %v6775, %v7018
        %v7020 = vand.u32 %v7019, 4294901760
        %7021 = vmatpush.msra.mxu0 %v7020
        %v7022 = vand.u32 %v6787, 4294901760
        %7023 = vmatmul.f32.gmra.mxu0 %v7022
        %v7024 = vpop.f32.mrf.mxu0
        %v7025 = vadd.f32 %v6974, %v7024
        %v7026 = vand.u32 %v6790, 4294901760
        %7027 = vmatmul.f32.gmra.mxu0 %v7026
        %v7028 = vpop.f32.mrf.mxu0
        %v7029 = vadd.f32 %v6980, %v7028
        %v7030 = vand.u32 %v6793, 4294901760
        %7031 = vmatmul.f32.gmra.mxu0 %v7030
        %v7032 = vpop.f32.mrf.mxu0
        %v7033 = vadd.f32 %v6986, %v7032
        %v7034 = vand.u32 %v6796, 4294901760
        %7035 = vmatmul.f32.gmra.mxu0 %v7034
        %v7036 = vpop.f32.mrf.mxu0
        %v7037 = vadd.f32 %v6992, %v7036
        %7038 = vdwg.mxu0
        %7039 = vmatpush.msra.mxu0 0.0
        %7040 = vmatpush.msra.mxu0 0.0
        %7041 = vmatpush.msra.mxu0 0.0
        %7042 = vmatpush.msra.mxu0 0.0
        %7043 = vmatpush.msra.mxu0 0.0
        %7044 = vmatpush.msra.mxu0 0.0
        %7045 = vmatpush.msra.mxu0 0.0
        %7046 = vmatpush.msra.mxu0 0.0
        %7047 = vmatpush.msra.mxu0 0.0
        %7048 = vmatpush.msra.mxu0 0.0
        %7049 = vmatpush.msra.mxu0 0.0
        %7050 = vmatpush.msra.mxu0 0.0
        %v7051 = vand.u32 %v6781, 4294901760
        %7052 = vmatpush.msra.mxu0 %v7051
        %v7053 = vand.u32 %v6779, 4294901760
        %7054 = vmatpush.msra.mxu0 %v7053
        %v7055 = vand.u32 %v6777, 4294901760
        %7056 = vmatpush.msra.mxu0 %v7055
        %v7057 = vand.u32 %v6775, 4294901760
        %7058 = vmatpush.msra.mxu0 %v7057
        %v7059 = vand.u32 %v6787, 4294901760
        %7060 = vmatmul.f32.gmra.mxu0 %v7059
        %v7061 = vpop.f32.mrf.mxu0
        %v7062 = vadd.f32 %v7025, %v7061
        %v7063 = vand.u32 %v6790, 4294901760
        %7064 = vmatmul.f32.gmra.mxu0 %v7063
        %v7065 = vpop.f32.mrf.mxu0
        %v7066 = vadd.f32 %v7029, %v7065
        %v7067 = vand.u32 %v6793, 4294901760
        %7068 = vmatmul.f32.gmra.mxu0 %v7067
        %v7069 = vpop.f32.mrf.mxu0
        %v7070 = vadd.f32 %v7033, %v7069
        %v7071 = vand.u32 %v6796, 4294901760
        %7072 = vmatmul.f32.gmra.mxu0 %v7071
        %v7073 = vpop.f32.mrf.mxu0
        %v7074 = vadd.f32 %v7037, %v7073
        %7075 = vdwg.mxu0
        %7080 = vrot.lane.b32.xlu0 %v5358, 64
        %v7081 = vpop.permute.xlu0 %7080
        %7082 = vrot.lane.b32.xlu0 %v5362, 64
        %v7083 = vpop.permute.xlu0 %7082
        %7084 = vrot.lane.b32.xlu0 %v5366, 64
        %v7085 = vpop.permute.xlu0 %7084
        %7086 = vrot.lane.b32.xlu0 %v5370, 64
        %v7087 = vpop.permute.xlu0 %7086
        %7096 = vrot.lane.b32.xlu0 %v7062, 64
        %v7097 = vpop.permute.xlu0 %7096
        %7098 = vrot.lane.b32.xlu0 %v7066, 64
        %v7099 = vpop.permute.xlu0 %7098
        %7100 = vrot.lane.b32.xlu0 %v7070, 64
        %v7101 = vpop.permute.xlu0 %7100
        %7102 = vrot.lane.b32.xlu0 %v7074, 64
        %v7103 = vpop.permute.xlu0 %7102
        %v7108 = vsel %vm3651, %v4478, %v7081
        %v7109 = vsel %vm3651, %v4482, %v7083
        %v7110 = vsel %vm3651, %v4486, %v7085
        %v7111 = vsel %vm3651, %v4490, %v7087
        %v7112 = vsel %vm3651, %v6182, %v7097
        %v7113 = vsel %vm3651, %v6186, %v7099
        %v7114 = vsel %vm3651, %v6190, %v7101
        %v7115 = vsel %vm3651, %v6194, %v7103
        %v7116 = vld [vmem:[%s8] sm:$0xff]
        %v7117 = vld [vmem:[%s8 + $0x8] sm:$0xff]
        %v7118 = vld [vmem:[%s8 + $0x10] sm:$0xff]
        %v7119 = vld [vmem:[%s8 + $0x18] sm:$0xff]
        %v7120 = vld [vmem:[%s9] sm:$0xff]
        %v7121 = vld [vmem:[%s9 + $0x8] sm:$0xff]
        %v7122 = vld [vmem:[%s9 + $0x10] sm:$0xff]
        %v7123 = vld [vmem:[%s9 + $0x18] sm:$0xff]
        %7125 = vset.pattern.permute.xlu0 0
        %7126 = vperm.xlu0 %7125, %v7120
        %v7127 = vpop.permute.xlu0 %7126
        %7130 = vset.pattern.permute.xlu0 0
        %7131 = vperm.xlu0 %7130, %v7121
        %v7132 = vpop.permute.xlu0 %7131
        %7135 = vset.pattern.permute.xlu0 0
        %7136 = vperm.xlu0 %7135, %v7122
        %v7137 = vpop.permute.xlu0 %7136
        %7140 = vset.pattern.permute.xlu0 0
        %7141 = vperm.xlu0 %7140, %v7123
        %v7142 = vpop.permute.xlu0 %7141
        %v7145 = vsel %vm482, %v7116, 0
        %v7148 = vsel %vm482, %v7117, 0
        %v7151 = vsel %vm482, %v7118, 0
        %v7154 = vsel %vm482, %v7119, 0
        %7156 = vmatpush.msra.mxu0 0.0
        %7157 = vmatpush.msra.mxu0 0.0
        %7158 = vmatpush.msra.mxu0 0.0
        %7159 = vmatpush.msra.mxu0 0.0
        %7160 = vmatpush.msra.mxu0 0.0
        %7161 = vmatpush.msra.mxu0 0.0
        %7162 = vmatpush.msra.mxu0 0.0
        %7163 = vmatpush.msra.mxu0 0.0
        %7164 = vmatpush.msra.mxu0 0.0
        %7165 = vmatpush.msra.mxu0 0.0
        %7166 = vmatpush.msra.mxu0 0.0
        %7167 = vmatpush.msra.mxu0 0.0
        %v7168 = vand.u32 %v7111, 4294901760
        %7169 = vmatpush.msra.mxu0 %v7168
        %v7170 = vand.u32 %v7110, 4294901760
        %7171 = vmatpush.msra.mxu0 %v7170
        %v7172 = vand.u32 %v7109, 4294901760
        %7173 = vmatpush.msra.mxu0 %v7172
        %v7174 = vand.u32 %v7108, 4294901760
        %7175 = vmatpush.msra.mxu0 %v7174
        %v7176 = vand.u32 %v7145, 4294901760
        %v7177 = vsub.f32 %v7145, %v7176
        %v7178 = vand.u32 %v7177, 4294901760
        %v7179 = vsub.f32 %v7177, %v7178
        %v7180 = vand.u32 %v7179, 4294901760
        %7181 = vmatmul.f32.gmra.mxu0 %v7180
        %v7182 = vpop.f32.mrf.mxu0
        %v7183 = vadd.f32 %v7127, %v7182
        %v7184 = vand.u32 %v7148, 4294901760
        %v7185 = vsub.f32 %v7148, %v7184
        %v7186 = vand.u32 %v7185, 4294901760
        %v7187 = vsub.f32 %v7185, %v7186
        %v7188 = vand.u32 %v7187, 4294901760
        %7189 = vmatmul.f32.gmra.mxu0 %v7188
        %v7190 = vpop.f32.mrf.mxu0
        %v7191 = vadd.f32 %v7132, %v7190
        %v7192 = vand.u32 %v7151, 4294901760
        %v7193 = vsub.f32 %v7151, %v7192
        %v7194 = vand.u32 %v7193, 4294901760
        %v7195 = vsub.f32 %v7193, %v7194
        %v7196 = vand.u32 %v7195, 4294901760
        %7197 = vmatmul.f32.gmra.mxu0 %v7196
        %v7198 = vpop.f32.mrf.mxu0
        %v7199 = vadd.f32 %v7137, %v7198
        %v7200 = vand.u32 %v7154, 4294901760
        %v7201 = vsub.f32 %v7154, %v7200
        %v7202 = vand.u32 %v7201, 4294901760
        %v7203 = vsub.f32 %v7201, %v7202
        %v7204 = vand.u32 %v7203, 4294901760
        %7205 = vmatmul.f32.gmra.mxu0 %v7204
        %v7206 = vpop.f32.mrf.mxu0
        %v7207 = vadd.f32 %v7142, %v7206
        %7208 = vdwg.mxu0
        %7209 = vmatpush.msra.mxu0 0.0
        %7210 = vmatpush.msra.mxu0 0.0
        %7211 = vmatpush.msra.mxu0 0.0
        %7212 = vmatpush.msra.mxu0 0.0
        %7213 = vmatpush.msra.mxu0 0.0
        %7214 = vmatpush.msra.mxu0 0.0
        %7215 = vmatpush.msra.mxu0 0.0
        %7216 = vmatpush.msra.mxu0 0.0
        %7217 = vmatpush.msra.mxu0 0.0
        %7218 = vmatpush.msra.mxu0 0.0
        %7219 = vmatpush.msra.mxu0 0.0
        %7220 = vmatpush.msra.mxu0 0.0
        %v7221 = vand.u32 %v7111, 4294901760
        %v7222 = vsub.f32 %v7111, %v7221
        %v7223 = vand.u32 %v7222, 4294901760
        %v7224 = vsub.f32 %v7222, %v7223
        %v7225 = vand.u32 %v7224, 4294901760
        %7226 = vmatpush.msra.mxu0 %v7225
        %v7227 = vand.u32 %v7110, 4294901760
        %v7228 = vsub.f32 %v7110, %v7227
        %v7229 = vand.u32 %v7228, 4294901760
        %v7230 = vsub.f32 %v7228, %v7229
        %v7231 = vand.u32 %v7230, 4294901760
        %7232 = vmatpush.msra.mxu0 %v7231
        %v7233 = vand.u32 %v7109, 4294901760
        %v7234 = vsub.f32 %v7109, %v7233
        %v7235 = vand.u32 %v7234, 4294901760
        %v7236 = vsub.f32 %v7234, %v7235
        %v7237 = vand.u32 %v7236, 4294901760
        %7238 = vmatpush.msra.mxu0 %v7237
        %v7239 = vand.u32 %v7108, 4294901760
        %v7240 = vsub.f32 %v7108, %v7239
        %v7241 = vand.u32 %v7240, 4294901760
        %v7242 = vsub.f32 %v7240, %v7241
        %v7243 = vand.u32 %v7242, 4294901760
        %7244 = vmatpush.msra.mxu0 %v7243
        %v7245 = vand.u32 %v7145, 4294901760
        %7246 = vmatmul.f32.gmra.mxu0 %v7245
        %v7247 = vpop.f32.mrf.mxu0
        %v7248 = vadd.f32 %v7183, %v7247
        %v7249 = vand.u32 %v7148, 4294901760
        %7250 = vmatmul.f32.gmra.mxu0 %v7249
        %v7251 = vpop.f32.mrf.mxu0
        %v7252 = vadd.f32 %v7191, %v7251
        %v7253 = vand.u32 %v7151, 4294901760
        %7254 = vmatmul.f32.gmra.mxu0 %v7253
        %v7255 = vpop.f32.mrf.mxu0
        %v7256 = vadd.f32 %v7199, %v7255
        %v7257 = vand.u32 %v7154, 4294901760
        %7258 = vmatmul.f32.gmra.mxu0 %v7257
        %v7259 = vpop.f32.mrf.mxu0
        %v7260 = vadd.f32 %v7207, %v7259
        %7261 = vdwg.mxu0
        %7262 = vmatpush.msra.mxu0 0.0
        %7263 = vmatpush.msra.mxu0 0.0
        %7264 = vmatpush.msra.mxu0 0.0
        %7265 = vmatpush.msra.mxu0 0.0
        %7266 = vmatpush.msra.mxu0 0.0
        %7267 = vmatpush.msra.mxu0 0.0
        %7268 = vmatpush.msra.mxu0 0.0
        %7269 = vmatpush.msra.mxu0 0.0
        %7270 = vmatpush.msra.mxu0 0.0
        %7271 = vmatpush.msra.mxu0 0.0
        %7272 = vmatpush.msra.mxu0 0.0
        %7273 = vmatpush.msra.mxu0 0.0
        %v7274 = vand.u32 %v7111, 4294901760
        %v7275 = vsub.f32 %v7111, %v7274
        %7276 = vmatpush.msra.mxu0 %v7275
        %v7277 = vand.u32 %v7110, 4294901760
        %v7278 = vsub.f32 %v7110, %v7277
        %7279 = vmatpush.msra.mxu0 %v7278
        %v7280 = vand.u32 %v7109, 4294901760
        %v7281 = vsub.f32 %v7109, %v7280
        %7282 = vmatpush.msra.mxu0 %v7281
        %v7283 = vand.u32 %v7108, 4294901760
        %v7284 = vsub.f32 %v7108, %v7283
        %7285 = vmatpush.msra.mxu0 %v7284
        %v7286 = vand.u32 %v7145, 4294901760
        %v7287 = vsub.f32 %v7145, %v7286
        %7288 = vmatmul.f32.gmra.mxu0 %v7287
        %v7289 = vpop.f32.mrf.mxu0
        %v7290 = vadd.f32 %v7248, %v7289
        %v7291 = vand.u32 %v7148, 4294901760
        %v7292 = vsub.f32 %v7148, %v7291
        %7293 = vmatmul.f32.gmra.mxu0 %v7292
        %v7294 = vpop.f32.mrf.mxu0
        %v7295 = vadd.f32 %v7252, %v7294
        %v7296 = vand.u32 %v7151, 4294901760
        %v7297 = vsub.f32 %v7151, %v7296
        %7298 = vmatmul.f32.gmra.mxu0 %v7297
        %v7299 = vpop.f32.mrf.mxu0
        %v7300 = vadd.f32 %v7256, %v7299
        %v7301 = vand.u32 %v7154, 4294901760
        %v7302 = vsub.f32 %v7154, %v7301
        %7303 = vmatmul.f32.gmra.mxu0 %v7302
        %v7304 = vpop.f32.mrf.mxu0
        %v7305 = vadd.f32 %v7260, %v7304
        %7306 = vdwg.mxu0
        %7307 = vmatpush.msra.mxu0 0.0
        %7308 = vmatpush.msra.mxu0 0.0
        %7309 = vmatpush.msra.mxu0 0.0
        %7310 = vmatpush.msra.mxu0 0.0
        %7311 = vmatpush.msra.mxu0 0.0
        %7312 = vmatpush.msra.mxu0 0.0
        %7313 = vmatpush.msra.mxu0 0.0
        %7314 = vmatpush.msra.mxu0 0.0
        %7315 = vmatpush.msra.mxu0 0.0
        %7316 = vmatpush.msra.mxu0 0.0
        %7317 = vmatpush.msra.mxu0 0.0
        %7318 = vmatpush.msra.mxu0 0.0
        %v7319 = vand.u32 %v7111, 4294901760
        %7320 = vmatpush.msra.mxu0 %v7319
        %v7321 = vand.u32 %v7110, 4294901760
        %7322 = vmatpush.msra.mxu0 %v7321
        %v7323 = vand.u32 %v7109, 4294901760
        %7324 = vmatpush.msra.mxu0 %v7323
        %v7325 = vand.u32 %v7108, 4294901760
        %7326 = vmatpush.msra.mxu0 %v7325
        %v7327 = vand.u32 %v7145, 4294901760
        %v7328 = vsub.f32 %v7145, %v7327
        %v7329 = vand.u32 %v7328, 4294901760
        %7330 = vmatmul.f32.gmra.mxu0 %v7329
        %v7331 = vpop.f32.mrf.mxu0
        %v7332 = vadd.f32 %v7290, %v7331
        %v7333 = vand.u32 %v7148, 4294901760
        %v7334 = vsub.f32 %v7148, %v7333
        %v7335 = vand.u32 %v7334, 4294901760
        %7336 = vmatmul.f32.gmra.mxu0 %v7335
        %v7337 = vpop.f32.mrf.mxu0
        %v7338 = vadd.f32 %v7295, %v7337
        %v7339 = vand.u32 %v7151, 4294901760
        %v7340 = vsub.f32 %v7151, %v7339
        %v7341 = vand.u32 %v7340, 4294901760
        %7342 = vmatmul.f32.gmra.mxu0 %v7341
        %v7343 = vpop.f32.mrf.mxu0
        %v7344 = vadd.f32 %v7300, %v7343
        %v7345 = vand.u32 %v7154, 4294901760
        %v7346 = vsub.f32 %v7154, %v7345
        %v7347 = vand.u32 %v7346, 4294901760
        %7348 = vmatmul.f32.gmra.mxu0 %v7347
        %v7349 = vpop.f32.mrf.mxu0
        %v7350 = vadd.f32 %v7305, %v7349
        %7351 = vdwg.mxu0
        %7352 = vmatpush.msra.mxu0 0.0
        %7353 = vmatpush.msra.mxu0 0.0
        %7354 = vmatpush.msra.mxu0 0.0
        %7355 = vmatpush.msra.mxu0 0.0
        %7356 = vmatpush.msra.mxu0 0.0
        %7357 = vmatpush.msra.mxu0 0.0
        %7358 = vmatpush.msra.mxu0 0.0
        %7359 = vmatpush.msra.mxu0 0.0
        %7360 = vmatpush.msra.mxu0 0.0
        %7361 = vmatpush.msra.mxu0 0.0
        %7362 = vmatpush.msra.mxu0 0.0
        %7363 = vmatpush.msra.mxu0 0.0
        %v7364 = vand.u32 %v7111, 4294901760
        %v7365 = vsub.f32 %v7111, %v7364
        %v7366 = vand.u32 %v7365, 4294901760
        %7367 = vmatpush.msra.mxu0 %v7366
        %v7368 = vand.u32 %v7110, 4294901760
        %v7369 = vsub.f32 %v7110, %v7368
        %v7370 = vand.u32 %v7369, 4294901760
        %7371 = vmatpush.msra.mxu0 %v7370
        %v7372 = vand.u32 %v7109, 4294901760
        %v7373 = vsub.f32 %v7109, %v7372
        %v7374 = vand.u32 %v7373, 4294901760
        %7375 = vmatpush.msra.mxu0 %v7374
        %v7376 = vand.u32 %v7108, 4294901760
        %v7377 = vsub.f32 %v7108, %v7376
        %v7378 = vand.u32 %v7377, 4294901760
        %7379 = vmatpush.msra.mxu0 %v7378
        %v7380 = vand.u32 %v7145, 4294901760
        %7381 = vmatmul.f32.gmra.mxu0 %v7380
        %v7382 = vpop.f32.mrf.mxu0
        %v7383 = vadd.f32 %v7332, %v7382
        %v7384 = vand.u32 %v7148, 4294901760
        %7385 = vmatmul.f32.gmra.mxu0 %v7384
        %v7386 = vpop.f32.mrf.mxu0
        %v7387 = vadd.f32 %v7338, %v7386
        %v7388 = vand.u32 %v7151, 4294901760
        %7389 = vmatmul.f32.gmra.mxu0 %v7388
        %v7390 = vpop.f32.mrf.mxu0
        %v7391 = vadd.f32 %v7344, %v7390
        %v7392 = vand.u32 %v7154, 4294901760
        %7393 = vmatmul.f32.gmra.mxu0 %v7392
        %v7394 = vpop.f32.mrf.mxu0
        %v7395 = vadd.f32 %v7350, %v7394
        %7396 = vdwg.mxu0
        %7397 = vmatpush.msra.mxu0 0.0
        %7398 = vmatpush.msra.mxu0 0.0
        %7399 = vmatpush.msra.mxu0 0.0
        %7400 = vmatpush.msra.mxu0 0.0
        %7401 = vmatpush.msra.mxu0 0.0
        %7402 = vmatpush.msra.mxu0 0.0
        %7403 = vmatpush.msra.mxu0 0.0
        %7404 = vmatpush.msra.mxu0 0.0
        %7405 = vmatpush.msra.mxu0 0.0
        %7406 = vmatpush.msra.mxu0 0.0
        %7407 = vmatpush.msra.mxu0 0.0
        %7408 = vmatpush.msra.mxu0 0.0
        %v7409 = vand.u32 %v7111, 4294901760
        %7410 = vmatpush.msra.mxu0 %v7409
        %v7411 = vand.u32 %v7110, 4294901760
        %7412 = vmatpush.msra.mxu0 %v7411
        %v7413 = vand.u32 %v7109, 4294901760
        %7414 = vmatpush.msra.mxu0 %v7413
        %v7415 = vand.u32 %v7108, 4294901760
        %7416 = vmatpush.msra.mxu0 %v7415
        %v7417 = vand.u32 %v7145, 4294901760
        %7418 = vmatmul.f32.gmra.mxu0 %v7417
        %v7419 = vpop.f32.mrf.mxu0
        %v7420 = vadd.f32 %v7383, %v7419
        %v7421 = vand.u32 %v7148, 4294901760
        %7422 = vmatmul.f32.gmra.mxu0 %v7421
        %v7423 = vpop.f32.mrf.mxu0
        %v7424 = vadd.f32 %v7387, %v7423
        %v7425 = vand.u32 %v7151, 4294901760
        %7426 = vmatmul.f32.gmra.mxu0 %v7425
        %v7427 = vpop.f32.mrf.mxu0
        %v7428 = vadd.f32 %v7391, %v7427
        %v7429 = vand.u32 %v7154, 4294901760
        %7430 = vmatmul.f32.gmra.mxu0 %v7429
        %v7431 = vpop.f32.mrf.mxu0
        %v7432 = vadd.f32 %v7395, %v7431
        %7433 = vdwg.mxu0
        %7434 = vmatpush.msra.mxu0 0.0
        %7435 = vmatpush.msra.mxu0 0.0
        %7436 = vmatpush.msra.mxu0 0.0
        %7437 = vmatpush.msra.mxu0 0.0
        %7438 = vmatpush.msra.mxu0 0.0
        %7439 = vmatpush.msra.mxu0 0.0
        %7440 = vmatpush.msra.mxu0 0.0
        %7441 = vmatpush.msra.mxu0 0.0
        %7442 = vmatpush.msra.mxu0 0.0
        %7443 = vmatpush.msra.mxu0 0.0
        %7444 = vmatpush.msra.mxu0 0.0
        %7445 = vmatpush.msra.mxu0 0.0
        %v7446 = vand.u32 %v7115, 4294901760
        %7447 = vmatpush.msra.mxu0 %v7446
        %v7448 = vand.u32 %v7114, 4294901760
        %7449 = vmatpush.msra.mxu0 %v7448
        %v7450 = vand.u32 %v7113, 4294901760
        %7451 = vmatpush.msra.mxu0 %v7450
        %v7452 = vand.u32 %v7112, 4294901760
        %7453 = vmatpush.msra.mxu0 %v7452
        %v7454 = vand.u32 %v7145, 4294901760
        %v7455 = vsub.f32 %v7145, %v7454
        %v7456 = vand.u32 %v7455, 4294901760
        %v7457 = vsub.f32 %v7455, %v7456
        %v7458 = vand.u32 %v7457, 4294901760
        %7459 = vmatmul.f32.gmra.mxu0 %v7458
        %v7460 = vpop.f32.mrf.mxu0
        %v7461 = vadd.f32 %v7127, %v7460
        %v7462 = vand.u32 %v7148, 4294901760
        %v7463 = vsub.f32 %v7148, %v7462
        %v7464 = vand.u32 %v7463, 4294901760
        %v7465 = vsub.f32 %v7463, %v7464
        %v7466 = vand.u32 %v7465, 4294901760
        %7467 = vmatmul.f32.gmra.mxu0 %v7466
        %v7468 = vpop.f32.mrf.mxu0
        %v7469 = vadd.f32 %v7132, %v7468
        %v7470 = vand.u32 %v7151, 4294901760
        %v7471 = vsub.f32 %v7151, %v7470
        %v7472 = vand.u32 %v7471, 4294901760
        %v7473 = vsub.f32 %v7471, %v7472
        %v7474 = vand.u32 %v7473, 4294901760
        %7475 = vmatmul.f32.gmra.mxu0 %v7474
        %v7476 = vpop.f32.mrf.mxu0
        %v7477 = vadd.f32 %v7137, %v7476
        %v7478 = vand.u32 %v7154, 4294901760
        %v7479 = vsub.f32 %v7154, %v7478
        %v7480 = vand.u32 %v7479, 4294901760
        %v7481 = vsub.f32 %v7479, %v7480
        %v7482 = vand.u32 %v7481, 4294901760
        %7483 = vmatmul.f32.gmra.mxu0 %v7482
        %v7484 = vpop.f32.mrf.mxu0
        %v7485 = vadd.f32 %v7142, %v7484
        %7486 = vdwg.mxu0
        %7487 = vmatpush.msra.mxu0 0.0
        %7488 = vmatpush.msra.mxu0 0.0
        %7489 = vmatpush.msra.mxu0 0.0
        %7490 = vmatpush.msra.mxu0 0.0
        %7491 = vmatpush.msra.mxu0 0.0
        %7492 = vmatpush.msra.mxu0 0.0
        %7493 = vmatpush.msra.mxu0 0.0
        %7494 = vmatpush.msra.mxu0 0.0
        %7495 = vmatpush.msra.mxu0 0.0
        %7496 = vmatpush.msra.mxu0 0.0
        %7497 = vmatpush.msra.mxu0 0.0
        %7498 = vmatpush.msra.mxu0 0.0
        %v7499 = vand.u32 %v7115, 4294901760
        %v7500 = vsub.f32 %v7115, %v7499
        %v7501 = vand.u32 %v7500, 4294901760
        %v7502 = vsub.f32 %v7500, %v7501
        %v7503 = vand.u32 %v7502, 4294901760
        %7504 = vmatpush.msra.mxu0 %v7503
        %v7505 = vand.u32 %v7114, 4294901760
        %v7506 = vsub.f32 %v7114, %v7505
        %v7507 = vand.u32 %v7506, 4294901760
        %v7508 = vsub.f32 %v7506, %v7507
        %v7509 = vand.u32 %v7508, 4294901760
        %7510 = vmatpush.msra.mxu0 %v7509
        %v7511 = vand.u32 %v7113, 4294901760
        %v7512 = vsub.f32 %v7113, %v7511
        %v7513 = vand.u32 %v7512, 4294901760
        %v7514 = vsub.f32 %v7512, %v7513
        %v7515 = vand.u32 %v7514, 4294901760
        %7516 = vmatpush.msra.mxu0 %v7515
        %v7517 = vand.u32 %v7112, 4294901760
        %v7518 = vsub.f32 %v7112, %v7517
        %v7519 = vand.u32 %v7518, 4294901760
        %v7520 = vsub.f32 %v7518, %v7519
        %v7521 = vand.u32 %v7520, 4294901760
        %7522 = vmatpush.msra.mxu0 %v7521
        %v7523 = vand.u32 %v7145, 4294901760
        %7524 = vmatmul.f32.gmra.mxu0 %v7523
        %v7525 = vpop.f32.mrf.mxu0
        %v7526 = vadd.f32 %v7461, %v7525
        %v7527 = vand.u32 %v7148, 4294901760
        %7528 = vmatmul.f32.gmra.mxu0 %v7527
        %v7529 = vpop.f32.mrf.mxu0
        %v7530 = vadd.f32 %v7469, %v7529
        %v7531 = vand.u32 %v7151, 4294901760
        %7532 = vmatmul.f32.gmra.mxu0 %v7531
        %v7533 = vpop.f32.mrf.mxu0
        %v7534 = vadd.f32 %v7477, %v7533
        %v7535 = vand.u32 %v7154, 4294901760
        %7536 = vmatmul.f32.gmra.mxu0 %v7535
        %v7537 = vpop.f32.mrf.mxu0
        %v7538 = vadd.f32 %v7485, %v7537
        %7539 = vdwg.mxu0
        %7540 = vmatpush.msra.mxu0 0.0
        %7541 = vmatpush.msra.mxu0 0.0
        %7542 = vmatpush.msra.mxu0 0.0
        %7543 = vmatpush.msra.mxu0 0.0
        %7544 = vmatpush.msra.mxu0 0.0
        %7545 = vmatpush.msra.mxu0 0.0
        %7546 = vmatpush.msra.mxu0 0.0
        %7547 = vmatpush.msra.mxu0 0.0
        %7548 = vmatpush.msra.mxu0 0.0
        %7549 = vmatpush.msra.mxu0 0.0
        %7550 = vmatpush.msra.mxu0 0.0
        %7551 = vmatpush.msra.mxu0 0.0
        %v7552 = vand.u32 %v7115, 4294901760
        %v7553 = vsub.f32 %v7115, %v7552
        %7554 = vmatpush.msra.mxu0 %v7553
        %v7555 = vand.u32 %v7114, 4294901760
        %v7556 = vsub.f32 %v7114, %v7555
        %7557 = vmatpush.msra.mxu0 %v7556
        %v7558 = vand.u32 %v7113, 4294901760
        %v7559 = vsub.f32 %v7113, %v7558
        %7560 = vmatpush.msra.mxu0 %v7559
        %v7561 = vand.u32 %v7112, 4294901760
        %v7562 = vsub.f32 %v7112, %v7561
        %7563 = vmatpush.msra.mxu0 %v7562
        %v7564 = vand.u32 %v7145, 4294901760
        %v7565 = vsub.f32 %v7145, %v7564
        %7566 = vmatmul.f32.gmra.mxu0 %v7565
        %v7567 = vpop.f32.mrf.mxu0
        %v7568 = vadd.f32 %v7526, %v7567
        %v7569 = vand.u32 %v7148, 4294901760
        %v7570 = vsub.f32 %v7148, %v7569
        %7571 = vmatmul.f32.gmra.mxu0 %v7570
        %v7572 = vpop.f32.mrf.mxu0
        %v7573 = vadd.f32 %v7530, %v7572
        %v7574 = vand.u32 %v7151, 4294901760
        %v7575 = vsub.f32 %v7151, %v7574
        %7576 = vmatmul.f32.gmra.mxu0 %v7575
        %v7577 = vpop.f32.mrf.mxu0
        %v7578 = vadd.f32 %v7534, %v7577
        %v7579 = vand.u32 %v7154, 4294901760
        %v7580 = vsub.f32 %v7154, %v7579
        %7581 = vmatmul.f32.gmra.mxu0 %v7580
        %v7582 = vpop.f32.mrf.mxu0
        %v7583 = vadd.f32 %v7538, %v7582
        %7584 = vdwg.mxu0
        %7585 = vmatpush.msra.mxu0 0.0
        %7586 = vmatpush.msra.mxu0 0.0
        %7587 = vmatpush.msra.mxu0 0.0
        %7588 = vmatpush.msra.mxu0 0.0
        %7589 = vmatpush.msra.mxu0 0.0
        %7590 = vmatpush.msra.mxu0 0.0
        %7591 = vmatpush.msra.mxu0 0.0
        %7592 = vmatpush.msra.mxu0 0.0
        %7593 = vmatpush.msra.mxu0 0.0
        %7594 = vmatpush.msra.mxu0 0.0
        %7595 = vmatpush.msra.mxu0 0.0
        %7596 = vmatpush.msra.mxu0 0.0
        %v7597 = vand.u32 %v7115, 4294901760
        %7598 = vmatpush.msra.mxu0 %v7597
        %v7599 = vand.u32 %v7114, 4294901760
        %7600 = vmatpush.msra.mxu0 %v7599
        %v7601 = vand.u32 %v7113, 4294901760
        %7602 = vmatpush.msra.mxu0 %v7601
        %v7603 = vand.u32 %v7112, 4294901760
        %7604 = vmatpush.msra.mxu0 %v7603
        %v7605 = vand.u32 %v7145, 4294901760
        %v7606 = vsub.f32 %v7145, %v7605
        %v7607 = vand.u32 %v7606, 4294901760
        %7608 = vmatmul.f32.gmra.mxu0 %v7607
        %v7609 = vpop.f32.mrf.mxu0
        %v7610 = vadd.f32 %v7568, %v7609
        %v7611 = vand.u32 %v7148, 4294901760
        %v7612 = vsub.f32 %v7148, %v7611
        %v7613 = vand.u32 %v7612, 4294901760
        %7614 = vmatmul.f32.gmra.mxu0 %v7613
        %v7615 = vpop.f32.mrf.mxu0
        %v7616 = vadd.f32 %v7573, %v7615
        %v7617 = vand.u32 %v7151, 4294901760
        %v7618 = vsub.f32 %v7151, %v7617
        %v7619 = vand.u32 %v7618, 4294901760
        %7620 = vmatmul.f32.gmra.mxu0 %v7619
        %v7621 = vpop.f32.mrf.mxu0
        %v7622 = vadd.f32 %v7578, %v7621
        %v7623 = vand.u32 %v7154, 4294901760
        %v7624 = vsub.f32 %v7154, %v7623
        %v7625 = vand.u32 %v7624, 4294901760
        %7626 = vmatmul.f32.gmra.mxu0 %v7625
        %v7627 = vpop.f32.mrf.mxu0
        %v7628 = vadd.f32 %v7583, %v7627
        %7629 = vdwg.mxu0
        %7630 = vmatpush.msra.mxu0 0.0
        %7631 = vmatpush.msra.mxu0 0.0
        %7632 = vmatpush.msra.mxu0 0.0
        %7633 = vmatpush.msra.mxu0 0.0
        %7634 = vmatpush.msra.mxu0 0.0
        %7635 = vmatpush.msra.mxu0 0.0
        %7636 = vmatpush.msra.mxu0 0.0
        %7637 = vmatpush.msra.mxu0 0.0
        %7638 = vmatpush.msra.mxu0 0.0
        %7639 = vmatpush.msra.mxu0 0.0
        %7640 = vmatpush.msra.mxu0 0.0
        %7641 = vmatpush.msra.mxu0 0.0
        %v7642 = vand.u32 %v7115, 4294901760
        %v7643 = vsub.f32 %v7115, %v7642
        %v7644 = vand.u32 %v7643, 4294901760
        %7645 = vmatpush.msra.mxu0 %v7644
        %v7646 = vand.u32 %v7114, 4294901760
        %v7647 = vsub.f32 %v7114, %v7646
        %v7648 = vand.u32 %v7647, 4294901760
        %7649 = vmatpush.msra.mxu0 %v7648
        %v7650 = vand.u32 %v7113, 4294901760
        %v7651 = vsub.f32 %v7113, %v7650
        %v7652 = vand.u32 %v7651, 4294901760
        %7653 = vmatpush.msra.mxu0 %v7652
        %v7654 = vand.u32 %v7112, 4294901760
        %v7655 = vsub.f32 %v7112, %v7654
        %v7656 = vand.u32 %v7655, 4294901760
        %7657 = vmatpush.msra.mxu0 %v7656
        %v7658 = vand.u32 %v7145, 4294901760
        %7659 = vmatmul.f32.gmra.mxu0 %v7658
        %v7660 = vpop.f32.mrf.mxu0
        %v7661 = vadd.f32 %v7610, %v7660
        %v7662 = vand.u32 %v7148, 4294901760
        %7663 = vmatmul.f32.gmra.mxu0 %v7662
        %v7664 = vpop.f32.mrf.mxu0
        %v7665 = vadd.f32 %v7616, %v7664
        %v7666 = vand.u32 %v7151, 4294901760
        %7667 = vmatmul.f32.gmra.mxu0 %v7666
        %v7668 = vpop.f32.mrf.mxu0
        %v7669 = vadd.f32 %v7622, %v7668
        %v7670 = vand.u32 %v7154, 4294901760
        %7671 = vmatmul.f32.gmra.mxu0 %v7670
        %v7672 = vpop.f32.mrf.mxu0
        %v7673 = vadd.f32 %v7628, %v7672
        %7674 = vdwg.mxu0
        %7675 = vmatpush.msra.mxu0 0.0
        %7676 = vmatpush.msra.mxu0 0.0
        %7677 = vmatpush.msra.mxu0 0.0
        %7678 = vmatpush.msra.mxu0 0.0
        %7679 = vmatpush.msra.mxu0 0.0
        %7680 = vmatpush.msra.mxu0 0.0
        %7681 = vmatpush.msra.mxu0 0.0
        %7682 = vmatpush.msra.mxu0 0.0
        %7683 = vmatpush.msra.mxu0 0.0
        %7684 = vmatpush.msra.mxu0 0.0
        %7685 = vmatpush.msra.mxu0 0.0
        %7686 = vmatpush.msra.mxu0 0.0
        %v7687 = vand.u32 %v7115, 4294901760
        %7688 = vmatpush.msra.mxu0 %v7687
        %v7689 = vand.u32 %v7114, 4294901760
        %7690 = vmatpush.msra.mxu0 %v7689
        %v7691 = vand.u32 %v7113, 4294901760
        %7692 = vmatpush.msra.mxu0 %v7691
        %v7693 = vand.u32 %v7112, 4294901760
        %7694 = vmatpush.msra.mxu0 %v7693
        %v7695 = vand.u32 %v7145, 4294901760
        %7696 = vmatmul.f32.gmra.mxu0 %v7695
        %v7697 = vpop.f32.mrf.mxu0
        %v7698 = vadd.f32 %v7661, %v7697
        %v7699 = vand.u32 %v7148, 4294901760
        %7700 = vmatmul.f32.gmra.mxu0 %v7699
        %v7701 = vpop.f32.mrf.mxu0
        %v7702 = vadd.f32 %v7665, %v7701
        %v7703 = vand.u32 %v7151, 4294901760
        %7704 = vmatmul.f32.gmra.mxu0 %v7703
        %v7705 = vpop.f32.mrf.mxu0
        %v7706 = vadd.f32 %v7669, %v7705
        %v7707 = vand.u32 %v7154, 4294901760
        %7708 = vmatmul.f32.gmra.mxu0 %v7707
        %v7709 = vpop.f32.mrf.mxu0
        %v7710 = vadd.f32 %v7673, %v7709
        %7711 = vdwg.mxu0
        %7712 = vst [vmem:[%s387] sm:$0xff] %v7420
        %7713 = vst [vmem:[%s387 + $0x8] sm:$0xff] %v7698
        %7714 = vst [vmem:[%s387 + $0x10] sm:$0xff] %v7424
        %7715 = vst [vmem:[%s387 + $0x18] sm:$0xff] %v7702
        %7716 = vst [vmem:[%s387 + $0x20] sm:$0xff] %v7428
        %7717 = vst [vmem:[%s387 + $0x28] sm:$0xff] %v7706
        %7718 = vst [vmem:[%s387 + $0x30] sm:$0xff] %v7432
        %7719 = vst [vmem:[%s387 + $0x38] sm:$0xff] %v7710
        %s7720 = sand.u32 %s244, 1
        %s7721 = sand.u32 %s244, 1
        %s7722 = smul.addr %s7721, 64
        %s7723 = scalar_lea.vmem [#allocation3], %s7722
        // Predicated region
        $region84: #{attention_forward.1} parent=78 // pred_check
          %p7724 = pneg %p254
        $region85: #{attention_forward.1} parent=78 // pred_check_branch
          %7726 = sbr.rel (%p7724) target = $region87
        $region86: #{attention_forward.1} parent=78 // pred_region
          %s7727 = smul.u32 2, %s21
          %s7728 = smul.addr %s7727, 8
          %s7729 = scalar_lea.vmem %s10, %s7728
          // Predicated region
          $region88: #{attention_forward.1} parent=86 // pred_check
            _
          $region89: #{attention_forward.1} parent=86 // pred_check_branch
            %7731 = sbr.rel (0) target = $region91
          $region90: #{attention_forward.1} parent=86 // pred_region
            // Predicated region
            $region92: #{attention_forward.1} parent=90 // pred_check
              _
            $region93: #{attention_forward.1} parent=90 // pred_check_branch
              %7733 = sbr.rel (0) target = $region95
            $region94: #{attention_forward.1} parent=90 // pred_region
              loop: start=0, step=1, limit=1
              $region96: #{attention_forward.1} parent=94 // loop_pre_header
                _
              $region97: #{attention_forward.1} parent=94 // loop_header
                %s7735 = sphi 0, %s7739
                %p7736 = scmp.ge.s32.totalorder %s7735, 1
                %s7740 = sphi %s7723, %s7723
                %s7741 = sphi %s7729, %s7729
              $region98: #{attention_forward.1} parent=94 // loop_header_branch
                %7738 = sbr.rel (%p7736) target = $region102
              $region99: #{attention_forward.1} parent=94 // loop_body
                %v7742 = vld [vmem:[%s7740] sm:$0xff]
                %7743 = vst [vmem:[%s7741] sm:$0xff] %v7742
                %v7744 = vld [vmem:[%s7740 + $0x8] sm:$0xff]
                %7745 = vst [vmem:[%s7741 + $0x8] sm:$0xff] %v7744
                %v7746 = vld [vmem:[%s7740 + $0x10] sm:$0xff]
                %7747 = vst [vmem:[%s7741 + $0x20] sm:$0xff] %v7746
                %v7748 = vld [vmem:[%s7740 + $0x18] sm:$0xff]
                %7749 = vst [vmem:[%s7741 + $0x28] sm:$0xff] %v7748
                %v7750 = vld [vmem:[%s7740 + $0x20] sm:$0xff]
                %7751 = vst [vmem:[%s7741 + $0x40] sm:$0xff] %v7750
                %v7752 = vld [vmem:[%s7740 + $0x28] sm:$0xff]
                %7753 = vst [vmem:[%s7741 + $0x48] sm:$0xff] %v7752
                %v7754 = vld [vmem:[%s7740 + $0x30] sm:$0xff]
                %7755 = vst [vmem:[%s7741 + $0x60] sm:$0xff] %v7754
                %v7756 = vld [vmem:[%s7740 + $0x38] sm:$0xff]
                %7757 = vst [vmem:[%s7741 + $0x68] sm:$0xff] %v7756
              $region100: #{attention_forward.1} parent=94 // loop_footer
                %s7739 = sadd.s32 1, %s7735
              $region101: #{attention_forward.1} parent=94 // loop_footer_branch
                %7734 = sbr.rel target = $region97
              $region102: #{attention_forward.1} parent=94 // loop_exit
                _
            $region95: #{attention_forward.1} parent=90 // pred_fallthru
              _
            // Predicated region
            $region103: #{attention_forward.1} parent=90 // pred_check
              _
            $region104: #{attention_forward.1} parent=90 // pred_check_branch
              %7759 = sbr.rel target = $region106
            $region105: #{attention_forward.1} parent=90 // pred_region
              _
            $region106: #{attention_forward.1} parent=90 // pred_fallthru
              _
          $region91: #{attention_forward.1} parent=86 // pred_fallthru
            _
          %7760 = vnop
        $region87: #{attention_forward.1} parent=78 // pred_fallthru
          _
      $region79: #{attention_forward.1} parent=5 // pred_fallthru
        _
      %p7761 = scmp.le.s32.totalorder 2, %s16
      // Predicated region
      $region107: #{attention_forward.1} parent=5 // pred_check
        %p7762 = pneg %p7761
      $region108: #{attention_forward.1} parent=5 // pred_check_branch
        %7764 = sbr.rel (%p7762) target = $region110
      $region109: #{attention_forward.1} parent=5 // pred_region
        %s7765 = ssub.s32 %s16, 2
        // Predicated region
        $region111: #{attention_forward.1} parent=109 // pred_check
          %p7766 = pneg %p260
        $region112: #{attention_forward.1} parent=109 // pred_check_branch
          %7768 = sbr.rel (%p7766) target = $region114
        $region113: #{attention_forward.1} parent=109 // pred_region
          %s7769 = sand.u32 %s245, 1
          %s7770 = sand.u32 %s245, 1
          %s7771 = smul.addr %s7770, 64
          %s7772 = scalar_lea.vmem [#allocation3], %s7771
        $region114: #{attention_forward.1} parent=109 // pred_fallthru
          _
      $region110: #{attention_forward.1} parent=5 // pred_fallthru
        _
    $region6: #{attention_forward.1} parent=1 // loop_footer
      %s20 = sadd.s32 1, %s16
    $region7: #{attention_forward.1} parent=1 // loop_footer_branch
      %15 = sbr.rel target = $region3
    $region8: #{attention_forward.1} parent=1 // loop_exit
      _

</llo_original>
